<compile_context>
chip_gen: v7x
topology: tpu7x:2x2x1
jax: 0.10.0
libtpu: 0.0.40
codegen_flags: <defaults>
</compile_context>

<pallas_src>
import functools

import jax
import jax.numpy as jnp
from jax import lax
from jax.experimental import pallas as pl
from jax.experimental.pallas import tpu as pltpu

NODE_HIDDEN = 64   # AttnMPNN node_hidden_dim
EDGE_HIDDEN = 64   # AttnMPNN edge_hidden_dim


# ----------------------------------------------------------------------------
# Fused MLP: all layers of one MLP inside a single pallas_call.
# ----------------------------------------------------------------------------
def _mlp_kernel(*refs, in_dims, acts):
    nin = len(in_dims)
    nl = len(acts)
    xs = [refs[i][...] for i in range(nin)]
    wb = refs[nin:nin + 2 * nl]
    o_ref = refs[nin + 2 * nl]

    # First layer via the algebraic weight split:
    #   concat(x1, x2) @ W == x1 @ W[:d1] + x2 @ W[d1:]
    # -> no lane-axis concat / relayout copy inside the kernel.
    w0 = wb[0][...]
    b0 = wb[1][...]
    acc = None
    off = 0
    for xi, d in zip(xs, in_dims):
        part = jnp.dot(xi.astype(jnp.bfloat16),
                       w0[off:off + d].astype(jnp.bfloat16),
                       preferred_element_type=jnp.float32)
        acc = part if acc is None else acc + part
        off += d
    x = acc + b0
    if acts[0] == "relu":
        x = jnp.maximum(x, 0.0)

    for li in range(1, nl):
        w = wb[2 * li][...]
        b = wb[2 * li + 1][...]
        x = jnp.dot(x.astype(jnp.bfloat16), w.astype(jnp.bfloat16),
                    preferred_element_type=jnp.float32) + b
        if acts[li] == "relu":
            x = jnp.maximum(x, 0.0)
    o_ref[...] = x


def pallas_mlp(inputs, layers, acts, tile_m=512):
    """Apply a whole MLP (list of {'w','b'} + static acts tuple) to its inputs.

    Single pallas_call: intermediate activations stay in VMEM, rows are tiled
    over a parallel grid axis, weight blocks are revisited (DMA'd once).
    """
    inputs = [jnp.asarray(x, jnp.float32) for x in inputs]
    m = inputs[0].shape[0]
    in_dims = tuple(int(x.shape[1]) for x in inputs)
    n_out = int(layers[-1]["w"].shape[1])
    acts = tuple(acts)
    assert len(acts) == len(layers)

    tm = m if m <= tile_m else tile_m        # tile_m is a multiple of 8
    grid_m = pl.cdiv(m, tm)                  # ragged tail handled by the grid (no pad pass)

    args = list(inputs)
    in_specs = [pl.BlockSpec((tm, d), lambda i: (i, 0)) for d in in_dims]
    flops = 0
    bytes_accessed = 4 * (sum(int(x.size) for x in inputs) + m * n_out)
    for l in layers:
        w = l["w"]
        b = l["b"].reshape(1, -1)
        args += [w, b]
        in_specs += [pl.BlockSpec(w.shape, lambda i: (0, 0)),
                     pl.BlockSpec(b.shape, lambda i: (0, 0))]
        flops += 2 * m * int(w.shape[0]) * int(w.shape[1])
        bytes_accessed += 4 * (int(w.size) + int(b.size))

    return pl.pallas_call(
        functools.partial(_mlp_kernel, in_dims=in_dims, acts=acts),
        out_shape=jax.ShapeDtypeStruct((m, n_out), jnp.float32),
        grid=(grid_m,),
        in_specs=in_specs,
        out_specs=pl.BlockSpec((tm, n_out), lambda i: (i, 0)),
        cost_estimate=pl.CostEstimate(flops=int(flops), transcendentals=0,
                                      bytes_accessed=int(bytes_accessed)),
        compiler_params=pltpu.CompilerParams(dimension_semantics=("parallel",)),
    )(*args)


# ----------------------------------------------------------------------------
# Fused GN-block kernel: edge MLP + attention logits + masked softmax + agg.
# Tiled over groups of TD destination nodes (parallel grid -> megacore friendly).
# ----------------------------------------------------------------------------
def _gn_edge_attn_kernel(*refs, n_rest, acts, write_eout):
    hd_ref, hs_ref, e_ref, mask_ref, w1e_ref, b1_ref = refs[:6]
    rest = refs[6:6 + 2 * n_rest]
    attn_w_ref = refs[6 + 2 * n_rest]           # (1, E_out)
    out_refs = refs[7 + 2 * n_rest:]
    agg_ref = out_refs[-1]                      # (TD, E_out)

    td, ns, e_in = e_ref.shape
    h1 = w1e_ref.shape[1]

    # Edge MLP first layer, rebuilt from the algebraic weight split:
    #   relu(concat(h_dst, h_src, e) @ W1 + b1)
    #     == relu(h_dst @ W1_dst + h_src @ W1_src + e @ W1_e + b1)
    y = jnp.dot(e_ref[...].reshape(td * ns, e_in).astype(jnp.bfloat16),
                w1e_ref[...].astype(jnp.bfloat16),
                preferred_element_type=jnp.float32).reshape(td, ns, h1)
    y = y + hs_ref[...][None, :, :] + hd_ref[...][:, None, :] + b1_ref[...]
    if acts[0] == "relu":
        y = jnp.maximum(y, 0.0)
    for li in range(n_rest):
        w = rest[2 * li][...]
        b = rest[2 * li + 1][...]
        wout = w.shape[1]
        y = (jnp.dot(y.reshape(td * ns, y.shape[-1]).astype(jnp.bfloat16),
                     w.astype(jnp.bfloat16),
                     preferred_element_type=jnp.float32) + b).reshape(td, ns, wout)
        if acts[li + 1] == "relu":
            y = jnp.maximum(y, 0.0)
    if write_eout:
        out_refs[0][...] = y                    # updated edges (skipped on last block)

    # Fused attention: logits never leave VMEM; masked softmax + weighted
    # aggregation run along the src axis (axis=1), output stays lane-dense.
    # (The attention bias is a constant shift under softmax -> mathematically a
    #  no-op; it is not applied here.)
    mask = mask_ref[...]                                          # (TD, N_src)
    s = jnp.sum(y * attn_w_ref[...], axis=-1)                     # (TD, N_src), f32
    masked = jnp.where(mask > 0.0, s, jnp.float32(-1e30))
    mx = jnp.max(masked, axis=1, keepdims=True)
    ew = jnp.exp(masked - mx) * mask                              # zero where no edge
    denom = jnp.sum(ew, axis=1, keepdims=True)
    alpha = ew / jnp.maximum(denom, jnp.float32(1e-20))           # isolated node -> agg = 0
    agg_ref[...] = jnp.sum(y * alpha[:, :, None], axis=1)


def pallas_gn_edge_attn(hd_proj, hs_proj, e, adj, w1_e, b1, rest_layers,
                        acts, attn_w, *, write_eout=True, tile_d=8):
    n, ns, e_in = e.shape
    h1 = int(w1_e.shape[1])
    e_out = int(rest_layers[-1]["w"].shape[1]) if rest_layers else h1
    n_rest = len(rest_layers)
    td = tile_d if n >= tile_d else n          # TD destination nodes per grid step

    args = [hd_proj, hs_proj, e, adj, w1_e, b1.reshape(1, -1)]
    in_specs = [
        pl.BlockSpec((td, h1), lambda i: (i, 0)),
        pl.BlockSpec((ns, h1), lambda i: (0, 0)),
        pl.BlockSpec((td, ns, e_in), lambda i: (i, 0, 0)),
        pl.BlockSpec((td, ns), lambda i: (i, 0)),        # lane-dense 2-D mask block
        pl.BlockSpec((e_in, h1), lambda i: (0, 0)),
        pl.BlockSpec((1, h1), lambda i: (0, 0)),
    ]
    flops = 2 * n * ns * e_in * h1
    prev = h1
    for l in rest_layers:
        b = l["b"].reshape(1, -1)
        args += [l["w"], b]
        in_specs += [pl.BlockSpec(l["w"].shape, lambda i: (0, 0)),
                     pl.BlockSpec(b.shape, lambda i: (0, 0))]
        flops += 2 * n * ns * prev * int(l["w"].shape[1])
        prev = int(l["w"].shape[1])
    args += [attn_w.reshape(1, -1)]
    in_specs += [pl.BlockSpec((1, e_out), lambda i: (0, 0))]

    out_shapes, out_specs = [], []
    if write_eout:
        out_shapes.append(jax.ShapeDtypeStruct((n, ns, e_out), jnp.float32))
        out_specs.append(pl.BlockSpec((td, ns, e_out), lambda i: (i, 0, 0)))
    out_shapes.append(jax.ShapeDtypeStruct((n, e_out), jnp.float32))
    out_specs.append(pl.BlockSpec((td, e_out), lambda i: (i, 0)))

    bytes_accessed = 4 * (n * ns * (e_in + (e_out if write_eout else 0) + 1)
                          + 2 * n * h1 + n * e_out)
    outs = pl.pallas_call(
        functools.partial(_gn_edge_attn_kernel, n_rest=n_rest, acts=tuple(acts),
                          write_eout=write_eout),
        out_shape=tuple(out_shapes),
        grid=(pl.cdiv(n, td),),
        in_specs=in_specs,
        out_specs=tuple(out_specs),
        cost_estimate=pl.CostEstimate(flops=int(flops), transcendentals=int(n * ns),
                                      bytes_accessed=int(bytes_accessed)),
        compiler_params=pltpu.CompilerParams(dimension_semantics=("parallel",)),
    )(*args)
    if write_eout:
        return outs[0], outs[1]
    return outs[0]


# ----------------------------------------------------------------------------
# Monotone implicit fixed-point layer (Peaceman-Rachford, Neumann resolvent)
# solved in [N, hidden] layout: Z = relu(Ahat Z P^T + B)  (transpose of the
# PyTorch z = relu(P z Ahat + b) equation; Ahat symmetric for undirected g).
# ----------------------------------------------------------------------------
def _pr_fixed_point_kernel(pc_ref, a_ref, b_ref, z_ref, *, alpha, max_iter,
                           neumann_terms):
    a_bf = a_ref[...]                  # bf16 [N, N]   (Ahat)
    pc_bf = pc_ref[...]                # bf16 [d, d]   (c * P^T, scaling pre-folded)
    bias = b_ref[...]                  # f32  [N, d]

    def linop_c(z):                    # c * W z  ==  Ahat @ z @ (c * P^T)
        zg = jnp.dot(a_bf, z.astype(jnp.bfloat16), preferred_element_type=jnp.float32)
        return jnp.dot(zg.astype(jnp.bfloat16), pc_bf, preferred_element_type=jnp.float32)

    def resolvent(r):                  # ((1+a) I - a W)^{-1} r, truncated Neumann
        acc = r
        term = r
        for _ in range(neumann_terms):     # static unroll -> visible to scheduler
            term = linop_c(term)
            acc = acc + term               # f32 accumulator
        return acc * (1.0 / (1.0 + alpha))

    z0 = jnp.zeros_like(bias)

    def pr_body(_, carry):
        z, u = carry                       # f32 carries
        u_half = 2.0 * z - u
        z_half = resolvent(u_half + alpha * bias)
        u_new = 2.0 * z_half - u_half
        z_new = jnp.maximum(u_new, 0.0)    # ReLU nonlin_module == prox step
        return z_new, u_new

    # TODO(synk): tol-based early exit of PeacemanRachford replaced by fixed max_iter.
    z, _ = lax.fori_loop(0, max_iter, pr_body, (z0, z0))
    z_ref[...] = z


def pallas_fixed_point(p, a_hat, bias_nd, *, alpha=1.0, max_iter=30,
                       neumann_terms=10):
    n, d = bias_nd.shape
    c = alpha / (1.0 + alpha)
    pc_t = (c * p.T).astype(jnp.bfloat16)   # fold Neumann scaling into P^T on the host
    a_bf = a_hat.astype(jnp.bfloat16)       # Ahat symmetric -> no transpose pass needed
    flops = 2 * max_iter * neumann_terms * (n * n * d + n * d * d)
    # Resident VMEM is roughly halved by the bf16 operands; set an explicit scoped
    # limit so the kernel also fits v7x (64 MiB) / v5e (16 MiB scoped default).
    needed = 2 * (2 * n * n + 2 * d * d + 4 * n * d) + 4 * n * d + (4 << 20)
    vmem_limit = int(min(max(needed, 32 << 20), 64 << 20))
    # TODO(synk): for very large N, single-buffer a_hat (pl.ANY + manual copy /
    # pl.Buffered(1)) and split the N rows across both TensorCores on v7x.
    return pl.pallas_call(
        functools.partial(_pr_fixed_point_kernel, alpha=alpha, max_iter=max_iter,
                          neumann_terms=neumann_terms),
        out_shape=jax.ShapeDtypeStruct((n, d), jnp.float32),
        grid=(1,),
        in_specs=[
            pl.BlockSpec((d, d), lambda i: (0, 0)),
            pl.BlockSpec((n, n), lambda i: (0, 0)),
            pl.BlockSpec((n, d), lambda i: (0, 0)),
        ],
        out_specs=pl.BlockSpec((n, d), lambda i: (0, 0)),
        cost_estimate=pl.CostEstimate(flops=int(flops), transcendentals=0,
                                      bytes_accessed=int(2 * n * n + 2 * d * d + 8 * n * d)),
        compiler_params=pltpu.CompilerParams(dimension_semantics=("arbitrary",),
                                             vmem_limit_bytes=vmem_limit),
    )(pc_t, a_bf, bias_nd)


# ----------------------------------------------------------------------------
# Parameters (deterministic init) and model glue
# ----------------------------------------------------------------------------
def _spectral_norm(w, iters=50):
    v = jnp.ones((w.shape[1],), jnp.float32)
    for _ in range(iters):
        v = w.T @ (w @ v)
        v = v / (jnp.linalg.norm(v) + 1e-12)
    return jnp.linalg.norm(w @ v) + 1e-12


def init_mlp(key, dims):
    keys = jax.random.split(key, len(dims) - 1)
    layers = []
    for i, k in enumerate(keys):
        fan_in, fan_out = dims[i], dims[i + 1]
        w = jax.random.normal(k, (fan_in, fan_out), jnp.float32) * jnp.sqrt(2.0 / fan_in)
        b = jnp.zeros((fan_out,), jnp.float32)
        layers.append({"w": w, "b": b})
    return layers


def mlp_acts(n_layers, hidden_act, out_act):
    return tuple([hidden_act] * (n_layers - 1) + [out_act])


def init_params(key, node_dim, edge_dim, lifted_dim, hidden_dim, output_dim,
                activation, num_hidden_gn, mlp_num_neurons, reg_num_neurons):
    """Returns (params, acts).

    `params` is an arrays-only pytree (safe to pass through jax.jit); `acts` is
    the static activation structure, bound to the forward via functools.partial
    (this fixes the previous TypeError on string leaves in the jitted pytree).
    """
    nh, eh = NODE_HIDDEN, EDGE_HIDDEN
    ks = jax.random.split(key, 8 + num_hidden_gn)
    node_enc_dims = [node_dim] + mlp_num_neurons + [nh]
    edge_enc_dims = [edge_dim] + mlp_num_neurons + [eh]
    edge_mlp_dims = [2 * nh + eh] + mlp_num_neurons + [eh]
    node_mlp_dims = [nh + eh] + mlp_num_neurons + [nh]
    node_out_dims = [nh] + mlp_num_neurons + [lifted_dim]
    edge_out_dims = [eh] + mlp_num_neurons + [1]
    dec_dims = [hidden_dim] + reg_num_neurons + [output_dim]

    params = {
        "node_enc": init_mlp(ks[0], node_enc_dims),
        "edge_enc": init_mlp(ks[1], edge_enc_dims),
    }
    blocks = []
    for b in range(num_hidden_gn):
        kb = jax.random.split(ks[2 + b], 3)
        blocks.append({
            "edge_mlp": init_mlp(kb[0], edge_mlp_dims),
            "attn_w": jax.random.normal(kb[1], (eh, 1), jnp.float32) * jnp.sqrt(1.0 / eh),
            # attention bias is a constant shift under the masked softmax ->
            # provably a no-op in the forward; kept for parameter parity only.
            "attn_b": jnp.zeros((1,), jnp.float32),
            "node_mlp": init_mlp(kb[2], node_mlp_dims),
        })
    params["gn_blocks"] = blocks
    params["node_out"] = init_mlp(ks[2 + num_hidden_gn], node_out_dims)
    # edge_out exists in AttnMPNN but its output (euf) is discarded by
    # porousMIGNN.forward, so it is never evaluated in this forward pass.
    params["edge_out"] = init_mlp(ks[3 + num_hidden_gn], edge_out_dims)
    # CayleyLinear weight: scale to spectral norm 0.9 so the monotone fixed point
    # and the Neumann-series resolvent both converge.
    praw = jax.random.normal(ks[4 + num_hidden_gn], (hidden_dim, hidden_dim), jnp.float32)
    params["fp_P"] = jnp.asarray(0.9 / _spectral_norm(praw), jnp.float32) * praw
    params["decoder"] = init_mlp(ks[5 + num_hidden_gn], dec_dims)

    acts = {
        "node_enc": mlp_acts(len(node_enc_dims) - 1, activation, activation),
        "edge_enc": mlp_acts(len(edge_enc_dims) - 1, activation, activation),
        "edge_mlp": mlp_acts(len(edge_mlp_dims) - 1, activation, activation),
        "node_mlp": mlp_acts(len(node_mlp_dims) - 1, activation, activation),
        "node_out": mlp_acts(len(node_out_dims) - 1, activation, activation),
        "decoder": mlp_acts(len(dec_dims) - 1, activation, "none"),
    }
    return params, acts


def encoder_forward(params, acts, adj, nf, ef):
    """AttnMPNN: node/edge encoders + num_hidden_gn attention GN blocks."""
    n = nf.shape[0]
    nh = NODE_HIDDEN
    h = pallas_mlp([nf], params["node_enc"], acts["node_enc"])                  # [N, 64]
    e = pallas_mlp([ef.reshape(n * n, -1)], params["edge_enc"],
                   acts["edge_enc"]).reshape(n, n, -1)                          # [N, N, 64]
    n_blocks = len(params["gn_blocks"])
    for bi, blk in enumerate(params["gn_blocks"]):
        em = blk["edge_mlp"]
        w1, b1 = em[0]["w"], em[0]["b"]
        h1w = w1.shape[1]
        # Algebraic split of the first edge-MLP layer: project the node features
        # once ([N, 2*H1]) instead of materializing [N*N, 128] repeats + concat.
        w1_nodes = jnp.concatenate([w1[:nh], w1[nh:2 * nh]], axis=1)            # [nh, 2*H1]
        proj = pallas_mlp([h], [{"w": w1_nodes,
                                 "b": jnp.zeros((2 * h1w,), jnp.float32)}], ("none",))
        hd_proj, hs_proj = proj[:, :h1w], proj[:, h1w:]
        last = bi == n_blocks - 1
        res = pallas_gn_edge_attn(hd_proj, hs_proj, e, adj, w1[2 * nh:], b1,
                                  em[1:], acts["edge_mlp"], blk["attn_w"],
                                  write_eout=not last)
        if last:
            agg = res                  # dead e_out of the final block not written
        else:
            e, agg = res
        h = pallas_mlp([h, agg], blk["node_mlp"], acts["node_mlp"])             # [N, 64]
    unf = pallas_mlp([h], params["node_out"], acts["node_out"])                 # [N, lifted]
    # NOTE: euf (edge_out decoder) is discarded by porousMIGNN.forward -> not computed.
    return unf


def porous_mignn_forward(params, adj, nf, ef, *, acts, max_iter=30,
                         neumann_terms=10):
    unf = encoder_forward(params, acts, adj, nf, ef)
    # LaplaceNorm (symmetric D^-1/2 A D^-1/2) hoisted out of the fixed-point kernel.
    deg_col = jnp.sum(adj, axis=1, keepdims=True)
    deg_row = jnp.sum(adj, axis=0, keepdims=True)
    a_hat = (lax.rsqrt(jnp.maximum(deg_col, 1.0)) * adj *
             lax.rsqrt(jnp.maximum(deg_row, 1.0)))
    # Fixed-point layer solved directly in [N, hidden] layout (transpose of the
    # PyTorch [hidden, N] equation, mathematically identical).  a_hat is
    # symmetric for an undirected graph, so no transpose pass is needed.
    z = pallas_fixed_point(params["fp_P"], a_hat, unf, alpha=1.0,
                           max_iter=max_iter, neumann_terms=neumann_terms)      # [N, hidden]
    pred = pallas_mlp([z], params["decoder"], acts["decoder"])                  # [N, out]
    return pred


# ----------------------------------------------------------------------------
if __name__ == "__main__":
    key = jax.random.PRNGKey(0)
    n_nodes, node_dim, edge_dim = 16, 8, 4
    lifted_dim = hidden_dim = 32
    output_dim = 1
    num_hidden_gn = 2

    k_adj, k_nf, k_ef, k_par = jax.random.split(key, 4)
    adj = (jax.random.uniform(k_adj, (n_nodes, n_nodes)) < 0.3).astype(jnp.float32)
    adj = jnp.maximum(adj, adj.T) * (1.0 - jnp.eye(n_nodes, dtype=jnp.float32))
    nf = jax.random.normal(k_nf, (n_nodes, node_dim), jnp.float32)
    ef = jax.random.normal(k_ef, (n_nodes, n_nodes, edge_dim), jnp.float32)

    params, acts = init_params(k_par, node_dim, edge_dim, lifted_dim, hidden_dim,
                               output_dim, "relu", num_hidden_gn,
                               mlp_num_neurons=[128], reg_num_neurons=[64, 32])

    # Static config (activation strings / iteration counts) is bound via partial,
    # so the jitted arguments are a pure-array pytree.
    fwd = jax.jit(functools.partial(porous_mignn_forward, acts=acts,
                                    max_iter=30, neumann_terms=10))
    pred = jax.block_until_ready(fwd(params, adj, nf, ef))
    assert pred.shape == (n_nodes, output_dim)
    assert bool(jnp.all(jnp.isfinite(pred)))
    print("KERNEL_OK")
</pallas_src>

<mosaic_0001>
module attributes {stable_mosaic.version = 11 : i64} {
  func.func @_mlp_kernel(%arg0: i32, %arg1: memref<16x64xf32, #tpu.memory_space<vmem>>, %arg2: memref<64x256xf32, #tpu.memory_space<vmem>>, %arg3: memref<1x256xf32, #tpu.memory_space<vmem>>, %arg4: memref<16x256xf32, #tpu.memory_space<vmem>>) attributes {dimension_semantics = [#tpu.dimension_semantics<parallel>], iteration_bounds = array<i64: 1>, scalar_prefetch = 0 : i64, scratch_operands = 0 : i64, tpu.core_type = #tpu.core_type<tc>, window_params = [{transform_indices = @transform_0, window_bounds = array<i64: 16, 64>}, {pipeline_mode = #tpu.pipeline_mode<synchronous>, transform_indices = @transform_1, window_bounds = array<i64: 64, 256>}, {pipeline_mode = #tpu.pipeline_mode<synchronous>, transform_indices = @transform_2, window_bounds = array<i64: 1, 256>}, {transform_indices = @transform_3, window_bounds = array<i64: 16, 256>}]} {
    %c0 = arith.constant 0 : index
    %c0_0 = arith.constant 0 : index
    %0 = vector.load %arg1[%c0, %c0_0] : memref<16x64xf32, #tpu.memory_space<vmem>>, vector<16x64xf32>
    %c0_1 = arith.constant 0 : index
    %c0_2 = arith.constant 0 : index
    %1 = vector.load %arg2[%c0_1, %c0_2] : memref<64x256xf32, #tpu.memory_space<vmem>>, vector<64x256xf32>
    %c0_3 = arith.constant 0 : index
    %c0_4 = arith.constant 0 : index
    %2 = vector.load %arg3[%c0_3, %c0_4] : memref<1x256xf32, #tpu.memory_space<vmem>>, vector<1x256xf32>
    %3 = arith.truncf %0 : vector<16x64xf32> to vector<16x64xbf16>
    %4 = arith.truncf %1 : vector<64x256xf32> to vector<64x256xbf16>
    %cst = arith.constant dense<0.000000e+00> : vector<16x256xf32>
    %5 = tpu.matmul %3, %4, %cst {dimension_numbers = #tpu.dot_dimension_numbers<[1], [0], [0], [1], [0, 0, 1, 1], [], []>} : vector<16x64xbf16>, vector<64x256xbf16>, vector<16x256xf32> -> vector<16x256xf32>
    %6 = vector.broadcast %2 : vector<1x256xf32> to vector<16x256xf32>
    %7 = arith.addf %5, %6 : vector<16x256xf32>
    %c0_5 = arith.constant 0 : index
    %c0_6 = arith.constant 0 : index
    %8 = vector.load %arg4[%c0_5, %c0_6] : memref<16x256xf32, #tpu.memory_space<vmem>>, vector<16x256xf32>
    tpu.vector_store %arg4[%c0_5, %c0_6], %7 {strides = array<i32>} : memref<16x256xf32, #tpu.memory_space<vmem>>, vector<16x256xf32>,
    return
  }
  func.func @transform_0(%arg0: i32) -> (i32, i32) {
    %c0_i32 = arith.constant 0 : i32
    %c0_i32_0 = arith.constant 0 : i32
    return %arg0, %c0_i32 : i32, i32
  }
  func.func @transform_1(%arg0: i32) -> (i32, i32) {
    %c0_i32 = arith.constant 0 : i32
    %c0_i32_0 = arith.constant 0 : i32
    %c0_i32_1 = arith.constant 0 : i32
    return %c0_i32, %c0_i32_0 : i32, i32
  }
  func.func @transform_2(%arg0: i32) -> (i32, i32) {
    %c0_i32 = arith.constant 0 : i32
    %c0_i32_0 = arith.constant 0 : i32
    %c0_i32_1 = arith.constant 0 : i32
    return %c0_i32, %c0_i32_0 : i32, i32
  }
  func.func @transform_3(%arg0: i32) -> (i32, i32) {
    %c0_i32 = arith.constant 0 : i32
    %c0_i32_0 = arith.constant 0 : i32
    return %arg0, %c0_i32 : i32, i32
  }
}

module attributes {stable_mosaic.version = 11 : i64} {
  func.func @_mlp_kernel(%arg0: i32, %arg1: memref<256x4xf32, #tpu.memory_space<vmem>>, %arg2: memref<4x128xf32, #tpu.memory_space<vmem>>, %arg3: memref<1x128xf32, #tpu.memory_space<vmem>>, %arg4: memref<128x64xf32, #tpu.memory_space<vmem>>, %arg5: memref<1x64xf32, #tpu.memory_space<vmem>>, %arg6: memref<256x64xf32, #tpu.memory_space<vmem>>) attributes {dimension_semantics = [#tpu.dimension_semantics<parallel>], iteration_bounds = array<i64: 1>, scalar_prefetch = 0 : i64, scratch_operands = 0 : i64, tpu.core_type = #tpu.core_type<tc>, window_params = [{transform_indices = @transform_0, window_bounds = array<i64: 256, 4>}, {pipeline_mode = #tpu.pipeline_mode<synchronous>, transform_indices = @transform_1, window_bounds = array<i64: 4, 128>}, {pipeline_mode = #tpu.pipeline_mode<synchronous>, transform_indices = @transform_2, window_bounds = array<i64: 1, 128>}, {pipeline_mode = #tpu.pipeline_mode<synchronous>, transform_indices = @transform_3, window_bounds = array<i64: 128, 64>}, {pipeline_mode = #tpu.pipeline_mode<synchronous>, transform_indices = @transform_4, window_bounds = array<i64: 1, 64>}, {transform_indices = @transform_5, window_bounds = array<i64: 256, 64>}]} {
    %c0 = arith.constant 0 : index
    %c0_0 = arith.constant 0 : index
    %0 = vector.load %arg1[%c0, %c0_0] : memref<256x4xf32, #tpu.memory_space<vmem>>, vector<256x4xf32>
    %c0_1 = arith.constant 0 : index
    %c0_2 = arith.constant 0 : index
    %1 = vector.load %arg2[%c0_1, %c0_2] : memref<4x128xf32, #tpu.memory_space<vmem>>, vector<4x128xf32>
    %c0_3 = arith.constant 0 : index
    %c0_4 = arith.constant 0 : index
    %2 = vector.load %arg3[%c0_3, %c0_4] : memref<1x128xf32, #tpu.memory_space<vmem>>, vector<1x128xf32>
    %3 = arith.truncf %0 : vector<256x4xf32> to vector<256x4xbf16>
    %4 = arith.truncf %1 : vector<4x128xf32> to vector<4x128xbf16>
    %cst = arith.constant dense<0.000000e+00> : vector<256x128xf32>
    %5 = tpu.matmul %3, %4, %cst {dimension_numbers = #tpu.dot_dimension_numbers<[1], [0], [0], [1], [0, 0, 1, 1], [], []>} : vector<256x4xbf16>, vector<4x128xbf16>, vector<256x128xf32> -> vector<256x128xf32>
    %6 = vector.broadcast %2 : vector<1x128xf32> to vector<256x128xf32>
    %7 = arith.addf %5, %6 : vector<256x128xf32>
    %cst_5 = arith.constant 0.000000e+00 : f32
    %8 = vector.broadcast %cst_5 : f32 to vector<256x128xf32>
    %9 = arith.maximumf %7, %8 : vector<256x128xf32>
    %c0_6 = arith.constant 0 : index
    %c0_7 = arith.constant 0 : index
    %10 = vector.load %arg4[%c0_6, %c0_7] : memref<128x64xf32, #tpu.memory_space<vmem>>, vector<128x64xf32>
    %c0_8 = arith.constant 0 : index
    %c0_9 = arith.constant 0 : index
    %11 = vector.load %arg5[%c0_8, %c0_9] : memref<1x64xf32, #tpu.memory_space<vmem>>, vector<1x64xf32>
    %12 = arith.truncf %9 : vector<256x128xf32> to vector<256x128xbf16>
    %13 = arith.truncf %10 : vector<128x64xf32> to vector<128x64xbf16>
    %cst_10 = arith.constant dense<0.000000e+00> : vector<256x64xf32>
    %14 = tpu.matmul %12, %13, %cst_10 {dimension_numbers = #tpu.dot_dimension_numbers<[1], [0], [0], [1], [0, 0, 1, 1], [], []>} : vector<256x128xbf16>, vector<128x64xbf16>, vector<256x64xf32> -> vector<256x64xf32>
    %15 = vector.broadcast %11 : vector<1x64xf32> to vector<256x64xf32>
    %16 = arith.addf %14, %15 : vector<256x64xf32>
    %cst_11 = arith.constant 0.000000e+00 : f32
    %17 = vector.broadcast %cst_11 : f32 to vector<256x64xf32>
    %18 = arith.maximumf %16, %17 : vector<256x64xf32>
    %c0_12 = arith.constant 0 : index
    %c0_13 = arith.constant 0 : index
    %19 = vector.load %arg6[%c0_12, %c0_13] : memref<256x64xf32, #tpu.memory_space<vmem>>, vector<256x64xf32>
    tpu.vector_store %arg6[%c0_12, %c0_13], %18 {strides = array<i32>} : memref<256x64xf32, #tpu.memory_space<vmem>>, vector<256x64xf32>,
    return
  }
  func.func @transform_0(%arg0: i32) -> (i32, i32) {
    %c0_i32 = arith.constant 0 : i32
    %c0_i32_0 = arith.constant 0 : i32
    return %arg0, %c0_i32 : i32, i32
  }
  func.func @transform_1(%arg0: i32) -> (i32, i32) {
    %c0_i32 = arith.constant 0 : i32
    %c0_i32_0 = arith.constant 0 : i32
    %c0_i32_1 = arith.constant 0 : i32
    return %c0_i32, %c0_i32_0 : i32, i32
  }
  func.func @transform_2(%arg0: i32) -> (i32, i32) {
    %c0_i32 = arith.constant 0 : i32
    %c0_i32_0 = arith.constant 0 : i32
    %c0_i32_1 = arith.constant 0 : i32
    return %c0_i32, %c0_i32_0 : i32, i32
  }
  func.func @transform_3(%arg0: i32) -> (i32, i32) {
    %c0_i32 = arith.constant 0 : i32
    %c0_i32_0 = arith.constant 0 : i32
    %c0_i32_1 = arith.constant 0 : i32
    return %c0_i32, %c0_i32_0 : i32, i32
  }
  func.func @transform_4(%arg0: i32) -> (i32, i32) {
    %c0_i32 = arith.constant 0 : i32
    %c0_i32_0 = arith.constant 0 : i32
    %c0_i32_1 = arith.constant 0 : i32
    return %c0_i32, %c0_i32_0 : i32, i32
  }
  func.func @transform_5(%arg0: i32) -> (i32, i32) {
    %c0_i32 = arith.constant 0 : i32
    %c0_i32_0 = arith.constant 0 : i32
    return %arg0, %c0_i32 : i32, i32
  }
}

module attributes {stable_mosaic.version = 11 : i64} {
  func.func @_mlp_kernel(%arg0: i32, %arg1: memref<16x8xf32, #tpu.memory_space<vmem>>, %arg2: memref<8x128xf32, #tpu.memory_space<vmem>>, %arg3: memref<1x128xf32, #tpu.memory_space<vmem>>, %arg4: memref<128x64xf32, #tpu.memory_space<vmem>>, %arg5: memref<1x64xf32, #tpu.memory_space<vmem>>, %arg6: memref<16x64xf32, #tpu.memory_space<vmem>>) attributes {dimension_semantics = [#tpu.dimension_semantics<parallel>], iteration_bounds = array<i64: 1>, scalar_prefetch = 0 : i64, scratch_operands = 0 : i64, tpu.core_type = #tpu.core_type<tc>, window_params = [{transform_indices = @transform_0, window_bounds = array<i64: 16, 8>}, {pipeline_mode = #tpu.pipeline_mode<synchronous>, transform_indices = @transform_1, window_bounds = array<i64: 8, 128>}, {pipeline_mode = #tpu.pipeline_mode<synchronous>, transform_indices = @transform_2, window_bounds = array<i64: 1, 128>}, {pipeline_mode = #tpu.pipeline_mode<synchronous>, transform_indices = @transform_3, window_bounds = array<i64: 128, 64>}, {pipeline_mode = #tpu.pipeline_mode<synchronous>, transform_indices = @transform_4, window_bounds = array<i64: 1, 64>}, {transform_indices = @transform_5, window_bounds = array<i64: 16, 64>}]} {
    %c0 = arith.constant 0 : index
    %c0_0 = arith.constant 0 : index
    %0 = vector.load %arg1[%c0, %c0_0] : memref<16x8xf32, #tpu.memory_space<vmem>>, vector<16x8xf32>
    %c0_1 = arith.constant 0 : index
    %c0_2 = arith.constant 0 : index
    %1 = vector.load %arg2[%c0_1, %c0_2] : memref<8x128xf32, #tpu.memory_space<vmem>>, vector<8x128xf32>
    %c0_3 = arith.constant 0 : index
    %c0_4 = arith.constant 0 : index
    %2 = vector.load %arg3[%c0_3, %c0_4] : memref<1x128xf32, #tpu.memory_space<vmem>>, vector<1x128xf32>
    %3 = arith.truncf %0 : vector<16x8xf32> to vector<16x8xbf16>
    %4 = arith.truncf %1 : vector<8x128xf32> to vector<8x128xbf16>
    %cst = arith.constant dense<0.000000e+00> : vector<16x128xf32>
    %5 = tpu.matmul %3, %4, %cst {dimension_numbers = #tpu.dot_dimension_numbers<[1], [0], [0], [1], [0, 0, 1, 1], [], []>} : vector<16x8xbf16>, vector<8x128xbf16>, vector<16x128xf32> -> vector<16x128xf32>
    %6 = vector.broadcast %2 : vector<1x128xf32> to vector<16x128xf32>
    %7 = arith.addf %5, %6 : vector<16x128xf32>
    %cst_5 = arith.constant 0.000000e+00 : f32
    %8 = vector.broadcast %cst_5 : f32 to vector<16x128xf32>
    %9 = arith.maximumf %7, %8 : vector<16x128xf32>
    %c0_6 = arith.constant 0 : index
    %c0_7 = arith.constant 0 : index
    %10 = vector.load %arg4[%c0_6, %c0_7] : memref<128x64xf32, #tpu.memory_space<vmem>>, vector<128x64xf32>
    %c0_8 = arith.constant 0 : index
    %c0_9 = arith.constant 0 : index
    %11 = vector.load %arg5[%c0_8, %c0_9] : memref<1x64xf32, #tpu.memory_space<vmem>>, vector<1x64xf32>
    %12 = arith.truncf %9 : vector<16x128xf32> to vector<16x128xbf16>
    %13 = arith.truncf %10 : vector<128x64xf32> to vector<128x64xbf16>
    %cst_10 = arith.constant dense<0.000000e+00> : vector<16x64xf32>
    %14 = tpu.matmul %12, %13, %cst_10 {dimension_numbers = #tpu.dot_dimension_numbers<[1], [0], [0], [1], [0, 0, 1, 1], [], []>} : vector<16x128xbf16>, vector<128x64xbf16>, vector<16x64xf32> -> vector<16x64xf32>
    %15 = vector.broadcast %11 : vector<1x64xf32> to vector<16x64xf32>
    %16 = arith.addf %14, %15 : vector<16x64xf32>
    %cst_11 = arith.constant 0.000000e+00 : f32
    %17 = vector.broadcast %cst_11 : f32 to vector<16x64xf32>
    %18 = arith.maximumf %16, %17 : vector<16x64xf32>
    %c0_12 = arith.constant 0 : index
    %c0_13 = arith.constant 0 : index
    %19 = vector.load %arg6[%c0_12, %c0_13] : memref<16x64xf32, #tpu.memory_space<vmem>>, vector<16x64xf32>
    tpu.vector_store %arg6[%c0_12, %c0_13], %18 {strides = array<i32>} : memref<16x64xf32, #tpu.memory_space<vmem>>, vector<16x64xf32>,
    return
  }
  func.func @transform_0(%arg0: i32) -> (i32, i32) {
    %c0_i32 = arith.constant 0 : i32
    %c0_i32_0 = arith.constant 0 : i32
    return %arg0, %c0_i32 : i32, i32
  }
  func.func @transform_1(%arg0: i32) -> (i32, i32) {
    %c0_i32 = arith.constant 0 : i32
    %c0_i32_0 = arith.constant 0 : i32
    %c0_i32_1 = arith.constant 0 : i32
    return %c0_i32, %c0_i32_0 : i32, i32
  }
  func.func @transform_2(%arg0: i32) -> (i32, i32) {
    %c0_i32 = arith.constant 0 : i32
    %c0_i32_0 = arith.constant 0 : i32
    %c0_i32_1 = arith.constant 0 : i32
    return %c0_i32, %c0_i32_0 : i32, i32
  }
  func.func @transform_3(%arg0: i32) -> (i32, i32) {
    %c0_i32 = arith.constant 0 : i32
    %c0_i32_0 = arith.constant 0 : i32
    %c0_i32_1 = arith.constant 0 : i32
    return %c0_i32, %c0_i32_0 : i32, i32
  }
  func.func @transform_4(%arg0: i32) -> (i32, i32) {
    %c0_i32 = arith.constant 0 : i32
    %c0_i32_0 = arith.constant 0 : i32
    %c0_i32_1 = arith.constant 0 : i32
    return %c0_i32, %c0_i32_0 : i32, i32
  }
  func.func @transform_5(%arg0: i32) -> (i32, i32) {
    %c0_i32 = arith.constant 0 : i32
    %c0_i32_0 = arith.constant 0 : i32
    return %arg0, %c0_i32 : i32, i32
  }
}

module attributes {stable_mosaic.version = 11 : i64} {
  func.func @_gn_edge_attn_kernel(%arg0: i32, %arg1: memref<8x128xf32, #tpu.memory_space<vmem>>, %arg2: memref<16x128xf32, #tpu.memory_space<vmem>>, %arg3: memref<8x16x64xf32, #tpu.memory_space<vmem>>, %arg4: memref<8x16xf32, #tpu.memory_space<vmem>>, %arg5: memref<64x128xf32, #tpu.memory_space<vmem>>, %arg6: memref<1x128xf32, #tpu.memory_space<vmem>>, %arg7: memref<128x64xf32, #tpu.memory_space<vmem>>, %arg8: memref<1x64xf32, #tpu.memory_space<vmem>>, %arg9: memref<1x64xf32, #tpu.memory_space<vmem>>, %arg10: memref<8x16x64xf32, #tpu.memory_space<vmem>>, %arg11: memref<8x64xf32, #tpu.memory_space<vmem>>) attributes {dimension_semantics = [#tpu.dimension_semantics<parallel>], iteration_bounds = array<i64: 2>, scalar_prefetch = 0 : i64, scratch_operands = 0 : i64, tpu.core_type = #tpu.core_type<tc>, window_params = [{transform_indices = @transform_0, window_bounds = array<i64: 8, 128>}, {pipeline_mode = #tpu.pipeline_mode<synchronous>, transform_indices = @transform_1, window_bounds = array<i64: 16, 128>}, {transform_indices = @transform_2, window_bounds = array<i64: 8, 16, 64>}, {transform_indices = @transform_3, window_bounds = array<i64: 8, 16>}, {pipeline_mode = #tpu.pipeline_mode<synchronous>, transform_indices = @transform_4, window_bounds = array<i64: 64, 128>}, {pipeline_mode = #tpu.pipeline_mode<synchronous>, transform_indices = @transform_5, window_bounds = array<i64: 1, 128>}, {pipeline_mode = #tpu.pipeline_mode<synchronous>, transform_indices = @transform_6, window_bounds = array<i64: 128, 64>}, {pipeline_mode = #tpu.pipeline_mode<synchronous>, transform_indices = @transform_7, window_bounds = array<i64: 1, 64>}, {pipeline_mode = #tpu.pipeline_mode<synchronous>, transform_indices = @transform_8, window_bounds = array<i64: 1, 64>}, {transform_indices = @transform_9, window_bounds = array<i64: 8, 16, 64>}, {transform_indices = @transform_10, window_bounds = array<i64: 8, 64>}]} {
    %c0 = arith.constant 0 : index
    %c0_0 = arith.constant 0 : index
    %c0_1 = arith.constant 0 : index
    %0 = vector.load %arg3[%c0, %c0_0, %c0_1] : memref<8x16x64xf32, #tpu.memory_space<vmem>>, vector<8x16x64xf32>
    %1 = vector.shape_cast %0 : vector<8x16x64xf32> to vector<128x64xf32>
    %2 = arith.truncf %1 : vector<128x64xf32> to vector<128x64xbf16>
    %c0_2 = arith.constant 0 : index
    %c0_3 = arith.constant 0 : index
    %3 = vector.load %arg5[%c0_2, %c0_3] : memref<64x128xf32, #tpu.memory_space<vmem>>, vector<64x128xf32>
    %4 = arith.truncf %3 : vector<64x128xf32> to vector<64x128xbf16>
    %cst = arith.constant dense<0.000000e+00> : vector<128x128xf32>
    %5 = tpu.matmul %2, %4, %cst {dimension_numbers = #tpu.dot_dimension_numbers<[1], [0], [0], [1], [0, 0, 1, 1], [], []>} : vector<128x64xbf16>, vector<64x128xbf16>, vector<128x128xf32> -> vector<128x128xf32>
    %6 = vector.shape_cast %5 : vector<128x128xf32> to vector<8x16x128xf32>
    %c0_4 = arith.constant 0 : index
    %c0_5 = arith.constant 0 : index
    %7 = vector.load %arg2[%c0_4, %c0_5] : memref<16x128xf32, #tpu.memory_space<vmem>>, vector<16x128xf32>
    %8 = vector.shape_cast %7 : vector<16x128xf32> to vector<1x16x128xf32>
    %9 = vector.broadcast %8 : vector<1x16x128xf32> to vector<8x16x128xf32>
    %10 = arith.addf %6, %9 : vector<8x16x128xf32>
    %c0_6 = arith.constant 0 : index
    %c0_7 = arith.constant 0 : index
    %11 = vector.load %arg1[%c0_6, %c0_7] : memref<8x128xf32, #tpu.memory_space<vmem>>, vector<8x128xf32>
    %12 = vector.shape_cast %11 : vector<8x128xf32> to vector<8x1x128xf32>
    %13 = vector.broadcast %12 : vector<8x1x128xf32> to vector<8x16x128xf32>
    %14 = arith.addf %10, %13 : vector<8x16x128xf32>
    %c0_8 = arith.constant 0 : index
    %c0_9 = arith.constant 0 : index
    %15 = vector.load %arg6[%c0_8, %c0_9] : memref<1x128xf32, #tpu.memory_space<vmem>>, vector<1x128xf32>
    %16 = vector.shape_cast %15 : vector<1x128xf32> to vector<1x1x128xf32>
    %17 = vector.broadcast %16 : vector<1x1x128xf32> to vector<8x16x128xf32>
    %18 = arith.addf %14, %17 : vector<8x16x128xf32>
    %cst_10 = arith.constant 0.000000e+00 : f32
    %19 = vector.broadcast %cst_10 : f32 to vector<8x16x128xf32>
    %20 = arith.maximumf %18, %19 : vector<8x16x128xf32>
    %c0_11 = arith.constant 0 : index
    %c0_12 = arith.constant 0 : index
    %21 = vector.load %arg7[%c0_11, %c0_12] : memref<128x64xf32, #tpu.memory_space<vmem>>, vector<128x64xf32>
    %c0_13 = arith.constant 0 : index
    %c0_14 = arith.constant 0 : index
    %22 = vector.load %arg8[%c0_13, %c0_14] : memref<1x64xf32, #tpu.memory_space<vmem>>, vector<1x64xf32>
    %23 = vector.shape_cast %20 : vector<8x16x128xf32> to vector<128x128xf32>
    %24 = arith.truncf %23 : vector<128x128xf32> to vector<128x128xbf16>
    %25 = arith.truncf %21 : vector<128x64xf32> to vector<128x64xbf16>
    %cst_15 = arith.constant dense<0.000000e+00> : vector<128x64xf32>
    %26 = tpu.matmul %24, %25, %cst_15 {dimension_numbers = #tpu.dot_dimension_numbers<[1], [0], [0], [1], [0, 0, 1, 1], [], []>} : vector<128x128xbf16>, vector<128x64xbf16>, vector<128x64xf32> -> vector<128x64xf32>
    %27 = vector.broadcast %22 : vector<1x64xf32> to vector<128x64xf32>
    %28 = arith.addf %26, %27 : vector<128x64xf32>
    %29 = vector.shape_cast %28 : vector<128x64xf32> to vector<8x16x64xf32>
    %cst_16 = arith.constant 0.000000e+00 : f32
    %30 = vector.broadcast %cst_16 : f32 to vector<8x16x64xf32>
    %31 = arith.maximumf %29, %30 : vector<8x16x64xf32>
    %c0_17 = arith.constant 0 : index
    %c0_18 = arith.constant 0 : index
    %c0_19 = arith.constant 0 : index
    %32 = vector.load %arg10[%c0_17, %c0_18, %c0_19] : memref<8x16x64xf32, #tpu.memory_space<vmem>>, vector<8x16x64xf32>
    tpu.vector_store %arg10[%c0_17, %c0_18, %c0_19], %31 {strides = array<i32>} : memref<8x16x64xf32, #tpu.memory_space<vmem>>, vector<8x16x64xf32>,
    %c0_20 = arith.constant 0 : index
    %c0_21 = arith.constant 0 : index
    %33 = vector.load %arg4[%c0_20, %c0_21] : memref<8x16xf32, #tpu.memory_space<vmem>>, vector<8x16xf32>
    %c0_22 = arith.constant 0 : index
    %c0_23 = arith.constant 0 : index
    %34 = vector.load %arg9[%c0_22, %c0_23] : memref<1x64xf32, #tpu.memory_space<vmem>>, vector<1x64xf32>
    %35 = vector.shape_cast %34 : vector<1x64xf32> to vector<1x1x64xf32>
    %36 = vector.broadcast %35 : vector<1x1x64xf32> to vector<8x16x64xf32>
    %37 = arith.mulf %31, %36 : vector<8x16x64xf32>
    %cst_24 = arith.constant dense<0.000000e+00> : vector<8x16xf32>
    %38 = vector.multi_reduction <add>, %37, %cst_24 [2] : vector<8x16x64xf32> to vector<8x16xf32>
    %cst_25 = arith.constant 0.000000e+00 : f32
    %39 = vector.broadcast %cst_25 : f32 to vector<8x16xf32>
    %40 = arith.cmpf ogt, %33, %39 : vector<8x16xf32>
    %cst_26 = arith.constant -1.000000e+30 : f32
    %41 = vector.broadcast %cst_26 : f32 to vector<8x16xf32>
    %42 = arith.select %40, %38, %41 : vector<8x16xi1>, vector<8x16xf32>
    %cst_27 = arith.constant dense<0xFF800000> : vector<8xf32>
    %43 = vector.multi_reduction <maximumf>, %42, %cst_27 [1] : vector<8x16xf32> to vector<8xf32>
    %44 = vector.shape_cast %43 : vector<8xf32> to vector<8x1xf32>
    %45 = vector.broadcast %44 : vector<8x1xf32> to vector<8x16xf32>
    %46 = arith.subf %42, %45 : vector<8x16xf32>
    %47 = math.exp %46 : vector<8x16xf32>
    %48 = arith.mulf %47, %33 : vector<8x16xf32>
    %cst_28 = arith.constant dense<0.000000e+00> : vector<8xf32>
    %49 = vector.multi_reduction <add>, %48, %cst_28 [1] : vector<8x16xf32> to vector<8xf32>
    %50 = vector.shape_cast %49 : vector<8xf32> to vector<8x1xf32>
    %cst_29 = arith.constant 9.99999968E-21 : f32
    %51 = vector.broadcast %cst_29 : f32 to vector<8x1xf32>
    %52 = arith.maximumf %50, %51 : vector<8x1xf32>
    %53 = vector.broadcast %52 : vector<8x1xf32> to vector<8x16xf32>
    %54 = arith.divf %48, %53 : vector<8x16xf32>
    %55 = vector.shape_cast %54 : vector<8x16xf32> to vector<8x16x1xf32>
    %56 = vector.broadcast %55 : vector<8x16x1xf32> to vector<8x16x64xf32>
    %57 = arith.mulf %31, %56 : vector<8x16x64xf32>
    %cst_30 = arith.constant dense<0.000000e+00> : vector<8x64xf32>
    %58 = vector.multi_reduction <add>, %57, %cst_30 [1] : vector<8x16x64xf32> to vector<8x64xf32>
    %c0_31 = arith.constant 0 : index
    %c0_32 = arith.constant 0 : index
    %59 = vector.load %arg11[%c0_31, %c0_32] : memref<8x64xf32, #tpu.memory_space<vmem>>, vector<8x64xf32>
    tpu.vector_store %arg11[%c0_31, %c0_32], %58 {strides = array<i32>} : memref<8x64xf32, #tpu.memory_space<vmem>>, vector<8x64xf32>,
    return
  }
  func.func @transform_0(%arg0: i32) -> (i32, i32) {
    %c0_i32 = arith.constant 0 : i32
    %c0_i32_0 = arith.constant 0 : i32
    return %arg0, %c0_i32 : i32, i32
  }
  func.func @transform_1(%arg0: i32) -> (i32, i32) {
    %c0_i32 = arith.constant 0 : i32
    %c0_i32_0 = arith.constant 0 : i32
    %c0_i32_1 = arith.constant 0 : i32
    return %c0_i32, %c0_i32_0 : i32, i32
  }
  func.func @transform_2(%arg0: i32) -> (i32, i32, i32) {
    %c0_i32 = arith.constant 0 : i32
    %c0_i32_0 = arith.constant 0 : i32
    %c0_i32_1 = arith.constant 0 : i32
    return %arg0, %c0_i32, %c0_i32_0 : i32, i32, i32
  }
  func.func @transform_3(%arg0: i32) -> (i32, i32) {
    %c0_i32 = arith.constant 0 : i32
    %c0_i32_0 = arith.constant 0 : i32
    return %arg0, %c0_i32 : i32, i32
  }
  func.func @transform_4(%arg0: i32) -> (i32, i32) {
    %c0_i32 = arith.constant 0 : i32
    %c0_i32_0 = arith.constant 0 : i32
    %c0_i32_1 = arith.constant 0 : i32
    return %c0_i32, %c0_i32_0 : i32, i32
  }
  func.func @transform_5(%arg0: i32) -> (i32, i32) {
    %c0_i32 = arith.constant 0 : i32
    %c0_i32_0 = arith.constant 0 : i32
    %c0_i32_1 = arith.constant 0 : i32
    return %c0_i32, %c0_i32_0 : i32, i32
  }
  func.func @transform_6(%arg0: i32) -> (i32, i32) {
    %c0_i32 = arith.constant 0 : i32
    %c0_i32_0 = arith.constant 0 : i32
    %c0_i32_1 = arith.constant 0 : i32
    return %c0_i32, %c0_i32_0 : i32, i32
  }
  func.func @transform_7(%arg0: i32) -> (i32, i32) {
    %c0_i32 = arith.constant 0 : i32
    %c0_i32_0 = arith.constant 0 : i32
    %c0_i32_1 = arith.constant 0 : i32
    return %c0_i32, %c0_i32_0 : i32, i32
  }
  func.func @transform_8(%arg0: i32) -> (i32, i32) {
    %c0_i32 = arith.constant 0 : i32
    %c0_i32_0 = arith.constant 0 : i32
    %c0_i32_1 = arith.constant 0 : i32
    return %c0_i32, %c0_i32_0 : i32, i32
  }
  func.func @transform_9(%arg0: i32) -> (i32, i32, i32) {
    %c0_i32 = arith.constant 0 : i32
    %c0_i32_0 = arith.constant 0 : i32
    %c0_i32_1 = arith.constant 0 : i32
    return %arg0, %c0_i32, %c0_i32_0 : i32, i32, i32
  }
  func.func @transform_10(%arg0: i32) -> (i32, i32) {
    %c0_i32 = arith.constant 0 : i32
    %c0_i32_0 = arith.constant 0 : i32
    return %arg0, %c0_i32 : i32, i32
  }
}

module attributes {stable_mosaic.version = 11 : i64} {
  func.func @_mlp_kernel(%arg0: i32, %arg1: memref<16x64xf32, #tpu.memory_space<vmem>>, %arg2: memref<16x64xf32, #tpu.memory_space<vmem>>, %arg3: memref<128x128xf32, #tpu.memory_space<vmem>>, %arg4: memref<1x128xf32, #tpu.memory_space<vmem>>, %arg5: memref<128x64xf32, #tpu.memory_space<vmem>>, %arg6: memref<1x64xf32, #tpu.memory_space<vmem>>, %arg7: memref<16x64xf32, #tpu.memory_space<vmem>>) attributes {dimension_semantics = [#tpu.dimension_semantics<parallel>], iteration_bounds = array<i64: 1>, scalar_prefetch = 0 : i64, scratch_operands = 0 : i64, tpu.core_type = #tpu.core_type<tc>, window_params = [{transform_indices = @transform_0, window_bounds = array<i64: 16, 64>}, {transform_indices = @transform_1, window_bounds = array<i64: 16, 64>}, {pipeline_mode = #tpu.pipeline_mode<synchronous>, transform_indices = @transform_2, window_bounds = array<i64: 128, 128>}, {pipeline_mode = #tpu.pipeline_mode<synchronous>, transform_indices = @transform_3, window_bounds = array<i64: 1, 128>}, {pipeline_mode = #tpu.pipeline_mode<synchronous>, transform_indices = @transform_4, window_bounds = array<i64: 128, 64>}, {pipeline_mode = #tpu.pipeline_mode<synchronous>, transform_indices = @transform_5, window_bounds = array<i64: 1, 64>}, {transform_indices = @transform_6, window_bounds = array<i64: 16, 64>}]} {
    %c0 = arith.constant 0 : index
    %c0_0 = arith.constant 0 : index
    %0 = vector.load %arg1[%c0, %c0_0] : memref<16x64xf32, #tpu.memory_space<vmem>>, vector<16x64xf32>
    %c0_1 = arith.constant 0 : index
    %c0_2 = arith.constant 0 : index
    %1 = vector.load %arg2[%c0_1, %c0_2] : memref<16x64xf32, #tpu.memory_space<vmem>>, vector<16x64xf32>
    %c0_3 = arith.constant 0 : index
    %c0_4 = arith.constant 0 : index
    %2 = vector.load %arg3[%c0_3, %c0_4] : memref<128x128xf32, #tpu.memory_space<vmem>>, vector<128x128xf32>
    %c0_5 = arith.constant 0 : index
    %c0_6 = arith.constant 0 : index
    %3 = vector.load %arg4[%c0_5, %c0_6] : memref<1x128xf32, #tpu.memory_space<vmem>>, vector<1x128xf32>
    %4 = arith.truncf %0 : vector<16x64xf32> to vector<16x64xbf16>
    %5 = vector.extract_strided_slice %2 {offsets = [0, 0], sizes = [64, 128], strides = [1, 1]} : vector<128x128xf32> to vector<64x128xf32>
    %6 = arith.truncf %5 : vector<64x128xf32> to vector<64x128xbf16>
    %cst = arith.constant dense<0.000000e+00> : vector<16x128xf32>
    %7 = tpu.matmul %4, %6, %cst {dimension_numbers = #tpu.dot_dimension_numbers<[1], [0], [0], [1], [0, 0, 1, 1], [], []>} : vector<16x64xbf16>, vector<64x128xbf16>, vector<16x128xf32> -> vector<16x128xf32>
    %8 = arith.truncf %1 : vector<16x64xf32> to vector<16x64xbf16>
    %9 = vector.extract_strided_slice %2 {offsets = [64, 0], sizes = [64, 128], strides = [1, 1]} : vector<128x128xf32> to vector<64x128xf32>
    %10 = arith.truncf %9 : vector<64x128xf32> to vector<64x128xbf16>
    %cst_7 = arith.constant dense<0.000000e+00> : vector<16x128xf32>
    %11 = tpu.matmul %8, %10, %cst_7 {dimension_numbers = #tpu.dot_dimension_numbers<[1], [0], [0], [1], [0, 0, 1, 1], [], []>} : vector<16x64xbf16>, vector<64x128xbf16>, vector<16x128xf32> -> vector<16x128xf32>
    %12 = arith.addf %7, %11 : vector<16x128xf32>
    %13 = vector.broadcast %3 : vector<1x128xf32> to vector<16x128xf32>
    %14 = arith.addf %12, %13 : vector<16x128xf32>
    %cst_8 = arith.constant 0.000000e+00 : f32
    %15 = vector.broadcast %cst_8 : f32 to vector<16x128xf32>
    %16 = arith.maximumf %14, %15 : vector<16x128xf32>
    %c0_9 = arith.constant 0 : index
    %c0_10 = arith.constant 0 : index
    %17 = vector.load %arg5[%c0_9, %c0_10] : memref<128x64xf32, #tpu.memory_space<vmem>>, vector<128x64xf32>
    %c0_11 = arith.constant 0 : index
    %c0_12 = arith.constant 0 : index
    %18 = vector.load %arg6[%c0_11, %c0_12] : memref<1x64xf32, #tpu.memory_space<vmem>>, vector<1x64xf32>
    %19 = arith.truncf %16 : vector<16x128xf32> to vector<16x128xbf16>
    %20 = arith.truncf %17 : vector<128x64xf32> to vector<128x64xbf16>
    %cst_13 = arith.constant dense<0.000000e+00> : vector<16x64xf32>
    %21 = tpu.matmul %19, %20, %cst_13 {dimension_numbers = #tpu.dot_dimension_numbers<[1], [0], [0], [1], [0, 0, 1, 1], [], []>} : vector<16x128xbf16>, vector<128x64xbf16>, vector<16x64xf32> -> vector<16x64xf32>
    %22 = vector.broadcast %18 : vector<1x64xf32> to vector<16x64xf32>
    %23 = arith.addf %21, %22 : vector<16x64xf32>
    %cst_14 = arith.constant 0.000000e+00 : f32
    %24 = vector.broadcast %cst_14 : f32 to vector<16x64xf32>
    %25 = arith.maximumf %23, %24 : vector<16x64xf32>
    %c0_15 = arith.constant 0 : index
    %c0_16 = arith.constant 0 : index
    %26 = vector.load %arg7[%c0_15, %c0_16] : memref<16x64xf32, #tpu.memory_space<vmem>>, vector<16x64xf32>
    tpu.vector_store %arg7[%c0_15, %c0_16], %25 {strides = array<i32>} : memref<16x64xf32, #tpu.memory_space<vmem>>, vector<16x64xf32>,
    return
  }
  func.func @transform_0(%arg0: i32) -> (i32, i32) {
    %c0_i32 = arith.constant 0 : i32
    %c0_i32_0 = arith.constant 0 : i32
    return %arg0, %c0_i32 : i32, i32
  }
  func.func @transform_1(%arg0: i32) -> (i32, i32) {
    %c0_i32 = arith.constant 0 : i32
    %c0_i32_0 = arith.constant 0 : i32
    return %arg0, %c0_i32 : i32, i32
  }
  func.func @transform_2(%arg0: i32) -> (i32, i32) {
    %c0_i32 = arith.constant 0 : i32
    %c0_i32_0 = arith.constant 0 : i32
    %c0_i32_1 = arith.constant 0 : i32
    return %c0_i32, %c0_i32_0 : i32, i32
  }
  func.func @transform_3(%arg0: i32) -> (i32, i32) {
    %c0_i32 = arith.constant 0 : i32
    %c0_i32_0 = arith.constant 0 : i32
    %c0_i32_1 = arith.constant 0 : i32
    return %c0_i32, %c0_i32_0 : i32, i32
  }
  func.func @transform_4(%arg0: i32) -> (i32, i32) {
    %c0_i32 = arith.constant 0 : i32
    %c0_i32_0 = arith.constant 0 : i32
    %c0_i32_1 = arith.constant 0 : i32
    return %c0_i32, %c0_i32_0 : i32, i32
  }
  func.func @transform_5(%arg0: i32) -> (i32, i32) {
    %c0_i32 = arith.constant 0 : i32
    %c0_i32_0 = arith.constant 0 : i32
    %c0_i32_1 = arith.constant 0 : i32
    return %c0_i32, %c0_i32_0 : i32, i32
  }
  func.func @transform_6(%arg0: i32) -> (i32, i32) {
    %c0_i32 = arith.constant 0 : i32
    %c0_i32_0 = arith.constant 0 : i32
    return %arg0, %c0_i32 : i32, i32
  }
}

module attributes {stable_mosaic.version = 11 : i64} {
  func.func @_gn_edge_attn_kernel(%arg0: i32, %arg1: memref<8x128xf32, #tpu.memory_space<vmem>>, %arg2: memref<16x128xf32, #tpu.memory_space<vmem>>, %arg3: memref<8x16x64xf32, #tpu.memory_space<vmem>>, %arg4: memref<8x16xf32, #tpu.memory_space<vmem>>, %arg5: memref<64x128xf32, #tpu.memory_space<vmem>>, %arg6: memref<1x128xf32, #tpu.memory_space<vmem>>, %arg7: memref<128x64xf32, #tpu.memory_space<vmem>>, %arg8: memref<1x64xf32, #tpu.memory_space<vmem>>, %arg9: memref<1x64xf32, #tpu.memory_space<vmem>>, %arg10: memref<8x64xf32, #tpu.memory_space<vmem>>) attributes {dimension_semantics = [#tpu.dimension_semantics<parallel>], iteration_bounds = array<i64: 2>, scalar_prefetch = 0 : i64, scratch_operands = 0 : i64, tpu.core_type = #tpu.core_type<tc>, window_params = [{transform_indices = @transform_0, window_bounds = array<i64: 8, 128>}, {pipeline_mode = #tpu.pipeline_mode<synchronous>, transform_indices = @transform_1, window_bounds = array<i64: 16, 128>}, {transform_indices = @transform_2, window_bounds = array<i64: 8, 16, 64>}, {transform_indices = @transform_3, window_bounds = array<i64: 8, 16>}, {pipeline_mode = #tpu.pipeline_mode<synchronous>, transform_indices = @transform_4, window_bounds = array<i64: 64, 128>}, {pipeline_mode = #tpu.pipeline_mode<synchronous>, transform_indices = @transform_5, window_bounds = array<i64: 1, 128>}, {pipeline_mode = #tpu.pipeline_mode<synchronous>, transform_indices = @transform_6, window_bounds = array<i64: 128, 64>}, {pipeline_mode = #tpu.pipeline_mode<synchronous>, transform_indices = @transform_7, window_bounds = array<i64: 1, 64>}, {pipeline_mode = #tpu.pipeline_mode<synchronous>, transform_indices = @transform_8, window_bounds = array<i64: 1, 64>}, {transform_indices = @transform_9, window_bounds = array<i64: 8, 64>}]} {
    %c0 = arith.constant 0 : index
    %c0_0 = arith.constant 0 : index
    %c0_1 = arith.constant 0 : index
    %0 = vector.load %arg3[%c0, %c0_0, %c0_1] : memref<8x16x64xf32, #tpu.memory_space<vmem>>, vector<8x16x64xf32>
    %1 = vector.shape_cast %0 : vector<8x16x64xf32> to vector<128x64xf32>
    %2 = arith.truncf %1 : vector<128x64xf32> to vector<128x64xbf16>
    %c0_2 = arith.constant 0 : index
    %c0_3 = arith.constant 0 : index
    %3 = vector.load %arg5[%c0_2, %c0_3] : memref<64x128xf32, #tpu.memory_space<vmem>>, vector<64x128xf32>
    %4 = arith.truncf %3 : vector<64x128xf32> to vector<64x128xbf16>
    %cst = arith.constant dense<0.000000e+00> : vector<128x128xf32>
    %5 = tpu.matmul %2, %4, %cst {dimension_numbers = #tpu.dot_dimension_numbers<[1], [0], [0], [1], [0, 0, 1, 1], [], []>} : vector<128x64xbf16>, vector<64x128xbf16>, vector<128x128xf32> -> vector<128x128xf32>
    %6 = vector.shape_cast %5 : vector<128x128xf32> to vector<8x16x128xf32>
    %c0_4 = arith.constant 0 : index
    %c0_5 = arith.constant 0 : index
    %7 = vector.load %arg2[%c0_4, %c0_5] : memref<16x128xf32, #tpu.memory_space<vmem>>, vector<16x128xf32>
    %8 = vector.shape_cast %7 : vector<16x128xf32> to vector<1x16x128xf32>
    %9 = vector.broadcast %8 : vector<1x16x128xf32> to vector<8x16x128xf32>
    %10 = arith.addf %6, %9 : vector<8x16x128xf32>
    %c0_6 = arith.constant 0 : index
    %c0_7 = arith.constant 0 : index
    %11 = vector.load %arg1[%c0_6, %c0_7] : memref<8x128xf32, #tpu.memory_space<vmem>>, vector<8x128xf32>
    %12 = vector.shape_cast %11 : vector<8x128xf32> to vector<8x1x128xf32>
    %13 = vector.broadcast %12 : vector<8x1x128xf32> to vector<8x16x128xf32>
    %14 = arith.addf %10, %13 : vector<8x16x128xf32>
    %c0_8 = arith.constant 0 : index
    %c0_9 = arith.constant 0 : index
    %15 = vector.load %arg6[%c0_8, %c0_9] : memref<1x128xf32, #tpu.memory_space<vmem>>, vector<1x128xf32>
    %16 = vector.shape_cast %15 : vector<1x128xf32> to vector<1x1x128xf32>
    %17 = vector.broadcast %16 : vector<1x1x128xf32> to vector<8x16x128xf32>
    %18 = arith.addf %14, %17 : vector<8x16x128xf32>
    %cst_10 = arith.constant 0.000000e+00 : f32
    %19 = vector.broadcast %cst_10 : f32 to vector<8x16x128xf32>
    %20 = arith.maximumf %18, %19 : vector<8x16x128xf32>
    %c0_11 = arith.constant 0 : index
    %c0_12 = arith.constant 0 : index
    %21 = vector.load %arg7[%c0_11, %c0_12] : memref<128x64xf32, #tpu.memory_space<vmem>>, vector<128x64xf32>
    %c0_13 = arith.constant 0 : index
    %c0_14 = arith.constant 0 : index
    %22 = vector.load %arg8[%c0_13, %c0_14] : memref<1x64xf32, #tpu.memory_space<vmem>>, vector<1x64xf32>
    %23 = vector.shape_cast %20 : vector<8x16x128xf32> to vector<128x128xf32>
    %24 = arith.truncf %23 : vector<128x128xf32> to vector<128x128xbf16>
    %25 = arith.truncf %21 : vector<128x64xf32> to vector<128x64xbf16>
    %cst_15 = arith.constant dense<0.000000e+00> : vector<128x64xf32>
    %26 = tpu.matmul %24, %25, %cst_15 {dimension_numbers = #tpu.dot_dimension_numbers<[1], [0], [0], [1], [0, 0, 1, 1], [], []>} : vector<128x128xbf16>, vector<128x64xbf16>, vector<128x64xf32> -> vector<128x64xf32>
    %27 = vector.broadcast %22 : vector<1x64xf32> to vector<128x64xf32>
    %28 = arith.addf %26, %27 : vector<128x64xf32>
    %29 = vector.shape_cast %28 : vector<128x64xf32> to vector<8x16x64xf32>
    %cst_16 = arith.constant 0.000000e+00 : f32
    %30 = vector.broadcast %cst_16 : f32 to vector<8x16x64xf32>
    %31 = arith.maximumf %29, %30 : vector<8x16x64xf32>
    %c0_17 = arith.constant 0 : index
    %c0_18 = arith.constant 0 : index
    %32 = vector.load %arg4[%c0_17, %c0_18] : memref<8x16xf32, #tpu.memory_space<vmem>>, vector<8x16xf32>
    %c0_19 = arith.constant 0 : index
    %c0_20 = arith.constant 0 : index
    %33 = vector.load %arg9[%c0_19, %c0_20] : memref<1x64xf32, #tpu.memory_space<vmem>>, vector<1x64xf32>
    %34 = vector.shape_cast %33 : vector<1x64xf32> to vector<1x1x64xf32>
    %35 = vector.broadcast %34 : vector<1x1x64xf32> to vector<8x16x64xf32>
    %36 = arith.mulf %31, %35 : vector<8x16x64xf32>
    %cst_21 = arith.constant dense<0.000000e+00> : vector<8x16xf32>
    %37 = vector.multi_reduction <add>, %36, %cst_21 [2] : vector<8x16x64xf32> to vector<8x16xf32>
    %cst_22 = arith.constant 0.000000e+00 : f32
    %38 = vector.broadcast %cst_22 : f32 to vector<8x16xf32>
    %39 = arith.cmpf ogt, %32, %38 : vector<8x16xf32>
    %cst_23 = arith.constant -1.000000e+30 : f32
    %40 = vector.broadcast %cst_23 : f32 to vector<8x16xf32>
    %41 = arith.select %39, %37, %40 : vector<8x16xi1>, vector<8x16xf32>
    %cst_24 = arith.constant dense<0xFF800000> : vector<8xf32>
    %42 = vector.multi_reduction <maximumf>, %41, %cst_24 [1] : vector<8x16xf32> to vector<8xf32>
    %43 = vector.shape_cast %42 : vector<8xf32> to vector<8x1xf32>
    %44 = vector.broadcast %43 : vector<8x1xf32> to vector<8x16xf32>
    %45 = arith.subf %41, %44 : vector<8x16xf32>
    %46 = math.exp %45 : vector<8x16xf32>
    %47 = arith.mulf %46, %32 : vector<8x16xf32>
    %cst_25 = arith.constant dense<0.000000e+00> : vector<8xf32>
    %48 = vector.multi_reduction <add>, %47, %cst_25 [1] : vector<8x16xf32> to vector<8xf32>
    %49 = vector.shape_cast %48 : vector<8xf32> to vector<8x1xf32>
    %cst_26 = arith.constant 9.99999968E-21 : f32
    %50 = vector.broadcast %cst_26 : f32 to vector<8x1xf32>
    %51 = arith.maximumf %49, %50 : vector<8x1xf32>
    %52 = vector.broadcast %51 : vector<8x1xf32> to vector<8x16xf32>
    %53 = arith.divf %47, %52 : vector<8x16xf32>
    %54 = vector.shape_cast %53 : vector<8x16xf32> to vector<8x16x1xf32>
    %55 = vector.broadcast %54 : vector<8x16x1xf32> to vector<8x16x64xf32>
    %56 = arith.mulf %31, %55 : vector<8x16x64xf32>
    %cst_27 = arith.constant dense<0.000000e+00> : vector<8x64xf32>
    %57 = vector.multi_reduction <add>, %56, %cst_27 [1] : vector<8x16x64xf32> to vector<8x64xf32>
    %c0_28 = arith.constant 0 : index
    %c0_29 = arith.constant 0 : index
    %58 = vector.load %arg10[%c0_28, %c0_29] : memref<8x64xf32, #tpu.memory_space<vmem>>, vector<8x64xf32>
    tpu.vector_store %arg10[%c0_28, %c0_29], %57 {strides = array<i32>} : memref<8x64xf32, #tpu.memory_space<vmem>>, vector<8x64xf32>,
    return
  }
  func.func @transform_0(%arg0: i32) -> (i32, i32) {
    %c0_i32 = arith.constant 0 : i32
    %c0_i32_0 = arith.constant 0 : i32
    return %arg0, %c0_i32 : i32, i32
  }
  func.func @transform_1(%arg0: i32) -> (i32, i32) {
    %c0_i32 = arith.constant 0 : i32
    %c0_i32_0 = arith.constant 0 : i32
    %c0_i32_1 = arith.constant 0 : i32
    return %c0_i32, %c0_i32_0 : i32, i32
  }
  func.func @transform_2(%arg0: i32) -> (i32, i32, i32) {
    %c0_i32 = arith.constant 0 : i32
    %c0_i32_0 = arith.constant 0 : i32
    %c0_i32_1 = arith.constant 0 : i32
    return %arg0, %c0_i32, %c0_i32_0 : i32, i32, i32
  }
  func.func @transform_3(%arg0: i32) -> (i32, i32) {
    %c0_i32 = arith.constant 0 : i32
    %c0_i32_0 = arith.constant 0 : i32
    return %arg0, %c0_i32 : i32, i32
  }
  func.func @transform_4(%arg0: i32) -> (i32, i32) {
    %c0_i32 = arith.constant 0 : i32
    %c0_i32_0 = arith.constant 0 : i32
    %c0_i32_1 = arith.constant 0 : i32
    return %c0_i32, %c0_i32_0 : i32, i32
  }
  func.func @transform_5(%arg0: i32) -> (i32, i32) {
    %c0_i32 = arith.constant 0 : i32
    %c0_i32_0 = arith.constant 0 : i32
    %c0_i32_1 = arith.constant 0 : i32
    return %c0_i32, %c0_i32_0 : i32, i32
  }
  func.func @transform_6(%arg0: i32) -> (i32, i32) {
    %c0_i32 = arith.constant 0 : i32
    %c0_i32_0 = arith.constant 0 : i32
    %c0_i32_1 = arith.constant 0 : i32
    return %c0_i32, %c0_i32_0 : i32, i32
  }
  func.func @transform_7(%arg0: i32) -> (i32, i32) {
    %c0_i32 = arith.constant 0 : i32
    %c0_i32_0 = arith.constant 0 : i32
    %c0_i32_1 = arith.constant 0 : i32
    return %c0_i32, %c0_i32_0 : i32, i32
  }
  func.func @transform_8(%arg0: i32) -> (i32, i32) {
    %c0_i32 = arith.constant 0 : i32
    %c0_i32_0 = arith.constant 0 : i32
    %c0_i32_1 = arith.constant 0 : i32
    return %c0_i32, %c0_i32_0 : i32, i32
  }
  func.func @transform_9(%arg0: i32) -> (i32, i32) {
    %c0_i32 = arith.constant 0 : i32
    %c0_i32_0 = arith.constant 0 : i32
    return %arg0, %c0_i32 : i32, i32
  }
}

module attributes {stable_mosaic.version = 11 : i64} {
  func.func @_mlp_kernel(%arg0: i32, %arg1: memref<16x64xf32, #tpu.memory_space<vmem>>, %arg2: memref<64x128xf32, #tpu.memory_space<vmem>>, %arg3: memref<1x128xf32, #tpu.memory_space<vmem>>, %arg4: memref<128x32xf32, #tpu.memory_space<vmem>>, %arg5: memref<1x32xf32, #tpu.memory_space<vmem>>, %arg6: memref<16x32xf32, #tpu.memory_space<vmem>>) attributes {dimension_semantics = [#tpu.dimension_semantics<parallel>], iteration_bounds = array<i64: 1>, scalar_prefetch = 0 : i64, scratch_operands = 0 : i64, tpu.core_type = #tpu.core_type<tc>, window_params = [{transform_indices = @transform_0, window_bounds = array<i64: 16, 64>}, {pipeline_mode = #tpu.pipeline_mode<synchronous>, transform_indices = @transform_1, window_bounds = array<i64: 64, 128>}, {pipeline_mode = #tpu.pipeline_mode<synchronous>, transform_indices = @transform_2, window_bounds = array<i64: 1, 128>}, {pipeline_mode = #tpu.pipeline_mode<synchronous>, transform_indices = @transform_3, window_bounds = array<i64: 128, 32>}, {pipeline_mode = #tpu.pipeline_mode<synchronous>, transform_indices = @transform_4, window_bounds = array<i64: 1, 32>}, {transform_indices = @transform_5, window_bounds = array<i64: 16, 32>}]} {
    %c0 = arith.constant 0 : index
    %c0_0 = arith.constant 0 : index
    %0 = vector.load %arg1[%c0, %c0_0] : memref<16x64xf32, #tpu.memory_space<vmem>>, vector<16x64xf32>
    %c0_1 = arith.constant 0 : index
    %c0_2 = arith.constant 0 : index
    %1 = vector.load %arg2[%c0_1, %c0_2] : memref<64x128xf32, #tpu.memory_space<vmem>>, vector<64x128xf32>
    %c0_3 = arith.constant 0 : index
    %c0_4 = arith.constant 0 : index
    %2 = vector.load %arg3[%c0_3, %c0_4] : memref<1x128xf32, #tpu.memory_space<vmem>>, vector<1x128xf32>
    %3 = arith.truncf %0 : vector<16x64xf32> to vector<16x64xbf16>
    %4 = arith.truncf %1 : vector<64x128xf32> to vector<64x128xbf16>
    %cst = arith.constant dense<0.000000e+00> : vector<16x128xf32>
    %5 = tpu.matmul %3, %4, %cst {dimension_numbers = #tpu.dot_dimension_numbers<[1], [0], [0], [1], [0, 0, 1, 1], [], []>} : vector<16x64xbf16>, vector<64x128xbf16>, vector<16x128xf32> -> vector<16x128xf32>
    %6 = vector.broadcast %2 : vector<1x128xf32> to vector<16x128xf32>
    %7 = arith.addf %5, %6 : vector<16x128xf32>
    %cst_5 = arith.constant 0.000000e+00 : f32
    %8 = vector.broadcast %cst_5 : f32 to vector<16x128xf32>
    %9 = arith.maximumf %7, %8 : vector<16x128xf32>
    %c0_6 = arith.constant 0 : index
    %c0_7 = arith.constant 0 : index
    %10 = vector.load %arg4[%c0_6, %c0_7] : memref<128x32xf32, #tpu.memory_space<vmem>>, vector<128x32xf32>
    %c0_8 = arith.constant 0 : index
    %c0_9 = arith.constant 0 : index
    %11 = vector.load %arg5[%c0_8, %c0_9] : memref<1x32xf32, #tpu.memory_space<vmem>>, vector<1x32xf32>
    %12 = arith.truncf %9 : vector<16x128xf32> to vector<16x128xbf16>
    %13 = arith.truncf %10 : vector<128x32xf32> to vector<128x32xbf16>
    %cst_10 = arith.constant dense<0.000000e+00> : vector<16x32xf32>
    %14 = tpu.matmul %12, %13, %cst_10 {dimension_numbers = #tpu.dot_dimension_numbers<[1], [0], [0], [1], [0, 0, 1, 1], [], []>} : vector<16x128xbf16>, vector<128x32xbf16>, vector<16x32xf32> -> vector<16x32xf32>
    %15 = vector.broadcast %11 : vector<1x32xf32> to vector<16x32xf32>
    %16 = arith.addf %14, %15 : vector<16x32xf32>
    %cst_11 = arith.constant 0.000000e+00 : f32
    %17 = vector.broadcast %cst_11 : f32 to vector<16x32xf32>
    %18 = arith.maximumf %16, %17 : vector<16x32xf32>
    %c0_12 = arith.constant 0 : index
    %c0_13 = arith.constant 0 : index
    %19 = vector.load %arg6[%c0_12, %c0_13] : memref<16x32xf32, #tpu.memory_space<vmem>>, vector<16x32xf32>
    tpu.vector_store %arg6[%c0_12, %c0_13], %18 {strides = array<i32>} : memref<16x32xf32, #tpu.memory_space<vmem>>, vector<16x32xf32>,
    return
  }
  func.func @transform_0(%arg0: i32) -> (i32, i32) {
    %c0_i32 = arith.constant 0 : i32
    %c0_i32_0 = arith.constant 0 : i32
    return %arg0, %c0_i32 : i32, i32
  }
  func.func @transform_1(%arg0: i32) -> (i32, i32) {
    %c0_i32 = arith.constant 0 : i32
    %c0_i32_0 = arith.constant 0 : i32
    %c0_i32_1 = arith.constant 0 : i32
    return %c0_i32, %c0_i32_0 : i32, i32
  }
  func.func @transform_2(%arg0: i32) -> (i32, i32) {
    %c0_i32 = arith.constant 0 : i32
    %c0_i32_0 = arith.constant 0 : i32
    %c0_i32_1 = arith.constant 0 : i32
    return %c0_i32, %c0_i32_0 : i32, i32
  }
  func.func @transform_3(%arg0: i32) -> (i32, i32) {
    %c0_i32 = arith.constant 0 : i32
    %c0_i32_0 = arith.constant 0 : i32
    %c0_i32_1 = arith.constant 0 : i32
    return %c0_i32, %c0_i32_0 : i32, i32
  }
  func.func @transform_4(%arg0: i32) -> (i32, i32) {
    %c0_i32 = arith.constant 0 : i32
    %c0_i32_0 = arith.constant 0 : i32
    %c0_i32_1 = arith.constant 0 : i32
    return %c0_i32, %c0_i32_0 : i32, i32
  }
  func.func @transform_5(%arg0: i32) -> (i32, i32) {
    %c0_i32 = arith.constant 0 : i32
    %c0_i32_0 = arith.constant 0 : i32
    return %arg0, %c0_i32 : i32, i32
  }
}

module attributes {stable_mosaic.version = 11 : i64} {
  func.func @_pr_fixed_point_kernel(%arg0: i32, %arg1: memref<32x32xbf16, #tpu.memory_space<vmem>>, %arg2: memref<16x16xbf16, #tpu.memory_space<vmem>>, %arg3: memref<16x32xf32, #tpu.memory_space<vmem>>, %arg4: memref<16x32xf32, #tpu.memory_space<vmem>>) attributes {dimension_semantics = [#tpu.dimension_semantics<arbitrary>], iteration_bounds = array<i64: 1>, scalar_prefetch = 0 : i64, scratch_operands = 0 : i64, tpu.core_type = #tpu.core_type<tc>, window_params = [{pipeline_mode = #tpu.pipeline_mode<synchronous>, transform_indices = @transform_0, window_bounds = array<i64: 32, 32>}, {pipeline_mode = #tpu.pipeline_mode<synchronous>, transform_indices = @transform_1, window_bounds = array<i64: 16, 16>}, {pipeline_mode = #tpu.pipeline_mode<synchronous>, transform_indices = @transform_2, window_bounds = array<i64: 16, 32>}, {pipeline_mode = #tpu.pipeline_mode<synchronous>, transform_indices = @transform_3, window_bounds = array<i64: 16, 32>}]} {
    %c0 = arith.constant 0 : index
    %c0_0 = arith.constant 0 : index
    %0 = vector.load %arg2[%c0, %c0_0] : memref<16x16xbf16, #tpu.memory_space<vmem>>, vector<16x16xbf16>
    %c0_1 = arith.constant 0 : index
    %c0_2 = arith.constant 0 : index
    %1 = vector.load %arg1[%c0_1, %c0_2] : memref<32x32xbf16, #tpu.memory_space<vmem>>, vector<32x32xbf16>
    %c0_3 = arith.constant 0 : index
    %c0_4 = arith.constant 0 : index
    %2 = vector.load %arg3[%c0_3, %c0_4] : memref<16x32xf32, #tpu.memory_space<vmem>>, vector<16x32xf32>
    %cst = arith.constant 0.000000e+00 : f32
    %3 = vector.broadcast %cst : f32 to vector<16x32xf32>
    %c0_i32 = arith.constant 0 : i32
    %c30_i32 = arith.constant 30 : i32
    %4 = arith.addi %c0_i32, %c30_i32 : i32
    %c1_i32 = arith.constant 1 : i32
    %5:2 = scf.for %arg5 = %c0_i32 to %4 step %c1_i32 iter_args(%arg6 = %3, %arg7 = %3) -> (vector<16x32xf32>, vector<16x32xf32>)  : i32 {
      %cst_7 = arith.constant 2.000000e+00 : f32
      %7 = vector.broadcast %cst_7 : f32 to vector<16x32xf32>
      %8 = arith.mulf %7, %arg6 : vector<16x32xf32>
      %9 = arith.subf %8, %arg7 : vector<16x32xf32>
      %cst_8 = arith.constant 1.000000e+00 : f32
      %10 = vector.broadcast %cst_8 : f32 to vector<16x32xf32>
      %11 = arith.mulf %10, %2 : vector<16x32xf32>
      %12 = arith.addf %9, %11 : vector<16x32xf32>
      %13 = arith.truncf %12 : vector<16x32xf32> to vector<16x32xbf16>
      %cst_9 = arith.constant dense<0.000000e+00> : vector<16x32xf32>
      %14 = tpu.matmul %0, %13, %cst_9 {dimension_numbers = #tpu.dot_dimension_numbers<[1], [0], [0], [1], [0, 0, 1, 1], [], []>} : vector<16x16xbf16>, vector<16x32xbf16>, vector<16x32xf32> -> vector<16x32xf32>
      %15 = arith.truncf %14 : vector<16x32xf32> to vector<16x32xbf16>
      %cst_10 = arith.constant dense<0.000000e+00> : vector<16x32xf32>
      %16 = tpu.matmul %15, %1, %cst_10 {dimension_numbers = #tpu.dot_dimension_numbers<[1], [0], [0], [1], [0, 0, 1, 1], [], []>} : vector<16x32xbf16>, vector<32x32xbf16>, vector<16x32xf32> -> vector<16x32xf32>
      %17 = arith.addf %12, %16 : vector<16x32xf32>
      %18 = arith.truncf %16 : vector<16x32xf32> to vector<16x32xbf16>
      %cst_11 = arith.constant dense<0.000000e+00> : vector<16x32xf32>
      %19 = tpu.matmul %0, %18, %cst_11 {dimension_numbers = #tpu.dot_dimension_numbers<[1], [0], [0], [1], [0, 0, 1, 1], [], []>} : vector<16x16xbf16>, vector<16x32xbf16>, vector<16x32xf32> -> vector<16x32xf32>
      %20 = arith.truncf %19 : vector<16x32xf32> to vector<16x32xbf16>
      %cst_12 = arith.constant dense<0.000000e+00> : vector<16x32xf32>
      %21 = tpu.matmul %20, %1, %cst_12 {dimension_numbers = #tpu.dot_dimension_numbers<[1], [0], [0], [1], [0, 0, 1, 1], [], []>} : vector<16x32xbf16>, vector<32x32xbf16>, vector<16x32xf32> -> vector<16x32xf32>
      %22 = arith.addf %17, %21 : vector<16x32xf32>
      %23 = arith.truncf %21 : vector<16x32xf32> to vector<16x32xbf16>
      %cst_13 = arith.constant dense<0.000000e+00> : vector<16x32xf32>
      %24 = tpu.matmul %0, %23, %cst_13 {dimension_numbers = #tpu.dot_dimension_numbers<[1], [0], [0], [1], [0, 0, 1, 1], [], []>} : vector<16x16xbf16>, vector<16x32xbf16>, vector<16x32xf32> -> vector<16x32xf32>
      %25 = arith.truncf %24 : vector<16x32xf32> to vector<16x32xbf16>
      %cst_14 = arith.constant dense<0.000000e+00> : vector<16x32xf32>
      %26 = tpu.matmul %25, %1, %cst_14 {dimension_numbers = #tpu.dot_dimension_numbers<[1], [0], [0], [1], [0, 0, 1, 1], [], []>} : vector<16x32xbf16>, vector<32x32xbf16>, vector<16x32xf32> -> vector<16x32xf32>
      %27 = arith.addf %22, %26 : vector<16x32xf32>
      %28 = arith.truncf %26 : vector<16x32xf32> to vector<16x32xbf16>
      %cst_15 = arith.constant dense<0.000000e+00> : vector<16x32xf32>
      %29 = tpu.matmul %0, %28, %cst_15 {dimension_numbers = #tpu.dot_dimension_numbers<[1], [0], [0], [1], [0, 0, 1, 1], [], []>} : vector<16x16xbf16>, vector<16x32xbf16>, vector<16x32xf32> -> vector<16x32xf32>
      %30 = arith.truncf %29 : vector<16x32xf32> to vector<16x32xbf16>
      %cst_16 = arith.constant dense<0.000000e+00> : vector<16x32xf32>
      %31 = tpu.matmul %30, %1, %cst_16 {dimension_numbers = #tpu.dot_dimension_numbers<[1], [0], [0], [1], [0, 0, 1, 1], [], []>} : vector<16x32xbf16>, vector<32x32xbf16>, vector<16x32xf32> -> vector<16x32xf32>
      %32 = arith.addf %27, %31 : vector<16x32xf32>
      %33 = arith.truncf %31 : vector<16x32xf32> to vector<16x32xbf16>
      %cst_17 = arith.constant dense<0.000000e+00> : vector<16x32xf32>
      %34 = tpu.matmul %0, %33, %cst_17 {dimension_numbers = #tpu.dot_dimension_numbers<[1], [0], [0], [1], [0, 0, 1, 1], [], []>} : vector<16x16xbf16>, vector<16x32xbf16>, vector<16x32xf32> -> vector<16x32xf32>
      %35 = arith.truncf %34 : vector<16x32xf32> to vector<16x32xbf16>
      %cst_18 = arith.constant dense<0.000000e+00> : vector<16x32xf32>
      %36 = tpu.matmul %35, %1, %cst_18 {dimension_numbers = #tpu.dot_dimension_numbers<[1], [0], [0], [1], [0, 0, 1, 1], [], []>} : vector<16x32xbf16>, vector<32x32xbf16>, vector<16x32xf32> -> vector<16x32xf32>
      %37 = arith.addf %32, %36 : vector<16x32xf32>
      %38 = arith.truncf %36 : vector<16x32xf32> to vector<16x32xbf16>
      %cst_19 = arith.constant dense<0.000000e+00> : vector<16x32xf32>
      %39 = tpu.matmul %0, %38, %cst_19 {dimension_numbers = #tpu.dot_dimension_numbers<[1], [0], [0], [1], [0, 0, 1, 1], [], []>} : vector<16x16xbf16>, vector<16x32xbf16>, vector<16x32xf32> -> vector<16x32xf32>
      %40 = arith.truncf %39 : vector<16x32xf32> to vector<16x32xbf16>
      %cst_20 = arith.constant dense<0.000000e+00> : vector<16x32xf32>
      %41 = tpu.matmul %40, %1, %cst_20 {dimension_numbers = #tpu.dot_dimension_numbers<[1], [0], [0], [1], [0, 0, 1, 1], [], []>} : vector<16x32xbf16>, vector<32x32xbf16>, vector<16x32xf32> -> vector<16x32xf32>
      %42 = arith.addf %37, %41 : vector<16x32xf32>
      %43 = arith.truncf %41 : vector<16x32xf32> to vector<16x32xbf16>
      %cst_21 = arith.constant dense<0.000000e+00> : vector<16x32xf32>
      %44 = tpu.matmul %0, %43, %cst_21 {dimension_numbers = #tpu.dot_dimension_numbers<[1], [0], [0], [1], [0, 0, 1, 1], [], []>} : vector<16x16xbf16>, vector<16x32xbf16>, vector<16x32xf32> -> vector<16x32xf32>
      %45 = arith.truncf %44 : vector<16x32xf32> to vector<16x32xbf16>
      %cst_22 = arith.constant dense<0.000000e+00> : vector<16x32xf32>
      %46 = tpu.matmul %45, %1, %cst_22 {dimension_numbers = #tpu.dot_dimension_numbers<[1], [0], [0], [1], [0, 0, 1, 1], [], []>} : vector<16x32xbf16>, vector<32x32xbf16>, vector<16x32xf32> -> vector<16x32xf32>
      %47 = arith.addf %42, %46 : vector<16x32xf32>
      %48 = arith.truncf %46 : vector<16x32xf32> to vector<16x32xbf16>
      %cst_23 = arith.constant dense<0.000000e+00> : vector<16x32xf32>
      %49 = tpu.matmul %0, %48, %cst_23 {dimension_numbers = #tpu.dot_dimension_numbers<[1], [0], [0], [1], [0, 0, 1, 1], [], []>} : vector<16x16xbf16>, vector<16x32xbf16>, vector<16x32xf32> -> vector<16x32xf32>
      %50 = arith.truncf %49 : vector<16x32xf32> to vector<16x32xbf16>
      %cst_24 = arith.constant dense<0.000000e+00> : vector<16x32xf32>
      %51 = tpu.matmul %50, %1, %cst_24 {dimension_numbers = #tpu.dot_dimension_numbers<[1], [0], [0], [1], [0, 0, 1, 1], [], []>} : vector<16x32xbf16>, vector<32x32xbf16>, vector<16x32xf32> -> vector<16x32xf32>
      %52 = arith.addf %47, %51 : vector<16x32xf32>
      %53 = arith.truncf %51 : vector<16x32xf32> to vector<16x32xbf16>
      %cst_25 = arith.constant dense<0.000000e+00> : vector<16x32xf32>
      %54 = tpu.matmul %0, %53, %cst_25 {dimension_numbers = #tpu.dot_dimension_numbers<[1], [0], [0], [1], [0, 0, 1, 1], [], []>} : vector<16x16xbf16>, vector<16x32xbf16>, vector<16x32xf32> -> vector<16x32xf32>
      %55 = arith.truncf %54 : vector<16x32xf32> to vector<16x32xbf16>
      %cst_26 = arith.constant dense<0.000000e+00> : vector<16x32xf32>
      %56 = tpu.matmul %55, %1, %cst_26 {dimension_numbers = #tpu.dot_dimension_numbers<[1], [0], [0], [1], [0, 0, 1, 1], [], []>} : vector<16x32xbf16>, vector<32x32xbf16>, vector<16x32xf32> -> vector<16x32xf32>
      %57 = arith.addf %52, %56 : vector<16x32xf32>
      %58 = arith.truncf %56 : vector<16x32xf32> to vector<16x32xbf16>
      %cst_27 = arith.constant dense<0.000000e+00> : vector<16x32xf32>
      %59 = tpu.matmul %0, %58, %cst_27 {dimension_numbers = #tpu.dot_dimension_numbers<[1], [0], [0], [1], [0, 0, 1, 1], [], []>} : vector<16x16xbf16>, vector<16x32xbf16>, vector<16x32xf32> -> vector<16x32xf32>
      %60 = arith.truncf %59 : vector<16x32xf32> to vector<16x32xbf16>
      %cst_28 = arith.constant dense<0.000000e+00> : vector<16x32xf32>
      %61 = tpu.matmul %60, %1, %cst_28 {dimension_numbers = #tpu.dot_dimension_numbers<[1], [0], [0], [1], [0, 0, 1, 1], [], []>} : vector<16x32xbf16>, vector<32x32xbf16>, vector<16x32xf32> -> vector<16x32xf32>
      %62 = arith.addf %57, %61 : vector<16x32xf32>
      %cst_29 = arith.constant 5.000000e-01 : f32
      %63 = vector.broadcast %cst_29 : f32 to vector<16x32xf32>
      %64 = arith.mulf %62, %63 : vector<16x32xf32>
      %cst_30 = arith.constant 2.000000e+00 : f32
      %65 = vector.broadcast %cst_30 : f32 to vector<16x32xf32>
      %66 = arith.mulf %65, %64 : vector<16x32xf32>
      %67 = arith.subf %66, %9 : vector<16x32xf32>
      %cst_31 = arith.constant 0.000000e+00 : f32
      %68 = vector.broadcast %cst_31 : f32 to vector<16x32xf32>
      %69 = arith.maximumf %67, %68 : vector<16x32xf32>
      scf.yield %69, %67 : vector<16x32xf32>, vector<16x32xf32>
    }
    %c0_5 = arith.constant 0 : index
    %c0_6 = arith.constant 0 : index
    %6 = vector.load %arg4[%c0_5, %c0_6] : memref<16x32xf32, #tpu.memory_space<vmem>>, vector<16x32xf32>
    tpu.vector_store %arg4[%c0_5, %c0_6], %5#0 {strides = array<i32>} : memref<16x32xf32, #tpu.memory_space<vmem>>, vector<16x32xf32>,
    return
  }
  func.func @transform_0(%arg0: i32) -> (i32, i32) {
    %c0_i32 = arith.constant 0 : i32
    %c0_i32_0 = arith.constant 0 : i32
    %c0_i32_1 = arith.constant 0 : i32
    return %c0_i32, %c0_i32_0 : i32, i32
  }
  func.func @transform_1(%arg0: i32) -> (i32, i32) {
    %c0_i32 = arith.constant 0 : i32
    %c0_i32_0 = arith.constant 0 : i32
    %c0_i32_1 = arith.constant 0 : i32
    return %c0_i32, %c0_i32_0 : i32, i32
  }
  func.func @transform_2(%arg0: i32) -> (i32, i32) {
    %c0_i32 = arith.constant 0 : i32
    %c0_i32_0 = arith.constant 0 : i32
    %c0_i32_1 = arith.constant 0 : i32
    return %c0_i32, %c0_i32_0 : i32, i32
  }
  func.func @transform_3(%arg0: i32) -> (i32, i32) {
    %c0_i32 = arith.constant 0 : i32
    %c0_i32_0 = arith.constant 0 : i32
    %c0_i32_1 = arith.constant 0 : i32
    return %c0_i32, %c0_i32_0 : i32, i32
  }
}

module attributes {stable_mosaic.version = 11 : i64} {
  func.func @_mlp_kernel(%arg0: i32, %arg1: memref<16x32xf32, #tpu.memory_space<vmem>>, %arg2: memref<32x64xf32, #tpu.memory_space<vmem>>, %arg3: memref<1x64xf32, #tpu.memory_space<vmem>>, %arg4: memref<64x32xf32, #tpu.memory_space<vmem>>, %arg5: memref<1x32xf32, #tpu.memory_space<vmem>>, %arg6: memref<32x1xf32, #tpu.memory_space<vmem>>, %arg7: memref<1x1xf32, #tpu.memory_space<vmem>>, %arg8: memref<16x1xf32, #tpu.memory_space<vmem>>) attributes {dimension_semantics = [#tpu.dimension_semantics<parallel>], iteration_bounds = array<i64: 1>, scalar_prefetch = 0 : i64, scratch_operands = 0 : i64, tpu.core_type = #tpu.core_type<tc>, window_params = [{transform_indices = @transform_0, window_bounds = array<i64: 16, 32>}, {pipeline_mode = #tpu.pipeline_mode<synchronous>, transform_indices = @transform_1, window_bounds = array<i64: 32, 64>}, {pipeline_mode = #tpu.pipeline_mode<synchronous>, transform_indices = @transform_2, window_bounds = array<i64: 1, 64>}, {pipeline_mode = #tpu.pipeline_mode<synchronous>, transform_indices = @transform_3, window_bounds = array<i64: 64, 32>}, {pipeline_mode = #tpu.pipeline_mode<synchronous>, transform_indices = @transform_4, window_bounds = array<i64: 1, 32>}, {pipeline_mode = #tpu.pipeline_mode<synchronous>, transform_indices = @transform_5, window_bounds = array<i64: 32, 1>}, {pipeline_mode = #tpu.pipeline_mode<synchronous>, transform_indices = @transform_6, window_bounds = array<i64: 1, 1>}, {transform_indices = @transform_7, window_bounds = array<i64: 16, 1>}]} {
    %c0 = arith.constant 0 : index
    %c0_0 = arith.constant 0 : index
    %0 = vector.load %arg1[%c0, %c0_0] : memref<16x32xf32, #tpu.memory_space<vmem>>, vector<16x32xf32>
    %c0_1 = arith.constant 0 : index
    %c0_2 = arith.constant 0 : index
    %1 = vector.load %arg2[%c0_1, %c0_2] : memref<32x64xf32, #tpu.memory_space<vmem>>, vector<32x64xf32>
    %c0_3 = arith.constant 0 : index
    %c0_4 = arith.constant 0 : index
    %2 = vector.load %arg3[%c0_3, %c0_4] : memref<1x64xf32, #tpu.memory_space<vmem>>, vector<1x64xf32>
    %3 = arith.truncf %0 : vector<16x32xf32> to vector<16x32xbf16>
    %4 = arith.truncf %1 : vector<32x64xf32> to vector<32x64xbf16>
    %cst = arith.constant dense<0.000000e+00> : vector<16x64xf32>
    %5 = tpu.matmul %3, %4, %cst {dimension_numbers = #tpu.dot_dimension_numbers<[1], [0], [0], [1], [0, 0, 1, 1], [], []>} : vector<16x32xbf16>, vector<32x64xbf16>, vector<16x64xf32> -> vector<16x64xf32>
    %6 = vector.broadcast %2 : vector<1x64xf32> to vector<16x64xf32>
    %7 = arith.addf %5, %6 : vector<16x64xf32>
    %cst_5 = arith.constant 0.000000e+00 : f32
    %8 = vector.broadcast %cst_5 : f32 to vector<16x64xf32>
    %9 = arith.maximumf %7, %8 : vector<16x64xf32>
    %c0_6 = arith.constant 0 : index
    %c0_7 = arith.constant 0 : index
    %10 = vector.load %arg4[%c0_6, %c0_7] : memref<64x32xf32, #tpu.memory_space<vmem>>, vector<64x32xf32>
    %c0_8 = arith.constant 0 : index
    %c0_9 = arith.constant 0 : index
    %11 = vector.load %arg5[%c0_8, %c0_9] : memref<1x32xf32, #tpu.memory_space<vmem>>, vector<1x32xf32>
    %12 = arith.truncf %9 : vector<16x64xf32> to vector<16x64xbf16>
    %13 = arith.truncf %10 : vector<64x32xf32> to vector<64x32xbf16>
    %cst_10 = arith.constant dense<0.000000e+00> : vector<16x32xf32>
    %14 = tpu.matmul %12, %13, %cst_10 {dimension_numbers = #tpu.dot_dimension_numbers<[1], [0], [0], [1], [0, 0, 1, 1], [], []>} : vector<16x64xbf16>, vector<64x32xbf16>, vector<16x32xf32> -> vector<16x32xf32>
    %15 = vector.broadcast %11 : vector<1x32xf32> to vector<16x32xf32>
    %16 = arith.addf %14, %15 : vector<16x32xf32>
    %cst_11 = arith.constant 0.000000e+00 : f32
    %17 = vector.broadcast %cst_11 : f32 to vector<16x32xf32>
    %18 = arith.maximumf %16, %17 : vector<16x32xf32>
    %c0_12 = arith.constant 0 : index
    %c0_13 = arith.constant 0 : index
    %19 = vector.load %arg6[%c0_12, %c0_13] : memref<32x1xf32, #tpu.memory_space<vmem>>, vector<32x1xf32>
    %c0_14 = arith.constant 0 : index
    %c0_15 = arith.constant 0 : index
    %20 = vector.load %arg7[%c0_14, %c0_15] : memref<1x1xf32, #tpu.memory_space<vmem>>, vector<1x1xf32>
    %21 = arith.truncf %18 : vector<16x32xf32> to vector<16x32xbf16>
    %22 = arith.truncf %19 : vector<32x1xf32> to vector<32x1xbf16>
    %cst_16 = arith.constant dense<0.000000e+00> : vector<16x1xf32>
    %23 = tpu.matmul %21, %22, %cst_16 {dimension_numbers = #tpu.dot_dimension_numbers<[1], [0], [0], [1], [0, 0, 1, 1], [], []>} : vector<16x32xbf16>, vector<32x1xbf16>, vector<16x1xf32> -> vector<16x1xf32>
    %24 = vector.broadcast %20 : vector<1x1xf32> to vector<16x1xf32>
    %25 = arith.addf %23, %24 : vector<16x1xf32>
    %c0_17 = arith.constant 0 : index
    %c0_18 = arith.constant 0 : index
    %26 = vector.load %arg8[%c0_17, %c0_18] : memref<16x1xf32, #tpu.memory_space<vmem>>, vector<16x1xf32>
    tpu.vector_store %arg8[%c0_17, %c0_18], %25 {strides = array<i32>} : memref<16x1xf32, #tpu.memory_space<vmem>>, vector<16x1xf32>,
    return
  }
  func.func @transform_0(%arg0: i32) -> (i32, i32) {
    %c0_i32 = arith.constant 0 : i32
    %c0_i32_0 = arith.constant 0 : i32
    return %arg0, %c0_i32 : i32, i32
  }
  func.func @transform_1(%arg0: i32) -> (i32, i32) {
    %c0_i32 = arith.constant 0 : i32
    %c0_i32_0 = arith.constant 0 : i32
    %c0_i32_1 = arith.constant 0 : i32
    return %c0_i32, %c0_i32_0 : i32, i32
  }
  func.func @transform_2(%arg0: i32) -> (i32, i32) {
    %c0_i32 = arith.constant 0 : i32
    %c0_i32_0 = arith.constant 0 : i32
    %c0_i32_1 = arith.constant 0 : i32
    return %c0_i32, %c0_i32_0 : i32, i32
  }
  func.func @transform_3(%arg0: i32) -> (i32, i32) {
    %c0_i32 = arith.constant 0 : i32
    %c0_i32_0 = arith.constant 0 : i32
    %c0_i32_1 = arith.constant 0 : i32
    return %c0_i32, %c0_i32_0 : i32, i32
  }
  func.func @transform_4(%arg0: i32) -> (i32, i32) {
    %c0_i32 = arith.constant 0 : i32
    %c0_i32_0 = arith.constant 0 : i32
    %c0_i32_1 = arith.constant 0 : i32
    return %c0_i32, %c0_i32_0 : i32, i32
  }
  func.func @transform_5(%arg0: i32) -> (i32, i32) {
    %c0_i32 = arith.constant 0 : i32
    %c0_i32_0 = arith.constant 0 : i32
    %c0_i32_1 = arith.constant 0 : i32
    return %c0_i32, %c0_i32_0 : i32, i32
  }
  func.func @transform_6(%arg0: i32) -> (i32, i32) {
    %c0_i32 = arith.constant 0 : i32
    %c0_i32_0 = arith.constant 0 : i32
    %c0_i32_1 = arith.constant 0 : i32
    return %c0_i32, %c0_i32_0 : i32, i32
  }
  func.func @transform_7(%arg0: i32) -> (i32, i32) {
    %c0_i32 = arith.constant 0 : i32
    %c0_i32_0 = arith.constant 0 : i32
    return %arg0, %c0_i32 : i32, i32
  }
}

</mosaic_0001>

<llo_original>
// kernel: porous_mignn_forward.13
$region0: #{porous_mignn_forward.13}
  #allocation0 [shape = 'u32[]', space=smem, size = 0x4, offset = 0x4, fixed_abs, tag = 'smem constant byte address 0x4 - core index']
  #allocation1 [shape = 'u32[144,128]{1,0:T(1,128)}', space=vmem, size = 0x12000, scoped, tag = 'internal scratch']
  %s0 = inlined_call_operand.vmem [shape: f32[16,64], index: 0, kind: input, shape index: {}]
  %s1 = inlined_call_operand.vmem [shape: f32[64,256], index: 1, kind: input, shape index: {}]
  %s2 = inlined_call_operand.vmem [shape: f32[1,256], index: 2, kind: input, shape index: {}]
  %s3 = inlined_call_operand.vmem [shape: f32[16,256], index: 3, kind: output, shape index: {}]
  %s4 = sld [smem:[#allocation0]]
  $region22: #{porous_mignn_forward.13} parent=0
    _
  %s6 = ssub.s32 1, %s4
  %s7 = scalar_select 0, %s6, %s4
  // Predicated region
  $region2: #{porous_mignn_forward.13} parent=0 // pred_check
    _
  $region3: #{porous_mignn_forward.13} parent=0 // pred_check_branch
    %9 = sbr.rel (0) target = $region5
  $region4: #{porous_mignn_forward.13} parent=0 // pred_region
    _
  $region5: #{porous_mignn_forward.13} parent=0 // pred_fallthru
    _
  // Predicated region
  $region6: #{porous_mignn_forward.13} parent=0 // pred_check
    _
  $region7: #{porous_mignn_forward.13} parent=0 // pred_check_branch
    %11 = sbr.rel (0) target = $region9
  $region8: #{porous_mignn_forward.13} parent=0 // pred_region
    _
  $region9: #{porous_mignn_forward.13} parent=0 // pred_fallthru
    _
  // Predicated region
  $region10: #{porous_mignn_forward.13} parent=0 // pred_check
    _
  $region11: #{porous_mignn_forward.13} parent=0 // pred_check_branch
    %13 = sbr.rel (0) target = $region13
  $region12: #{porous_mignn_forward.13} parent=0 // pred_region
    _
  $region13: #{porous_mignn_forward.13} parent=0 // pred_fallthru
    _
  %v15 = vld [vmem:[%s0] sm:$0xff]
  %v16 = vld [vmem:[%s0 + $0x8] sm:$0xff]
  %v17 = vld [vmem:[%s1] sm:$0xff]
  %v18 = vld [vmem:[%s1 + $0x8] sm:$0xff]
  %v19 = vld [vmem:[%s1 + $0x10] sm:$0xff]
  %v20 = vld [vmem:[%s1 + $0x18] sm:$0xff]
  %v21 = vld [vmem:[%s1 + $0x20] sm:$0xff]
  %v22 = vld [vmem:[%s1 + $0x28] sm:$0xff]
  %v23 = vld [vmem:[%s1 + $0x30] sm:$0xff]
  %v24 = vld [vmem:[%s1 + $0x38] sm:$0xff]
  %v25 = vld [vmem:[%s1 + $0x40] sm:$0xff]
  %v26 = vld [vmem:[%s1 + $0x48] sm:$0xff]
  %v27 = vld [vmem:[%s1 + $0x50] sm:$0xff]
  %v28 = vld [vmem:[%s1 + $0x58] sm:$0xff]
  %v29 = vld [vmem:[%s1 + $0x60] sm:$0xff]
  %v30 = vld [vmem:[%s1 + $0x68] sm:$0xff]
  %v31 = vld [vmem:[%s1 + $0x70] sm:$0xff]
  %v32 = vld [vmem:[%s1 + $0x78] sm:$0xff]
  %v33 = vld [vmem:[%s2] sm:$0x3]
  %v34 = vpack.c.bf16 %v16, %v15
  %v35 = vpack.c.bf16 %v19, %v17
  %v36 = vpack.c.bf16 %v20, %v18
  %v37 = vpack.c.bf16 %v23, %v21
  %v38 = vpack.c.bf16 %v24, %v22
  %v39 = vpack.c.bf16 %v27, %v25
  %v40 = vpack.c.bf16 %v28, %v26
  %v41 = vpack.c.bf16 %v31, %v29
  %v42 = vpack.c.bf16 %v32, %v30
  %v44 = vlaneseq
  %v45 = vshrl.u32 %v44, 7
  %v46 = vsub.s32 0, %v45
  %v47 = vrot.slane %v33, %v46
  %v48 = vlaneseq
  %v49 = vshrl.u32 %v48, 7
  %v50 = vsub.s32 1, %v49
  %v51 = vrot.slane %v33, %v50
  %vm54 = vcmask 523264
  %v56 = vsel %vm54, %v34, 0
  %58 = vmatprep.subr.bf16.mxu0 %v36
  %59 = vmatpush1.bf16.msra.mxu0 %v35
  %60 = vmatprep.subr.bf16.mxu0 %v38
  %61 = vmatpush1.bf16.msra.mxu0 %v37
  %62 = vmatprep.subr.bf16.mxu0 %v40
  %63 = vmatpush1.bf16.msra.mxu0 %v39
  %64 = vmatprep.subr.bf16.mxu0 %v42
  %65 = vmatpush1.bf16.msra.mxu0 %v41
  %66 = vmatprep.subr.bf16.mxu0 0
  %67 = vmatpush1.bf16.msra.mxu0 0
  %68 = vmatprep.subr.bf16.mxu0 0
  %69 = vmatpush1.bf16.msra.mxu0 0
  %70 = vmatprep.subr.bf16.mxu0 0
  %71 = vmatpush1.bf16.msra.mxu0 0
  %72 = vmatprep.subr.bf16.mxu0 0
  %73 = vmatpush1.bf16.msra.mxu0 0
  %74 = vmatprep.subr.bf16.mxu0 0
  %75 = vmatpush1.bf16.msra.mxu0 0
  %76 = vmatprep.subr.bf16.mxu0 0
  %77 = vmatpush1.bf16.msra.mxu0 0
  %78 = vmatprep.subr.bf16.mxu0 0
  %79 = vmatpush1.bf16.msra.mxu0 0
  %80 = vmatprep.subr.bf16.mxu0 0
  %81 = vmatpush1.bf16.msra.mxu0 0
  %82 = vmatprep.subr.bf16.mxu0 0
  %83 = vmatpush1.bf16.msra.mxu0 0
  %84 = vmatprep.subr.bf16.mxu0 0
  %85 = vmatpush1.bf16.msra.mxu0 0
  %86 = vmatprep.subr.bf16.mxu0 0
  %87 = vmatpush1.bf16.msra.mxu0 0
  %88 = vmatprep.subr.bf16.mxu0 0
  %89 = vmatpush1.bf16.msra.mxu0 0
  %90 = vmatprep.mubr.bf16.mxu0 0
  %91 = vmatmul.mubr.bf16.gmra.mrb[0].mxu0 %v56
  %v92 = vpop.f32.mrb[0].mxu0
  %v93 = vadd.f32 %v47, %v92
  %v94 = vpop.f32.mrb[0].mxu0
  %v95 = vadd.f32 %v51, %v94
  %v96 = vpop.f32.mrb[0].mxu0
  %v97 = vadd.f32 %v47, %v96
  %v98 = vpop.f32.mrb[0].mxu0
  %v99 = vadd.f32 %v51, %v98
  %100 = vdwg.mxu0
  %101 = vst [vmem:[%s3] sm:$0xff] %v93
  %102 = vst [vmem:[%s3 + $0x8] sm:$0xff] %v95
  %103 = vst [vmem:[%s3 + $0x10] sm:$0xff] %v97
  %104 = vst [vmem:[%s3 + $0x18] sm:$0xff] %v99
  // Predicated region
  $region14: #{porous_mignn_forward.13} parent=0 // pred_check
    _
  $region15: #{porous_mignn_forward.13} parent=0 // pred_check_branch
    %106 = sbr.rel (0) target = $region17
  $region16: #{porous_mignn_forward.13} parent=0 // pred_region
    _
  $region17: #{porous_mignn_forward.13} parent=0 // pred_fallthru
    _
  // Predicated region
  $region18: #{porous_mignn_forward.13} parent=0 // pred_check
    _
  $region19: #{porous_mignn_forward.13} parent=0 // pred_check_branch
    %108 = sbr.rel (0) target = $region21
  $region20: #{porous_mignn_forward.13} parent=0 // pred_region
    _
  $region21: #{porous_mignn_forward.13} parent=0 // pred_fallthru
    _

// kernel: porous_mignn_forward.11
$region0: #{porous_mignn_forward.11}
  #allocation0 [shape = 'u32[]', space=smem, size = 0x4, offset = 0x4, fixed_abs, tag = 'smem constant byte address 0x4 - core index']
  #allocation1 [shape = 'u32[144,128]{1,0:T(1,128)}', space=vmem, size = 0x12000, scoped, tag = 'internal scratch']
  %s0 = inlined_call_operand.vmem [shape: f32[16,8], index: 0, kind: input, shape index: {}]
  %s1 = inlined_call_operand.vmem [shape: f32[8,128], index: 1, kind: input, shape index: {}]
  %s2 = inlined_call_operand.vmem [shape: f32[1,128], index: 2, kind: input, shape index: {}]
  %s3 = inlined_call_operand.vmem [shape: f32[128,64], index: 3, kind: input, shape index: {}]
  %s4 = inlined_call_operand.vmem [shape: f32[1,64], index: 4, kind: input, shape index: {}]
  %s5 = inlined_call_operand.vmem [shape: f32[16,64], index: 5, kind: output, shape index: {}]
  %s6 = sld [smem:[#allocation0]]
  $region30: #{porous_mignn_forward.11} parent=0
    _
  %s8 = ssub.s32 1, %s6
  %s9 = scalar_select 0, %s8, %s6
  // Predicated region
  $region2: #{porous_mignn_forward.11} parent=0 // pred_check
    _
  $region3: #{porous_mignn_forward.11} parent=0 // pred_check_branch
    %11 = sbr.rel (0) target = $region5
  $region4: #{porous_mignn_forward.11} parent=0 // pred_region
    _
  $region5: #{porous_mignn_forward.11} parent=0 // pred_fallthru
    _
  // Predicated region
  $region6: #{porous_mignn_forward.11} parent=0 // pred_check
    _
  $region7: #{porous_mignn_forward.11} parent=0 // pred_check_branch
    %13 = sbr.rel (0) target = $region9
  $region8: #{porous_mignn_forward.11} parent=0 // pred_region
    _
  $region9: #{porous_mignn_forward.11} parent=0 // pred_fallthru
    _
  // Predicated region
  $region10: #{porous_mignn_forward.11} parent=0 // pred_check
    _
  $region11: #{porous_mignn_forward.11} parent=0 // pred_check_branch
    %15 = sbr.rel (0) target = $region13
  $region12: #{porous_mignn_forward.11} parent=0 // pred_region
    _
  $region13: #{porous_mignn_forward.11} parent=0 // pred_fallthru
    _
  // Predicated region
  $region14: #{porous_mignn_forward.11} parent=0 // pred_check
    _
  $region15: #{porous_mignn_forward.11} parent=0 // pred_check_branch
    %17 = sbr.rel (0) target = $region17
  $region16: #{porous_mignn_forward.11} parent=0 // pred_region
    _
  $region17: #{porous_mignn_forward.11} parent=0 // pred_fallthru
    _
  // Predicated region
  $region18: #{porous_mignn_forward.11} parent=0 // pred_check
    _
  $region19: #{porous_mignn_forward.11} parent=0 // pred_check_branch
    %19 = sbr.rel (0) target = $region21
  $region20: #{porous_mignn_forward.11} parent=0 // pred_region
    _
  $region21: #{porous_mignn_forward.11} parent=0 // pred_fallthru
    _
  %v21 = vld [vmem:[%s0] sm:$0xff]
  %v22 = vld [vmem:[%s0 + $0x8] sm:$0xff]
  %v23 = vld [vmem:[%s1] sm:$0xff]
  %v24 = vld [vmem:[%s2] sm:$0x1]
  %v25 = vpack.c.bf16 %v22, %v21
  %v26 = vpack.c.bf16 %v23, %v23
  %v28 = vlaneseq
  %v29 = vshrl.u32 %v28, 7
  %v30 = vsub.s32 0, %v29
  %v31 = vrot.slane %v24, %v30
  %vm33 = vcmask 64512
  %v35 = vsel %vm33, %v25, 0
  %vm37 = vcmask 1043456
  %v39 = vsel %vm37, %v26, 0
  %41 = vmatprep.subr.bf16.mxu0 0
  %42 = vmatpush1.bf16.msra.mxu0 %v39
  %43 = vmatprep.subr.bf16.mxu0 0
  %44 = vmatpush1.bf16.msra.mxu0 0
  %45 = vmatprep.subr.bf16.mxu0 0
  %46 = vmatpush1.bf16.msra.mxu0 0
  %47 = vmatprep.subr.bf16.mxu0 0
  %48 = vmatpush1.bf16.msra.mxu0 0
  %49 = vmatprep.subr.bf16.mxu0 0
  %50 = vmatpush1.bf16.msra.mxu0 0
  %51 = vmatprep.subr.bf16.mxu0 0
  %52 = vmatpush1.bf16.msra.mxu0 0
  %53 = vmatprep.subr.bf16.mxu0 0
  %54 = vmatpush1.bf16.msra.mxu0 0
  %55 = vmatprep.subr.bf16.mxu0 0
  %56 = vmatpush1.bf16.msra.mxu0 0
  %57 = vmatprep.subr.bf16.mxu0 0
  %58 = vmatpush1.bf16.msra.mxu0 0
  %59 = vmatprep.subr.bf16.mxu0 0
  %60 = vmatpush1.bf16.msra.mxu0 0
  %61 = vmatprep.subr.bf16.mxu0 0
  %62 = vmatpush1.bf16.msra.mxu0 0
  %63 = vmatprep.subr.bf16.mxu0 0
  %64 = vmatpush1.bf16.msra.mxu0 0
  %65 = vmatprep.subr.bf16.mxu0 0
  %66 = vmatpush1.bf16.msra.mxu0 0
  %67 = vmatprep.subr.bf16.mxu0 0
  %68 = vmatpush1.bf16.msra.mxu0 0
  %69 = vmatprep.subr.bf16.mxu0 0
  %70 = vmatpush1.bf16.msra.mxu0 0
  %71 = vmatprep.subr.bf16.mxu0 0
  %72 = vmatpush1.bf16.msra.mxu0 0
  %73 = vmatprep.mubr.bf16.mxu0 0
  %74 = vmatmul.mubr.bf16.gmra.mrb[0].mxu0 %v35
  %v75 = vpop.f32.mrb[0].mxu0
  %v76 = vadd.f32 %v31, %v75
  %v77 = vpop.f32.mrb[0].mxu0
  %v78 = vpop.f32.mrb[0].mxu0
  %v79 = vadd.f32 %v31, %v78
  %v80 = vpop.f32.mrb[0].mxu0
  %81 = vdwg.mxu0
  %v82 = vmax.f32 %v76, 0.0
  %v83 = vmax.f32 %v79, 0.0
  %v84 = vld [vmem:[%s3] sm:$0xff]
  %v85 = vld [vmem:[%s3 + $0x8] sm:$0xff]
  %v86 = vld [vmem:[%s3 + $0x10] sm:$0xff]
  %v87 = vld [vmem:[%s3 + $0x18] sm:$0xff]
  %v88 = vld [vmem:[%s3 + $0x20] sm:$0xff]
  %v89 = vld [vmem:[%s3 + $0x28] sm:$0xff]
  %v90 = vld [vmem:[%s3 + $0x30] sm:$0xff]
  %v91 = vld [vmem:[%s3 + $0x38] sm:$0xff]
  %v92 = vld [vmem:[%s3 + $0x40] sm:$0xff]
  %v93 = vld [vmem:[%s3 + $0x48] sm:$0xff]
  %v94 = vld [vmem:[%s3 + $0x50] sm:$0xff]
  %v95 = vld [vmem:[%s3 + $0x58] sm:$0xff]
  %v96 = vld [vmem:[%s3 + $0x60] sm:$0xff]
  %v97 = vld [vmem:[%s3 + $0x68] sm:$0xff]
  %v98 = vld [vmem:[%s3 + $0x70] sm:$0xff]
  %v99 = vld [vmem:[%s3 + $0x78] sm:$0xff]
  %v100 = vld [vmem:[%s4] sm:$0x1]
  %v101 = vpack.c.bf16 %v83, %v82
  %v102 = vpack.c.bf16 %v85, %v84
  %v103 = vpack.c.bf16 %v87, %v86
  %v104 = vpack.c.bf16 %v89, %v88
  %v105 = vpack.c.bf16 %v91, %v90
  %v106 = vpack.c.bf16 %v93, %v92
  %v107 = vpack.c.bf16 %v95, %v94
  %v108 = vpack.c.bf16 %v97, %v96
  %v109 = vpack.c.bf16 %v99, %v98
  %v111 = vlaneseq
  %v112 = vshrl.u32 %v111, 7
  %v113 = vsub.s32 0, %v112
  %v114 = vrot.slane %v100, %v113
  %116 = vmatprep.subr.bf16.mxu0 0
  %117 = vmatpush1.bf16.msra.mxu0 %v102
  %118 = vmatprep.subr.bf16.mxu0 0
  %119 = vmatpush1.bf16.msra.mxu0 %v103
  %120 = vmatprep.subr.bf16.mxu0 0
  %121 = vmatpush1.bf16.msra.mxu0 %v104
  %122 = vmatprep.subr.bf16.mxu0 0
  %123 = vmatpush1.bf16.msra.mxu0 %v105
  %124 = vmatprep.subr.bf16.mxu0 0
  %125 = vmatpush1.bf16.msra.mxu0 %v106
  %126 = vmatprep.subr.bf16.mxu0 0
  %127 = vmatpush1.bf16.msra.mxu0 %v107
  %128 = vmatprep.subr.bf16.mxu0 0
  %129 = vmatpush1.bf16.msra.mxu0 %v108
  %130 = vmatprep.subr.bf16.mxu0 0
  %131 = vmatpush1.bf16.msra.mxu0 %v109
  %132 = vmatprep.subr.bf16.mxu0 0
  %133 = vmatpush1.bf16.msra.mxu0 0
  %134 = vmatprep.subr.bf16.mxu0 0
  %135 = vmatpush1.bf16.msra.mxu0 0
  %136 = vmatprep.subr.bf16.mxu0 0
  %137 = vmatpush1.bf16.msra.mxu0 0
  %138 = vmatprep.subr.bf16.mxu0 0
  %139 = vmatpush1.bf16.msra.mxu0 0
  %140 = vmatprep.subr.bf16.mxu0 0
  %141 = vmatpush1.bf16.msra.mxu0 0
  %142 = vmatprep.subr.bf16.mxu0 0
  %143 = vmatpush1.bf16.msra.mxu0 0
  %144 = vmatprep.subr.bf16.mxu0 0
  %145 = vmatpush1.bf16.msra.mxu0 0
  %146 = vmatprep.subr.bf16.mxu0 0
  %147 = vmatpush1.bf16.msra.mxu0 0
  %148 = vmatprep.mubr.bf16.mxu0 0
  %149 = vmatmul.mubr.bf16.gmra.mrb[0].mxu0 %v101
  %v150 = vpop.f32.mrb[0].mxu0
  %v151 = vadd.f32 %v114, %v150
  %v152 = vpop.f32.mrb[0].mxu0
  %v153 = vpop.f32.mrb[0].mxu0
  %v154 = vadd.f32 %v114, %v153
  %v155 = vpop.f32.mrb[0].mxu0
  %156 = vdwg.mxu0
  %v157 = vmax.f32 %v151, 0.0
  %v158 = vmax.f32 %v154, 0.0
  %vm159 = vcmask 523264
  %160 = vst.msk [vmem:[%s5] sm:$0xff] %vm159, %v157
  %161 = vst.msk [vmem:[%s5 + $0x8] sm:$0xff] %vm159, %v158
  // Predicated region
  $region22: #{porous_mignn_forward.11} parent=0 // pred_check
    _
  $region23: #{porous_mignn_forward.11} parent=0 // pred_check_branch
    %163 = sbr.rel (0) target = $region25
  $region24: #{porous_mignn_forward.11} parent=0 // pred_region
    _
  $region25: #{porous_mignn_forward.11} parent=0 // pred_fallthru
    _
  // Predicated region
  $region26: #{porous_mignn_forward.11} parent=0 // pred_check
    _
  $region27: #{porous_mignn_forward.11} parent=0 // pred_check_branch
    %165 = sbr.rel (0) target = $region29
  $region28: #{porous_mignn_forward.11} parent=0 // pred_region
    _
  $region29: #{porous_mignn_forward.11} parent=0 // pred_fallthru
    _

// kernel: porous_mignn_forward.12
$region0: #{porous_mignn_forward.12}
  #allocation0 [shape = 'u32[]', space=smem, size = 0x4, offset = 0x4, fixed_abs, tag = 'smem constant byte address 0x4 - core index']
  #allocation1 [shape = 'u32[144,128]{1,0:T(1,128)}', space=vmem, size = 0x12000, scoped, tag = 'internal scratch']
  %s0 = inlined_call_operand.vmem [shape: f32[256,4], index: 0, kind: input, shape index: {}]
  %s1 = inlined_call_operand.vmem [shape: f32[4,128], index: 1, kind: input, shape index: {}]
  %s2 = inlined_call_operand.vmem [shape: f32[1,128], index: 2, kind: input, shape index: {}]
  %s3 = inlined_call_operand.vmem [shape: f32[128,64], index: 3, kind: input, shape index: {}]
  %s4 = inlined_call_operand.vmem [shape: f32[1,64], index: 4, kind: input, shape index: {}]
  %s5 = inlined_call_operand.vmem [shape: f32[256,64], index: 5, kind: output, shape index: {}]
  %s6 = sld [smem:[#allocation0]]
  $region30: #{porous_mignn_forward.12} parent=0
    _
  %s8 = ssub.s32 1, %s6
  %s9 = scalar_select 0, %s8, %s6
  // Predicated region
  $region2: #{porous_mignn_forward.12} parent=0 // pred_check
    _
  $region3: #{porous_mignn_forward.12} parent=0 // pred_check_branch
    %11 = sbr.rel (0) target = $region5
  $region4: #{porous_mignn_forward.12} parent=0 // pred_region
    _
  $region5: #{porous_mignn_forward.12} parent=0 // pred_fallthru
    _
  // Predicated region
  $region6: #{porous_mignn_forward.12} parent=0 // pred_check
    _
  $region7: #{porous_mignn_forward.12} parent=0 // pred_check_branch
    %13 = sbr.rel (0) target = $region9
  $region8: #{porous_mignn_forward.12} parent=0 // pred_region
    _
  $region9: #{porous_mignn_forward.12} parent=0 // pred_fallthru
    _
  // Predicated region
  $region10: #{porous_mignn_forward.12} parent=0 // pred_check
    _
  $region11: #{porous_mignn_forward.12} parent=0 // pred_check_branch
    %15 = sbr.rel (0) target = $region13
  $region12: #{porous_mignn_forward.12} parent=0 // pred_region
    _
  $region13: #{porous_mignn_forward.12} parent=0 // pred_fallthru
    _
  // Predicated region
  $region14: #{porous_mignn_forward.12} parent=0 // pred_check
    _
  $region15: #{porous_mignn_forward.12} parent=0 // pred_check_branch
    %17 = sbr.rel (0) target = $region17
  $region16: #{porous_mignn_forward.12} parent=0 // pred_region
    _
  $region17: #{porous_mignn_forward.12} parent=0 // pred_fallthru
    _
  // Predicated region
  $region18: #{porous_mignn_forward.12} parent=0 // pred_check
    _
  $region19: #{porous_mignn_forward.12} parent=0 // pred_check_branch
    %19 = sbr.rel (0) target = $region21
  $region20: #{porous_mignn_forward.12} parent=0 // pred_region
    _
  $region21: #{porous_mignn_forward.12} parent=0 // pred_fallthru
    _
  %v21 = vld [vmem:[%s0] sm:$0xff]
  %v22 = vld [vmem:[%s0 + $0x8] sm:$0xff]
  %v23 = vld [vmem:[%s0 + $0x10] sm:$0xff]
  %v24 = vld [vmem:[%s0 + $0x18] sm:$0xff]
  %v25 = vld [vmem:[%s0 + $0x20] sm:$0xff]
  %v26 = vld [vmem:[%s0 + $0x28] sm:$0xff]
  %v27 = vld [vmem:[%s0 + $0x30] sm:$0xff]
  %v28 = vld [vmem:[%s0 + $0x38] sm:$0xff]
  %v29 = vld [vmem:[%s0 + $0x40] sm:$0xff]
  %v30 = vld [vmem:[%s0 + $0x48] sm:$0xff]
  %v31 = vld [vmem:[%s0 + $0x50] sm:$0xff]
  %v32 = vld [vmem:[%s0 + $0x58] sm:$0xff]
  %v33 = vld [vmem:[%s0 + $0x60] sm:$0xff]
  %v34 = vld [vmem:[%s0 + $0x68] sm:$0xff]
  %v35 = vld [vmem:[%s0 + $0x70] sm:$0xff]
  %v36 = vld [vmem:[%s0 + $0x78] sm:$0xff]
  %v37 = vld [vmem:[%s0 + $0x80] sm:$0xff]
  %v38 = vld [vmem:[%s0 + $0x88] sm:$0xff]
  %v39 = vld [vmem:[%s0 + $0x90] sm:$0xff]
  %v40 = vld [vmem:[%s0 + $0x98] sm:$0xff]
  %v41 = vld [vmem:[%s0 + $0xa0] sm:$0xff]
  %v42 = vld [vmem:[%s0 + $0xa8] sm:$0xff]
  %v43 = vld [vmem:[%s0 + $0xb0] sm:$0xff]
  %v44 = vld [vmem:[%s0 + $0xb8] sm:$0xff]
  %v45 = vld [vmem:[%s0 + $0xc0] sm:$0xff]
  %v46 = vld [vmem:[%s0 + $0xc8] sm:$0xff]
  %v47 = vld [vmem:[%s0 + $0xd0] sm:$0xff]
  %v48 = vld [vmem:[%s0 + $0xd8] sm:$0xff]
  %v49 = vld [vmem:[%s0 + $0xe0] sm:$0xff]
  %v50 = vld [vmem:[%s0 + $0xe8] sm:$0xff]
  %v51 = vld [vmem:[%s0 + $0xf0] sm:$0xff]
  %v52 = vld [vmem:[%s0 + $0xf8] sm:$0xff]
  %v53 = vld [vmem:[%s1] sm:$0xf]
  %v54 = vld [vmem:[%s2] sm:$0x1]
  %v55 = vpack.c.bf16 %v22, %v21
  %v56 = vpack.c.bf16 %v24, %v23
  %v57 = vpack.c.bf16 %v26, %v25
  %v58 = vpack.c.bf16 %v28, %v27
  %v59 = vpack.c.bf16 %v30, %v29
  %v60 = vpack.c.bf16 %v32, %v31
  %v61 = vpack.c.bf16 %v34, %v33
  %v62 = vpack.c.bf16 %v36, %v35
  %v63 = vpack.c.bf16 %v38, %v37
  %v64 = vpack.c.bf16 %v40, %v39
  %v65 = vpack.c.bf16 %v42, %v41
  %v66 = vpack.c.bf16 %v44, %v43
  %v67 = vpack.c.bf16 %v46, %v45
  %v68 = vpack.c.bf16 %v48, %v47
  %v69 = vpack.c.bf16 %v50, %v49
  %v70 = vpack.c.bf16 %v52, %v51
  %v71 = vpack.c.bf16 %v53, %v53
  %v73 = vlaneseq
  %v74 = vshrl.u32 %v73, 7
  %v75 = vsub.s32 0, %v74
  %v76 = vrot.slane %v54, %v75
  %vm78 = vcmask 31744
  %v80 = vsel %vm78, %v55, 0
  %v83 = vsel %vm78, %v56, 0
  %v86 = vsel %vm78, %v57, 0
  %v89 = vsel %vm78, %v58, 0
  %v92 = vsel %vm78, %v59, 0
  %v95 = vsel %vm78, %v60, 0
  %v98 = vsel %vm78, %v61, 0
  %v101 = vsel %vm78, %v62, 0
  %v104 = vsel %vm78, %v63, 0
  %v107 = vsel %vm78, %v64, 0
  %v110 = vsel %vm78, %v65, 0
  %v113 = vsel %vm78, %v66, 0
  %v116 = vsel %vm78, %v67, 0
  %v119 = vsel %vm78, %v68, 0
  %v122 = vsel %vm78, %v69, 0
  %v125 = vsel %vm78, %v70, 0
  %vm127 = vcmask 1041408
  %v129 = vsel %vm127, %v71, 0
  %131 = vmatprep.subr.bf16.mxu0 0
  %132 = vmatpush1.bf16.msra.mxu0 %v129
  %133 = vmatprep.subr.bf16.mxu0 0
  %134 = vmatpush1.bf16.msra.mxu0 0
  %135 = vmatprep.subr.bf16.mxu0 0
  %136 = vmatpush1.bf16.msra.mxu0 0
  %137 = vmatprep.subr.bf16.mxu0 0
  %138 = vmatpush1.bf16.msra.mxu0 0
  %139 = vmatprep.subr.bf16.mxu0 0
  %140 = vmatpush1.bf16.msra.mxu0 0
  %141 = vmatprep.subr.bf16.mxu0 0
  %142 = vmatpush1.bf16.msra.mxu0 0
  %143 = vmatprep.subr.bf16.mxu0 0
  %144 = vmatpush1.bf16.msra.mxu0 0
  %145 = vmatprep.subr.bf16.mxu0 0
  %146 = vmatpush1.bf16.msra.mxu0 0
  %147 = vmatprep.subr.bf16.mxu0 0
  %148 = vmatpush1.bf16.msra.mxu0 0
  %149 = vmatprep.subr.bf16.mxu0 0
  %150 = vmatpush1.bf16.msra.mxu0 0
  %151 = vmatprep.subr.bf16.mxu0 0
  %152 = vmatpush1.bf16.msra.mxu0 0
  %153 = vmatprep.subr.bf16.mxu0 0
  %154 = vmatpush1.bf16.msra.mxu0 0
  %155 = vmatprep.subr.bf16.mxu0 0
  %156 = vmatpush1.bf16.msra.mxu0 0
  %157 = vmatprep.subr.bf16.mxu0 0
  %158 = vmatpush1.bf16.msra.mxu0 0
  %159 = vmatprep.subr.bf16.mxu0 0
  %160 = vmatpush1.bf16.msra.mxu0 0
  %161 = vmatprep.subr.bf16.mxu0 0
  %162 = vmatpush1.bf16.msra.mxu0 0
  %163 = vmatprep.mubr.bf16.mxu0 0
  %164 = vmatmul.mubr.bf16.gmra.mrb[0].mxu0 %v80
  %v165 = vpop.f32.mrb[0].mxu0
  %v166 = vadd.f32 %v76, %v165
  %v167 = vpop.f32.mrb[0].mxu0
  %v168 = vpop.f32.mrb[0].mxu0
  %v169 = vadd.f32 %v76, %v168
  %v170 = vpop.f32.mrb[0].mxu0
  %171 = vmatprep.mubr.bf16.mxu0 0
  %172 = vmatmul.mubr.bf16.gmra.mrb[0].mxu0 %v83
  %v173 = vpop.f32.mrb[0].mxu0
  %v174 = vadd.f32 %v76, %v173
  %v175 = vpop.f32.mrb[0].mxu0
  %v176 = vpop.f32.mrb[0].mxu0
  %v177 = vadd.f32 %v76, %v176
  %v178 = vpop.f32.mrb[0].mxu0
  %179 = vmatprep.mubr.bf16.mxu0 0
  %180 = vmatmul.mubr.bf16.gmra.mrb[0].mxu0 %v86
  %v181 = vpop.f32.mrb[0].mxu0
  %v182 = vadd.f32 %v76, %v181
  %v183 = vpop.f32.mrb[0].mxu0
  %v184 = vpop.f32.mrb[0].mxu0
  %v185 = vadd.f32 %v76, %v184
  %v186 = vpop.f32.mrb[0].mxu0
  %187 = vmatprep.mubr.bf16.mxu0 0
  %188 = vmatmul.mubr.bf16.gmra.mrb[0].mxu0 %v89
  %v189 = vpop.f32.mrb[0].mxu0
  %v190 = vadd.f32 %v76, %v189
  %v191 = vpop.f32.mrb[0].mxu0
  %v192 = vpop.f32.mrb[0].mxu0
  %v193 = vadd.f32 %v76, %v192
  %v194 = vpop.f32.mrb[0].mxu0
  %195 = vmatprep.mubr.bf16.mxu0 0
  %196 = vmatmul.mubr.bf16.gmra.mrb[0].mxu0 %v92
  %v197 = vpop.f32.mrb[0].mxu0
  %v198 = vadd.f32 %v76, %v197
  %v199 = vpop.f32.mrb[0].mxu0
  %v200 = vpop.f32.mrb[0].mxu0
  %v201 = vadd.f32 %v76, %v200
  %v202 = vpop.f32.mrb[0].mxu0
  %203 = vmatprep.mubr.bf16.mxu0 0
  %204 = vmatmul.mubr.bf16.gmra.mrb[0].mxu0 %v95
  %v205 = vpop.f32.mrb[0].mxu0
  %v206 = vadd.f32 %v76, %v205
  %v207 = vpop.f32.mrb[0].mxu0
  %v208 = vpop.f32.mrb[0].mxu0
  %v209 = vadd.f32 %v76, %v208
  %v210 = vpop.f32.mrb[0].mxu0
  %211 = vmatprep.mubr.bf16.mxu0 0
  %212 = vmatmul.mubr.bf16.gmra.mrb[0].mxu0 %v98
  %v213 = vpop.f32.mrb[0].mxu0
  %v214 = vadd.f32 %v76, %v213
  %v215 = vpop.f32.mrb[0].mxu0
  %v216 = vpop.f32.mrb[0].mxu0
  %v217 = vadd.f32 %v76, %v216
  %v218 = vpop.f32.mrb[0].mxu0
  %219 = vmatprep.mubr.bf16.mxu0 0
  %220 = vmatmul.mubr.bf16.gmra.mrb[0].mxu0 %v101
  %v221 = vpop.f32.mrb[0].mxu0
  %v222 = vadd.f32 %v76, %v221
  %v223 = vpop.f32.mrb[0].mxu0
  %v224 = vpop.f32.mrb[0].mxu0
  %v225 = vadd.f32 %v76, %v224
  %v226 = vpop.f32.mrb[0].mxu0
  %227 = vmatprep.mubr.bf16.mxu0 0
  %228 = vmatmul.mubr.bf16.gmra.mrb[0].mxu0 %v104
  %v229 = vpop.f32.mrb[0].mxu0
  %v230 = vadd.f32 %v76, %v229
  %v231 = vpop.f32.mrb[0].mxu0
  %v232 = vpop.f32.mrb[0].mxu0
  %v233 = vadd.f32 %v76, %v232
  %v234 = vpop.f32.mrb[0].mxu0
  %235 = vmatprep.mubr.bf16.mxu0 0
  %236 = vmatmul.mubr.bf16.gmra.mrb[0].mxu0 %v107
  %v237 = vpop.f32.mrb[0].mxu0
  %v238 = vadd.f32 %v76, %v237
  %v239 = vpop.f32.mrb[0].mxu0
  %v240 = vpop.f32.mrb[0].mxu0
  %v241 = vadd.f32 %v76, %v240
  %v242 = vpop.f32.mrb[0].mxu0
  %243 = vmatprep.mubr.bf16.mxu0 0
  %244 = vmatmul.mubr.bf16.gmra.mrb[0].mxu0 %v110
  %v245 = vpop.f32.mrb[0].mxu0
  %v246 = vadd.f32 %v76, %v245
  %v247 = vpop.f32.mrb[0].mxu0
  %v248 = vpop.f32.mrb[0].mxu0
  %v249 = vadd.f32 %v76, %v248
  %v250 = vpop.f32.mrb[0].mxu0
  %251 = vmatprep.mubr.bf16.mxu0 0
  %252 = vmatmul.mubr.bf16.gmra.mrb[0].mxu0 %v113
  %v253 = vpop.f32.mrb[0].mxu0
  %v254 = vadd.f32 %v76, %v253
  %v255 = vpop.f32.mrb[0].mxu0
  %v256 = vpop.f32.mrb[0].mxu0
  %v257 = vadd.f32 %v76, %v256
  %v258 = vpop.f32.mrb[0].mxu0
  %259 = vmatprep.mubr.bf16.mxu0 0
  %260 = vmatmul.mubr.bf16.gmra.mrb[0].mxu0 %v116
  %v261 = vpop.f32.mrb[0].mxu0
  %v262 = vadd.f32 %v76, %v261
  %v263 = vpop.f32.mrb[0].mxu0
  %v264 = vpop.f32.mrb[0].mxu0
  %v265 = vadd.f32 %v76, %v264
  %v266 = vpop.f32.mrb[0].mxu0
  %267 = vmatprep.mubr.bf16.mxu0 0
  %268 = vmatmul.mubr.bf16.gmra.mrb[0].mxu0 %v119
  %v269 = vpop.f32.mrb[0].mxu0
  %v270 = vadd.f32 %v76, %v269
  %v271 = vpop.f32.mrb[0].mxu0
  %v272 = vpop.f32.mrb[0].mxu0
  %v273 = vadd.f32 %v76, %v272
  %v274 = vpop.f32.mrb[0].mxu0
  %275 = vmatprep.mubr.bf16.mxu0 0
  %276 = vmatmul.mubr.bf16.gmra.mrb[0].mxu0 %v122
  %v277 = vpop.f32.mrb[0].mxu0
  %v278 = vadd.f32 %v76, %v277
  %v279 = vpop.f32.mrb[0].mxu0
  %v280 = vpop.f32.mrb[0].mxu0
  %v281 = vadd.f32 %v76, %v280
  %v282 = vpop.f32.mrb[0].mxu0
  %283 = vmatprep.mubr.bf16.mxu0 0
  %284 = vmatmul.mubr.bf16.gmra.mrb[0].mxu0 %v125
  %v285 = vpop.f32.mrb[0].mxu0
  %v286 = vadd.f32 %v76, %v285
  %v287 = vpop.f32.mrb[0].mxu0
  %v288 = vpop.f32.mrb[0].mxu0
  %v289 = vadd.f32 %v76, %v288
  %v290 = vpop.f32.mrb[0].mxu0
  %291 = vdwg.mxu0
  %v292 = vmax.f32 %v166, 0.0
  %v293 = vmax.f32 %v169, 0.0
  %v294 = vmax.f32 %v174, 0.0
  %v295 = vmax.f32 %v177, 0.0
  %v296 = vmax.f32 %v182, 0.0
  %v297 = vmax.f32 %v185, 0.0
  %v298 = vmax.f32 %v190, 0.0
  %v299 = vmax.f32 %v193, 0.0
  %v300 = vmax.f32 %v198, 0.0
  %v301 = vmax.f32 %v201, 0.0
  %v302 = vmax.f32 %v206, 0.0
  %v303 = vmax.f32 %v209, 0.0
  %v304 = vmax.f32 %v214, 0.0
  %v305 = vmax.f32 %v217, 0.0
  %v306 = vmax.f32 %v222, 0.0
  %v307 = vmax.f32 %v225, 0.0
  %v308 = vmax.f32 %v230, 0.0
  %v309 = vmax.f32 %v233, 0.0
  %v310 = vmax.f32 %v238, 0.0
  %v311 = vmax.f32 %v241, 0.0
  %v312 = vmax.f32 %v246, 0.0
  %v313 = vmax.f32 %v249, 0.0
  %v314 = vmax.f32 %v254, 0.0
  %v315 = vmax.f32 %v257, 0.0
  %v316 = vmax.f32 %v262, 0.0
  %v317 = vmax.f32 %v265, 0.0
  %v318 = vmax.f32 %v270, 0.0
  %v319 = vmax.f32 %v273, 0.0
  %v320 = vmax.f32 %v278, 0.0
  %v321 = vmax.f32 %v281, 0.0
  %v322 = vmax.f32 %v286, 0.0
  %v323 = vmax.f32 %v289, 0.0
  %v324 = vld [vmem:[%s3] sm:$0xff]
  %v325 = vld [vmem:[%s3 + $0x8] sm:$0xff]
  %v326 = vld [vmem:[%s3 + $0x10] sm:$0xff]
  %v327 = vld [vmem:[%s3 + $0x18] sm:$0xff]
  %v328 = vld [vmem:[%s3 + $0x20] sm:$0xff]
  %v329 = vld [vmem:[%s3 + $0x28] sm:$0xff]
  %v330 = vld [vmem:[%s3 + $0x30] sm:$0xff]
  %v331 = vld [vmem:[%s3 + $0x38] sm:$0xff]
  %v332 = vld [vmem:[%s3 + $0x40] sm:$0xff]
  %v333 = vld [vmem:[%s3 + $0x48] sm:$0xff]
  %v334 = vld [vmem:[%s3 + $0x50] sm:$0xff]
  %v335 = vld [vmem:[%s3 + $0x58] sm:$0xff]
  %v336 = vld [vmem:[%s3 + $0x60] sm:$0xff]
  %v337 = vld [vmem:[%s3 + $0x68] sm:$0xff]
  %v338 = vld [vmem:[%s3 + $0x70] sm:$0xff]
  %v339 = vld [vmem:[%s3 + $0x78] sm:$0xff]
  %v340 = vld [vmem:[%s4] sm:$0x1]
  %v341 = vpack.c.bf16 %v293, %v292
  %v342 = vpack.c.bf16 %v295, %v294
  %v343 = vpack.c.bf16 %v297, %v296
  %v344 = vpack.c.bf16 %v299, %v298
  %v345 = vpack.c.bf16 %v301, %v300
  %v346 = vpack.c.bf16 %v303, %v302
  %v347 = vpack.c.bf16 %v305, %v304
  %v348 = vpack.c.bf16 %v307, %v306
  %v349 = vpack.c.bf16 %v309, %v308
  %v350 = vpack.c.bf16 %v311, %v310
  %v351 = vpack.c.bf16 %v313, %v312
  %v352 = vpack.c.bf16 %v315, %v314
  %v353 = vpack.c.bf16 %v317, %v316
  %v354 = vpack.c.bf16 %v319, %v318
  %v355 = vpack.c.bf16 %v321, %v320
  %v356 = vpack.c.bf16 %v323, %v322
  %v357 = vpack.c.bf16 %v325, %v324
  %v358 = vpack.c.bf16 %v327, %v326
  %v359 = vpack.c.bf16 %v329, %v328
  %v360 = vpack.c.bf16 %v331, %v330
  %v361 = vpack.c.bf16 %v333, %v332
  %v362 = vpack.c.bf16 %v335, %v334
  %v363 = vpack.c.bf16 %v337, %v336
  %v364 = vpack.c.bf16 %v339, %v338
  %v366 = vlaneseq
  %v367 = vshrl.u32 %v366, 7
  %v368 = vsub.s32 0, %v367
  %v369 = vrot.slane %v340, %v368
  %371 = vmatprep.subr.bf16.mxu0 0
  %372 = vmatpush1.bf16.msra.mxu0 %v357
  %373 = vmatprep.subr.bf16.mxu0 0
  %374 = vmatpush1.bf16.msra.mxu0 %v358
  %375 = vmatprep.subr.bf16.mxu0 0
  %376 = vmatpush1.bf16.msra.mxu0 %v359
  %377 = vmatprep.subr.bf16.mxu0 0
  %378 = vmatpush1.bf16.msra.mxu0 %v360
  %379 = vmatprep.subr.bf16.mxu0 0
  %380 = vmatpush1.bf16.msra.mxu0 %v361
  %381 = vmatprep.subr.bf16.mxu0 0
  %382 = vmatpush1.bf16.msra.mxu0 %v362
  %383 = vmatprep.subr.bf16.mxu0 0
  %384 = vmatpush1.bf16.msra.mxu0 %v363
  %385 = vmatprep.subr.bf16.mxu0 0
  %386 = vmatpush1.bf16.msra.mxu0 %v364
  %387 = vmatprep.subr.bf16.mxu0 0
  %388 = vmatpush1.bf16.msra.mxu0 0
  %389 = vmatprep.subr.bf16.mxu0 0
  %390 = vmatpush1.bf16.msra.mxu0 0
  %391 = vmatprep.subr.bf16.mxu0 0
  %392 = vmatpush1.bf16.msra.mxu0 0
  %393 = vmatprep.subr.bf16.mxu0 0
  %394 = vmatpush1.bf16.msra.mxu0 0
  %395 = vmatprep.subr.bf16.mxu0 0
  %396 = vmatpush1.bf16.msra.mxu0 0
  %397 = vmatprep.subr.bf16.mxu0 0
  %398 = vmatpush1.bf16.msra.mxu0 0
  %399 = vmatprep.subr.bf16.mxu0 0
  %400 = vmatpush1.bf16.msra.mxu0 0
  %401 = vmatprep.subr.bf16.mxu0 0
  %402 = vmatpush1.bf16.msra.mxu0 0
  %403 = vmatprep.mubr.bf16.mxu0 0
  %404 = vmatmul.mubr.bf16.gmra.mrb[0].mxu0 %v341
  %v405 = vpop.f32.mrb[0].mxu0
  %v406 = vadd.f32 %v369, %v405
  %v407 = vpop.f32.mrb[0].mxu0
  %v408 = vpop.f32.mrb[0].mxu0
  %v409 = vadd.f32 %v369, %v408
  %v410 = vpop.f32.mrb[0].mxu0
  %411 = vmatprep.mubr.bf16.mxu0 0
  %412 = vmatmul.mubr.bf16.gmra.mrb[0].mxu0 %v342
  %v413 = vpop.f32.mrb[0].mxu0
  %v414 = vadd.f32 %v369, %v413
  %v415 = vpop.f32.mrb[0].mxu0
  %v416 = vpop.f32.mrb[0].mxu0
  %v417 = vadd.f32 %v369, %v416
  %v418 = vpop.f32.mrb[0].mxu0
  %419 = vmatprep.mubr.bf16.mxu0 0
  %420 = vmatmul.mubr.bf16.gmra.mrb[0].mxu0 %v343
  %v421 = vpop.f32.mrb[0].mxu0
  %v422 = vadd.f32 %v369, %v421
  %v423 = vpop.f32.mrb[0].mxu0
  %v424 = vpop.f32.mrb[0].mxu0
  %v425 = vadd.f32 %v369, %v424
  %v426 = vpop.f32.mrb[0].mxu0
  %427 = vmatprep.mubr.bf16.mxu0 0
  %428 = vmatmul.mubr.bf16.gmra.mrb[0].mxu0 %v344
  %v429 = vpop.f32.mrb[0].mxu0
  %v430 = vadd.f32 %v369, %v429
  %v431 = vpop.f32.mrb[0].mxu0
  %v432 = vpop.f32.mrb[0].mxu0
  %v433 = vadd.f32 %v369, %v432
  %v434 = vpop.f32.mrb[0].mxu0
  %435 = vmatprep.mubr.bf16.mxu0 0
  %436 = vmatmul.mubr.bf16.gmra.mrb[0].mxu0 %v345
  %v437 = vpop.f32.mrb[0].mxu0
  %v438 = vadd.f32 %v369, %v437
  %v439 = vpop.f32.mrb[0].mxu0
  %v440 = vpop.f32.mrb[0].mxu0
  %v441 = vadd.f32 %v369, %v440
  %v442 = vpop.f32.mrb[0].mxu0
  %443 = vmatprep.mubr.bf16.mxu0 0
  %444 = vmatmul.mubr.bf16.gmra.mrb[0].mxu0 %v346
  %v445 = vpop.f32.mrb[0].mxu0
  %v446 = vadd.f32 %v369, %v445
  %v447 = vpop.f32.mrb[0].mxu0
  %v448 = vpop.f32.mrb[0].mxu0
  %v449 = vadd.f32 %v369, %v448
  %v450 = vpop.f32.mrb[0].mxu0
  %451 = vmatprep.mubr.bf16.mxu0 0
  %452 = vmatmul.mubr.bf16.gmra.mrb[0].mxu0 %v347
  %v453 = vpop.f32.mrb[0].mxu0
  %v454 = vadd.f32 %v369, %v453
  %v455 = vpop.f32.mrb[0].mxu0
  %v456 = vpop.f32.mrb[0].mxu0
  %v457 = vadd.f32 %v369, %v456
  %v458 = vpop.f32.mrb[0].mxu0
  %459 = vmatprep.mubr.bf16.mxu0 0
  %460 = vmatmul.mubr.bf16.gmra.mrb[0].mxu0 %v348
  %v461 = vpop.f32.mrb[0].mxu0
  %v462 = vadd.f32 %v369, %v461
  %v463 = vpop.f32.mrb[0].mxu0
  %v464 = vpop.f32.mrb[0].mxu0
  %v465 = vadd.f32 %v369, %v464
  %v466 = vpop.f32.mrb[0].mxu0
  %467 = vmatprep.mubr.bf16.mxu0 0
  %468 = vmatmul.mubr.bf16.gmra.mrb[0].mxu0 %v349
  %v469 = vpop.f32.mrb[0].mxu0
  %v470 = vadd.f32 %v369, %v469
  %v471 = vpop.f32.mrb[0].mxu0
  %v472 = vpop.f32.mrb[0].mxu0
  %v473 = vadd.f32 %v369, %v472
  %v474 = vpop.f32.mrb[0].mxu0
  %475 = vmatprep.mubr.bf16.mxu0 0
  %476 = vmatmul.mubr.bf16.gmra.mrb[0].mxu0 %v350
  %v477 = vpop.f32.mrb[0].mxu0
  %v478 = vadd.f32 %v369, %v477
  %v479 = vpop.f32.mrb[0].mxu0
  %v480 = vpop.f32.mrb[0].mxu0
  %v481 = vadd.f32 %v369, %v480
  %v482 = vpop.f32.mrb[0].mxu0
  %483 = vmatprep.mubr.bf16.mxu0 0
  %484 = vmatmul.mubr.bf16.gmra.mrb[0].mxu0 %v351
  %v485 = vpop.f32.mrb[0].mxu0
  %v486 = vadd.f32 %v369, %v485
  %v487 = vpop.f32.mrb[0].mxu0
  %v488 = vpop.f32.mrb[0].mxu0
  %v489 = vadd.f32 %v369, %v488
  %v490 = vpop.f32.mrb[0].mxu0
  %491 = vmatprep.mubr.bf16.mxu0 0
  %492 = vmatmul.mubr.bf16.gmra.mrb[0].mxu0 %v352
  %v493 = vpop.f32.mrb[0].mxu0
  %v494 = vadd.f32 %v369, %v493
  %v495 = vpop.f32.mrb[0].mxu0
  %v496 = vpop.f32.mrb[0].mxu0
  %v497 = vadd.f32 %v369, %v496
  %v498 = vpop.f32.mrb[0].mxu0
  %499 = vmatprep.mubr.bf16.mxu0 0
  %500 = vmatmul.mubr.bf16.gmra.mrb[0].mxu0 %v353
  %v501 = vpop.f32.mrb[0].mxu0
  %v502 = vadd.f32 %v369, %v501
  %v503 = vpop.f32.mrb[0].mxu0
  %v504 = vpop.f32.mrb[0].mxu0
  %v505 = vadd.f32 %v369, %v504
  %v506 = vpop.f32.mrb[0].mxu0
  %507 = vmatprep.mubr.bf16.mxu0 0
  %508 = vmatmul.mubr.bf16.gmra.mrb[0].mxu0 %v354
  %v509 = vpop.f32.mrb[0].mxu0
  %v510 = vadd.f32 %v369, %v509
  %v511 = vpop.f32.mrb[0].mxu0
  %v512 = vpop.f32.mrb[0].mxu0
  %v513 = vadd.f32 %v369, %v512
  %v514 = vpop.f32.mrb[0].mxu0
  %515 = vmatprep.mubr.bf16.mxu0 0
  %516 = vmatmul.mubr.bf16.gmra.mrb[0].mxu0 %v355
  %v517 = vpop.f32.mrb[0].mxu0
  %v518 = vadd.f32 %v369, %v517
  %v519 = vpop.f32.mrb[0].mxu0
  %v520 = vpop.f32.mrb[0].mxu0
  %v521 = vadd.f32 %v369, %v520
  %v522 = vpop.f32.mrb[0].mxu0
  %523 = vmatprep.mubr.bf16.mxu0 0
  %524 = vmatmul.mubr.bf16.gmra.mrb[0].mxu0 %v356
  %v525 = vpop.f32.mrb[0].mxu0
  %v526 = vadd.f32 %v369, %v525
  %v527 = vpop.f32.mrb[0].mxu0
  %v528 = vpop.f32.mrb[0].mxu0
  %v529 = vadd.f32 %v369, %v528
  %v530 = vpop.f32.mrb[0].mxu0
  %531 = vdwg.mxu0
  %v532 = vmax.f32 %v406, 0.0
  %v533 = vmax.f32 %v409, 0.0
  %v534 = vmax.f32 %v414, 0.0
  %v535 = vmax.f32 %v417, 0.0
  %v536 = vmax.f32 %v422, 0.0
  %v537 = vmax.f32 %v425, 0.0
  %v538 = vmax.f32 %v430, 0.0
  %v539 = vmax.f32 %v433, 0.0
  %v540 = vmax.f32 %v438, 0.0
  %v541 = vmax.f32 %v441, 0.0
  %v542 = vmax.f32 %v446, 0.0
  %v543 = vmax.f32 %v449, 0.0
  %v544 = vmax.f32 %v454, 0.0
  %v545 = vmax.f32 %v457, 0.0
  %v546 = vmax.f32 %v462, 0.0
  %v547 = vmax.f32 %v465, 0.0
  %v548 = vmax.f32 %v470, 0.0
  %v549 = vmax.f32 %v473, 0.0
  %v550 = vmax.f32 %v478, 0.0
  %v551 = vmax.f32 %v481, 0.0
  %v552 = vmax.f32 %v486, 0.0
  %v553 = vmax.f32 %v489, 0.0
  %v554 = vmax.f32 %v494, 0.0
  %v555 = vmax.f32 %v497, 0.0
  %v556 = vmax.f32 %v502, 0.0
  %v557 = vmax.f32 %v505, 0.0
  %v558 = vmax.f32 %v510, 0.0
  %v559 = vmax.f32 %v513, 0.0
  %v560 = vmax.f32 %v518, 0.0
  %v561 = vmax.f32 %v521, 0.0
  %v562 = vmax.f32 %v526, 0.0
  %v563 = vmax.f32 %v529, 0.0
  %vm564 = vcmask 523264
  %565 = vst.msk [vmem:[%s5] sm:$0xff] %vm564, %v532
  %566 = vst.msk [vmem:[%s5 + $0x8] sm:$0xff] %vm564, %v533
  %567 = vst.msk [vmem:[%s5 + $0x10] sm:$0xff] %vm564, %v534
  %568 = vst.msk [vmem:[%s5 + $0x18] sm:$0xff] %vm564, %v535
  %569 = vst.msk [vmem:[%s5 + $0x20] sm:$0xff] %vm564, %v536
  %570 = vst.msk [vmem:[%s5 + $0x28] sm:$0xff] %vm564, %v537
  %571 = vst.msk [vmem:[%s5 + $0x30] sm:$0xff] %vm564, %v538
  %572 = vst.msk [vmem:[%s5 + $0x38] sm:$0xff] %vm564, %v539
  %573 = vst.msk [vmem:[%s5 + $0x40] sm:$0xff] %vm564, %v540
  %574 = vst.msk [vmem:[%s5 + $0x48] sm:$0xff] %vm564, %v541
  %575 = vst.msk [vmem:[%s5 + $0x50] sm:$0xff] %vm564, %v542
  %576 = vst.msk [vmem:[%s5 + $0x58] sm:$0xff] %vm564, %v543
  %577 = vst.msk [vmem:[%s5 + $0x60] sm:$0xff] %vm564, %v544
  %578 = vst.msk [vmem:[%s5 + $0x68] sm:$0xff] %vm564, %v545
  %579 = vst.msk [vmem:[%s5 + $0x70] sm:$0xff] %vm564, %v546
  %580 = vst.msk [vmem:[%s5 + $0x78] sm:$0xff] %vm564, %v547
  %581 = vst.msk [vmem:[%s5 + $0x80] sm:$0xff] %vm564, %v548
  %582 = vst.msk [vmem:[%s5 + $0x88] sm:$0xff] %vm564, %v549
  %583 = vst.msk [vmem:[%s5 + $0x90] sm:$0xff] %vm564, %v550
  %584 = vst.msk [vmem:[%s5 + $0x98] sm:$0xff] %vm564, %v551
  %585 = vst.msk [vmem:[%s5 + $0xa0] sm:$0xff] %vm564, %v552
  %586 = vst.msk [vmem:[%s5 + $0xa8] sm:$0xff] %vm564, %v553
  %587 = vst.msk [vmem:[%s5 + $0xb0] sm:$0xff] %vm564, %v554
  %588 = vst.msk [vmem:[%s5 + $0xb8] sm:$0xff] %vm564, %v555
  %589 = vst.msk [vmem:[%s5 + $0xc0] sm:$0xff] %vm564, %v556
  %590 = vst.msk [vmem:[%s5 + $0xc8] sm:$0xff] %vm564, %v557
  %591 = vst.msk [vmem:[%s5 + $0xd0] sm:$0xff] %vm564, %v558
  %592 = vst.msk [vmem:[%s5 + $0xd8] sm:$0xff] %vm564, %v559
  %593 = vst.msk [vmem:[%s5 + $0xe0] sm:$0xff] %vm564, %v560
  %594 = vst.msk [vmem:[%s5 + $0xe8] sm:$0xff] %vm564, %v561
  %595 = vst.msk [vmem:[%s5 + $0xf0] sm:$0xff] %vm564, %v562
  %596 = vst.msk [vmem:[%s5 + $0xf8] sm:$0xff] %vm564, %v563
  // Predicated region
  $region22: #{porous_mignn_forward.12} parent=0 // pred_check
    _
  $region23: #{porous_mignn_forward.12} parent=0 // pred_check_branch
    %598 = sbr.rel (0) target = $region25
  $region24: #{porous_mignn_forward.12} parent=0 // pred_region
    _
  $region25: #{porous_mignn_forward.12} parent=0 // pred_fallthru
    _
  // Predicated region
  $region26: #{porous_mignn_forward.12} parent=0 // pred_check
    _
  $region27: #{porous_mignn_forward.12} parent=0 // pred_check_branch
    %600 = sbr.rel (0) target = $region29
  $region28: #{porous_mignn_forward.12} parent=0 // pred_region
    _
  $region29: #{porous_mignn_forward.12} parent=0 // pred_fallthru
    _

// kernel: porous_mignn_forward.14
$region0: #{porous_mignn_forward.14}
  #allocation0 [shape = 'u32[]', space=smem, size = 0x4, offset = 0x4, fixed_abs, tag = 'smem constant byte address 0x4 - core index']
  #allocation1 [shape = 'u32[144,128]{1,0:T(1,128)}', space=vmem, size = 0x12000, scoped, tag = 'internal scratch']
  %s0 = inlined_call_operand.vmem [shape: f32[16,128], index: 0, kind: input, shape index: {}]
  %s1 = inlined_call_operand.vmem [shape: f32[16,128], index: 1, kind: input, shape index: {}]
  %s2 = inlined_call_operand.vmem [shape: f32[16,16,64], index: 2, kind: input, shape index: {}]
  %s3 = inlined_call_operand.vmem [shape: f32[16,16], index: 3, kind: input, shape index: {}]
  %s4 = inlined_call_operand.vmem [shape: f32[64,128], index: 4, kind: input, shape index: {}]
  %s5 = inlined_call_operand.vmem [shape: f32[1,128], index: 5, kind: input, shape index: {}]
  %s6 = inlined_call_operand.vmem [shape: f32[128,64], index: 6, kind: input, shape index: {}]
  %s7 = inlined_call_operand.vmem [shape: f32[1,64], index: 7, kind: input, shape index: {}]
  %s8 = inlined_call_operand.vmem [shape: f32[1,64], index: 8, kind: input, shape index: {}]
  %s9 = inlined_call_operand.vmem [shape: f32[16,16,64], index: 9, kind: output, shape index: {0}]
  %s10 = inlined_call_operand.vmem [shape: f32[16,64], index: 10, kind: output, shape index: {1}]
  %11 = xla_tuple %s9, %s10
  %s12 = sld [smem:[#allocation0]]
  $region77: #{porous_mignn_forward.14} parent=0
    _
  %s14 = ssub.s32 1, %s12
  %s15 = scalar_select 0, %s14, %s12
  loop: start=0, step=1, limit=4
  $region2: #{porous_mignn_forward.14} parent=0 // loop_pre_header
    _
  $region3: #{porous_mignn_forward.14} parent=0 // loop_header
    %s17 = sphi 0, %s21
    %p18 = scmp.ge.s32.totalorder %s17, 4
    %s27 = sphi 0, %s29
    %s30 = sphi 0, %s27
    %s31 = sphi 0, %s30
    %s47 = sphi 0, %s31
    %s51 = sphi 0, %s51
    %s53 = sphi 0, %s51
    %s54 = sphi 0, %s53
    %s68 = sphi 0, %s54
    %s74 = sphi 0, %s76
    %s77 = sphi 0, %s74
    %s78 = sphi 0, %s77
    %s94 = sphi 0, %s78
    %s100 = sphi 0, %s102
    %s103 = sphi 0, %s100
    %s104 = sphi 0, %s103
    %s120 = sphi 0, %s104
    %s124 = sphi 0, %s124
    %s126 = sphi 0, %s124
    %s127 = sphi 0, %s126
    %s141 = sphi 0, %s127
    %s145 = sphi 0, %s145
    %s147 = sphi 0, %s145
    %s148 = sphi 0, %s147
    %s162 = sphi 0, %s148
    %s166 = sphi 0, %s166
    %s168 = sphi 0, %s166
    %s169 = sphi 0, %s168
    %s183 = sphi 0, %s169
    %s187 = sphi 0, %s187
    %s189 = sphi 0, %s187
    %s190 = sphi 0, %s189
    %s204 = sphi 0, %s190
    %s208 = sphi 0, %s208
    %s210 = sphi 0, %s208
    %s211 = sphi 0, %s210
    %s225 = sphi 0, %s211
    %s231 = sphi 0, %s233
    %s234 = sphi 0, %s231
    %s235 = sphi 0, %s234
    %s251 = sphi 0, %s235
    %s257 = sphi 0, %s259
    %s260 = sphi 0, %s257
    %s261 = sphi 0, %s260
    %s277 = sphi 0, %s261
  $region4: #{porous_mignn_forward.14} parent=0 // loop_header_branch
    %20 = sbr.rel (%p18) target = $region8
  $region5: #{porous_mignn_forward.14} parent=0 // loop_body
    %s22 = ssub.s32 %s17, 1
    %s23 = ssub.s32 %s17, 2
    %s24 = sadd.s32 %s17, 1
    %s25 = ssub.s32 %s17, %s24
    %p26 = scmp.eq.s32.totalorder %s25, 0
    %s28 = sadd.s32 %s27, 1
    %s29 = scalar_select %p26, %s27, %s28
    %p32 = pneg %p26
    %p33 = scmp.eq.s32.totalorder %s17, 1
    %p34 = por %p32, %p33
    %p35 = scmp.ne.s32.totalorder %s27, %s30
    %p36 = scmp.eq.s32.totalorder %s17, 0
    %p37 = por %p35, %p36
    %p38 = scmp.ne.s32.totalorder %s27, %s30
    %p39 = scmp.eq.s32.totalorder %s22, 1
    %p40 = por %p38, %p39
    %p41 = scmp.ne.s32.totalorder %s30, %s31
    %p42 = scmp.eq.s32.totalorder %s22, 0
    %p43 = por %p41, %p42
    %p44 = scmp.ne.s32.totalorder %s30, %s31
    %p45 = scmp.eq.s32.totalorder %s23, 1
    %p46 = por %p44, %p45
    %p48 = scmp.ne.s32.totalorder %s31, %s47
    %p49 = scmp.eq.s32.totalorder %s23, 0
    %p50 = por %p48, %p49
    %s52 = sadd.s32 %s51, 1
    %p55 = scmp.eq.s32.totalorder %s17, 1
    %p56 = scmp.ne.s32.totalorder %s51, %s53
    %p57 = scmp.eq.s32.totalorder %s17, 0
    %p58 = por %p56, %p57
    %p59 = scmp.ne.s32.totalorder %s51, %s53
    %p60 = scmp.eq.s32.totalorder %s22, 1
    %p61 = por %p59, %p60
    %p62 = scmp.ne.s32.totalorder %s53, %s54
    %p63 = scmp.eq.s32.totalorder %s22, 0
    %p64 = por %p62, %p63
    %p65 = scmp.ne.s32.totalorder %s53, %s54
    %p66 = scmp.eq.s32.totalorder %s23, 1
    %p67 = por %p65, %p66
    %p69 = scmp.ne.s32.totalorder %s54, %s68
    %p70 = scmp.eq.s32.totalorder %s23, 0
    %p71 = por %p69, %p70
    %s72 = ssub.s32 %s17, %s24
    %p73 = scmp.eq.s32.totalorder %s72, 0
    %s75 = sadd.s32 %s74, 1
    %s76 = scalar_select %p73, %s74, %s75
    %p79 = pneg %p73
    %p80 = scmp.eq.s32.totalorder %s17, 1
    %p81 = por %p79, %p80
    %p82 = scmp.ne.s32.totalorder %s74, %s77
    %p83 = scmp.eq.s32.totalorder %s17, 0
    %p84 = por %p82, %p83
    %p85 = scmp.ne.s32.totalorder %s74, %s77
    %p86 = scmp.eq.s32.totalorder %s22, 1
    %p87 = por %p85, %p86
    %p88 = scmp.ne.s32.totalorder %s77, %s78
    %p89 = scmp.eq.s32.totalorder %s22, 0
    %p90 = por %p88, %p89
    %p91 = scmp.ne.s32.totalorder %s77, %s78
    %p92 = scmp.eq.s32.totalorder %s23, 1
    %p93 = por %p91, %p92
    %p95 = scmp.ne.s32.totalorder %s78, %s94
    %p96 = scmp.eq.s32.totalorder %s23, 0
    %p97 = por %p95, %p96
    %s98 = ssub.s32 %s17, %s24
    %p99 = scmp.eq.s32.totalorder %s98, 0
    %s101 = sadd.s32 %s100, 1
    %s102 = scalar_select %p99, %s100, %s101
    %p105 = pneg %p99
    %p106 = scmp.eq.s32.totalorder %s17, 1
    %p107 = por %p105, %p106
    %p108 = scmp.ne.s32.totalorder %s100, %s103
    %p109 = scmp.eq.s32.totalorder %s17, 0
    %p110 = por %p108, %p109
    %p111 = scmp.ne.s32.totalorder %s100, %s103
    %p112 = scmp.eq.s32.totalorder %s22, 1
    %p113 = por %p111, %p112
    %p114 = scmp.ne.s32.totalorder %s103, %s104
    %p115 = scmp.eq.s32.totalorder %s22, 0
    %p116 = por %p114, %p115
    %p117 = scmp.ne.s32.totalorder %s103, %s104
    %p118 = scmp.eq.s32.totalorder %s23, 1
    %p119 = por %p117, %p118
    %p121 = scmp.ne.s32.totalorder %s104, %s120
    %p122 = scmp.eq.s32.totalorder %s23, 0
    %p123 = por %p121, %p122
    %s125 = sadd.s32 %s124, 1
    %p128 = scmp.eq.s32.totalorder %s17, 1
    %p129 = scmp.ne.s32.totalorder %s124, %s126
    %p130 = scmp.eq.s32.totalorder %s17, 0
    %p131 = por %p129, %p130
    %p132 = scmp.ne.s32.totalorder %s124, %s126
    %p133 = scmp.eq.s32.totalorder %s22, 1
    %p134 = por %p132, %p133
    %p135 = scmp.ne.s32.totalorder %s126, %s127
    %p136 = scmp.eq.s32.totalorder %s22, 0
    %p137 = por %p135, %p136
    %p138 = scmp.ne.s32.totalorder %s126, %s127
    %p139 = scmp.eq.s32.totalorder %s23, 1
    %p140 = por %p138, %p139
    %p142 = scmp.ne.s32.totalorder %s127, %s141
    %p143 = scmp.eq.s32.totalorder %s23, 0
    %p144 = por %p142, %p143
    %s146 = sadd.s32 %s145, 1
    %p149 = scmp.eq.s32.totalorder %s17, 1
    %p150 = scmp.ne.s32.totalorder %s145, %s147
    %p151 = scmp.eq.s32.totalorder %s17, 0
    %p152 = por %p150, %p151
    %p153 = scmp.ne.s32.totalorder %s145, %s147
    %p154 = scmp.eq.s32.totalorder %s22, 1
    %p155 = por %p153, %p154
    %p156 = scmp.ne.s32.totalorder %s147, %s148
    %p157 = scmp.eq.s32.totalorder %s22, 0
    %p158 = por %p156, %p157
    %p159 = scmp.ne.s32.totalorder %s147, %s148
    %p160 = scmp.eq.s32.totalorder %s23, 1
    %p161 = por %p159, %p160
    %p163 = scmp.ne.s32.totalorder %s148, %s162
    %p164 = scmp.eq.s32.totalorder %s23, 0
    %p165 = por %p163, %p164
    %s167 = sadd.s32 %s166, 1
    %p170 = scmp.eq.s32.totalorder %s17, 1
    %p171 = scmp.ne.s32.totalorder %s166, %s168
    %p172 = scmp.eq.s32.totalorder %s17, 0
    %p173 = por %p171, %p172
    %p174 = scmp.ne.s32.totalorder %s166, %s168
    %p175 = scmp.eq.s32.totalorder %s22, 1
    %p176 = por %p174, %p175
    %p177 = scmp.ne.s32.totalorder %s168, %s169
    %p178 = scmp.eq.s32.totalorder %s22, 0
    %p179 = por %p177, %p178
    %p180 = scmp.ne.s32.totalorder %s168, %s169
    %p181 = scmp.eq.s32.totalorder %s23, 1
    %p182 = por %p180, %p181
    %p184 = scmp.ne.s32.totalorder %s169, %s183
    %p185 = scmp.eq.s32.totalorder %s23, 0
    %p186 = por %p184, %p185
    %s188 = sadd.s32 %s187, 1
    %p191 = scmp.eq.s32.totalorder %s17, 1
    %p192 = scmp.ne.s32.totalorder %s187, %s189
    %p193 = scmp.eq.s32.totalorder %s17, 0
    %p194 = por %p192, %p193
    %p195 = scmp.ne.s32.totalorder %s187, %s189
    %p196 = scmp.eq.s32.totalorder %s22, 1
    %p197 = por %p195, %p196
    %p198 = scmp.ne.s32.totalorder %s189, %s190
    %p199 = scmp.eq.s32.totalorder %s22, 0
    %p200 = por %p198, %p199
    %p201 = scmp.ne.s32.totalorder %s189, %s190
    %p202 = scmp.eq.s32.totalorder %s23, 1
    %p203 = por %p201, %p202
    %p205 = scmp.ne.s32.totalorder %s190, %s204
    %p206 = scmp.eq.s32.totalorder %s23, 0
    %p207 = por %p205, %p206
    %s209 = sadd.s32 %s208, 1
    %p212 = scmp.eq.s32.totalorder %s17, 1
    %p213 = scmp.ne.s32.totalorder %s208, %s210
    %p214 = scmp.eq.s32.totalorder %s17, 0
    %p215 = por %p213, %p214
    %p216 = scmp.ne.s32.totalorder %s208, %s210
    %p217 = scmp.eq.s32.totalorder %s22, 1
    %p218 = por %p216, %p217
    %p219 = scmp.ne.s32.totalorder %s210, %s211
    %p220 = scmp.eq.s32.totalorder %s22, 0
    %p221 = por %p219, %p220
    %p222 = scmp.ne.s32.totalorder %s210, %s211
    %p223 = scmp.eq.s32.totalorder %s23, 1
    %p224 = por %p222, %p223
    %p226 = scmp.ne.s32.totalorder %s211, %s225
    %p227 = scmp.eq.s32.totalorder %s23, 0
    %p228 = por %p226, %p227
    %s229 = ssub.s32 %s17, %s24
    %p230 = scmp.eq.s32.totalorder %s229, 0
    %s232 = sadd.s32 %s231, 1
    %s233 = scalar_select %p230, %s231, %s232
    %p236 = pneg %p230
    %p237 = scmp.eq.s32.totalorder %s17, 1
    %p238 = por %p236, %p237
    %p239 = scmp.ne.s32.totalorder %s231, %s234
    %p240 = scmp.eq.s32.totalorder %s17, 0
    %p241 = por %p239, %p240
    %p242 = scmp.ne.s32.totalorder %s231, %s234
    %p243 = scmp.eq.s32.totalorder %s22, 1
    %p244 = por %p242, %p243
    %p245 = scmp.ne.s32.totalorder %s234, %s235
    %p246 = scmp.eq.s32.totalorder %s22, 0
    %p247 = por %p245, %p246
    %p248 = scmp.ne.s32.totalorder %s234, %s235
    %p249 = scmp.eq.s32.totalorder %s23, 1
    %p250 = por %p248, %p249
    %p252 = scmp.ne.s32.totalorder %s235, %s251
    %p253 = scmp.eq.s32.totalorder %s23, 0
    %p254 = por %p252, %p253
    %s255 = ssub.s32 %s17, %s24
    %p256 = scmp.eq.s32.totalorder %s255, 0
    %s258 = sadd.s32 %s257, 1
    %s259 = scalar_select %p256, %s257, %s258
    %p262 = pneg %p256
    %p263 = scmp.eq.s32.totalorder %s17, 1
    %p264 = por %p262, %p263
    %p265 = scmp.ne.s32.totalorder %s257, %s260
    %p266 = scmp.eq.s32.totalorder %s17, 0
    %p267 = por %p265, %p266
    %p268 = scmp.ne.s32.totalorder %s257, %s260
    %p269 = scmp.eq.s32.totalorder %s22, 1
    %p270 = por %p268, %p269
    %p271 = scmp.ne.s32.totalorder %s260, %s261
    %p272 = scmp.eq.s32.totalorder %s22, 0
    %p273 = por %p271, %p272
    %p274 = scmp.ne.s32.totalorder %s260, %s261
    %p275 = scmp.eq.s32.totalorder %s23, 1
    %p276 = por %p274, %p275
    %p278 = scmp.ne.s32.totalorder %s261, %s277
    %p279 = scmp.eq.s32.totalorder %s23, 0
    %p280 = por %p278, %p279
    %p281 = scmp.le.s32.totalorder 1, %s17
    %p282 = scmp.lt.s32.totalorder %s17, 3
    %p283 = pnand %p281, %p282
    %p284 = pneg %p283
    // Predicated region
    $region9: #{porous_mignn_forward.14} parent=5 // pred_check
      _
    $region10: #{porous_mignn_forward.14} parent=5 // pred_check_branch
      %286 = sbr.rel (%p283) target = $region12
    $region11: #{porous_mignn_forward.14} parent=5 // pred_region
      %s287 = ssub.s32 %s17, 1
      // Predicated region
      $region13: #{porous_mignn_forward.14} parent=11 // pred_check
        %p288 = pneg %p64
      $region14: #{porous_mignn_forward.14} parent=11 // pred_check_branch
        %290 = sbr.rel (%p288) target = $region16
      $region15: #{porous_mignn_forward.14} parent=11 // pred_region
        _
      $region16: #{porous_mignn_forward.14} parent=11 // pred_fallthru
        _
      // Predicated region
      $region17: #{porous_mignn_forward.14} parent=11 // pred_check
        %p291 = pneg %p137
      $region18: #{porous_mignn_forward.14} parent=11 // pred_check_branch
        %293 = sbr.rel (%p291) target = $region20
      $region19: #{porous_mignn_forward.14} parent=11 // pred_region
        _
      $region20: #{porous_mignn_forward.14} parent=11 // pred_fallthru
        _
      // Predicated region
      $region21: #{porous_mignn_forward.14} parent=11 // pred_check
        %p294 = pneg %p158
      $region22: #{porous_mignn_forward.14} parent=11 // pred_check_branch
        %296 = sbr.rel (%p294) target = $region24
      $region23: #{porous_mignn_forward.14} parent=11 // pred_region
        _
      $region24: #{porous_mignn_forward.14} parent=11 // pred_fallthru
        _
      // Predicated region
      $region25: #{porous_mignn_forward.14} parent=11 // pred_check
        %p297 = pneg %p179
      $region26: #{porous_mignn_forward.14} parent=11 // pred_check_branch
        %299 = sbr.rel (%p297) target = $region28
      $region27: #{porous_mignn_forward.14} parent=11 // pred_region
        _
      $region28: #{porous_mignn_forward.14} parent=11 // pred_fallthru
        _
      // Predicated region
      $region29: #{porous_mignn_forward.14} parent=11 // pred_check
        %p300 = pneg %p200
      $region30: #{porous_mignn_forward.14} parent=11 // pred_check_branch
        %302 = sbr.rel (%p300) target = $region32
      $region31: #{porous_mignn_forward.14} parent=11 // pred_region
        _
      $region32: #{porous_mignn_forward.14} parent=11 // pred_fallthru
        _
      // Predicated region
      $region33: #{porous_mignn_forward.14} parent=11 // pred_check
        %p303 = pneg %p221
      $region34: #{porous_mignn_forward.14} parent=11 // pred_check_branch
        %305 = sbr.rel (%p303) target = $region36
      $region35: #{porous_mignn_forward.14} parent=11 // pred_region
        _
      $region36: #{porous_mignn_forward.14} parent=11 // pred_fallthru
        _
    $region12: #{porous_mignn_forward.14} parent=5 // pred_fallthru
      _
    %p306 = scmp.lt.s32.totalorder %s17, 2
    // Predicated region
    $region37: #{porous_mignn_forward.14} parent=5 // pred_check
      %p307 = pneg %p306
    $region38: #{porous_mignn_forward.14} parent=5 // pred_check_branch
      %309 = sbr.rel (%p307) target = $region40
    $region39: #{porous_mignn_forward.14} parent=5 // pred_region
      // Predicated region
      $region41: #{porous_mignn_forward.14} parent=39 // pred_check
        %p310 = pneg %p37
      $region42: #{porous_mignn_forward.14} parent=39 // pred_check_branch
        %312 = sbr.rel (%p310) target = $region44
      $region43: #{porous_mignn_forward.14} parent=39 // pred_region
        %p313 = scmp.lt.s32.totalorder %s17, 1
        %s314 = scalar_select %p313, %s17, 1
        %s315 = smul.addr %s314, 8
        %s316 = scalar_lea.vmem %s0, %s315
      $region44: #{porous_mignn_forward.14} parent=39 // pred_fallthru
        _
      // Predicated region
      $region45: #{porous_mignn_forward.14} parent=39 // pred_check
        %p317 = pneg %p84
      $region46: #{porous_mignn_forward.14} parent=39 // pred_check_branch
        %319 = sbr.rel (%p317) target = $region48
      $region47: #{porous_mignn_forward.14} parent=39 // pred_region
        %s320 = smul.u32 8, %s17
        %p321 = scmp.lt.s32.totalorder %s320, 15
        %s322 = scalar_select %p321, %s320, 15
        %s323 = smul.addr %s322, 2
        %s324 = smul.addr %s323, 8
        %s325 = scalar_lea.vmem %s2, %s324
        %s326 = smul.u32 8, %s17
      $region48: #{porous_mignn_forward.14} parent=39 // pred_fallthru
        _
      // Predicated region
      $region49: #{porous_mignn_forward.14} parent=39 // pred_check
        %p327 = pneg %p110
      $region50: #{porous_mignn_forward.14} parent=39 // pred_check_branch
        %329 = sbr.rel (%p327) target = $region52
      $region51: #{porous_mignn_forward.14} parent=39 // pred_region
        %p330 = scmp.lt.s32.totalorder %s17, 1
        %s331 = scalar_select %p330, %s17, 1
        %s332 = smul.addr %s331, 8
        %s333 = scalar_lea.vmem %s3, %s332
      $region52: #{porous_mignn_forward.14} parent=39 // pred_fallthru
        _
    $region40: #{porous_mignn_forward.14} parent=5 // pred_fallthru
      _
    %p334 = scmp.le.s32.totalorder 1, %s17
    %p335 = scmp.lt.s32.totalorder %s17, 3
    %p336 = pnand %p334, %p335
    %p337 = pneg %p336
    // Predicated region
    $region53: #{porous_mignn_forward.14} parent=5 // pred_check
      _
    $region54: #{porous_mignn_forward.14} parent=5 // pred_check_branch
      %339 = sbr.rel (%p336) target = $region56
    $region55: #{porous_mignn_forward.14} parent=5 // pred_region
      %s340 = ssub.s32 %s17, 1
      %p341 = scmp.lt.s32.totalorder %s22, 1
      %s342 = scalar_select %p341, %s22, 1
      %s343 = smul.addr %s342, 8
      %s344 = scalar_lea.vmem %s0, %s343
      %p345 = pneg %p43
      %p346 = pneg %p40
      %p347 = pneg %p64
      %p348 = pneg %p61
      %s349 = smul.u32 8, %s22
      %p350 = scmp.lt.s32.totalorder %s349, 15
      %s351 = scalar_select %p350, %s349, 15
      %s352 = smul.addr %s351, 2
      %s353 = smul.addr %s352, 8
      %s354 = scalar_lea.vmem %s2, %s353
      %p355 = pneg %p90
      %p356 = pneg %p87
      %p357 = scmp.lt.s32.totalorder %s22, 1
      %s358 = scalar_select %p357, %s22, 1
      %s359 = smul.addr %s358, 8
      %s360 = scalar_lea.vmem %s3, %s359
      %p361 = pneg %p116
      %p362 = pneg %p113
      %p363 = pneg %p137
      %p364 = pneg %p134
      %p365 = pneg %p158
      %p366 = pneg %p155
      %p367 = pneg %p179
      %p368 = pneg %p176
      %p369 = pneg %p200
      %p370 = pneg %p197
      %p371 = pneg %p221
      %p372 = pneg %p218
      %p373 = pneg %p247
      %p374 = pneg %p244
      %s375 = smul.u32 8, %s22
      %p376 = scmp.lt.s32.totalorder %s375, 15
      %s377 = scalar_select %p376, %s375, 15
      %s378 = smul.addr %s377, 2
      %s379 = smul.addr %s378, 8
      %s380 = scalar_lea.vmem %s9, %s379
      %p381 = pneg %p273
      %p382 = pneg %p270
      %p383 = scmp.lt.s32.totalorder %s22, 1
      %s384 = scalar_select %p383, %s22, 1
      %s385 = smul.addr %s384, 8
      %s386 = scalar_lea.vmem %s10, %s385
      %p387 = scmp.lt.s32.totalorder %s22, 1
      %s388 = scalar_select %p387, %s22, 1
      %s389 = smul.addr %s388, 8
      %s390 = scalar_lea.vmem %s0, %s389
      %s391 = smul.u32 8, %s22
      %p392 = scmp.lt.s32.totalorder %s391, 15
      %s393 = scalar_select %p392, %s391, 15
      %s394 = smul.addr %s393, 2
      %s395 = smul.addr %s394, 8
      %s396 = scalar_lea.vmem %s2, %s395
      %s397 = smul.u32 8, %s22
      %p398 = scmp.lt.s32.totalorder %s22, 1
      %s399 = scalar_select %p398, %s22, 1
      %s400 = smul.addr %s399, 8
      %s401 = scalar_lea.vmem %s3, %s400
      %s402 = smul.u32 8, %s22
      %p403 = scmp.lt.s32.totalorder %s402, 15
      %s404 = scalar_select %p403, %s402, 15
      %s405 = smul.addr %s404, 2
      %s406 = smul.addr %s405, 8
      %s407 = scalar_lea.vmem %s9, %s406
      %s408 = smul.u32 8, %s22
      %p409 = scmp.lt.s32.totalorder %s22, 1
      %s410 = scalar_select %p409, %s22, 1
      %s411 = smul.addr %s410, 8
      %s412 = scalar_lea.vmem %s10, %s411
      %v414 = vld [vmem:[%s396] sm:$0xff]
      %v415 = vld [vmem:[%s396 + $0x8] sm:$0xff]
      %v416 = vld [vmem:[%s396 + $0x10] sm:$0xff]
      %v417 = vld [vmem:[%s396 + $0x18] sm:$0xff]
      %v418 = vld [vmem:[%s396 + $0x20] sm:$0xff]
      %v419 = vld [vmem:[%s396 + $0x28] sm:$0xff]
      %v420 = vld [vmem:[%s396 + $0x30] sm:$0xff]
      %v421 = vld [vmem:[%s396 + $0x38] sm:$0xff]
      %v422 = vld [vmem:[%s396 + $0x40] sm:$0xff]
      %v423 = vld [vmem:[%s396 + $0x48] sm:$0xff]
      %v424 = vld [vmem:[%s396 + $0x50] sm:$0xff]
      %v425 = vld [vmem:[%s396 + $0x58] sm:$0xff]
      %v426 = vld [vmem:[%s396 + $0x60] sm:$0xff]
      %v427 = vld [vmem:[%s396 + $0x68] sm:$0xff]
      %v428 = vld [vmem:[%s396 + $0x70] sm:$0xff]
      %v429 = vld [vmem:[%s396 + $0x78] sm:$0xff]
      %v430 = vpack.c.bf16 %v415, %v414
      %v431 = vpack.c.bf16 %v417, %v416
      %v432 = vpack.c.bf16 %v419, %v418
      %v433 = vpack.c.bf16 %v421, %v420
      %v434 = vpack.c.bf16 %v423, %v422
      %v435 = vpack.c.bf16 %v425, %v424
      %v436 = vpack.c.bf16 %v427, %v426
      %v437 = vpack.c.bf16 %v429, %v428
      %v438 = vld [vmem:[%s4] sm:$0xff]
      %v439 = vld [vmem:[%s4 + $0x8] sm:$0xff]
      %v440 = vld [vmem:[%s4 + $0x10] sm:$0xff]
      %v441 = vld [vmem:[%s4 + $0x18] sm:$0xff]
      %v442 = vld [vmem:[%s4 + $0x20] sm:$0xff]
      %v443 = vld [vmem:[%s4 + $0x28] sm:$0xff]
      %v444 = vld [vmem:[%s4 + $0x30] sm:$0xff]
      %v445 = vld [vmem:[%s4 + $0x38] sm:$0xff]
      %v446 = vpack.c.bf16 %v439, %v438
      %v447 = vpack.c.bf16 %v441, %v440
      %v448 = vpack.c.bf16 %v443, %v442
      %v449 = vpack.c.bf16 %v445, %v444
      %vm450 = vcmask 523264
      %v452 = vsel %vm450, %v430, 0
      %v455 = vsel %vm450, %v431, 0
      %v458 = vsel %vm450, %v432, 0
      %v461 = vsel %vm450, %v433, 0
      %v464 = vsel %vm450, %v434, 0
      %v467 = vsel %vm450, %v435, 0
      %v470 = vsel %vm450, %v436, 0
      %v473 = vsel %vm450, %v437, 0
      %475 = vmatprep.subr.bf16.mxu0 0
      %476 = vmatpush1.bf16.msra.mxu0 %v446
      %477 = vmatprep.subr.bf16.mxu0 0
      %478 = vmatpush1.bf16.msra.mxu0 %v447
      %479 = vmatprep.subr.bf16.mxu0 0
      %480 = vmatpush1.bf16.msra.mxu0 %v448
      %481 = vmatprep.subr.bf16.mxu0 0
      %482 = vmatpush1.bf16.msra.mxu0 %v449
      %483 = vmatprep.subr.bf16.mxu0 0
      %484 = vmatpush1.bf16.msra.mxu0 0
      %485 = vmatprep.subr.bf16.mxu0 0
      %486 = vmatpush1.bf16.msra.mxu0 0
      %487 = vmatprep.subr.bf16.mxu0 0
      %488 = vmatpush1.bf16.msra.mxu0 0
      %489 = vmatprep.subr.bf16.mxu0 0
      %490 = vmatpush1.bf16.msra.mxu0 0
      %491 = vmatprep.subr.bf16.mxu0 0
      %492 = vmatpush1.bf16.msra.mxu0 0
      %493 = vmatprep.subr.bf16.mxu0 0
      %494 = vmatpush1.bf16.msra.mxu0 0
      %495 = vmatprep.subr.bf16.mxu0 0
      %496 = vmatpush1.bf16.msra.mxu0 0
      %497 = vmatprep.subr.bf16.mxu0 0
      %498 = vmatpush1.bf16.msra.mxu0 0
      %499 = vmatprep.subr.bf16.mxu0 0
      %500 = vmatpush1.bf16.msra.mxu0 0
      %501 = vmatprep.subr.bf16.mxu0 0
      %502 = vmatpush1.bf16.msra.mxu0 0
      %503 = vmatprep.subr.bf16.mxu0 0
      %504 = vmatpush1.bf16.msra.mxu0 0
      %505 = vmatprep.subr.bf16.mxu0 0
      %506 = vmatpush1.bf16.msra.mxu0 0
      %507 = vmatprep.mubr.bf16.mxu0 0
      %508 = vmatmul.mubr.bf16.gmra.mrb[0].mxu0 %v452
      %v509 = vpop.f32.mrb[0].mxu0
      %v510 = vadd.f32 0.0, %v509
      %v511 = vpop.f32.mrb[0].mxu0
      %v512 = vpop.f32.mrb[0].mxu0
      %v513 = vadd.f32 0.0, %v512
      %v514 = vpop.f32.mrb[0].mxu0
      %515 = vmatprep.mubr.bf16.mxu0 0
      %516 = vmatmul.mubr.bf16.gmra.mrb[0].mxu0 %v455
      %v517 = vpop.f32.mrb[0].mxu0
      %v518 = vadd.f32 0.0, %v517
      %v519 = vpop.f32.mrb[0].mxu0
      %v520 = vpop.f32.mrb[0].mxu0
      %v521 = vadd.f32 0.0, %v520
      %v522 = vpop.f32.mrb[0].mxu0
      %523 = vmatprep.mubr.bf16.mxu0 0
      %524 = vmatmul.mubr.bf16.gmra.mrb[0].mxu0 %v458
      %v525 = vpop.f32.mrb[0].mxu0
      %v526 = vadd.f32 0.0, %v525
      %v527 = vpop.f32.mrb[0].mxu0
      %v528 = vpop.f32.mrb[0].mxu0
      %v529 = vadd.f32 0.0, %v528
      %v530 = vpop.f32.mrb[0].mxu0
      %531 = vmatprep.mubr.bf16.mxu0 0
      %532 = vmatmul.mubr.bf16.gmra.mrb[0].mxu0 %v461
      %v533 = vpop.f32.mrb[0].mxu0
      %v534 = vadd.f32 0.0, %v533
      %v535 = vpop.f32.mrb[0].mxu0
      %v536 = vpop.f32.mrb[0].mxu0
      %v537 = vadd.f32 0.0, %v536
      %v538 = vpop.f32.mrb[0].mxu0
      %539 = vmatprep.mubr.bf16.mxu0 0
      %540 = vmatmul.mubr.bf16.gmra.mrb[0].mxu0 %v464
      %v541 = vpop.f32.mrb[0].mxu0
      %v542 = vadd.f32 0.0, %v541
      %v543 = vpop.f32.mrb[0].mxu0
      %v544 = vpop.f32.mrb[0].mxu0
      %v545 = vadd.f32 0.0, %v544
      %v546 = vpop.f32.mrb[0].mxu0
      %547 = vmatprep.mubr.bf16.mxu0 0
      %548 = vmatmul.mubr.bf16.gmra.mrb[0].mxu0 %v467
      %v549 = vpop.f32.mrb[0].mxu0
      %v550 = vadd.f32 0.0, %v549
      %v551 = vpop.f32.mrb[0].mxu0
      %v552 = vpop.f32.mrb[0].mxu0
      %v553 = vadd.f32 0.0, %v552
      %v554 = vpop.f32.mrb[0].mxu0
      %555 = vmatprep.mubr.bf16.mxu0 0
      %556 = vmatmul.mubr.bf16.gmra.mrb[0].mxu0 %v470
      %v557 = vpop.f32.mrb[0].mxu0
      %v558 = vadd.f32 0.0, %v557
      %v559 = vpop.f32.mrb[0].mxu0
      %v560 = vpop.f32.mrb[0].mxu0
      %v561 = vadd.f32 0.0, %v560
      %v562 = vpop.f32.mrb[0].mxu0
      %563 = vmatprep.mubr.bf16.mxu0 0
      %564 = vmatmul.mubr.bf16.gmra.mrb[0].mxu0 %v473
      %v565 = vpop.f32.mrb[0].mxu0
      %v566 = vadd.f32 0.0, %v565
      %v567 = vpop.f32.mrb[0].mxu0
      %v568 = vpop.f32.mrb[0].mxu0
      %v569 = vadd.f32 0.0, %v568
      %v570 = vpop.f32.mrb[0].mxu0
      %571 = vdwg.mxu0
      %v572 = vld [vmem:[%s1] sm:$0xff]
      %v573 = vld [vmem:[%s1 + $0x8] sm:$0xff]
      %v574 = vadd.f32 %v510, %v572
      %v575 = vadd.f32 %v513, %v573
      %v576 = vadd.f32 %v518, %v572
      %v577 = vadd.f32 %v521, %v573
      %v578 = vadd.f32 %v526, %v572
      %v579 = vadd.f32 %v529, %v573
      %v580 = vadd.f32 %v534, %v572
      %v581 = vadd.f32 %v537, %v573
      %v582 = vadd.f32 %v542, %v572
      %v583 = vadd.f32 %v545, %v573
      %v584 = vadd.f32 %v550, %v572
      %v585 = vadd.f32 %v553, %v573
      %v586 = vadd.f32 %v558, %v572
      %v587 = vadd.f32 %v561, %v573
      %v588 = vadd.f32 %v566, %v572
      %v589 = vadd.f32 %v569, %v573
      %v590 = vld [vmem:[%s390] sm:$0xff]
      %v592 = vcombine.high %v590, %v590
      %v594 = vunpack.c.l.s4 1966171168
      %v595 = vunpack.c.0.s8 %v594
      %v596 = vlaneseq
      %v597 = vshrl.u32 %v596, 7
      %v598 = vsub.s32 %v595, %v597
      %v599 = vrot.slane %v590, %v598
      %v601 = vunpack.c.l.s4 1966171168
      %v602 = vunpack.c.0.s8 %v601
      %v603 = vlaneseq
      %v604 = vshrl.u32 %v603, 7
      %v605 = vsub.s32 %v602, %v604
      %v606 = vrot.slane %v592, %v605
      %v607 = vcombine.high %v599, %v599
      %v608 = vcombine.high %v606, %v606
      %v610 = vunpack.c.l.s4 1966171168
      %v611 = vunpack.c.0.s8 %v610
      %v612 = vlaneseq
      %v613 = vshrl.u32 %v612, 7
      %v614 = vsub.s32 %v611, %v613
      %v615 = vrot.slane %v599, %v614
      %v617 = vunpack.c.l.s4 1966171168
      %v618 = vunpack.c.0.s8 %v617
      %v619 = vlaneseq
      %v620 = vshrl.u32 %v619, 7
      %v621 = vsub.s32 %v618, %v620
      %v622 = vrot.slane %v606, %v621
      %v624 = vunpack.c.l.s4 1966171168
      %v625 = vunpack.c.0.s8 %v624
      %v626 = vlaneseq
      %v627 = vshrl.u32 %v626, 7
      %v628 = vsub.s32 %v625, %v627
      %v629 = vrot.slane %v607, %v628
      %v631 = vunpack.c.l.s4 1966171168
      %v632 = vunpack.c.0.s8 %v631
      %v633 = vlaneseq
      %v634 = vshrl.u32 %v633, 7
      %v635 = vsub.s32 %v632, %v634
      %v636 = vrot.slane %v608, %v635
      %v637 = vcombine.high %v615, %v615
      %v638 = vcombine.high %v622, %v622
      %v639 = vcombine.high %v629, %v629
      %v640 = vcombine.high %v636, %v636
      %v641 = vlaneseq
      %v642 = vshrl.u32 %v641, 7
      %v643 = vsub.s32 0, %v642
      %v644 = vrot.slane %v615, %v643
      %v645 = vlaneseq
      %v646 = vshrl.u32 %v645, 7
      %v647 = vsub.s32 0, %v646
      %v648 = vrot.slane %v629, %v647
      %v649 = vlaneseq
      %v650 = vshrl.u32 %v649, 7
      %v651 = vsub.s32 0, %v650
      %v652 = vrot.slane %v637, %v651
      %v653 = vlaneseq
      %v654 = vshrl.u32 %v653, 7
      %v655 = vsub.s32 0, %v654
      %v656 = vrot.slane %v639, %v655
      %v657 = vlaneseq
      %v658 = vshrl.u32 %v657, 7
      %v659 = vsub.s32 0, %v658
      %v660 = vrot.slane %v622, %v659
      %v661 = vlaneseq
      %v662 = vshrl.u32 %v661, 7
      %v663 = vsub.s32 0, %v662
      %v664 = vrot.slane %v636, %v663
      %v665 = vlaneseq
      %v666 = vshrl.u32 %v665, 7
      %v667 = vsub.s32 0, %v666
      %v668 = vrot.slane %v638, %v667
      %v669 = vlaneseq
      %v670 = vshrl.u32 %v669, 7
      %v671 = vsub.s32 0, %v670
      %v672 = vrot.slane %v640, %v671
      %v681 = vadd.f32 %v574, %v644
      %v682 = vadd.f32 %v575, %v644
      %v683 = vadd.f32 %v576, %v648
      %v684 = vadd.f32 %v577, %v648
      %v685 = vadd.f32 %v578, %v652
      %v686 = vadd.f32 %v579, %v652
      %v687 = vadd.f32 %v580, %v656
      %v688 = vadd.f32 %v581, %v656
      %v689 = vadd.f32 %v582, %v660
      %v690 = vadd.f32 %v583, %v660
      %v691 = vadd.f32 %v584, %v664
      %v692 = vadd.f32 %v585, %v664
      %v693 = vadd.f32 %v586, %v668
      %v694 = vadd.f32 %v587, %v668
      %v695 = vadd.f32 %v588, %v672
      %v696 = vadd.f32 %v589, %v672
      %v697 = vld [vmem:[%s5] sm:$0x1]
      %v699 = vlaneseq
      %v700 = vshrl.u32 %v699, 7
      %v701 = vsub.s32 0, %v700
      %v702 = vrot.slane %v697, %v701
      %v704 = vadd.f32 %v681, %v702
      %v705 = vadd.f32 %v682, %v702
      %v706 = vadd.f32 %v683, %v702
      %v707 = vadd.f32 %v684, %v702
      %v708 = vadd.f32 %v685, %v702
      %v709 = vadd.f32 %v686, %v702
      %v710 = vadd.f32 %v687, %v702
      %v711 = vadd.f32 %v688, %v702
      %v712 = vadd.f32 %v689, %v702
      %v713 = vadd.f32 %v690, %v702
      %v714 = vadd.f32 %v691, %v702
      %v715 = vadd.f32 %v692, %v702
      %v716 = vadd.f32 %v693, %v702
      %v717 = vadd.f32 %v694, %v702
      %v718 = vadd.f32 %v695, %v702
      %v719 = vadd.f32 %v696, %v702
      %v720 = vmax.f32 %v704, 0.0
      %v721 = vmax.f32 %v705, 0.0
      %v722 = vmax.f32 %v706, 0.0
      %v723 = vmax.f32 %v707, 0.0
      %v724 = vmax.f32 %v708, 0.0
      %v725 = vmax.f32 %v709, 0.0
      %v726 = vmax.f32 %v710, 0.0
      %v727 = vmax.f32 %v711, 0.0
      %v728 = vmax.f32 %v712, 0.0
      %v729 = vmax.f32 %v713, 0.0
      %v730 = vmax.f32 %v714, 0.0
      %v731 = vmax.f32 %v715, 0.0
      %v732 = vmax.f32 %v716, 0.0
      %v733 = vmax.f32 %v717, 0.0
      %v734 = vmax.f32 %v718, 0.0
      %v735 = vmax.f32 %v719, 0.0
      %v736 = vld [vmem:[%s6] sm:$0xff]
      %v737 = vld [vmem:[%s6 + $0x8] sm:$0xff]
      %v738 = vld [vmem:[%s6 + $0x10] sm:$0xff]
      %v739 = vld [vmem:[%s6 + $0x18] sm:$0xff]
      %v740 = vld [vmem:[%s6 + $0x20] sm:$0xff]
      %v741 = vld [vmem:[%s6 + $0x28] sm:$0xff]
      %v742 = vld [vmem:[%s6 + $0x30] sm:$0xff]
      %v743 = vld [vmem:[%s6 + $0x38] sm:$0xff]
      %v744 = vld [vmem:[%s6 + $0x40] sm:$0xff]
      %v745 = vld [vmem:[%s6 + $0x48] sm:$0xff]
      %v746 = vld [vmem:[%s6 + $0x50] sm:$0xff]
      %v747 = vld [vmem:[%s6 + $0x58] sm:$0xff]
      %v748 = vld [vmem:[%s6 + $0x60] sm:$0xff]
      %v749 = vld [vmem:[%s6 + $0x68] sm:$0xff]
      %v750 = vld [vmem:[%s6 + $0x70] sm:$0xff]
      %v751 = vld [vmem:[%s6 + $0x78] sm:$0xff]
      %v752 = vld [vmem:[%s7] sm:$0x1]
      %v753 = vpack.c.bf16 %v721, %v720
      %v754 = vpack.c.bf16 %v723, %v722
      %v755 = vpack.c.bf16 %v725, %v724
      %v756 = vpack.c.bf16 %v727, %v726
      %v757 = vpack.c.bf16 %v729, %v728
      %v758 = vpack.c.bf16 %v731, %v730
      %v759 = vpack.c.bf16 %v733, %v732
      %v760 = vpack.c.bf16 %v735, %v734
      %v761 = vpack.c.bf16 %v737, %v736
      %v762 = vpack.c.bf16 %v739, %v738
      %v763 = vpack.c.bf16 %v741, %v740
      %v764 = vpack.c.bf16 %v743, %v742
      %v765 = vpack.c.bf16 %v745, %v744
      %v766 = vpack.c.bf16 %v747, %v746
      %v767 = vpack.c.bf16 %v749, %v748
      %v768 = vpack.c.bf16 %v751, %v750
      %v770 = vlaneseq
      %v771 = vshrl.u32 %v770, 7
      %v772 = vsub.s32 0, %v771
      %v773 = vrot.slane %v752, %v772
      %775 = vmatprep.subr.bf16.mxu0 0
      %776 = vmatpush1.bf16.msra.mxu0 %v761
      %777 = vmatprep.subr.bf16.mxu0 0
      %778 = vmatpush1.bf16.msra.mxu0 %v762
      %779 = vmatprep.subr.bf16.mxu0 0
      %780 = vmatpush1.bf16.msra.mxu0 %v763
      %781 = vmatprep.subr.bf16.mxu0 0
      %782 = vmatpush1.bf16.msra.mxu0 %v764
      %783 = vmatprep.subr.bf16.mxu0 0
      %784 = vmatpush1.bf16.msra.mxu0 %v765
      %785 = vmatprep.subr.bf16.mxu0 0
      %786 = vmatpush1.bf16.msra.mxu0 %v766
      %787 = vmatprep.subr.bf16.mxu0 0
      %788 = vmatpush1.bf16.msra.mxu0 %v767
      %789 = vmatprep.subr.bf16.mxu0 0
      %790 = vmatpush1.bf16.msra.mxu0 %v768
      %791 = vmatprep.subr.bf16.mxu0 0
      %792 = vmatpush1.bf16.msra.mxu0 0
      %793 = vmatprep.subr.bf16.mxu0 0
      %794 = vmatpush1.bf16.msra.mxu0 0
      %795 = vmatprep.subr.bf16.mxu0 0
      %796 = vmatpush1.bf16.msra.mxu0 0
      %797 = vmatprep.subr.bf16.mxu0 0
      %798 = vmatpush1.bf16.msra.mxu0 0
      %799 = vmatprep.subr.bf16.mxu0 0
      %800 = vmatpush1.bf16.msra.mxu0 0
      %801 = vmatprep.subr.bf16.mxu0 0
      %802 = vmatpush1.bf16.msra.mxu0 0
      %803 = vmatprep.subr.bf16.mxu0 0
      %804 = vmatpush1.bf16.msra.mxu0 0
      %805 = vmatprep.subr.bf16.mxu0 0
      %806 = vmatpush1.bf16.msra.mxu0 0
      %807 = vmatprep.mubr.bf16.mxu0 0
      %808 = vmatmul.mubr.bf16.gmra.mrb[0].mxu0 %v753
      %v809 = vpop.f32.mrb[0].mxu0
      %v810 = vadd.f32 %v773, %v809
      %v811 = vpop.f32.mrb[0].mxu0
      %v812 = vpop.f32.mrb[0].mxu0
      %v813 = vadd.f32 %v773, %v812
      %v814 = vpop.f32.mrb[0].mxu0
      %815 = vmatprep.mubr.bf16.mxu0 0
      %816 = vmatmul.mubr.bf16.gmra.mrb[0].mxu0 %v754
      %v817 = vpop.f32.mrb[0].mxu0
      %v818 = vadd.f32 %v773, %v817
      %v819 = vpop.f32.mrb[0].mxu0
      %v820 = vpop.f32.mrb[0].mxu0
      %v821 = vadd.f32 %v773, %v820
      %v822 = vpop.f32.mrb[0].mxu0
      %823 = vmatprep.mubr.bf16.mxu0 0
      %824 = vmatmul.mubr.bf16.gmra.mrb[0].mxu0 %v755
      %v825 = vpop.f32.mrb[0].mxu0
      %v826 = vadd.f32 %v773, %v825
      %v827 = vpop.f32.mrb[0].mxu0
      %v828 = vpop.f32.mrb[0].mxu0
      %v829 = vadd.f32 %v773, %v828
      %v830 = vpop.f32.mrb[0].mxu0
      %831 = vmatprep.mubr.bf16.mxu0 0
      %832 = vmatmul.mubr.bf16.gmra.mrb[0].mxu0 %v756
      %v833 = vpop.f32.mrb[0].mxu0
      %v834 = vadd.f32 %v773, %v833
      %v835 = vpop.f32.mrb[0].mxu0
      %v836 = vpop.f32.mrb[0].mxu0
      %v837 = vadd.f32 %v773, %v836
      %v838 = vpop.f32.mrb[0].mxu0
      %839 = vmatprep.mubr.bf16.mxu0 0
      %840 = vmatmul.mubr.bf16.gmra.mrb[0].mxu0 %v757
      %v841 = vpop.f32.mrb[0].mxu0
      %v842 = vadd.f32 %v773, %v841
      %v843 = vpop.f32.mrb[0].mxu0
      %v844 = vpop.f32.mrb[0].mxu0
      %v845 = vadd.f32 %v773, %v844
      %v846 = vpop.f32.mrb[0].mxu0
      %847 = vmatprep.mubr.bf16.mxu0 0
      %848 = vmatmul.mubr.bf16.gmra.mrb[0].mxu0 %v758
      %v849 = vpop.f32.mrb[0].mxu0
      %v850 = vadd.f32 %v773, %v849
      %v851 = vpop.f32.mrb[0].mxu0
      %v852 = vpop.f32.mrb[0].mxu0
      %v853 = vadd.f32 %v773, %v852
      %v854 = vpop.f32.mrb[0].mxu0
      %855 = vmatprep.mubr.bf16.mxu0 0
      %856 = vmatmul.mubr.bf16.gmra.mrb[0].mxu0 %v759
      %v857 = vpop.f32.mrb[0].mxu0
      %v858 = vadd.f32 %v773, %v857
      %v859 = vpop.f32.mrb[0].mxu0
      %v860 = vpop.f32.mrb[0].mxu0
      %v861 = vadd.f32 %v773, %v860
      %v862 = vpop.f32.mrb[0].mxu0
      %863 = vmatprep.mubr.bf16.mxu0 0
      %864 = vmatmul.mubr.bf16.gmra.mrb[0].mxu0 %v760
      %v865 = vpop.f32.mrb[0].mxu0
      %v866 = vadd.f32 %v773, %v865
      %v867 = vpop.f32.mrb[0].mxu0
      %v868 = vpop.f32.mrb[0].mxu0
      %v869 = vadd.f32 %v773, %v868
      %v870 = vpop.f32.mrb[0].mxu0
      %871 = vdwg.mxu0
      %v872 = vmax.f32 %v810, 0.0
      %v873 = vmax.f32 %v813, 0.0
      %v874 = vmax.f32 %v818, 0.0
      %v875 = vmax.f32 %v821, 0.0
      %v876 = vmax.f32 %v826, 0.0
      %v877 = vmax.f32 %v829, 0.0
      %v878 = vmax.f32 %v834, 0.0
      %v879 = vmax.f32 %v837, 0.0
      %v880 = vmax.f32 %v842, 0.0
      %v881 = vmax.f32 %v845, 0.0
      %v882 = vmax.f32 %v850, 0.0
      %v883 = vmax.f32 %v853, 0.0
      %v884 = vmax.f32 %v858, 0.0
      %v885 = vmax.f32 %v861, 0.0
      %v886 = vmax.f32 %v866, 0.0
      %v887 = vmax.f32 %v869, 0.0
      %888 = vst.msk [vmem:[%s407] sm:$0xff] %vm450, %v872
      %889 = vst.msk [vmem:[%s407 + $0x8] sm:$0xff] %vm450, %v873
      %890 = vst.msk [vmem:[%s407 + $0x10] sm:$0xff] %vm450, %v874
      %891 = vst.msk [vmem:[%s407 + $0x18] sm:$0xff] %vm450, %v875
      %892 = vst.msk [vmem:[%s407 + $0x20] sm:$0xff] %vm450, %v876
      %893 = vst.msk [vmem:[%s407 + $0x28] sm:$0xff] %vm450, %v877
      %894 = vst.msk [vmem:[%s407 + $0x30] sm:$0xff] %vm450, %v878
      %895 = vst.msk [vmem:[%s407 + $0x38] sm:$0xff] %vm450, %v879
      %896 = vst.msk [vmem:[%s407 + $0x40] sm:$0xff] %vm450, %v880
      %897 = vst.msk [vmem:[%s407 + $0x48] sm:$0xff] %vm450, %v881
      %898 = vst.msk [vmem:[%s407 + $0x50] sm:$0xff] %vm450, %v882
      %899 = vst.msk [vmem:[%s407 + $0x58] sm:$0xff] %vm450, %v883
      %900 = vst.msk [vmem:[%s407 + $0x60] sm:$0xff] %vm450, %v884
      %901 = vst.msk [vmem:[%s407 + $0x68] sm:$0xff] %vm450, %v885
      %902 = vst.msk [vmem:[%s407 + $0x70] sm:$0xff] %vm450, %v886
      %903 = vst.msk [vmem:[%s407 + $0x78] sm:$0xff] %vm450, %v887
      %v904 = vld [vmem:[%s401] sm:$0xff]
      %v905 = vld [vmem:[%s8] sm:$0x1]
      %v907 = vlaneseq
      %v908 = vshrl.u32 %v907, 7
      %v909 = vsub.s32 0, %v908
      %v910 = vrot.slane %v905, %v909
      %v912 = vmul.f32 %v872, %v910
      %v913 = vmul.f32 %v873, %v910
      %v914 = vmul.f32 %v874, %v910
      %v915 = vmul.f32 %v875, %v910
      %v916 = vmul.f32 %v876, %v910
      %v917 = vmul.f32 %v877, %v910
      %v918 = vmul.f32 %v878, %v910
      %v919 = vmul.f32 %v879, %v910
      %v920 = vmul.f32 %v880, %v910
      %v921 = vmul.f32 %v881, %v910
      %v922 = vmul.f32 %v882, %v910
      %v923 = vmul.f32 %v883, %v910
      %v924 = vmul.f32 %v884, %v910
      %v925 = vmul.f32 %v885, %v910
      %v926 = vmul.f32 %v886, %v910
      %v927 = vmul.f32 %v887, %v910
      %v928 = vsel %vm450, %v912, 0.0
      %929 = vadd.xlane.f32.xlu0 %v928
      %v930 = vpop.xlane.xlu0 %929
      %v931 = vsel %vm450, %v913, 0.0
      %932 = vadd.xlane.f32.xlu0 %v931
      %v933 = vpop.xlane.xlu0 %932
      %v934 = vsel %vm450, %v914, 0.0
      %935 = vadd.xlane.f32.xlu0 %v934
      %v936 = vpop.xlane.xlu0 %935
      %v937 = vsel %vm450, %v915, 0.0
      %938 = vadd.xlane.f32.xlu0 %v937
      %v939 = vpop.xlane.xlu0 %938
      %v940 = vsel %vm450, %v916, 0.0
      %941 = vadd.xlane.f32.xlu0 %v940
      %v942 = vpop.xlane.xlu0 %941
      %v943 = vsel %vm450, %v917, 0.0
      %944 = vadd.xlane.f32.xlu0 %v943
      %v945 = vpop.xlane.xlu0 %944
      %v946 = vsel %vm450, %v918, 0.0
      %947 = vadd.xlane.f32.xlu0 %v946
      %v948 = vpop.xlane.xlu0 %947
      %v949 = vsel %vm450, %v919, 0.0
      %950 = vadd.xlane.f32.xlu0 %v949
      %v951 = vpop.xlane.xlu0 %950
      %v952 = vsel %vm450, %v920, 0.0
      %953 = vadd.xlane.f32.xlu0 %v952
      %v954 = vpop.xlane.xlu0 %953
      %v955 = vsel %vm450, %v921, 0.0
      %956 = vadd.xlane.f32.xlu0 %v955
      %v957 = vpop.xlane.xlu0 %956
      %v958 = vsel %vm450, %v922, 0.0
      %959 = vadd.xlane.f32.xlu0 %v958
      %v960 = vpop.xlane.xlu0 %959
      %v961 = vsel %vm450, %v923, 0.0
      %962 = vadd.xlane.f32.xlu0 %v961
      %v963 = vpop.xlane.xlu0 %962
      %v964 = vsel %vm450, %v924, 0.0
      %965 = vadd.xlane.f32.xlu0 %v964
      %v966 = vpop.xlane.xlu0 %965
      %v967 = vsel %vm450, %v925, 0.0
      %968 = vadd.xlane.f32.xlu0 %v967
      %v969 = vpop.xlane.xlu0 %968
      %v970 = vsel %vm450, %v926, 0.0
      %971 = vadd.xlane.f32.xlu0 %v970
      %v972 = vpop.xlane.xlu0 %971
      %v973 = vsel %vm450, %v927, 0.0
      %974 = vadd.xlane.f32.xlu0 %v973
      %v975 = vpop.xlane.xlu0 %974
      %vm976 = vcmp.gt.f32.partialorder %v904, 0.0
      %v993 = vlaneseq
      %v994 = vand.u32 %v993, 127
      %v995 = vlaneseq
      %v996 = vshrl.u32 %v995, 7
      %v997 = vsub.s32 %v994, %v996
      %v998 = vrot.slane %v930, %v997
      %v999 = vadd.s32 %v994, 4294967288
      %v1000 = vlaneseq
      %v1001 = vshrl.u32 %v1000, 7
      %v1002 = vsub.s32 %v999, %v1001
      %v1003 = vrot.slane %v933, %v1002
      %vm1004 = vcmask 130112
      %v1005 = vsel %vm1004, %v1003, %v998
      %v1006 = vlaneseq
      %v1007 = vshrl.u32 %v1006, 7
      %v1008 = vsub.s32 %v994, %v1007
      %v1009 = vrot.slane %v936, %v1008
      %v1010 = vlaneseq
      %v1011 = vshrl.u32 %v1010, 7
      %v1012 = vsub.s32 %v999, %v1011
      %v1013 = vrot.slane %v939, %v1012
      %v1014 = vsel %vm1004, %v1013, %v1009
      %v1015 = vlaneseq
      %v1016 = vshrl.u32 %v1015, 7
      %v1017 = vsub.s32 %v994, %v1016
      %v1018 = vrot.slane %v942, %v1017
      %v1019 = vlaneseq
      %v1020 = vshrl.u32 %v1019, 7
      %v1021 = vsub.s32 %v999, %v1020
      %v1022 = vrot.slane %v945, %v1021
      %v1023 = vsel %vm1004, %v1022, %v1018
      %v1024 = vlaneseq
      %v1025 = vshrl.u32 %v1024, 7
      %v1026 = vsub.s32 %v994, %v1025
      %v1027 = vrot.slane %v948, %v1026
      %v1028 = vlaneseq
      %v1029 = vshrl.u32 %v1028, 7
      %v1030 = vsub.s32 %v999, %v1029
      %v1031 = vrot.slane %v951, %v1030
      %v1032 = vsel %vm1004, %v1031, %v1027
      %v1033 = vlaneseq
      %v1034 = vshrl.u32 %v1033, 7
      %v1035 = vsub.s32 %v994, %v1034
      %v1036 = vrot.slane %v954, %v1035
      %v1037 = vlaneseq
      %v1038 = vshrl.u32 %v1037, 7
      %v1039 = vsub.s32 %v999, %v1038
      %v1040 = vrot.slane %v957, %v1039
      %v1041 = vsel %vm1004, %v1040, %v1036
      %v1042 = vlaneseq
      %v1043 = vshrl.u32 %v1042, 7
      %v1044 = vsub.s32 %v994, %v1043
      %v1045 = vrot.slane %v960, %v1044
      %v1046 = vlaneseq
      %v1047 = vshrl.u32 %v1046, 7
      %v1048 = vsub.s32 %v999, %v1047
      %v1049 = vrot.slane %v963, %v1048
      %v1050 = vsel %vm1004, %v1049, %v1045
      %v1051 = vlaneseq
      %v1052 = vshrl.u32 %v1051, 7
      %v1053 = vsub.s32 %v994, %v1052
      %v1054 = vrot.slane %v966, %v1053
      %v1055 = vlaneseq
      %v1056 = vshrl.u32 %v1055, 7
      %v1057 = vsub.s32 %v999, %v1056
      %v1058 = vrot.slane %v969, %v1057
      %v1059 = vsel %vm1004, %v1058, %v1054
      %v1060 = vlaneseq
      %v1061 = vshrl.u32 %v1060, 7
      %v1062 = vsub.s32 %v994, %v1061
      %v1063 = vrot.slane %v972, %v1062
      %v1064 = vlaneseq
      %v1065 = vshrl.u32 %v1064, 7
      %v1066 = vsub.s32 %v999, %v1065
      %v1067 = vrot.slane %v975, %v1066
      %v1068 = vsel %vm1004, %v1067, %v1063
      %vm1069 = vcmask 1041409
      %v1070 = vsel %vm1069, %v1014, %v1005
      %vm1071 = vcmask 1042434
      %v1072 = vsel %vm1071, %v1023, %v1070
      %vm1073 = vcmask 1043459
      %v1074 = vsel %vm1073, %v1032, %v1072
      %vm1075 = vcmask 1044484
      %v1076 = vsel %vm1075, %v1041, %v1074
      %vm1077 = vcmask 1045509
      %v1078 = vsel %vm1077, %v1050, %v1076
      %vm1079 = vcmask 1046534
      %v1080 = vsel %vm1079, %v1059, %v1078
      %vm1081 = vcmask 1047559
      %v1082 = vsel %vm1081, %v1068, %v1080
      %v1084 = vsel %vm976, %v1082, -1e+30
      %vm1085 = vcmask 130048
      %v1086 = vsel %vm1085, %v1084, -inf
      %1087 = vmax.xlane.f32.xlu0 %v1086
      %v1088 = vpop.xlane.xlu0 %1087
      %v1089 = vsub.f32 %v1084, %v1088
      %v1090 = vmul.f32 %v1089, 1.442695
      %v1091 = vpow.pop %v1090
      %v1092 = vmul.f32 %v1091, %v904
      %v1093 = vsel %vm1085, %v1092, 0.0
      %1094 = vadd.xlane.f32.xlu0 %v1093
      %v1095 = vpop.xlane.xlu0 %1094
      %v1096 = vmax.f32 %v1095, 1e-20
      %v1097 = vrcp.pop %v1096
      %v1098 = vmul.f32 %v1092, %v1097
      %v1099 = vlaneseq
      %v1100 = vshrl.u32 %v1099, 7
      %v1101 = vsub.s32 0, %v1100
      %v1102 = vrot.slane %v1098, %v1101
      %1104 = vbcast.lane.b32.xlu0 %v1102, 256
      %v1105 = vpop.permute.xlu0 %1104
      %s1107 = sor.u32 256, 8
      %1108 = vbcast.lane.b32.xlu0 %v1102, %s1107
      %v1109 = vpop.permute.xlu0 %1108
      %v1110 = vlaneseq
      %v1111 = vshrl.u32 %v1110, 7
      %v1112 = vsub.s32 1, %v1111
      %v1113 = vrot.slane %v1098, %v1112
      %1115 = vbcast.lane.b32.xlu0 %v1113, 256
      %v1116 = vpop.permute.xlu0 %1115
      %s1118 = sor.u32 256, 8
      %1119 = vbcast.lane.b32.xlu0 %v1113, %s1118
      %v1120 = vpop.permute.xlu0 %1119
      %v1121 = vlaneseq
      %v1122 = vshrl.u32 %v1121, 7
      %v1123 = vsub.s32 2, %v1122
      %v1124 = vrot.slane %v1098, %v1123
      %1126 = vbcast.lane.b32.xlu0 %v1124, 256
      %v1127 = vpop.permute.xlu0 %1126
      %s1129 = sor.u32 256, 8
      %1130 = vbcast.lane.b32.xlu0 %v1124, %s1129
      %v1131 = vpop.permute.xlu0 %1130
      %v1132 = vlaneseq
      %v1133 = vshrl.u32 %v1132, 7
      %v1134 = vsub.s32 3, %v1133
      %v1135 = vrot.slane %v1098, %v1134
      %1137 = vbcast.lane.b32.xlu0 %v1135, 256
      %v1138 = vpop.permute.xlu0 %1137
      %s1140 = sor.u32 256, 8
      %1141 = vbcast.lane.b32.xlu0 %v1135, %s1140
      %v1142 = vpop.permute.xlu0 %1141
      %v1143 = vlaneseq
      %v1144 = vshrl.u32 %v1143, 7
      %v1145 = vsub.s32 4, %v1144
      %v1146 = vrot.slane %v1098, %v1145
      %1148 = vbcast.lane.b32.xlu0 %v1146, 256
      %v1149 = vpop.permute.xlu0 %1148
      %s1151 = sor.u32 256, 8
      %1152 = vbcast.lane.b32.xlu0 %v1146, %s1151
      %v1153 = vpop.permute.xlu0 %1152
      %v1154 = vlaneseq
      %v1155 = vshrl.u32 %v1154, 7
      %v1156 = vsub.s32 5, %v1155
      %v1157 = vrot.slane %v1098, %v1156
      %1159 = vbcast.lane.b32.xlu0 %v1157, 256
      %v1160 = vpop.permute.xlu0 %1159
      %s1162 = sor.u32 256, 8
      %1163 = vbcast.lane.b32.xlu0 %v1157, %s1162
      %v1164 = vpop.permute.xlu0 %1163
      %v1165 = vlaneseq
      %v1166 = vshrl.u32 %v1165, 7
      %v1167 = vsub.s32 6, %v1166
      %v1168 = vrot.slane %v1098, %v1167
      %1170 = vbcast.lane.b32.xlu0 %v1168, 256
      %v1171 = vpop.permute.xlu0 %1170
      %s1173 = sor.u32 256, 8
      %1174 = vbcast.lane.b32.xlu0 %v1168, %s1173
      %v1175 = vpop.permute.xlu0 %1174
      %v1176 = vlaneseq
      %v1177 = vshrl.u32 %v1176, 7
      %v1178 = vsub.s32 7, %v1177
      %v1179 = vrot.slane %v1098, %v1178
      %1181 = vbcast.lane.b32.xlu0 %v1179, 256
      %v1182 = vpop.permute.xlu0 %1181
      %s1184 = sor.u32 256, 8
      %1185 = vbcast.lane.b32.xlu0 %v1179, %s1184
      %v1186 = vpop.permute.xlu0 %1185
      %v1187 = vmul.f32 %v872, %v1105
      %v1188 = vmul.f32 %v873, %v1109
      %v1189 = vmul.f32 %v874, %v1116
      %v1190 = vmul.f32 %v875, %v1120
      %v1191 = vmul.f32 %v876, %v1127
      %v1192 = vmul.f32 %v877, %v1131
      %v1193 = vmul.f32 %v878, %v1138
      %v1194 = vmul.f32 %v879, %v1142
      %v1195 = vmul.f32 %v880, %v1149
      %v1196 = vmul.f32 %v881, %v1153
      %v1197 = vmul.f32 %v882, %v1160
      %v1198 = vmul.f32 %v883, %v1164
      %v1199 = vmul.f32 %v884, %v1171
      %v1200 = vmul.f32 %v885, %v1175
      %v1201 = vmul.f32 %v886, %v1182
      %v1202 = vmul.f32 %v887, %v1186
      %v1203 = vsel %vm450, %v1187, 0.0
      %v1204 = vsel %vm450, %v1188, 0.0
      %v1205 = vadd.f32 %v1203, %v1204
      %v1206 = vrot.slane %v1205, 4
      %v1207 = vadd.f32 %v1205, %v1206
      %v1208 = vrot.slane %v1207, 2
      %v1209 = vadd.f32 %v1207, %v1208
      %v1210 = vrot.slane %v1209, 1
      %v1211 = vadd.f32 %v1209, %v1210
      %v1212 = vsel %vm450, %v1189, 0.0
      %v1213 = vsel %vm450, %v1190, 0.0
      %v1214 = vadd.f32 %v1212, %v1213
      %v1215 = vrot.slane %v1214, 4
      %v1216 = vadd.f32 %v1214, %v1215
      %v1217 = vrot.slane %v1216, 2
      %v1218 = vadd.f32 %v1216, %v1217
      %v1219 = vrot.slane %v1218, 1
      %v1220 = vadd.f32 %v1218, %v1219
      %v1221 = vsel %vm450, %v1191, 0.0
      %v1222 = vsel %vm450, %v1192, 0.0
      %v1223 = vadd.f32 %v1221, %v1222
      %v1224 = vrot.slane %v1223, 4
      %v1225 = vadd.f32 %v1223, %v1224
      %v1226 = vrot.slane %v1225, 2
      %v1227 = vadd.f32 %v1225, %v1226
      %v1228 = vrot.slane %v1227, 1
      %v1229 = vadd.f32 %v1227, %v1228
      %v1230 = vsel %vm450, %v1193, 0.0
      %v1231 = vsel %vm450, %v1194, 0.0
      %v1232 = vadd.f32 %v1230, %v1231
      %v1233 = vrot.slane %v1232, 4
      %v1234 = vadd.f32 %v1232, %v1233
      %v1235 = vrot.slane %v1234, 2
      %v1236 = vadd.f32 %v1234, %v1235
      %v1237 = vrot.slane %v1236, 1
      %v1238 = vadd.f32 %v1236, %v1237
      %v1239 = vsel %vm450, %v1195, 0.0
      %v1240 = vsel %vm450, %v1196, 0.0
      %v1241 = vadd.f32 %v1239, %v1240
      %v1242 = vrot.slane %v1241, 4
      %v1243 = vadd.f32 %v1241, %v1242
      %v1244 = vrot.slane %v1243, 2
      %v1245 = vadd.f32 %v1243, %v1244
      %v1246 = vrot.slane %v1245, 1
      %v1247 = vadd.f32 %v1245, %v1246
      %v1248 = vsel %vm450, %v1197, 0.0
      %v1249 = vsel %vm450, %v1198, 0.0
      %v1250 = vadd.f32 %v1248, %v1249
      %v1251 = vrot.slane %v1250, 4
      %v1252 = vadd.f32 %v1250, %v1251
      %v1253 = vrot.slane %v1252, 2
      %v1254 = vadd.f32 %v1252, %v1253
      %v1255 = vrot.slane %v1254, 1
      %v1256 = vadd.f32 %v1254, %v1255
      %v1257 = vsel %vm450, %v1199, 0.0
      %v1258 = vsel %vm450, %v1200, 0.0
      %v1259 = vadd.f32 %v1257, %v1258
      %v1260 = vrot.slane %v1259, 4
      %v1261 = vadd.f32 %v1259, %v1260
      %v1262 = vrot.slane %v1261, 2
      %v1263 = vadd.f32 %v1261, %v1262
      %v1264 = vrot.slane %v1263, 1
      %v1265 = vadd.f32 %v1263, %v1264
      %v1266 = vsel %vm450, %v1201, 0.0
      %v1267 = vsel %vm450, %v1202, 0.0
      %v1268 = vadd.f32 %v1266, %v1267
      %v1269 = vrot.slane %v1268, 4
      %v1270 = vadd.f32 %v1268, %v1269
      %v1271 = vrot.slane %v1270, 2
      %v1272 = vadd.f32 %v1270, %v1271
      %v1273 = vrot.slane %v1272, 1
      %v1274 = vadd.f32 %v1272, %v1273
      %v1283 = vsel %vm1069, %v1220, %v1211
      %v1284 = vsel %vm1071, %v1229, %v1283
      %v1285 = vsel %vm1073, %v1238, %v1284
      %v1286 = vsel %vm1075, %v1247, %v1285
      %v1287 = vsel %vm1077, %v1256, %v1286
      %v1288 = vsel %vm1079, %v1265, %v1287
      %v1289 = vsel %vm1081, %v1274, %v1288
      %1291 = vst.msk [vmem:[%s412] sm:$0xff] %vm450, %v1289
      %s1292 = smul.u32 8, %s22
      %p1293 = scmp.lt.s32.totalorder %s1292, 15
      %s1294 = scalar_select %p1293, %s1292, 15
      %s1295 = smul.addr %s1294, 2
      %s1296 = smul.addr %s1295, 8
      %s1297 = scalar_lea.vmem %s9, %s1296
      %p1298 = scmp.lt.s32.totalorder %s22, 1
      %s1299 = scalar_select %p1298, %s22, 1
      %s1300 = smul.addr %s1299, 8
      %s1301 = scalar_lea.vmem %s10, %s1300
      // Predicated region
      $region57: #{porous_mignn_forward.14} parent=55 // pred_check
        %p1302 = pneg %p244
      $region58: #{porous_mignn_forward.14} parent=55 // pred_check_branch
        %1304 = sbr.rel (%p1302) target = $region60
      $region59: #{porous_mignn_forward.14} parent=55 // pred_region
        %s1305 = smul.u32 8, %s22
      $region60: #{porous_mignn_forward.14} parent=55 // pred_fallthru
        _
      // Predicated region
      $region61: #{porous_mignn_forward.14} parent=55 // pred_check
        %p1306 = pneg %p270
      $region62: #{porous_mignn_forward.14} parent=55 // pred_check_branch
        %1308 = sbr.rel (%p1306) target = $region64
      $region63: #{porous_mignn_forward.14} parent=55 // pred_region
        _
      $region64: #{porous_mignn_forward.14} parent=55 // pred_fallthru
        _
    $region56: #{porous_mignn_forward.14} parent=5 // pred_fallthru
      _
    %p1309 = scmp.le.s32.totalorder 2, %s17
    // Predicated region
    $region65: #{porous_mignn_forward.14} parent=5 // pred_check
      %p1310 = pneg %p1309
    $region66: #{porous_mignn_forward.14} parent=5 // pred_check_branch
      %1312 = sbr.rel (%p1310) target = $region68
    $region67: #{porous_mignn_forward.14} parent=5 // pred_region
      %s1313 = ssub.s32 %s17, 2
      // Predicated region
      $region69: #{porous_mignn_forward.14} parent=67 // pred_check
        %p1314 = pneg %p250
      $region70: #{porous_mignn_forward.14} parent=67 // pred_check_branch
        %1316 = sbr.rel (%p1314) target = $region72
      $region71: #{porous_mignn_forward.14} parent=67 // pred_region
        %s1317 = smul.u32 8, %s23
        %p1318 = scmp.lt.s32.totalorder %s1317, 15
        %s1319 = scalar_select %p1318, %s1317, 15
        %s1320 = smul.addr %s1319, 2
        %s1321 = smul.addr %s1320, 8
        %s1322 = scalar_lea.vmem %s9, %s1321
      $region72: #{porous_mignn_forward.14} parent=67 // pred_fallthru
        _
      // Predicated region
      $region73: #{porous_mignn_forward.14} parent=67 // pred_check
        %p1323 = pneg %p276
      $region74: #{porous_mignn_forward.14} parent=67 // pred_check_branch
        %1325 = sbr.rel (%p1323) target = $region76
      $region75: #{porous_mignn_forward.14} parent=67 // pred_region
        %p1326 = scmp.lt.s32.totalorder %s23, 1
        %s1327 = scalar_select %p1326, %s23, 1
        %s1328 = smul.addr %s1327, 8
        %s1329 = scalar_lea.vmem %s10, %s1328
      $region76: #{porous_mignn_forward.14} parent=67 // pred_fallthru
        _
    $region68: #{porous_mignn_forward.14} parent=5 // pred_fallthru
      _
  $region6: #{porous_mignn_forward.14} parent=0 // loop_footer
    %s21 = sadd.s32 1, %s17
  $region7: #{porous_mignn_forward.14} parent=0 // loop_footer_branch
    %16 = sbr.rel target = $region3
  $region8: #{porous_mignn_forward.14} parent=0 // loop_exit
    _

// kernel: porous_mignn_forward.15
$region0: #{porous_mignn_forward.15}
  #allocation0 [shape = 'u32[]', space=smem, size = 0x4, offset = 0x4, fixed_abs, tag = 'smem constant byte address 0x4 - core index']
  #allocation1 [shape = 'u32[144,128]{1,0:T(1,128)}', space=vmem, size = 0x12000, scoped, tag = 'internal scratch']
  %s0 = inlined_call_operand.vmem [shape: f32[16,64], index: 0, kind: input, shape index: {}]
  %s1 = inlined_call_operand.vmem [shape: f32[16,64], index: 1, kind: input, shape index: {}]
  %s2 = inlined_call_operand.vmem [shape: f32[128,128], index: 2, kind: input, shape index: {}]
  %s3 = inlined_call_operand.vmem [shape: f32[1,128], index: 3, kind: input, shape index: {}]
  %s4 = inlined_call_operand.vmem [shape: f32[128,64], index: 4, kind: input, shape index: {}]
  %s5 = inlined_call_operand.vmem [shape: f32[1,64], index: 5, kind: input, shape index: {}]
  %s6 = inlined_call_operand.vmem [shape: f32[16,64], index: 6, kind: output, shape index: {}]
  %s7 = sld [smem:[#allocation0]]
  $region34: #{porous_mignn_forward.15} parent=0
    _
  %s9 = ssub.s32 1, %s7
  %s10 = scalar_select 0, %s9, %s7
  // Predicated region
  $region2: #{porous_mignn_forward.15} parent=0 // pred_check
    _
  $region3: #{porous_mignn_forward.15} parent=0 // pred_check_branch
    %12 = sbr.rel (0) target = $region5
  $region4: #{porous_mignn_forward.15} parent=0 // pred_region
    _
  $region5: #{porous_mignn_forward.15} parent=0 // pred_fallthru
    _
  // Predicated region
  $region6: #{porous_mignn_forward.15} parent=0 // pred_check
    _
  $region7: #{porous_mignn_forward.15} parent=0 // pred_check_branch
    %14 = sbr.rel (0) target = $region9
  $region8: #{porous_mignn_forward.15} parent=0 // pred_region
    _
  $region9: #{porous_mignn_forward.15} parent=0 // pred_fallthru
    _
  // Predicated region
  $region10: #{porous_mignn_forward.15} parent=0 // pred_check
    _
  $region11: #{porous_mignn_forward.15} parent=0 // pred_check_branch
    %16 = sbr.rel (0) target = $region13
  $region12: #{porous_mignn_forward.15} parent=0 // pred_region
    _
  $region13: #{porous_mignn_forward.15} parent=0 // pred_fallthru
    _
  // Predicated region
  $region14: #{porous_mignn_forward.15} parent=0 // pred_check
    _
  $region15: #{porous_mignn_forward.15} parent=0 // pred_check_branch
    %18 = sbr.rel (0) target = $region17
  $region16: #{porous_mignn_forward.15} parent=0 // pred_region
    _
  $region17: #{porous_mignn_forward.15} parent=0 // pred_fallthru
    _
  // Predicated region
  $region18: #{porous_mignn_forward.15} parent=0 // pred_check
    _
  $region19: #{porous_mignn_forward.15} parent=0 // pred_check_branch
    %20 = sbr.rel (0) target = $region21
  $region20: #{porous_mignn_forward.15} parent=0 // pred_region
    _
  $region21: #{porous_mignn_forward.15} parent=0 // pred_fallthru
    _
  // Predicated region
  $region22: #{porous_mignn_forward.15} parent=0 // pred_check
    _
  $region23: #{porous_mignn_forward.15} parent=0 // pred_check_branch
    %22 = sbr.rel (0) target = $region25
  $region24: #{porous_mignn_forward.15} parent=0 // pred_region
    _
  $region25: #{porous_mignn_forward.15} parent=0 // pred_fallthru
    _
  %v24 = vld [vmem:[%s0] sm:$0xff]
  %v25 = vld [vmem:[%s0 + $0x8] sm:$0xff]
  %v26 = vld [vmem:[%s1] sm:$0xff]
  %v27 = vld [vmem:[%s1 + $0x8] sm:$0xff]
  %v28 = vld [vmem:[%s2] sm:$0xff]
  %v29 = vld [vmem:[%s2 + $0x8] sm:$0xff]
  %v30 = vld [vmem:[%s2 + $0x10] sm:$0xff]
  %v31 = vld [vmem:[%s2 + $0x18] sm:$0xff]
  %v32 = vld [vmem:[%s2 + $0x20] sm:$0xff]
  %v33 = vld [vmem:[%s2 + $0x28] sm:$0xff]
  %v34 = vld [vmem:[%s2 + $0x30] sm:$0xff]
  %v35 = vld [vmem:[%s2 + $0x38] sm:$0xff]
  %v36 = vld [vmem:[%s2 + $0x40] sm:$0xff]
  %v37 = vld [vmem:[%s2 + $0x48] sm:$0xff]
  %v38 = vld [vmem:[%s2 + $0x50] sm:$0xff]
  %v39 = vld [vmem:[%s2 + $0x58] sm:$0xff]
  %v40 = vld [vmem:[%s2 + $0x60] sm:$0xff]
  %v41 = vld [vmem:[%s2 + $0x68] sm:$0xff]
  %v42 = vld [vmem:[%s2 + $0x70] sm:$0xff]
  %v43 = vld [vmem:[%s2 + $0x78] sm:$0xff]
  %v44 = vld [vmem:[%s3] sm:$0x1]
  %v45 = vpack.c.bf16 %v25, %v24
  %v46 = vpack.c.bf16 %v29, %v28
  %v47 = vpack.c.bf16 %v31, %v30
  %v48 = vpack.c.bf16 %v33, %v32
  %v49 = vpack.c.bf16 %v35, %v34
  %v50 = vpack.c.bf16 %v27, %v26
  %v51 = vpack.c.bf16 %v37, %v36
  %v52 = vpack.c.bf16 %v39, %v38
  %v53 = vpack.c.bf16 %v41, %v40
  %v54 = vpack.c.bf16 %v43, %v42
  %vm55 = vcmask 523264
  %v57 = vsel %vm55, %v50, 0
  %59 = vmatprep.subr.bf16.mxu0 0
  %60 = vmatpush1.bf16.msra.mxu0 %v51
  %61 = vmatprep.subr.bf16.mxu0 0
  %62 = vmatpush1.bf16.msra.mxu0 %v52
  %63 = vmatprep.subr.bf16.mxu0 0
  %64 = vmatpush1.bf16.msra.mxu0 %v53
  %65 = vmatprep.subr.bf16.mxu0 0
  %66 = vmatpush1.bf16.msra.mxu0 %v54
  %67 = vmatprep.subr.bf16.mxu0 0
  %68 = vmatpush1.bf16.msra.mxu0 0
  %69 = vmatprep.subr.bf16.mxu0 0
  %70 = vmatpush1.bf16.msra.mxu0 0
  %71 = vmatprep.subr.bf16.mxu0 0
  %72 = vmatpush1.bf16.msra.mxu0 0
  %73 = vmatprep.subr.bf16.mxu0 0
  %74 = vmatpush1.bf16.msra.mxu0 0
  %75 = vmatprep.subr.bf16.mxu0 0
  %76 = vmatpush1.bf16.msra.mxu0 0
  %77 = vmatprep.subr.bf16.mxu0 0
  %78 = vmatpush1.bf16.msra.mxu0 0
  %79 = vmatprep.subr.bf16.mxu0 0
  %80 = vmatpush1.bf16.msra.mxu0 0
  %81 = vmatprep.subr.bf16.mxu0 0
  %82 = vmatpush1.bf16.msra.mxu0 0
  %83 = vmatprep.subr.bf16.mxu0 0
  %84 = vmatpush1.bf16.msra.mxu0 0
  %85 = vmatprep.subr.bf16.mxu0 0
  %86 = vmatpush1.bf16.msra.mxu0 0
  %87 = vmatprep.subr.bf16.mxu0 0
  %88 = vmatpush1.bf16.msra.mxu0 0
  %89 = vmatprep.subr.bf16.mxu0 0
  %90 = vmatpush1.bf16.msra.mxu0 0
  %91 = vmatprep.mubr.bf16.mxu0 0
  %92 = vmatmul.mubr.bf16.gmra.mrb[0].mxu0 %v57
  %v93 = vpop.f32.mrb[0].mxu0
  %v94 = vadd.f32 0.0, %v93
  %v95 = vpop.f32.mrb[0].mxu0
  %v96 = vpop.f32.mrb[0].mxu0
  %v97 = vadd.f32 0.0, %v96
  %v98 = vpop.f32.mrb[0].mxu0
  %99 = vdwg.mxu0
  %v101 = vsel %vm55, %v45, 0
  %103 = vmatprep.subr.bf16.mxu0 0
  %104 = vmatpush1.bf16.msra.mxu0 %v46
  %105 = vmatprep.subr.bf16.mxu0 0
  %106 = vmatpush1.bf16.msra.mxu0 %v47
  %107 = vmatprep.subr.bf16.mxu0 0
  %108 = vmatpush1.bf16.msra.mxu0 %v48
  %109 = vmatprep.subr.bf16.mxu0 0
  %110 = vmatpush1.bf16.msra.mxu0 %v49
  %111 = vmatprep.subr.bf16.mxu0 0
  %112 = vmatpush1.bf16.msra.mxu0 0
  %113 = vmatprep.subr.bf16.mxu0 0
  %114 = vmatpush1.bf16.msra.mxu0 0
  %115 = vmatprep.subr.bf16.mxu0 0
  %116 = vmatpush1.bf16.msra.mxu0 0
  %117 = vmatprep.subr.bf16.mxu0 0
  %118 = vmatpush1.bf16.msra.mxu0 0
  %119 = vmatprep.subr.bf16.mxu0 0
  %120 = vmatpush1.bf16.msra.mxu0 0
  %121 = vmatprep.subr.bf16.mxu0 0
  %122 = vmatpush1.bf16.msra.mxu0 0
  %123 = vmatprep.subr.bf16.mxu0 0
  %124 = vmatpush1.bf16.msra.mxu0 0
  %125 = vmatprep.subr.bf16.mxu0 0
  %126 = vmatpush1.bf16.msra.mxu0 0
  %127 = vmatprep.subr.bf16.mxu0 0
  %128 = vmatpush1.bf16.msra.mxu0 0
  %129 = vmatprep.subr.bf16.mxu0 0
  %130 = vmatpush1.bf16.msra.mxu0 0
  %131 = vmatprep.subr.bf16.mxu0 0
  %132 = vmatpush1.bf16.msra.mxu0 0
  %133 = vmatprep.subr.bf16.mxu0 0
  %134 = vmatpush1.bf16.msra.mxu0 0
  %135 = vmatprep.mubr.bf16.mxu0 0
  %136 = vmatmul.mubr.bf16.gmra.mrb[0].mxu0 %v101
  %v137 = vpop.f32.mrb[0].mxu0
  %v138 = vadd.f32 %v94, %v137
  %v139 = vpop.f32.mrb[0].mxu0
  %v140 = vpop.f32.mrb[0].mxu0
  %v141 = vadd.f32 %v97, %v140
  %v142 = vpop.f32.mrb[0].mxu0
  %143 = vdwg.mxu0
  %v145 = vlaneseq
  %v146 = vshrl.u32 %v145, 7
  %v147 = vsub.s32 0, %v146
  %v148 = vrot.slane %v44, %v147
  %v150 = vadd.f32 %v138, %v148
  %v151 = vadd.f32 %v141, %v148
  %v152 = vmax.f32 %v150, 0.0
  %v153 = vmax.f32 %v151, 0.0
  %v154 = vld [vmem:[%s4] sm:$0xff]
  %v155 = vld [vmem:[%s4 + $0x8] sm:$0xff]
  %v156 = vld [vmem:[%s4 + $0x10] sm:$0xff]
  %v157 = vld [vmem:[%s4 + $0x18] sm:$0xff]
  %v158 = vld [vmem:[%s4 + $0x20] sm:$0xff]
  %v159 = vld [vmem:[%s4 + $0x28] sm:$0xff]
  %v160 = vld [vmem:[%s4 + $0x30] sm:$0xff]
  %v161 = vld [vmem:[%s4 + $0x38] sm:$0xff]
  %v162 = vld [vmem:[%s4 + $0x40] sm:$0xff]
  %v163 = vld [vmem:[%s4 + $0x48] sm:$0xff]
  %v164 = vld [vmem:[%s4 + $0x50] sm:$0xff]
  %v165 = vld [vmem:[%s4 + $0x58] sm:$0xff]
  %v166 = vld [vmem:[%s4 + $0x60] sm:$0xff]
  %v167 = vld [vmem:[%s4 + $0x68] sm:$0xff]
  %v168 = vld [vmem:[%s4 + $0x70] sm:$0xff]
  %v169 = vld [vmem:[%s4 + $0x78] sm:$0xff]
  %v170 = vld [vmem:[%s5] sm:$0x1]
  %v171 = vpack.c.bf16 %v153, %v152
  %v172 = vpack.c.bf16 %v155, %v154
  %v173 = vpack.c.bf16 %v157, %v156
  %v174 = vpack.c.bf16 %v159, %v158
  %v175 = vpack.c.bf16 %v161, %v160
  %v176 = vpack.c.bf16 %v163, %v162
  %v177 = vpack.c.bf16 %v165, %v164
  %v178 = vpack.c.bf16 %v167, %v166
  %v179 = vpack.c.bf16 %v169, %v168
  %v181 = vlaneseq
  %v182 = vshrl.u32 %v181, 7
  %v183 = vsub.s32 0, %v182
  %v184 = vrot.slane %v170, %v183
  %186 = vmatprep.subr.bf16.mxu0 0
  %187 = vmatpush1.bf16.msra.mxu0 %v172
  %188 = vmatprep.subr.bf16.mxu0 0
  %189 = vmatpush1.bf16.msra.mxu0 %v173
  %190 = vmatprep.subr.bf16.mxu0 0
  %191 = vmatpush1.bf16.msra.mxu0 %v174
  %192 = vmatprep.subr.bf16.mxu0 0
  %193 = vmatpush1.bf16.msra.mxu0 %v175
  %194 = vmatprep.subr.bf16.mxu0 0
  %195 = vmatpush1.bf16.msra.mxu0 %v176
  %196 = vmatprep.subr.bf16.mxu0 0
  %197 = vmatpush1.bf16.msra.mxu0 %v177
  %198 = vmatprep.subr.bf16.mxu0 0
  %199 = vmatpush1.bf16.msra.mxu0 %v178
  %200 = vmatprep.subr.bf16.mxu0 0
  %201 = vmatpush1.bf16.msra.mxu0 %v179
  %202 = vmatprep.subr.bf16.mxu0 0
  %203 = vmatpush1.bf16.msra.mxu0 0
  %204 = vmatprep.subr.bf16.mxu0 0
  %205 = vmatpush1.bf16.msra.mxu0 0
  %206 = vmatprep.subr.bf16.mxu0 0
  %207 = vmatpush1.bf16.msra.mxu0 0
  %208 = vmatprep.subr.bf16.mxu0 0
  %209 = vmatpush1.bf16.msra.mxu0 0
  %210 = vmatprep.subr.bf16.mxu0 0
  %211 = vmatpush1.bf16.msra.mxu0 0
  %212 = vmatprep.subr.bf16.mxu0 0
  %213 = vmatpush1.bf16.msra.mxu0 0
  %214 = vmatprep.subr.bf16.mxu0 0
  %215 = vmatpush1.bf16.msra.mxu0 0
  %216 = vmatprep.subr.bf16.mxu0 0
  %217 = vmatpush1.bf16.msra.mxu0 0
  %218 = vmatprep.mubr.bf16.mxu0 0
  %219 = vmatmul.mubr.bf16.gmra.mrb[0].mxu0 %v171
  %v220 = vpop.f32.mrb[0].mxu0
  %v221 = vadd.f32 %v184, %v220
  %v222 = vpop.f32.mrb[0].mxu0
  %v223 = vpop.f32.mrb[0].mxu0
  %v224 = vadd.f32 %v184, %v223
  %v225 = vpop.f32.mrb[0].mxu0
  %226 = vdwg.mxu0
  %v227 = vmax.f32 %v221, 0.0
  %v228 = vmax.f32 %v224, 0.0
  %229 = vst.msk [vmem:[%s6] sm:$0xff] %vm55, %v227
  %230 = vst.msk [vmem:[%s6 + $0x8] sm:$0xff] %vm55, %v228
  // Predicated region
  $region26: #{porous_mignn_forward.15} parent=0 // pred_check
    _
  $region27: #{porous_mignn_forward.15} parent=0 // pred_check_branch
    %232 = sbr.rel (0) target = $region29
  $region28: #{porous_mignn_forward.15} parent=0 // pred_region
    _
  $region29: #{porous_mignn_forward.15} parent=0 // pred_fallthru
    _
  // Predicated region
  $region30: #{porous_mignn_forward.15} parent=0 // pred_check
    _
  $region31: #{porous_mignn_forward.15} parent=0 // pred_check_branch
    %234 = sbr.rel (0) target = $region33
  $region32: #{porous_mignn_forward.15} parent=0 // pred_region
    _
  $region33: #{porous_mignn_forward.15} parent=0 // pred_fallthru
    _

// kernel: porous_mignn_forward.19
$region0: #{porous_mignn_forward.19}
  #allocation0 [shape = 'u32[]', space=smem, size = 0x4, offset = 0x4, fixed_abs, tag = 'smem constant byte address 0x4 - core index']
  #allocation1 [shape = 'u32[144,128]{1,0:T(1,128)}', space=vmem, size = 0x12000, scoped, tag = 'internal scratch']
  %s0 = inlined_call_operand.vmem [shape: f32[16,64], index: 0, kind: input, shape index: {}]
  %s1 = inlined_call_operand.vmem [shape: f32[64,128], index: 1, kind: input, shape index: {}]
  %s2 = inlined_call_operand.vmem [shape: f32[1,128], index: 2, kind: input, shape index: {}]
  %s3 = inlined_call_operand.vmem [shape: f32[128,32], index: 3, kind: input, shape index: {}]
  %s4 = inlined_call_operand.vmem [shape: f32[1,32], index: 4, kind: input, shape index: {}]
  %s5 = inlined_call_operand.vmem [shape: f32[16,32], index: 5, kind: output, shape index: {}]
  %s6 = sld [smem:[#allocation0]]
  $region30: #{porous_mignn_forward.19} parent=0
    _
  %s8 = ssub.s32 1, %s6
  %s9 = scalar_select 0, %s8, %s6
  // Predicated region
  $region2: #{porous_mignn_forward.19} parent=0 // pred_check
    _
  $region3: #{porous_mignn_forward.19} parent=0 // pred_check_branch
    %11 = sbr.rel (0) target = $region5
  $region4: #{porous_mignn_forward.19} parent=0 // pred_region
    _
  $region5: #{porous_mignn_forward.19} parent=0 // pred_fallthru
    _
  // Predicated region
  $region6: #{porous_mignn_forward.19} parent=0 // pred_check
    _
  $region7: #{porous_mignn_forward.19} parent=0 // pred_check_branch
    %13 = sbr.rel (0) target = $region9
  $region8: #{porous_mignn_forward.19} parent=0 // pred_region
    _
  $region9: #{porous_mignn_forward.19} parent=0 // pred_fallthru
    _
  // Predicated region
  $region10: #{porous_mignn_forward.19} parent=0 // pred_check
    _
  $region11: #{porous_mignn_forward.19} parent=0 // pred_check_branch
    %15 = sbr.rel (0) target = $region13
  $region12: #{porous_mignn_forward.19} parent=0 // pred_region
    _
  $region13: #{porous_mignn_forward.19} parent=0 // pred_fallthru
    _
  // Predicated region
  $region14: #{porous_mignn_forward.19} parent=0 // pred_check
    _
  $region15: #{porous_mignn_forward.19} parent=0 // pred_check_branch
    %17 = sbr.rel (0) target = $region17
  $region16: #{porous_mignn_forward.19} parent=0 // pred_region
    _
  $region17: #{porous_mignn_forward.19} parent=0 // pred_fallthru
    _
  // Predicated region
  $region18: #{porous_mignn_forward.19} parent=0 // pred_check
    _
  $region19: #{porous_mignn_forward.19} parent=0 // pred_check_branch
    %19 = sbr.rel (0) target = $region21
  $region20: #{porous_mignn_forward.19} parent=0 // pred_region
    _
  $region21: #{porous_mignn_forward.19} parent=0 // pred_fallthru
    _
  %v21 = vld [vmem:[%s0] sm:$0xff]
  %v22 = vld [vmem:[%s0 + $0x8] sm:$0xff]
  %v23 = vld [vmem:[%s1] sm:$0xff]
  %v24 = vld [vmem:[%s1 + $0x8] sm:$0xff]
  %v25 = vld [vmem:[%s1 + $0x10] sm:$0xff]
  %v26 = vld [vmem:[%s1 + $0x18] sm:$0xff]
  %v27 = vld [vmem:[%s1 + $0x20] sm:$0xff]
  %v28 = vld [vmem:[%s1 + $0x28] sm:$0xff]
  %v29 = vld [vmem:[%s1 + $0x30] sm:$0xff]
  %v30 = vld [vmem:[%s1 + $0x38] sm:$0xff]
  %v31 = vld [vmem:[%s2] sm:$0x1]
  %v32 = vpack.c.bf16 %v22, %v21
  %v33 = vpack.c.bf16 %v24, %v23
  %v34 = vpack.c.bf16 %v26, %v25
  %v35 = vpack.c.bf16 %v28, %v27
  %v36 = vpack.c.bf16 %v30, %v29
  %v38 = vlaneseq
  %v39 = vshrl.u32 %v38, 7
  %v40 = vsub.s32 0, %v39
  %v41 = vrot.slane %v31, %v40
  %vm43 = vcmask 523264
  %v45 = vsel %vm43, %v32, 0
  %47 = vmatprep.subr.bf16.mxu0 0
  %48 = vmatpush1.bf16.msra.mxu0 %v33
  %49 = vmatprep.subr.bf16.mxu0 0
  %50 = vmatpush1.bf16.msra.mxu0 %v34
  %51 = vmatprep.subr.bf16.mxu0 0
  %52 = vmatpush1.bf16.msra.mxu0 %v35
  %53 = vmatprep.subr.bf16.mxu0 0
  %54 = vmatpush1.bf16.msra.mxu0 %v36
  %55 = vmatprep.subr.bf16.mxu0 0
  %56 = vmatpush1.bf16.msra.mxu0 0
  %57 = vmatprep.subr.bf16.mxu0 0
  %58 = vmatpush1.bf16.msra.mxu0 0
  %59 = vmatprep.subr.bf16.mxu0 0
  %60 = vmatpush1.bf16.msra.mxu0 0
  %61 = vmatprep.subr.bf16.mxu0 0
  %62 = vmatpush1.bf16.msra.mxu0 0
  %63 = vmatprep.subr.bf16.mxu0 0
  %64 = vmatpush1.bf16.msra.mxu0 0
  %65 = vmatprep.subr.bf16.mxu0 0
  %66 = vmatpush1.bf16.msra.mxu0 0
  %67 = vmatprep.subr.bf16.mxu0 0
  %68 = vmatpush1.bf16.msra.mxu0 0
  %69 = vmatprep.subr.bf16.mxu0 0
  %70 = vmatpush1.bf16.msra.mxu0 0
  %71 = vmatprep.subr.bf16.mxu0 0
  %72 = vmatpush1.bf16.msra.mxu0 0
  %73 = vmatprep.subr.bf16.mxu0 0
  %74 = vmatpush1.bf16.msra.mxu0 0
  %75 = vmatprep.subr.bf16.mxu0 0
  %76 = vmatpush1.bf16.msra.mxu0 0
  %77 = vmatprep.subr.bf16.mxu0 0
  %78 = vmatpush1.bf16.msra.mxu0 0
  %79 = vmatprep.mubr.bf16.mxu0 0
  %80 = vmatmul.mubr.bf16.gmra.mrb[0].mxu0 %v45
  %v81 = vpop.f32.mrb[0].mxu0
  %v82 = vadd.f32 %v41, %v81
  %v83 = vpop.f32.mrb[0].mxu0
  %v84 = vpop.f32.mrb[0].mxu0
  %v85 = vadd.f32 %v41, %v84
  %v86 = vpop.f32.mrb[0].mxu0
  %87 = vdwg.mxu0
  %v88 = vmax.f32 %v82, 0.0
  %v89 = vmax.f32 %v85, 0.0
  %v90 = vld [vmem:[%s3] sm:$0xff]
  %v91 = vld [vmem:[%s3 + $0x8] sm:$0xff]
  %v92 = vld [vmem:[%s3 + $0x10] sm:$0xff]
  %v93 = vld [vmem:[%s3 + $0x18] sm:$0xff]
  %v94 = vld [vmem:[%s3 + $0x20] sm:$0xff]
  %v95 = vld [vmem:[%s3 + $0x28] sm:$0xff]
  %v96 = vld [vmem:[%s3 + $0x30] sm:$0xff]
  %v97 = vld [vmem:[%s3 + $0x38] sm:$0xff]
  %v98 = vld [vmem:[%s3 + $0x40] sm:$0xff]
  %v99 = vld [vmem:[%s3 + $0x48] sm:$0xff]
  %v100 = vld [vmem:[%s3 + $0x50] sm:$0xff]
  %v101 = vld [vmem:[%s3 + $0x58] sm:$0xff]
  %v102 = vld [vmem:[%s3 + $0x60] sm:$0xff]
  %v103 = vld [vmem:[%s3 + $0x68] sm:$0xff]
  %v104 = vld [vmem:[%s3 + $0x70] sm:$0xff]
  %v105 = vld [vmem:[%s3 + $0x78] sm:$0xff]
  %v106 = vld [vmem:[%s4] sm:$0x1]
  %v107 = vpack.c.bf16 %v89, %v88
  %v108 = vpack.c.bf16 %v91, %v90
  %v109 = vpack.c.bf16 %v93, %v92
  %v110 = vpack.c.bf16 %v95, %v94
  %v111 = vpack.c.bf16 %v97, %v96
  %v112 = vpack.c.bf16 %v99, %v98
  %v113 = vpack.c.bf16 %v101, %v100
  %v114 = vpack.c.bf16 %v103, %v102
  %v115 = vpack.c.bf16 %v105, %v104
  %v117 = vlaneseq
  %v118 = vshrl.u32 %v117, 7
  %v119 = vsub.s32 0, %v118
  %v120 = vrot.slane %v106, %v119
  %122 = vmatprep.subr.bf16.mxu0 0
  %123 = vmatpush1.bf16.msra.mxu0 %v108
  %124 = vmatprep.subr.bf16.mxu0 0
  %125 = vmatpush1.bf16.msra.mxu0 %v109
  %126 = vmatprep.subr.bf16.mxu0 0
  %127 = vmatpush1.bf16.msra.mxu0 %v110
  %128 = vmatprep.subr.bf16.mxu0 0
  %129 = vmatpush1.bf16.msra.mxu0 %v111
  %130 = vmatprep.subr.bf16.mxu0 0
  %131 = vmatpush1.bf16.msra.mxu0 %v112
  %132 = vmatprep.subr.bf16.mxu0 0
  %133 = vmatpush1.bf16.msra.mxu0 %v113
  %134 = vmatprep.subr.bf16.mxu0 0
  %135 = vmatpush1.bf16.msra.mxu0 %v114
  %136 = vmatprep.subr.bf16.mxu0 0
  %137 = vmatpush1.bf16.msra.mxu0 %v115
  %138 = vmatprep.subr.bf16.mxu0 0
  %139 = vmatpush1.bf16.msra.mxu0 0
  %140 = vmatprep.subr.bf16.mxu0 0
  %141 = vmatpush1.bf16.msra.mxu0 0
  %142 = vmatprep.subr.bf16.mxu0 0
  %143 = vmatpush1.bf16.msra.mxu0 0
  %144 = vmatprep.subr.bf16.mxu0 0
  %145 = vmatpush1.bf16.msra.mxu0 0
  %146 = vmatprep.subr.bf16.mxu0 0
  %147 = vmatpush1.bf16.msra.mxu0 0
  %148 = vmatprep.subr.bf16.mxu0 0
  %149 = vmatpush1.bf16.msra.mxu0 0
  %150 = vmatprep.subr.bf16.mxu0 0
  %151 = vmatpush1.bf16.msra.mxu0 0
  %152 = vmatprep.subr.bf16.mxu0 0
  %153 = vmatpush1.bf16.msra.mxu0 0
  %154 = vmatprep.mubr.bf16.mxu0 0
  %155 = vmatmul.mubr.bf16.gmra.mrb[0].mxu0 %v107
  %v156 = vpop.f32.mrb[0].mxu0
  %v157 = vadd.f32 %v120, %v156
  %v158 = vpop.f32.mrb[0].mxu0
  %v159 = vpop.f32.mrb[0].mxu0
  %v160 = vadd.f32 %v120, %v159
  %v161 = vpop.f32.mrb[0].mxu0
  %162 = vdwg.mxu0
  %v163 = vmax.f32 %v157, 0.0
  %v164 = vmax.f32 %v160, 0.0
  %vm165 = vcmask 261120
  %166 = vst.msk [vmem:[%s5] sm:$0xff] %vm165, %v163
  %167 = vst.msk [vmem:[%s5 + $0x8] sm:$0xff] %vm165, %v164
  // Predicated region
  $region22: #{porous_mignn_forward.19} parent=0 // pred_check
    _
  $region23: #{porous_mignn_forward.19} parent=0 // pred_check_branch
    %169 = sbr.rel (0) target = $region25
  $region24: #{porous_mignn_forward.19} parent=0 // pred_region
    _
  $region25: #{porous_mignn_forward.19} parent=0 // pred_fallthru
    _
  // Predicated region
  $region26: #{porous_mignn_forward.19} parent=0 // pred_check
    _
  $region27: #{porous_mignn_forward.19} parent=0 // pred_check_branch
    %171 = sbr.rel (0) target = $region29
  $region28: #{porous_mignn_forward.19} parent=0 // pred_region
    _
  $region29: #{porous_mignn_forward.19} parent=0 // pred_fallthru
    _

// kernel: porous_mignn_forward.17
$region0: #{porous_mignn_forward.17}
  #allocation0 [shape = 'u32[]', space=smem, size = 0x4, offset = 0x4, fixed_abs, tag = 'smem constant byte address 0x4 - core index']
  #allocation1 [shape = 'u32[144,128]{1,0:T(1,128)}', space=vmem, size = 0x12000, scoped, tag = 'internal scratch']
  %s0 = inlined_call_operand.vmem [shape: f32[16,128], index: 0, kind: input, shape index: {}]
  %s1 = inlined_call_operand.vmem [shape: f32[16,128], index: 1, kind: input, shape index: {}]
  %s2 = inlined_call_operand.vmem [shape: f32[16,16,64], index: 2, kind: input, shape index: {}]
  %s3 = inlined_call_operand.vmem [shape: f32[16,16], index: 3, kind: input, shape index: {}]
  %s4 = inlined_call_operand.vmem [shape: f32[64,128], index: 4, kind: input, shape index: {}]
  %s5 = inlined_call_operand.vmem [shape: f32[1,128], index: 5, kind: input, shape index: {}]
  %s6 = inlined_call_operand.vmem [shape: f32[128,64], index: 6, kind: input, shape index: {}]
  %s7 = inlined_call_operand.vmem [shape: f32[1,64], index: 7, kind: input, shape index: {}]
  %s8 = inlined_call_operand.vmem [shape: f32[1,64], index: 8, kind: input, shape index: {}]
  %s9 = inlined_call_operand.vmem [shape: f32[16,64], index: 9, kind: output, shape index: {}]
  %s10 = sld [smem:[#allocation0]]
  $region69: #{porous_mignn_forward.17} parent=0
    _
  %s12 = ssub.s32 1, %s10
  %s13 = scalar_select 0, %s12, %s10
  loop: start=0, step=1, limit=4
  $region2: #{porous_mignn_forward.17} parent=0 // loop_pre_header
    _
  $region3: #{porous_mignn_forward.17} parent=0 // loop_header
    %s15 = sphi 0, %s19
    %p16 = scmp.ge.s32.totalorder %s15, 4
    %s25 = sphi 0, %s27
    %s28 = sphi 0, %s25
    %s29 = sphi 0, %s28
    %s45 = sphi 0, %s29
    %s49 = sphi 0, %s49
    %s51 = sphi 0, %s49
    %s52 = sphi 0, %s51
    %s66 = sphi 0, %s52
    %s72 = sphi 0, %s74
    %s75 = sphi 0, %s72
    %s76 = sphi 0, %s75
    %s92 = sphi 0, %s76
    %s98 = sphi 0, %s100
    %s101 = sphi 0, %s98
    %s102 = sphi 0, %s101
    %s118 = sphi 0, %s102
    %s122 = sphi 0, %s122
    %s124 = sphi 0, %s122
    %s125 = sphi 0, %s124
    %s139 = sphi 0, %s125
    %s143 = sphi 0, %s143
    %s145 = sphi 0, %s143
    %s146 = sphi 0, %s145
    %s160 = sphi 0, %s146
    %s164 = sphi 0, %s164
    %s166 = sphi 0, %s164
    %s167 = sphi 0, %s166
    %s181 = sphi 0, %s167
    %s185 = sphi 0, %s185
    %s187 = sphi 0, %s185
    %s188 = sphi 0, %s187
    %s202 = sphi 0, %s188
    %s206 = sphi 0, %s206
    %s208 = sphi 0, %s206
    %s209 = sphi 0, %s208
    %s223 = sphi 0, %s209
    %s229 = sphi 0, %s231
    %s232 = sphi 0, %s229
    %s233 = sphi 0, %s232
    %s249 = sphi 0, %s233
  $region4: #{porous_mignn_forward.17} parent=0 // loop_header_branch
    %18 = sbr.rel (%p16) target = $region8
  $region5: #{porous_mignn_forward.17} parent=0 // loop_body
    %s20 = ssub.s32 %s15, 1
    %s21 = ssub.s32 %s15, 2
    %s22 = sadd.s32 %s15, 1
    %s23 = ssub.s32 %s15, %s22
    %p24 = scmp.eq.s32.totalorder %s23, 0
    %s26 = sadd.s32 %s25, 1
    %s27 = scalar_select %p24, %s25, %s26
    %p30 = pneg %p24
    %p31 = scmp.eq.s32.totalorder %s15, 1
    %p32 = por %p30, %p31
    %p33 = scmp.ne.s32.totalorder %s25, %s28
    %p34 = scmp.eq.s32.totalorder %s15, 0
    %p35 = por %p33, %p34
    %p36 = scmp.ne.s32.totalorder %s25, %s28
    %p37 = scmp.eq.s32.totalorder %s20, 1
    %p38 = por %p36, %p37
    %p39 = scmp.ne.s32.totalorder %s28, %s29
    %p40 = scmp.eq.s32.totalorder %s20, 0
    %p41 = por %p39, %p40
    %p42 = scmp.ne.s32.totalorder %s28, %s29
    %p43 = scmp.eq.s32.totalorder %s21, 1
    %p44 = por %p42, %p43
    %p46 = scmp.ne.s32.totalorder %s29, %s45
    %p47 = scmp.eq.s32.totalorder %s21, 0
    %p48 = por %p46, %p47
    %s50 = sadd.s32 %s49, 1
    %p53 = scmp.eq.s32.totalorder %s15, 1
    %p54 = scmp.ne.s32.totalorder %s49, %s51
    %p55 = scmp.eq.s32.totalorder %s15, 0
    %p56 = por %p54, %p55
    %p57 = scmp.ne.s32.totalorder %s49, %s51
    %p58 = scmp.eq.s32.totalorder %s20, 1
    %p59 = por %p57, %p58
    %p60 = scmp.ne.s32.totalorder %s51, %s52
    %p61 = scmp.eq.s32.totalorder %s20, 0
    %p62 = por %p60, %p61
    %p63 = scmp.ne.s32.totalorder %s51, %s52
    %p64 = scmp.eq.s32.totalorder %s21, 1
    %p65 = por %p63, %p64
    %p67 = scmp.ne.s32.totalorder %s52, %s66
    %p68 = scmp.eq.s32.totalorder %s21, 0
    %p69 = por %p67, %p68
    %s70 = ssub.s32 %s15, %s22
    %p71 = scmp.eq.s32.totalorder %s70, 0
    %s73 = sadd.s32 %s72, 1
    %s74 = scalar_select %p71, %s72, %s73
    %p77 = pneg %p71
    %p78 = scmp.eq.s32.totalorder %s15, 1
    %p79 = por %p77, %p78
    %p80 = scmp.ne.s32.totalorder %s72, %s75
    %p81 = scmp.eq.s32.totalorder %s15, 0
    %p82 = por %p80, %p81
    %p83 = scmp.ne.s32.totalorder %s72, %s75
    %p84 = scmp.eq.s32.totalorder %s20, 1
    %p85 = por %p83, %p84
    %p86 = scmp.ne.s32.totalorder %s75, %s76
    %p87 = scmp.eq.s32.totalorder %s20, 0
    %p88 = por %p86, %p87
    %p89 = scmp.ne.s32.totalorder %s75, %s76
    %p90 = scmp.eq.s32.totalorder %s21, 1
    %p91 = por %p89, %p90
    %p93 = scmp.ne.s32.totalorder %s76, %s92
    %p94 = scmp.eq.s32.totalorder %s21, 0
    %p95 = por %p93, %p94
    %s96 = ssub.s32 %s15, %s22
    %p97 = scmp.eq.s32.totalorder %s96, 0
    %s99 = sadd.s32 %s98, 1
    %s100 = scalar_select %p97, %s98, %s99
    %p103 = pneg %p97
    %p104 = scmp.eq.s32.totalorder %s15, 1
    %p105 = por %p103, %p104
    %p106 = scmp.ne.s32.totalorder %s98, %s101
    %p107 = scmp.eq.s32.totalorder %s15, 0
    %p108 = por %p106, %p107
    %p109 = scmp.ne.s32.totalorder %s98, %s101
    %p110 = scmp.eq.s32.totalorder %s20, 1
    %p111 = por %p109, %p110
    %p112 = scmp.ne.s32.totalorder %s101, %s102
    %p113 = scmp.eq.s32.totalorder %s20, 0
    %p114 = por %p112, %p113
    %p115 = scmp.ne.s32.totalorder %s101, %s102
    %p116 = scmp.eq.s32.totalorder %s21, 1
    %p117 = por %p115, %p116
    %p119 = scmp.ne.s32.totalorder %s102, %s118
    %p120 = scmp.eq.s32.totalorder %s21, 0
    %p121 = por %p119, %p120
    %s123 = sadd.s32 %s122, 1
    %p126 = scmp.eq.s32.totalorder %s15, 1
    %p127 = scmp.ne.s32.totalorder %s122, %s124
    %p128 = scmp.eq.s32.totalorder %s15, 0
    %p129 = por %p127, %p128
    %p130 = scmp.ne.s32.totalorder %s122, %s124
    %p131 = scmp.eq.s32.totalorder %s20, 1
    %p132 = por %p130, %p131
    %p133 = scmp.ne.s32.totalorder %s124, %s125
    %p134 = scmp.eq.s32.totalorder %s20, 0
    %p135 = por %p133, %p134
    %p136 = scmp.ne.s32.totalorder %s124, %s125
    %p137 = scmp.eq.s32.totalorder %s21, 1
    %p138 = por %p136, %p137
    %p140 = scmp.ne.s32.totalorder %s125, %s139
    %p141 = scmp.eq.s32.totalorder %s21, 0
    %p142 = por %p140, %p141
    %s144 = sadd.s32 %s143, 1
    %p147 = scmp.eq.s32.totalorder %s15, 1
    %p148 = scmp.ne.s32.totalorder %s143, %s145
    %p149 = scmp.eq.s32.totalorder %s15, 0
    %p150 = por %p148, %p149
    %p151 = scmp.ne.s32.totalorder %s143, %s145
    %p152 = scmp.eq.s32.totalorder %s20, 1
    %p153 = por %p151, %p152
    %p154 = scmp.ne.s32.totalorder %s145, %s146
    %p155 = scmp.eq.s32.totalorder %s20, 0
    %p156 = por %p154, %p155
    %p157 = scmp.ne.s32.totalorder %s145, %s146
    %p158 = scmp.eq.s32.totalorder %s21, 1
    %p159 = por %p157, %p158
    %p161 = scmp.ne.s32.totalorder %s146, %s160
    %p162 = scmp.eq.s32.totalorder %s21, 0
    %p163 = por %p161, %p162
    %s165 = sadd.s32 %s164, 1
    %p168 = scmp.eq.s32.totalorder %s15, 1
    %p169 = scmp.ne.s32.totalorder %s164, %s166
    %p170 = scmp.eq.s32.totalorder %s15, 0
    %p171 = por %p169, %p170
    %p172 = scmp.ne.s32.totalorder %s164, %s166
    %p173 = scmp.eq.s32.totalorder %s20, 1
    %p174 = por %p172, %p173
    %p175 = scmp.ne.s32.totalorder %s166, %s167
    %p176 = scmp.eq.s32.totalorder %s20, 0
    %p177 = por %p175, %p176
    %p178 = scmp.ne.s32.totalorder %s166, %s167
    %p179 = scmp.eq.s32.totalorder %s21, 1
    %p180 = por %p178, %p179
    %p182 = scmp.ne.s32.totalorder %s167, %s181
    %p183 = scmp.eq.s32.totalorder %s21, 0
    %p184 = por %p182, %p183
    %s186 = sadd.s32 %s185, 1
    %p189 = scmp.eq.s32.totalorder %s15, 1
    %p190 = scmp.ne.s32.totalorder %s185, %s187
    %p191 = scmp.eq.s32.totalorder %s15, 0
    %p192 = por %p190, %p191
    %p193 = scmp.ne.s32.totalorder %s185, %s187
    %p194 = scmp.eq.s32.totalorder %s20, 1
    %p195 = por %p193, %p194
    %p196 = scmp.ne.s32.totalorder %s187, %s188
    %p197 = scmp.eq.s32.totalorder %s20, 0
    %p198 = por %p196, %p197
    %p199 = scmp.ne.s32.totalorder %s187, %s188
    %p200 = scmp.eq.s32.totalorder %s21, 1
    %p201 = por %p199, %p200
    %p203 = scmp.ne.s32.totalorder %s188, %s202
    %p204 = scmp.eq.s32.totalorder %s21, 0
    %p205 = por %p203, %p204
    %s207 = sadd.s32 %s206, 1
    %p210 = scmp.eq.s32.totalorder %s15, 1
    %p211 = scmp.ne.s32.totalorder %s206, %s208
    %p212 = scmp.eq.s32.totalorder %s15, 0
    %p213 = por %p211, %p212
    %p214 = scmp.ne.s32.totalorder %s206, %s208
    %p215 = scmp.eq.s32.totalorder %s20, 1
    %p216 = por %p214, %p215
    %p217 = scmp.ne.s32.totalorder %s208, %s209
    %p218 = scmp.eq.s32.totalorder %s20, 0
    %p219 = por %p217, %p218
    %p220 = scmp.ne.s32.totalorder %s208, %s209
    %p221 = scmp.eq.s32.totalorder %s21, 1
    %p222 = por %p220, %p221
    %p224 = scmp.ne.s32.totalorder %s209, %s223
    %p225 = scmp.eq.s32.totalorder %s21, 0
    %p226 = por %p224, %p225
    %s227 = ssub.s32 %s15, %s22
    %p228 = scmp.eq.s32.totalorder %s227, 0
    %s230 = sadd.s32 %s229, 1
    %s231 = scalar_select %p228, %s229, %s230
    %p234 = pneg %p228
    %p235 = scmp.eq.s32.totalorder %s15, 1
    %p236 = por %p234, %p235
    %p237 = scmp.ne.s32.totalorder %s229, %s232
    %p238 = scmp.eq.s32.totalorder %s15, 0
    %p239 = por %p237, %p238
    %p240 = scmp.ne.s32.totalorder %s229, %s232
    %p241 = scmp.eq.s32.totalorder %s20, 1
    %p242 = por %p240, %p241
    %p243 = scmp.ne.s32.totalorder %s232, %s233
    %p244 = scmp.eq.s32.totalorder %s20, 0
    %p245 = por %p243, %p244
    %p246 = scmp.ne.s32.totalorder %s232, %s233
    %p247 = scmp.eq.s32.totalorder %s21, 1
    %p248 = por %p246, %p247
    %p250 = scmp.ne.s32.totalorder %s233, %s249
    %p251 = scmp.eq.s32.totalorder %s21, 0
    %p252 = por %p250, %p251
    %p253 = scmp.le.s32.totalorder 1, %s15
    %p254 = scmp.lt.s32.totalorder %s15, 3
    %p255 = pnand %p253, %p254
    %p256 = pneg %p255
    // Predicated region
    $region9: #{porous_mignn_forward.17} parent=5 // pred_check
      _
    $region10: #{porous_mignn_forward.17} parent=5 // pred_check_branch
      %258 = sbr.rel (%p255) target = $region12
    $region11: #{porous_mignn_forward.17} parent=5 // pred_region
      %s259 = ssub.s32 %s15, 1
      // Predicated region
      $region13: #{porous_mignn_forward.17} parent=11 // pred_check
        %p260 = pneg %p62
      $region14: #{porous_mignn_forward.17} parent=11 // pred_check_branch
        %262 = sbr.rel (%p260) target = $region16
      $region15: #{porous_mignn_forward.17} parent=11 // pred_region
        _
      $region16: #{porous_mignn_forward.17} parent=11 // pred_fallthru
        _
      // Predicated region
      $region17: #{porous_mignn_forward.17} parent=11 // pred_check
        %p263 = pneg %p135
      $region18: #{porous_mignn_forward.17} parent=11 // pred_check_branch
        %265 = sbr.rel (%p263) target = $region20
      $region19: #{porous_mignn_forward.17} parent=11 // pred_region
        _
      $region20: #{porous_mignn_forward.17} parent=11 // pred_fallthru
        _
      // Predicated region
      $region21: #{porous_mignn_forward.17} parent=11 // pred_check
        %p266 = pneg %p156
      $region22: #{porous_mignn_forward.17} parent=11 // pred_check_branch
        %268 = sbr.rel (%p266) target = $region24
      $region23: #{porous_mignn_forward.17} parent=11 // pred_region
        _
      $region24: #{porous_mignn_forward.17} parent=11 // pred_fallthru
        _
      // Predicated region
      $region25: #{porous_mignn_forward.17} parent=11 // pred_check
        %p269 = pneg %p177
      $region26: #{porous_mignn_forward.17} parent=11 // pred_check_branch
        %271 = sbr.rel (%p269) target = $region28
      $region27: #{porous_mignn_forward.17} parent=11 // pred_region
        _
      $region28: #{porous_mignn_forward.17} parent=11 // pred_fallthru
        _
      // Predicated region
      $region29: #{porous_mignn_forward.17} parent=11 // pred_check
        %p272 = pneg %p198
      $region30: #{porous_mignn_forward.17} parent=11 // pred_check_branch
        %274 = sbr.rel (%p272) target = $region32
      $region31: #{porous_mignn_forward.17} parent=11 // pred_region
        _
      $region32: #{porous_mignn_forward.17} parent=11 // pred_fallthru
        _
      // Predicated region
      $region33: #{porous_mignn_forward.17} parent=11 // pred_check
        %p275 = pneg %p219
      $region34: #{porous_mignn_forward.17} parent=11 // pred_check_branch
        %277 = sbr.rel (%p275) target = $region36
      $region35: #{porous_mignn_forward.17} parent=11 // pred_region
        _
      $region36: #{porous_mignn_forward.17} parent=11 // pred_fallthru
        _
    $region12: #{porous_mignn_forward.17} parent=5 // pred_fallthru
      _
    %p278 = scmp.lt.s32.totalorder %s15, 2
    // Predicated region
    $region37: #{porous_mignn_forward.17} parent=5 // pred_check
      %p279 = pneg %p278
    $region38: #{porous_mignn_forward.17} parent=5 // pred_check_branch
      %281 = sbr.rel (%p279) target = $region40
    $region39: #{porous_mignn_forward.17} parent=5 // pred_region
      // Predicated region
      $region41: #{porous_mignn_forward.17} parent=39 // pred_check
        %p282 = pneg %p35
      $region42: #{porous_mignn_forward.17} parent=39 // pred_check_branch
        %284 = sbr.rel (%p282) target = $region44
      $region43: #{porous_mignn_forward.17} parent=39 // pred_region
        %p285 = scmp.lt.s32.totalorder %s15, 1
        %s286 = scalar_select %p285, %s15, 1
        %s287 = smul.addr %s286, 8
        %s288 = scalar_lea.vmem %s0, %s287
      $region44: #{porous_mignn_forward.17} parent=39 // pred_fallthru
        _
      // Predicated region
      $region45: #{porous_mignn_forward.17} parent=39 // pred_check
        %p289 = pneg %p82
      $region46: #{porous_mignn_forward.17} parent=39 // pred_check_branch
        %291 = sbr.rel (%p289) target = $region48
      $region47: #{porous_mignn_forward.17} parent=39 // pred_region
        %s292 = smul.u32 8, %s15
        %p293 = scmp.lt.s32.totalorder %s292, 15
        %s294 = scalar_select %p293, %s292, 15
        %s295 = smul.addr %s294, 2
        %s296 = smul.addr %s295, 8
        %s297 = scalar_lea.vmem %s2, %s296
        %s298 = smul.u32 8, %s15
      $region48: #{porous_mignn_forward.17} parent=39 // pred_fallthru
        _
      // Predicated region
      $region49: #{porous_mignn_forward.17} parent=39 // pred_check
        %p299 = pneg %p108
      $region50: #{porous_mignn_forward.17} parent=39 // pred_check_branch
        %301 = sbr.rel (%p299) target = $region52
      $region51: #{porous_mignn_forward.17} parent=39 // pred_region
        %p302 = scmp.lt.s32.totalorder %s15, 1
        %s303 = scalar_select %p302, %s15, 1
        %s304 = smul.addr %s303, 8
        %s305 = scalar_lea.vmem %s3, %s304
      $region52: #{porous_mignn_forward.17} parent=39 // pred_fallthru
        _
    $region40: #{porous_mignn_forward.17} parent=5 // pred_fallthru
      _
    %p306 = scmp.le.s32.totalorder 1, %s15
    %p307 = scmp.lt.s32.totalorder %s15, 3
    %p308 = pnand %p306, %p307
    %p309 = pneg %p308
    // Predicated region
    $region53: #{porous_mignn_forward.17} parent=5 // pred_check
      _
    $region54: #{porous_mignn_forward.17} parent=5 // pred_check_branch
      %311 = sbr.rel (%p308) target = $region56
    $region55: #{porous_mignn_forward.17} parent=5 // pred_region
      %s312 = ssub.s32 %s15, 1
      %p313 = scmp.lt.s32.totalorder %s20, 1
      %s314 = scalar_select %p313, %s20, 1
      %s315 = smul.addr %s314, 8
      %s316 = scalar_lea.vmem %s0, %s315
      %p317 = pneg %p41
      %p318 = pneg %p38
      %p319 = pneg %p62
      %p320 = pneg %p59
      %s321 = smul.u32 8, %s20
      %p322 = scmp.lt.s32.totalorder %s321, 15
      %s323 = scalar_select %p322, %s321, 15
      %s324 = smul.addr %s323, 2
      %s325 = smul.addr %s324, 8
      %s326 = scalar_lea.vmem %s2, %s325
      %p327 = pneg %p88
      %p328 = pneg %p85
      %p329 = scmp.lt.s32.totalorder %s20, 1
      %s330 = scalar_select %p329, %s20, 1
      %s331 = smul.addr %s330, 8
      %s332 = scalar_lea.vmem %s3, %s331
      %p333 = pneg %p114
      %p334 = pneg %p111
      %p335 = pneg %p135
      %p336 = pneg %p132
      %p337 = pneg %p156
      %p338 = pneg %p153
      %p339 = pneg %p177
      %p340 = pneg %p174
      %p341 = pneg %p198
      %p342 = pneg %p195
      %p343 = pneg %p219
      %p344 = pneg %p216
      %p345 = pneg %p245
      %p346 = pneg %p242
      %p347 = scmp.lt.s32.totalorder %s20, 1
      %s348 = scalar_select %p347, %s20, 1
      %s349 = smul.addr %s348, 8
      %s350 = scalar_lea.vmem %s9, %s349
      %p351 = scmp.lt.s32.totalorder %s20, 1
      %s352 = scalar_select %p351, %s20, 1
      %s353 = smul.addr %s352, 8
      %s354 = scalar_lea.vmem %s0, %s353
      %s355 = smul.u32 8, %s20
      %p356 = scmp.lt.s32.totalorder %s355, 15
      %s357 = scalar_select %p356, %s355, 15
      %s358 = smul.addr %s357, 2
      %s359 = smul.addr %s358, 8
      %s360 = scalar_lea.vmem %s2, %s359
      %s361 = smul.u32 8, %s20
      %p362 = scmp.lt.s32.totalorder %s20, 1
      %s363 = scalar_select %p362, %s20, 1
      %s364 = smul.addr %s363, 8
      %s365 = scalar_lea.vmem %s3, %s364
      %p366 = scmp.lt.s32.totalorder %s20, 1
      %s367 = scalar_select %p366, %s20, 1
      %s368 = smul.addr %s367, 8
      %s369 = scalar_lea.vmem %s9, %s368
      %v371 = vld [vmem:[%s360] sm:$0xff]
      %v372 = vld [vmem:[%s360 + $0x8] sm:$0xff]
      %v373 = vld [vmem:[%s360 + $0x10] sm:$0xff]
      %v374 = vld [vmem:[%s360 + $0x18] sm:$0xff]
      %v375 = vld [vmem:[%s360 + $0x20] sm:$0xff]
      %v376 = vld [vmem:[%s360 + $0x28] sm:$0xff]
      %v377 = vld [vmem:[%s360 + $0x30] sm:$0xff]
      %v378 = vld [vmem:[%s360 + $0x38] sm:$0xff]
      %v379 = vld [vmem:[%s360 + $0x40] sm:$0xff]
      %v380 = vld [vmem:[%s360 + $0x48] sm:$0xff]
      %v381 = vld [vmem:[%s360 + $0x50] sm:$0xff]
      %v382 = vld [vmem:[%s360 + $0x58] sm:$0xff]
      %v383 = vld [vmem:[%s360 + $0x60] sm:$0xff]
      %v384 = vld [vmem:[%s360 + $0x68] sm:$0xff]
      %v385 = vld [vmem:[%s360 + $0x70] sm:$0xff]
      %v386 = vld [vmem:[%s360 + $0x78] sm:$0xff]
      %v387 = vpack.c.bf16 %v372, %v371
      %v388 = vpack.c.bf16 %v374, %v373
      %v389 = vpack.c.bf16 %v376, %v375
      %v390 = vpack.c.bf16 %v378, %v377
      %v391 = vpack.c.bf16 %v380, %v379
      %v392 = vpack.c.bf16 %v382, %v381
      %v393 = vpack.c.bf16 %v384, %v383
      %v394 = vpack.c.bf16 %v386, %v385
      %v395 = vld [vmem:[%s4] sm:$0xff]
      %v396 = vld [vmem:[%s4 + $0x8] sm:$0xff]
      %v397 = vld [vmem:[%s4 + $0x10] sm:$0xff]
      %v398 = vld [vmem:[%s4 + $0x18] sm:$0xff]
      %v399 = vld [vmem:[%s4 + $0x20] sm:$0xff]
      %v400 = vld [vmem:[%s4 + $0x28] sm:$0xff]
      %v401 = vld [vmem:[%s4 + $0x30] sm:$0xff]
      %v402 = vld [vmem:[%s4 + $0x38] sm:$0xff]
      %v403 = vpack.c.bf16 %v396, %v395
      %v404 = vpack.c.bf16 %v398, %v397
      %v405 = vpack.c.bf16 %v400, %v399
      %v406 = vpack.c.bf16 %v402, %v401
      %vm407 = vcmask 523264
      %v409 = vsel %vm407, %v387, 0
      %v412 = vsel %vm407, %v388, 0
      %v415 = vsel %vm407, %v389, 0
      %v418 = vsel %vm407, %v390, 0
      %v421 = vsel %vm407, %v391, 0
      %v424 = vsel %vm407, %v392, 0
      %v427 = vsel %vm407, %v393, 0
      %v430 = vsel %vm407, %v394, 0
      %432 = vmatprep.subr.bf16.mxu0 0
      %433 = vmatpush1.bf16.msra.mxu0 %v403
      %434 = vmatprep.subr.bf16.mxu0 0
      %435 = vmatpush1.bf16.msra.mxu0 %v404
      %436 = vmatprep.subr.bf16.mxu0 0
      %437 = vmatpush1.bf16.msra.mxu0 %v405
      %438 = vmatprep.subr.bf16.mxu0 0
      %439 = vmatpush1.bf16.msra.mxu0 %v406
      %440 = vmatprep.subr.bf16.mxu0 0
      %441 = vmatpush1.bf16.msra.mxu0 0
      %442 = vmatprep.subr.bf16.mxu0 0
      %443 = vmatpush1.bf16.msra.mxu0 0
      %444 = vmatprep.subr.bf16.mxu0 0
      %445 = vmatpush1.bf16.msra.mxu0 0
      %446 = vmatprep.subr.bf16.mxu0 0
      %447 = vmatpush1.bf16.msra.mxu0 0
      %448 = vmatprep.subr.bf16.mxu0 0
      %449 = vmatpush1.bf16.msra.mxu0 0
      %450 = vmatprep.subr.bf16.mxu0 0
      %451 = vmatpush1.bf16.msra.mxu0 0
      %452 = vmatprep.subr.bf16.mxu0 0
      %453 = vmatpush1.bf16.msra.mxu0 0
      %454 = vmatprep.subr.bf16.mxu0 0
      %455 = vmatpush1.bf16.msra.mxu0 0
      %456 = vmatprep.subr.bf16.mxu0 0
      %457 = vmatpush1.bf16.msra.mxu0 0
      %458 = vmatprep.subr.bf16.mxu0 0
      %459 = vmatpush1.bf16.msra.mxu0 0
      %460 = vmatprep.subr.bf16.mxu0 0
      %461 = vmatpush1.bf16.msra.mxu0 0
      %462 = vmatprep.subr.bf16.mxu0 0
      %463 = vmatpush1.bf16.msra.mxu0 0
      %464 = vmatprep.mubr.bf16.mxu0 0
      %465 = vmatmul.mubr.bf16.gmra.mrb[0].mxu0 %v409
      %v466 = vpop.f32.mrb[0].mxu0
      %v467 = vadd.f32 0.0, %v466
      %v468 = vpop.f32.mrb[0].mxu0
      %v469 = vpop.f32.mrb[0].mxu0
      %v470 = vadd.f32 0.0, %v469
      %v471 = vpop.f32.mrb[0].mxu0
      %472 = vmatprep.mubr.bf16.mxu0 0
      %473 = vmatmul.mubr.bf16.gmra.mrb[0].mxu0 %v412
      %v474 = vpop.f32.mrb[0].mxu0
      %v475 = vadd.f32 0.0, %v474
      %v476 = vpop.f32.mrb[0].mxu0
      %v477 = vpop.f32.mrb[0].mxu0
      %v478 = vadd.f32 0.0, %v477
      %v479 = vpop.f32.mrb[0].mxu0
      %480 = vmatprep.mubr.bf16.mxu0 0
      %481 = vmatmul.mubr.bf16.gmra.mrb[0].mxu0 %v415
      %v482 = vpop.f32.mrb[0].mxu0
      %v483 = vadd.f32 0.0, %v482
      %v484 = vpop.f32.mrb[0].mxu0
      %v485 = vpop.f32.mrb[0].mxu0
      %v486 = vadd.f32 0.0, %v485
      %v487 = vpop.f32.mrb[0].mxu0
      %488 = vmatprep.mubr.bf16.mxu0 0
      %489 = vmatmul.mubr.bf16.gmra.mrb[0].mxu0 %v418
      %v490 = vpop.f32.mrb[0].mxu0
      %v491 = vadd.f32 0.0, %v490
      %v492 = vpop.f32.mrb[0].mxu0
      %v493 = vpop.f32.mrb[0].mxu0
      %v494 = vadd.f32 0.0, %v493
      %v495 = vpop.f32.mrb[0].mxu0
      %496 = vmatprep.mubr.bf16.mxu0 0
      %497 = vmatmul.mubr.bf16.gmra.mrb[0].mxu0 %v421
      %v498 = vpop.f32.mrb[0].mxu0
      %v499 = vadd.f32 0.0, %v498
      %v500 = vpop.f32.mrb[0].mxu0
      %v501 = vpop.f32.mrb[0].mxu0
      %v502 = vadd.f32 0.0, %v501
      %v503 = vpop.f32.mrb[0].mxu0
      %504 = vmatprep.mubr.bf16.mxu0 0
      %505 = vmatmul.mubr.bf16.gmra.mrb[0].mxu0 %v424
      %v506 = vpop.f32.mrb[0].mxu0
      %v507 = vadd.f32 0.0, %v506
      %v508 = vpop.f32.mrb[0].mxu0
      %v509 = vpop.f32.mrb[0].mxu0
      %v510 = vadd.f32 0.0, %v509
      %v511 = vpop.f32.mrb[0].mxu0
      %512 = vmatprep.mubr.bf16.mxu0 0
      %513 = vmatmul.mubr.bf16.gmra.mrb[0].mxu0 %v427
      %v514 = vpop.f32.mrb[0].mxu0
      %v515 = vadd.f32 0.0, %v514
      %v516 = vpop.f32.mrb[0].mxu0
      %v517 = vpop.f32.mrb[0].mxu0
      %v518 = vadd.f32 0.0, %v517
      %v519 = vpop.f32.mrb[0].mxu0
      %520 = vmatprep.mubr.bf16.mxu0 0
      %521 = vmatmul.mubr.bf16.gmra.mrb[0].mxu0 %v430
      %v522 = vpop.f32.mrb[0].mxu0
      %v523 = vadd.f32 0.0, %v522
      %v524 = vpop.f32.mrb[0].mxu0
      %v525 = vpop.f32.mrb[0].mxu0
      %v526 = vadd.f32 0.0, %v525
      %v527 = vpop.f32.mrb[0].mxu0
      %528 = vdwg.mxu0
      %v529 = vld [vmem:[%s1] sm:$0xff]
      %v530 = vld [vmem:[%s1 + $0x8] sm:$0xff]
      %v531 = vadd.f32 %v467, %v529
      %v532 = vadd.f32 %v470, %v530
      %v533 = vadd.f32 %v475, %v529
      %v534 = vadd.f32 %v478, %v530
      %v535 = vadd.f32 %v483, %v529
      %v536 = vadd.f32 %v486, %v530
      %v537 = vadd.f32 %v491, %v529
      %v538 = vadd.f32 %v494, %v530
      %v539 = vadd.f32 %v499, %v529
      %v540 = vadd.f32 %v502, %v530
      %v541 = vadd.f32 %v507, %v529
      %v542 = vadd.f32 %v510, %v530
      %v543 = vadd.f32 %v515, %v529
      %v544 = vadd.f32 %v518, %v530
      %v545 = vadd.f32 %v523, %v529
      %v546 = vadd.f32 %v526, %v530
      %v547 = vld [vmem:[%s354] sm:$0xff]
      %v549 = vcombine.high %v547, %v547
      %v551 = vunpack.c.l.s4 1966171168
      %v552 = vunpack.c.0.s8 %v551
      %v553 = vlaneseq
      %v554 = vshrl.u32 %v553, 7
      %v555 = vsub.s32 %v552, %v554
      %v556 = vrot.slane %v547, %v555
      %v558 = vunpack.c.l.s4 1966171168
      %v559 = vunpack.c.0.s8 %v558
      %v560 = vlaneseq
      %v561 = vshrl.u32 %v560, 7
      %v562 = vsub.s32 %v559, %v561
      %v563 = vrot.slane %v549, %v562
      %v564 = vcombine.high %v556, %v556
      %v565 = vcombine.high %v563, %v563
      %v567 = vunpack.c.l.s4 1966171168
      %v568 = vunpack.c.0.s8 %v567
      %v569 = vlaneseq
      %v570 = vshrl.u32 %v569, 7
      %v571 = vsub.s32 %v568, %v570
      %v572 = vrot.slane %v556, %v571
      %v574 = vunpack.c.l.s4 1966171168
      %v575 = vunpack.c.0.s8 %v574
      %v576 = vlaneseq
      %v577 = vshrl.u32 %v576, 7
      %v578 = vsub.s32 %v575, %v577
      %v579 = vrot.slane %v563, %v578
      %v581 = vunpack.c.l.s4 1966171168
      %v582 = vunpack.c.0.s8 %v581
      %v583 = vlaneseq
      %v584 = vshrl.u32 %v583, 7
      %v585 = vsub.s32 %v582, %v584
      %v586 = vrot.slane %v564, %v585
      %v588 = vunpack.c.l.s4 1966171168
      %v589 = vunpack.c.0.s8 %v588
      %v590 = vlaneseq
      %v591 = vshrl.u32 %v590, 7
      %v592 = vsub.s32 %v589, %v591
      %v593 = vrot.slane %v565, %v592
      %v594 = vcombine.high %v572, %v572
      %v595 = vcombine.high %v579, %v579
      %v596 = vcombine.high %v586, %v586
      %v597 = vcombine.high %v593, %v593
      %v598 = vlaneseq
      %v599 = vshrl.u32 %v598, 7
      %v600 = vsub.s32 0, %v599
      %v601 = vrot.slane %v572, %v600
      %v602 = vlaneseq
      %v603 = vshrl.u32 %v602, 7
      %v604 = vsub.s32 0, %v603
      %v605 = vrot.slane %v586, %v604
      %v606 = vlaneseq
      %v607 = vshrl.u32 %v606, 7
      %v608 = vsub.s32 0, %v607
      %v609 = vrot.slane %v594, %v608
      %v610 = vlaneseq
      %v611 = vshrl.u32 %v610, 7
      %v612 = vsub.s32 0, %v611
      %v613 = vrot.slane %v596, %v612
      %v614 = vlaneseq
      %v615 = vshrl.u32 %v614, 7
      %v616 = vsub.s32 0, %v615
      %v617 = vrot.slane %v579, %v616
      %v618 = vlaneseq
      %v619 = vshrl.u32 %v618, 7
      %v620 = vsub.s32 0, %v619
      %v621 = vrot.slane %v593, %v620
      %v622 = vlaneseq
      %v623 = vshrl.u32 %v622, 7
      %v624 = vsub.s32 0, %v623
      %v625 = vrot.slane %v595, %v624
      %v626 = vlaneseq
      %v627 = vshrl.u32 %v626, 7
      %v628 = vsub.s32 0, %v627
      %v629 = vrot.slane %v597, %v628
      %v638 = vadd.f32 %v531, %v601
      %v639 = vadd.f32 %v532, %v601
      %v640 = vadd.f32 %v533, %v605
      %v641 = vadd.f32 %v534, %v605
      %v642 = vadd.f32 %v535, %v609
      %v643 = vadd.f32 %v536, %v609
      %v644 = vadd.f32 %v537, %v613
      %v645 = vadd.f32 %v538, %v613
      %v646 = vadd.f32 %v539, %v617
      %v647 = vadd.f32 %v540, %v617
      %v648 = vadd.f32 %v541, %v621
      %v649 = vadd.f32 %v542, %v621
      %v650 = vadd.f32 %v543, %v625
      %v651 = vadd.f32 %v544, %v625
      %v652 = vadd.f32 %v545, %v629
      %v653 = vadd.f32 %v546, %v629
      %v654 = vld [vmem:[%s5] sm:$0x1]
      %v656 = vlaneseq
      %v657 = vshrl.u32 %v656, 7
      %v658 = vsub.s32 0, %v657
      %v659 = vrot.slane %v654, %v658
      %v661 = vadd.f32 %v638, %v659
      %v662 = vadd.f32 %v639, %v659
      %v663 = vadd.f32 %v640, %v659
      %v664 = vadd.f32 %v641, %v659
      %v665 = vadd.f32 %v642, %v659
      %v666 = vadd.f32 %v643, %v659
      %v667 = vadd.f32 %v644, %v659
      %v668 = vadd.f32 %v645, %v659
      %v669 = vadd.f32 %v646, %v659
      %v670 = vadd.f32 %v647, %v659
      %v671 = vadd.f32 %v648, %v659
      %v672 = vadd.f32 %v649, %v659
      %v673 = vadd.f32 %v650, %v659
      %v674 = vadd.f32 %v651, %v659
      %v675 = vadd.f32 %v652, %v659
      %v676 = vadd.f32 %v653, %v659
      %v677 = vmax.f32 %v661, 0.0
      %v678 = vmax.f32 %v662, 0.0
      %v679 = vmax.f32 %v663, 0.0
      %v680 = vmax.f32 %v664, 0.0
      %v681 = vmax.f32 %v665, 0.0
      %v682 = vmax.f32 %v666, 0.0
      %v683 = vmax.f32 %v667, 0.0
      %v684 = vmax.f32 %v668, 0.0
      %v685 = vmax.f32 %v669, 0.0
      %v686 = vmax.f32 %v670, 0.0
      %v687 = vmax.f32 %v671, 0.0
      %v688 = vmax.f32 %v672, 0.0
      %v689 = vmax.f32 %v673, 0.0
      %v690 = vmax.f32 %v674, 0.0
      %v691 = vmax.f32 %v675, 0.0
      %v692 = vmax.f32 %v676, 0.0
      %v693 = vld [vmem:[%s6] sm:$0xff]
      %v694 = vld [vmem:[%s6 + $0x8] sm:$0xff]
      %v695 = vld [vmem:[%s6 + $0x10] sm:$0xff]
      %v696 = vld [vmem:[%s6 + $0x18] sm:$0xff]
      %v697 = vld [vmem:[%s6 + $0x20] sm:$0xff]
      %v698 = vld [vmem:[%s6 + $0x28] sm:$0xff]
      %v699 = vld [vmem:[%s6 + $0x30] sm:$0xff]
      %v700 = vld [vmem:[%s6 + $0x38] sm:$0xff]
      %v701 = vld [vmem:[%s6 + $0x40] sm:$0xff]
      %v702 = vld [vmem:[%s6 + $0x48] sm:$0xff]
      %v703 = vld [vmem:[%s6 + $0x50] sm:$0xff]
      %v704 = vld [vmem:[%s6 + $0x58] sm:$0xff]
      %v705 = vld [vmem:[%s6 + $0x60] sm:$0xff]
      %v706 = vld [vmem:[%s6 + $0x68] sm:$0xff]
      %v707 = vld [vmem:[%s6 + $0x70] sm:$0xff]
      %v708 = vld [vmem:[%s6 + $0x78] sm:$0xff]
      %v709 = vld [vmem:[%s7] sm:$0x1]
      %v710 = vpack.c.bf16 %v678, %v677
      %v711 = vpack.c.bf16 %v680, %v679
      %v712 = vpack.c.bf16 %v682, %v681
      %v713 = vpack.c.bf16 %v684, %v683
      %v714 = vpack.c.bf16 %v686, %v685
      %v715 = vpack.c.bf16 %v688, %v687
      %v716 = vpack.c.bf16 %v690, %v689
      %v717 = vpack.c.bf16 %v692, %v691
      %v718 = vpack.c.bf16 %v694, %v693
      %v719 = vpack.c.bf16 %v696, %v695
      %v720 = vpack.c.bf16 %v698, %v697
      %v721 = vpack.c.bf16 %v700, %v699
      %v722 = vpack.c.bf16 %v702, %v701
      %v723 = vpack.c.bf16 %v704, %v703
      %v724 = vpack.c.bf16 %v706, %v705
      %v725 = vpack.c.bf16 %v708, %v707
      %v727 = vlaneseq
      %v728 = vshrl.u32 %v727, 7
      %v729 = vsub.s32 0, %v728
      %v730 = vrot.slane %v709, %v729
      %732 = vmatprep.subr.bf16.mxu0 0
      %733 = vmatpush1.bf16.msra.mxu0 %v718
      %734 = vmatprep.subr.bf16.mxu0 0
      %735 = vmatpush1.bf16.msra.mxu0 %v719
      %736 = vmatprep.subr.bf16.mxu0 0
      %737 = vmatpush1.bf16.msra.mxu0 %v720
      %738 = vmatprep.subr.bf16.mxu0 0
      %739 = vmatpush1.bf16.msra.mxu0 %v721
      %740 = vmatprep.subr.bf16.mxu0 0
      %741 = vmatpush1.bf16.msra.mxu0 %v722
      %742 = vmatprep.subr.bf16.mxu0 0
      %743 = vmatpush1.bf16.msra.mxu0 %v723
      %744 = vmatprep.subr.bf16.mxu0 0
      %745 = vmatpush1.bf16.msra.mxu0 %v724
      %746 = vmatprep.subr.bf16.mxu0 0
      %747 = vmatpush1.bf16.msra.mxu0 %v725
      %748 = vmatprep.subr.bf16.mxu0 0
      %749 = vmatpush1.bf16.msra.mxu0 0
      %750 = vmatprep.subr.bf16.mxu0 0
      %751 = vmatpush1.bf16.msra.mxu0 0
      %752 = vmatprep.subr.bf16.mxu0 0
      %753 = vmatpush1.bf16.msra.mxu0 0
      %754 = vmatprep.subr.bf16.mxu0 0
      %755 = vmatpush1.bf16.msra.mxu0 0
      %756 = vmatprep.subr.bf16.mxu0 0
      %757 = vmatpush1.bf16.msra.mxu0 0
      %758 = vmatprep.subr.bf16.mxu0 0
      %759 = vmatpush1.bf16.msra.mxu0 0
      %760 = vmatprep.subr.bf16.mxu0 0
      %761 = vmatpush1.bf16.msra.mxu0 0
      %762 = vmatprep.subr.bf16.mxu0 0
      %763 = vmatpush1.bf16.msra.mxu0 0
      %764 = vmatprep.mubr.bf16.mxu0 0
      %765 = vmatmul.mubr.bf16.gmra.mrb[0].mxu0 %v710
      %v766 = vpop.f32.mrb[0].mxu0
      %v767 = vadd.f32 %v730, %v766
      %v768 = vpop.f32.mrb[0].mxu0
      %v769 = vpop.f32.mrb[0].mxu0
      %v770 = vadd.f32 %v730, %v769
      %v771 = vpop.f32.mrb[0].mxu0
      %772 = vmatprep.mubr.bf16.mxu0 0
      %773 = vmatmul.mubr.bf16.gmra.mrb[0].mxu0 %v711
      %v774 = vpop.f32.mrb[0].mxu0
      %v775 = vadd.f32 %v730, %v774
      %v776 = vpop.f32.mrb[0].mxu0
      %v777 = vpop.f32.mrb[0].mxu0
      %v778 = vadd.f32 %v730, %v777
      %v779 = vpop.f32.mrb[0].mxu0
      %780 = vmatprep.mubr.bf16.mxu0 0
      %781 = vmatmul.mubr.bf16.gmra.mrb[0].mxu0 %v712
      %v782 = vpop.f32.mrb[0].mxu0
      %v783 = vadd.f32 %v730, %v782
      %v784 = vpop.f32.mrb[0].mxu0
      %v785 = vpop.f32.mrb[0].mxu0
      %v786 = vadd.f32 %v730, %v785
      %v787 = vpop.f32.mrb[0].mxu0
      %788 = vmatprep.mubr.bf16.mxu0 0
      %789 = vmatmul.mubr.bf16.gmra.mrb[0].mxu0 %v713
      %v790 = vpop.f32.mrb[0].mxu0
      %v791 = vadd.f32 %v730, %v790
      %v792 = vpop.f32.mrb[0].mxu0
      %v793 = vpop.f32.mrb[0].mxu0
      %v794 = vadd.f32 %v730, %v793
      %v795 = vpop.f32.mrb[0].mxu0
      %796 = vmatprep.mubr.bf16.mxu0 0
      %797 = vmatmul.mubr.bf16.gmra.mrb[0].mxu0 %v714
      %v798 = vpop.f32.mrb[0].mxu0
      %v799 = vadd.f32 %v730, %v798
      %v800 = vpop.f32.mrb[0].mxu0
      %v801 = vpop.f32.mrb[0].mxu0
      %v802 = vadd.f32 %v730, %v801
      %v803 = vpop.f32.mrb[0].mxu0
      %804 = vmatprep.mubr.bf16.mxu0 0
      %805 = vmatmul.mubr.bf16.gmra.mrb[0].mxu0 %v715
      %v806 = vpop.f32.mrb[0].mxu0
      %v807 = vadd.f32 %v730, %v806
      %v808 = vpop.f32.mrb[0].mxu0
      %v809 = vpop.f32.mrb[0].mxu0
      %v810 = vadd.f32 %v730, %v809
      %v811 = vpop.f32.mrb[0].mxu0
      %812 = vmatprep.mubr.bf16.mxu0 0
      %813 = vmatmul.mubr.bf16.gmra.mrb[0].mxu0 %v716
      %v814 = vpop.f32.mrb[0].mxu0
      %v815 = vadd.f32 %v730, %v814
      %v816 = vpop.f32.mrb[0].mxu0
      %v817 = vpop.f32.mrb[0].mxu0
      %v818 = vadd.f32 %v730, %v817
      %v819 = vpop.f32.mrb[0].mxu0
      %820 = vmatprep.mubr.bf16.mxu0 0
      %821 = vmatmul.mubr.bf16.gmra.mrb[0].mxu0 %v717
      %v822 = vpop.f32.mrb[0].mxu0
      %v823 = vadd.f32 %v730, %v822
      %v824 = vpop.f32.mrb[0].mxu0
      %v825 = vpop.f32.mrb[0].mxu0
      %v826 = vadd.f32 %v730, %v825
      %v827 = vpop.f32.mrb[0].mxu0
      %828 = vdwg.mxu0
      %v829 = vmax.f32 %v767, 0.0
      %v830 = vmax.f32 %v770, 0.0
      %v831 = vmax.f32 %v775, 0.0
      %v832 = vmax.f32 %v778, 0.0
      %v833 = vmax.f32 %v783, 0.0
      %v834 = vmax.f32 %v786, 0.0
      %v835 = vmax.f32 %v791, 0.0
      %v836 = vmax.f32 %v794, 0.0
      %v837 = vmax.f32 %v799, 0.0
      %v838 = vmax.f32 %v802, 0.0
      %v839 = vmax.f32 %v807, 0.0
      %v840 = vmax.f32 %v810, 0.0
      %v841 = vmax.f32 %v815, 0.0
      %v842 = vmax.f32 %v818, 0.0
      %v843 = vmax.f32 %v823, 0.0
      %v844 = vmax.f32 %v826, 0.0
      %v845 = vld [vmem:[%s365] sm:$0xff]
      %v846 = vld [vmem:[%s8] sm:$0x1]
      %v848 = vlaneseq
      %v849 = vshrl.u32 %v848, 7
      %v850 = vsub.s32 0, %v849
      %v851 = vrot.slane %v846, %v850
      %v853 = vmul.f32 %v829, %v851
      %v854 = vmul.f32 %v830, %v851
      %v855 = vmul.f32 %v831, %v851
      %v856 = vmul.f32 %v832, %v851
      %v857 = vmul.f32 %v833, %v851
      %v858 = vmul.f32 %v834, %v851
      %v859 = vmul.f32 %v835, %v851
      %v860 = vmul.f32 %v836, %v851
      %v861 = vmul.f32 %v837, %v851
      %v862 = vmul.f32 %v838, %v851
      %v863 = vmul.f32 %v839, %v851
      %v864 = vmul.f32 %v840, %v851
      %v865 = vmul.f32 %v841, %v851
      %v866 = vmul.f32 %v842, %v851
      %v867 = vmul.f32 %v843, %v851
      %v868 = vmul.f32 %v844, %v851
      %v869 = vsel %vm407, %v853, 0.0
      %870 = vadd.xlane.f32.xlu0 %v869
      %v871 = vpop.xlane.xlu0 %870
      %v872 = vsel %vm407, %v854, 0.0
      %873 = vadd.xlane.f32.xlu0 %v872
      %v874 = vpop.xlane.xlu0 %873
      %v875 = vsel %vm407, %v855, 0.0
      %876 = vadd.xlane.f32.xlu0 %v875
      %v877 = vpop.xlane.xlu0 %876
      %v878 = vsel %vm407, %v856, 0.0
      %879 = vadd.xlane.f32.xlu0 %v878
      %v880 = vpop.xlane.xlu0 %879
      %v881 = vsel %vm407, %v857, 0.0
      %882 = vadd.xlane.f32.xlu0 %v881
      %v883 = vpop.xlane.xlu0 %882
      %v884 = vsel %vm407, %v858, 0.0
      %885 = vadd.xlane.f32.xlu0 %v884
      %v886 = vpop.xlane.xlu0 %885
      %v887 = vsel %vm407, %v859, 0.0
      %888 = vadd.xlane.f32.xlu0 %v887
      %v889 = vpop.xlane.xlu0 %888
      %v890 = vsel %vm407, %v860, 0.0
      %891 = vadd.xlane.f32.xlu0 %v890
      %v892 = vpop.xlane.xlu0 %891
      %v893 = vsel %vm407, %v861, 0.0
      %894 = vadd.xlane.f32.xlu0 %v893
      %v895 = vpop.xlane.xlu0 %894
      %v896 = vsel %vm407, %v862, 0.0
      %897 = vadd.xlane.f32.xlu0 %v896
      %v898 = vpop.xlane.xlu0 %897
      %v899 = vsel %vm407, %v863, 0.0
      %900 = vadd.xlane.f32.xlu0 %v899
      %v901 = vpop.xlane.xlu0 %900
      %v902 = vsel %vm407, %v864, 0.0
      %903 = vadd.xlane.f32.xlu0 %v902
      %v904 = vpop.xlane.xlu0 %903
      %v905 = vsel %vm407, %v865, 0.0
      %906 = vadd.xlane.f32.xlu0 %v905
      %v907 = vpop.xlane.xlu0 %906
      %v908 = vsel %vm407, %v866, 0.0
      %909 = vadd.xlane.f32.xlu0 %v908
      %v910 = vpop.xlane.xlu0 %909
      %v911 = vsel %vm407, %v867, 0.0
      %912 = vadd.xlane.f32.xlu0 %v911
      %v913 = vpop.xlane.xlu0 %912
      %v914 = vsel %vm407, %v868, 0.0
      %915 = vadd.xlane.f32.xlu0 %v914
      %v916 = vpop.xlane.xlu0 %915
      %vm917 = vcmp.gt.f32.partialorder %v845, 0.0
      %v934 = vlaneseq
      %v935 = vand.u32 %v934, 127
      %v936 = vlaneseq
      %v937 = vshrl.u32 %v936, 7
      %v938 = vsub.s32 %v935, %v937
      %v939 = vrot.slane %v871, %v938
      %v940 = vadd.s32 %v935, 4294967288
      %v941 = vlaneseq
      %v942 = vshrl.u32 %v941, 7
      %v943 = vsub.s32 %v940, %v942
      %v944 = vrot.slane %v874, %v943
      %vm945 = vcmask 130112
      %v946 = vsel %vm945, %v944, %v939
      %v947 = vlaneseq
      %v948 = vshrl.u32 %v947, 7
      %v949 = vsub.s32 %v935, %v948
      %v950 = vrot.slane %v877, %v949
      %v951 = vlaneseq
      %v952 = vshrl.u32 %v951, 7
      %v953 = vsub.s32 %v940, %v952
      %v954 = vrot.slane %v880, %v953
      %v955 = vsel %vm945, %v954, %v950
      %v956 = vlaneseq
      %v957 = vshrl.u32 %v956, 7
      %v958 = vsub.s32 %v935, %v957
      %v959 = vrot.slane %v883, %v958
      %v960 = vlaneseq
      %v961 = vshrl.u32 %v960, 7
      %v962 = vsub.s32 %v940, %v961
      %v963 = vrot.slane %v886, %v962
      %v964 = vsel %vm945, %v963, %v959
      %v965 = vlaneseq
      %v966 = vshrl.u32 %v965, 7
      %v967 = vsub.s32 %v935, %v966
      %v968 = vrot.slane %v889, %v967
      %v969 = vlaneseq
      %v970 = vshrl.u32 %v969, 7
      %v971 = vsub.s32 %v940, %v970
      %v972 = vrot.slane %v892, %v971
      %v973 = vsel %vm945, %v972, %v968
      %v974 = vlaneseq
      %v975 = vshrl.u32 %v974, 7
      %v976 = vsub.s32 %v935, %v975
      %v977 = vrot.slane %v895, %v976
      %v978 = vlaneseq
      %v979 = vshrl.u32 %v978, 7
      %v980 = vsub.s32 %v940, %v979
      %v981 = vrot.slane %v898, %v980
      %v982 = vsel %vm945, %v981, %v977
      %v983 = vlaneseq
      %v984 = vshrl.u32 %v983, 7
      %v985 = vsub.s32 %v935, %v984
      %v986 = vrot.slane %v901, %v985
      %v987 = vlaneseq
      %v988 = vshrl.u32 %v987, 7
      %v989 = vsub.s32 %v940, %v988
      %v990 = vrot.slane %v904, %v989
      %v991 = vsel %vm945, %v990, %v986
      %v992 = vlaneseq
      %v993 = vshrl.u32 %v992, 7
      %v994 = vsub.s32 %v935, %v993
      %v995 = vrot.slane %v907, %v994
      %v996 = vlaneseq
      %v997 = vshrl.u32 %v996, 7
      %v998 = vsub.s32 %v940, %v997
      %v999 = vrot.slane %v910, %v998
      %v1000 = vsel %vm945, %v999, %v995
      %v1001 = vlaneseq
      %v1002 = vshrl.u32 %v1001, 7
      %v1003 = vsub.s32 %v935, %v1002
      %v1004 = vrot.slane %v913, %v1003
      %v1005 = vlaneseq
      %v1006 = vshrl.u32 %v1005, 7
      %v1007 = vsub.s32 %v940, %v1006
      %v1008 = vrot.slane %v916, %v1007
      %v1009 = vsel %vm945, %v1008, %v1004
      %vm1010 = vcmask 1041409
      %v1011 = vsel %vm1010, %v955, %v946
      %vm1012 = vcmask 1042434
      %v1013 = vsel %vm1012, %v964, %v1011
      %vm1014 = vcmask 1043459
      %v1015 = vsel %vm1014, %v973, %v1013
      %vm1016 = vcmask 1044484
      %v1017 = vsel %vm1016, %v982, %v1015
      %vm1018 = vcmask 1045509
      %v1019 = vsel %vm1018, %v991, %v1017
      %vm1020 = vcmask 1046534
      %v1021 = vsel %vm1020, %v1000, %v1019
      %vm1022 = vcmask 1047559
      %v1023 = vsel %vm1022, %v1009, %v1021
      %v1025 = vsel %vm917, %v1023, -1e+30
      %vm1026 = vcmask 130048
      %v1027 = vsel %vm1026, %v1025, -inf
      %1028 = vmax.xlane.f32.xlu0 %v1027
      %v1029 = vpop.xlane.xlu0 %1028
      %v1030 = vsub.f32 %v1025, %v1029
      %v1031 = vmul.f32 %v1030, 1.442695
      %v1032 = vpow.pop %v1031
      %v1033 = vmul.f32 %v1032, %v845
      %v1034 = vsel %vm1026, %v1033, 0.0
      %1035 = vadd.xlane.f32.xlu0 %v1034
      %v1036 = vpop.xlane.xlu0 %1035
      %v1037 = vmax.f32 %v1036, 1e-20
      %v1038 = vrcp.pop %v1037
      %v1039 = vmul.f32 %v1033, %v1038
      %v1040 = vlaneseq
      %v1041 = vshrl.u32 %v1040, 7
      %v1042 = vsub.s32 0, %v1041
      %v1043 = vrot.slane %v1039, %v1042
      %1045 = vbcast.lane.b32.xlu0 %v1043, 256
      %v1046 = vpop.permute.xlu0 %1045
      %s1048 = sor.u32 256, 8
      %1049 = vbcast.lane.b32.xlu0 %v1043, %s1048
      %v1050 = vpop.permute.xlu0 %1049
      %v1051 = vlaneseq
      %v1052 = vshrl.u32 %v1051, 7
      %v1053 = vsub.s32 1, %v1052
      %v1054 = vrot.slane %v1039, %v1053
      %1056 = vbcast.lane.b32.xlu0 %v1054, 256
      %v1057 = vpop.permute.xlu0 %1056
      %s1059 = sor.u32 256, 8
      %1060 = vbcast.lane.b32.xlu0 %v1054, %s1059
      %v1061 = vpop.permute.xlu0 %1060
      %v1062 = vlaneseq
      %v1063 = vshrl.u32 %v1062, 7
      %v1064 = vsub.s32 2, %v1063
      %v1065 = vrot.slane %v1039, %v1064
      %1067 = vbcast.lane.b32.xlu0 %v1065, 256
      %v1068 = vpop.permute.xlu0 %1067
      %s1070 = sor.u32 256, 8
      %1071 = vbcast.lane.b32.xlu0 %v1065, %s1070
      %v1072 = vpop.permute.xlu0 %1071
      %v1073 = vlaneseq
      %v1074 = vshrl.u32 %v1073, 7
      %v1075 = vsub.s32 3, %v1074
      %v1076 = vrot.slane %v1039, %v1075
      %1078 = vbcast.lane.b32.xlu0 %v1076, 256
      %v1079 = vpop.permute.xlu0 %1078
      %s1081 = sor.u32 256, 8
      %1082 = vbcast.lane.b32.xlu0 %v1076, %s1081
      %v1083 = vpop.permute.xlu0 %1082
      %v1084 = vlaneseq
      %v1085 = vshrl.u32 %v1084, 7
      %v1086 = vsub.s32 4, %v1085
      %v1087 = vrot.slane %v1039, %v1086
      %1089 = vbcast.lane.b32.xlu0 %v1087, 256
      %v1090 = vpop.permute.xlu0 %1089
      %s1092 = sor.u32 256, 8
      %1093 = vbcast.lane.b32.xlu0 %v1087, %s1092
      %v1094 = vpop.permute.xlu0 %1093
      %v1095 = vlaneseq
      %v1096 = vshrl.u32 %v1095, 7
      %v1097 = vsub.s32 5, %v1096
      %v1098 = vrot.slane %v1039, %v1097
      %1100 = vbcast.lane.b32.xlu0 %v1098, 256
      %v1101 = vpop.permute.xlu0 %1100
      %s1103 = sor.u32 256, 8
      %1104 = vbcast.lane.b32.xlu0 %v1098, %s1103
      %v1105 = vpop.permute.xlu0 %1104
      %v1106 = vlaneseq
      %v1107 = vshrl.u32 %v1106, 7
      %v1108 = vsub.s32 6, %v1107
      %v1109 = vrot.slane %v1039, %v1108
      %1111 = vbcast.lane.b32.xlu0 %v1109, 256
      %v1112 = vpop.permute.xlu0 %1111
      %s1114 = sor.u32 256, 8
      %1115 = vbcast.lane.b32.xlu0 %v1109, %s1114
      %v1116 = vpop.permute.xlu0 %1115
      %v1117 = vlaneseq
      %v1118 = vshrl.u32 %v1117, 7
      %v1119 = vsub.s32 7, %v1118
      %v1120 = vrot.slane %v1039, %v1119
      %1122 = vbcast.lane.b32.xlu0 %v1120, 256
      %v1123 = vpop.permute.xlu0 %1122
      %s1125 = sor.u32 256, 8
      %1126 = vbcast.lane.b32.xlu0 %v1120, %s1125
      %v1127 = vpop.permute.xlu0 %1126
      %v1128 = vmul.f32 %v829, %v1046
      %v1129 = vmul.f32 %v830, %v1050
      %v1130 = vmul.f32 %v831, %v1057
      %v1131 = vmul.f32 %v832, %v1061
      %v1132 = vmul.f32 %v833, %v1068
      %v1133 = vmul.f32 %v834, %v1072
      %v1134 = vmul.f32 %v835, %v1079
      %v1135 = vmul.f32 %v836, %v1083
      %v1136 = vmul.f32 %v837, %v1090
      %v1137 = vmul.f32 %v838, %v1094
      %v1138 = vmul.f32 %v839, %v1101
      %v1139 = vmul.f32 %v840, %v1105
      %v1140 = vmul.f32 %v841, %v1112
      %v1141 = vmul.f32 %v842, %v1116
      %v1142 = vmul.f32 %v843, %v1123
      %v1143 = vmul.f32 %v844, %v1127
      %v1144 = vsel %vm407, %v1128, 0.0
      %v1145 = vsel %vm407, %v1129, 0.0
      %v1146 = vadd.f32 %v1144, %v1145
      %v1147 = vrot.slane %v1146, 4
      %v1148 = vadd.f32 %v1146, %v1147
      %v1149 = vrot.slane %v1148, 2
      %v1150 = vadd.f32 %v1148, %v1149
      %v1151 = vrot.slane %v1150, 1
      %v1152 = vadd.f32 %v1150, %v1151
      %v1153 = vsel %vm407, %v1130, 0.0
      %v1154 = vsel %vm407, %v1131, 0.0
      %v1155 = vadd.f32 %v1153, %v1154
      %v1156 = vrot.slane %v1155, 4
      %v1157 = vadd.f32 %v1155, %v1156
      %v1158 = vrot.slane %v1157, 2
      %v1159 = vadd.f32 %v1157, %v1158
      %v1160 = vrot.slane %v1159, 1
      %v1161 = vadd.f32 %v1159, %v1160
      %v1162 = vsel %vm407, %v1132, 0.0
      %v1163 = vsel %vm407, %v1133, 0.0
      %v1164 = vadd.f32 %v1162, %v1163
      %v1165 = vrot.slane %v1164, 4
      %v1166 = vadd.f32 %v1164, %v1165
      %v1167 = vrot.slane %v1166, 2
      %v1168 = vadd.f32 %v1166, %v1167
      %v1169 = vrot.slane %v1168, 1
      %v1170 = vadd.f32 %v1168, %v1169
      %v1171 = vsel %vm407, %v1134, 0.0
      %v1172 = vsel %vm407, %v1135, 0.0
      %v1173 = vadd.f32 %v1171, %v1172
      %v1174 = vrot.slane %v1173, 4
      %v1175 = vadd.f32 %v1173, %v1174
      %v1176 = vrot.slane %v1175, 2
      %v1177 = vadd.f32 %v1175, %v1176
      %v1178 = vrot.slane %v1177, 1
      %v1179 = vadd.f32 %v1177, %v1178
      %v1180 = vsel %vm407, %v1136, 0.0
      %v1181 = vsel %vm407, %v1137, 0.0
      %v1182 = vadd.f32 %v1180, %v1181
      %v1183 = vrot.slane %v1182, 4
      %v1184 = vadd.f32 %v1182, %v1183
      %v1185 = vrot.slane %v1184, 2
      %v1186 = vadd.f32 %v1184, %v1185
      %v1187 = vrot.slane %v1186, 1
      %v1188 = vadd.f32 %v1186, %v1187
      %v1189 = vsel %vm407, %v1138, 0.0
      %v1190 = vsel %vm407, %v1139, 0.0
      %v1191 = vadd.f32 %v1189, %v1190
      %v1192 = vrot.slane %v1191, 4
      %v1193 = vadd.f32 %v1191, %v1192
      %v1194 = vrot.slane %v1193, 2
      %v1195 = vadd.f32 %v1193, %v1194
      %v1196 = vrot.slane %v1195, 1
      %v1197 = vadd.f32 %v1195, %v1196
      %v1198 = vsel %vm407, %v1140, 0.0
      %v1199 = vsel %vm407, %v1141, 0.0
      %v1200 = vadd.f32 %v1198, %v1199
      %v1201 = vrot.slane %v1200, 4
      %v1202 = vadd.f32 %v1200, %v1201
      %v1203 = vrot.slane %v1202, 2
      %v1204 = vadd.f32 %v1202, %v1203
      %v1205 = vrot.slane %v1204, 1
      %v1206 = vadd.f32 %v1204, %v1205
      %v1207 = vsel %vm407, %v1142, 0.0
      %v1208 = vsel %vm407, %v1143, 0.0
      %v1209 = vadd.f32 %v1207, %v1208
      %v1210 = vrot.slane %v1209, 4
      %v1211 = vadd.f32 %v1209, %v1210
      %v1212 = vrot.slane %v1211, 2
      %v1213 = vadd.f32 %v1211, %v1212
      %v1214 = vrot.slane %v1213, 1
      %v1215 = vadd.f32 %v1213, %v1214
      %v1224 = vsel %vm1010, %v1161, %v1152
      %v1225 = vsel %vm1012, %v1170, %v1224
      %v1226 = vsel %vm1014, %v1179, %v1225
      %v1227 = vsel %vm1016, %v1188, %v1226
      %v1228 = vsel %vm1018, %v1197, %v1227
      %v1229 = vsel %vm1020, %v1206, %v1228
      %v1230 = vsel %vm1022, %v1215, %v1229
      %1232 = vst.msk [vmem:[%s369] sm:$0xff] %vm407, %v1230
      %p1233 = scmp.lt.s32.totalorder %s20, 1
      %s1234 = scalar_select %p1233, %s20, 1
      %s1235 = smul.addr %s1234, 8
      %s1236 = scalar_lea.vmem %s9, %s1235
      // Predicated region
      $region57: #{porous_mignn_forward.17} parent=55 // pred_check
        %p1237 = pneg %p242
      $region58: #{porous_mignn_forward.17} parent=55 // pred_check_branch
        %1239 = sbr.rel (%p1237) target = $region60
      $region59: #{porous_mignn_forward.17} parent=55 // pred_region
        _
      $region60: #{porous_mignn_forward.17} parent=55 // pred_fallthru
        _
    $region56: #{porous_mignn_forward.17} parent=5 // pred_fallthru
      _
    %p1240 = scmp.le.s32.totalorder 2, %s15
    // Predicated region
    $region61: #{porous_mignn_forward.17} parent=5 // pred_check
      %p1241 = pneg %p1240
    $region62: #{porous_mignn_forward.17} parent=5 // pred_check_branch
      %1243 = sbr.rel (%p1241) target = $region64
    $region63: #{porous_mignn_forward.17} parent=5 // pred_region
      %s1244 = ssub.s32 %s15, 2
      // Predicated region
      $region65: #{porous_mignn_forward.17} parent=63 // pred_check
        %p1245 = pneg %p248
      $region66: #{porous_mignn_forward.17} parent=63 // pred_check_branch
        %1247 = sbr.rel (%p1245) target = $region68
      $region67: #{porous_mignn_forward.17} parent=63 // pred_region
        %p1248 = scmp.lt.s32.totalorder %s21, 1
        %s1249 = scalar_select %p1248, %s21, 1
        %s1250 = smul.addr %s1249, 8
        %s1251 = scalar_lea.vmem %s9, %s1250
      $region68: #{porous_mignn_forward.17} parent=63 // pred_fallthru
        _
    $region64: #{porous_mignn_forward.17} parent=5 // pred_fallthru
      _
  $region6: #{porous_mignn_forward.17} parent=0 // loop_footer
    %s19 = sadd.s32 1, %s15
  $region7: #{porous_mignn_forward.17} parent=0 // loop_footer_branch
    %14 = sbr.rel target = $region3
  $region8: #{porous_mignn_forward.17} parent=0 // loop_exit
    _

// kernel: porous_mignn_forward.20
$region0: #{porous_mignn_forward.20}
  #allocation0 [shape = 'u32[]', space=smem, size = 0x4, offset = 0x4, fixed_abs, tag = 'smem constant byte address 0x4 - core index']
  #allocation1 [shape = 'u32[144,128]{1,0:T(1,128)}', space=vmem, size = 0x12000, scoped, tag = 'internal scratch']
  %s0 = inlined_call_operand.vmem [shape: bf16[32,32], index: 0, kind: input, shape index: {}]
  %s1 = inlined_call_operand.vmem [shape: bf16[16,16], index: 1, kind: input, shape index: {}]
  %s2 = inlined_call_operand.vmem [shape: f32[16,32], index: 2, kind: input, shape index: {}]
  %s3 = inlined_call_operand.vmem [shape: f32[16,32], index: 3, kind: output, shape index: {}]
  %s4 = sld [smem:[#allocation0]]
  $region29: #{porous_mignn_forward.20} parent=0
    _
  %s6 = ssub.s32 1, %s4
  %s7 = scalar_select 0, %s6, %s4
  // Predicated region
  $region2: #{porous_mignn_forward.20} parent=0 // pred_check
    _
  $region3: #{porous_mignn_forward.20} parent=0 // pred_check_branch
    %9 = sbr.rel (0) target = $region5
  $region4: #{porous_mignn_forward.20} parent=0 // pred_region
    _
  $region5: #{porous_mignn_forward.20} parent=0 // pred_fallthru
    _
  // Predicated region
  $region6: #{porous_mignn_forward.20} parent=0 // pred_check
    _
  $region7: #{porous_mignn_forward.20} parent=0 // pred_check_branch
    %11 = sbr.rel (0) target = $region9
  $region8: #{porous_mignn_forward.20} parent=0 // pred_region
    _
  $region9: #{porous_mignn_forward.20} parent=0 // pred_fallthru
    _
  // Predicated region
  $region10: #{porous_mignn_forward.20} parent=0 // pred_check
    _
  $region11: #{porous_mignn_forward.20} parent=0 // pred_check_branch
    %13 = sbr.rel (0) target = $region13
  $region12: #{porous_mignn_forward.20} parent=0 // pred_region
    _
  $region13: #{porous_mignn_forward.20} parent=0 // pred_fallthru
    _
  %v15 = vld [vmem:[%s1] sm:$0xf]
  %v16 = vld [vmem:[%s1 + $0x4] sm:$0xf]
  %v17 = vld [vmem:[%s0] sm:$0xf]
  %v18 = vld [vmem:[%s0 + $0x4] sm:$0xf]
  %v19 = vld [vmem:[%s0 + $0x8] sm:$0xf]
  %v20 = vld [vmem:[%s0 + $0xc] sm:$0xf]
  %v21 = vld [vmem:[%s2] sm:$0xff]
  %v22 = vld [vmem:[%s2 + $0x8] sm:$0xff]
  loop: start=0, step=1, limit=30
  $region14: #{porous_mignn_forward.20} parent=0 // loop_pre_header
    _
  $region15: #{porous_mignn_forward.20} parent=0 // loop_header
    %s24 = sphi 0, %s28
    %p25 = scmp.ge.s32.totalorder %s24, 30
    %v29 = vphi 0.0, %v957
    %v30 = vphi 0.0, %v958
    %v31 = vphi 0.0, %v955
    %v32 = vphi 0.0, %v956
  $region16: #{porous_mignn_forward.20} parent=0 // loop_header_branch
    %27 = sbr.rel (%p25) target = $region20
  $region17: #{porous_mignn_forward.20} parent=0 // loop_body
    %v33 = vmul.f32 %v29, 2.0
    %v34 = vmul.f32 %v30, 2.0
    %v35 = vsub.f32 %v33, %v31
    %v36 = vsub.f32 %v34, %v32
    %v37 = vadd.f32 %v35, %v21
    %v38 = vadd.f32 %v36, %v22
    %v39 = vpack.c.bf16 %v38, %v37
    %v42 = vunpack.c.l.b16 %v15
    %v43 = vunpack.c.l.b16 %v16
    %v44 = vpack.c.b16 %v43, %v42
    %vm45 = vcmask 130048
    %v47 = vsel %vm45, %v44, 0
    %49 = vmatprep.subr.bf16.mxu0 0
    %50 = vmatpush1.bf16.msra.mxu0 %v39
    %51 = vmatprep.subr.bf16.mxu0 0
    %52 = vmatpush1.bf16.msra.mxu0 0
    %53 = vmatprep.subr.bf16.mxu0 0
    %54 = vmatpush1.bf16.msra.mxu0 0
    %55 = vmatprep.subr.bf16.mxu0 0
    %56 = vmatpush1.bf16.msra.mxu0 0
    %57 = vmatprep.subr.bf16.mxu0 0
    %58 = vmatpush1.bf16.msra.mxu0 0
    %59 = vmatprep.subr.bf16.mxu0 0
    %60 = vmatpush1.bf16.msra.mxu0 0
    %61 = vmatprep.subr.bf16.mxu0 0
    %62 = vmatpush1.bf16.msra.mxu0 0
    %63 = vmatprep.subr.bf16.mxu0 0
    %64 = vmatpush1.bf16.msra.mxu0 0
    %65 = vmatprep.subr.bf16.mxu0 0
    %66 = vmatpush1.bf16.msra.mxu0 0
    %67 = vmatprep.subr.bf16.mxu0 0
    %68 = vmatpush1.bf16.msra.mxu0 0
    %69 = vmatprep.subr.bf16.mxu0 0
    %70 = vmatpush1.bf16.msra.mxu0 0
    %71 = vmatprep.subr.bf16.mxu0 0
    %72 = vmatpush1.bf16.msra.mxu0 0
    %73 = vmatprep.subr.bf16.mxu0 0
    %74 = vmatpush1.bf16.msra.mxu0 0
    %75 = vmatprep.subr.bf16.mxu0 0
    %76 = vmatpush1.bf16.msra.mxu0 0
    %77 = vmatprep.subr.bf16.mxu0 0
    %78 = vmatpush1.bf16.msra.mxu0 0
    %79 = vmatprep.subr.bf16.mxu0 0
    %80 = vmatpush1.bf16.msra.mxu0 0
    %81 = vmatprep.mubr.bf16.mxu0 0
    %82 = vmatmul.mubr.bf16.gmra.mrb[0].mxu0 %v47
    %v83 = vpop.f32.mrb[0].mxu0
    %v84 = vadd.f32 0.0, %v83
    %v85 = vpop.f32.mrb[0].mxu0
    %v86 = vpop.f32.mrb[0].mxu0
    %v87 = vadd.f32 0.0, %v86
    %v88 = vpop.f32.mrb[0].mxu0
    %89 = vdwg.mxu0
    %v90 = vpack.c.bf16 %v87, %v84
    %v95 = vunpack.c.l.b16 %v17
    %v96 = vunpack.c.l.b16 %v18
    %v97 = vunpack.c.l.b16 %v19
    %v98 = vunpack.c.l.b16 %v20
    %v99 = vpack.c.b16 %v96, %v95
    %v100 = vpack.c.b16 %v98, %v97
    %vm103 = vcmask 261120
    %v105 = vsel %vm103, %v90, 0
    %107 = vmatprep.subr.bf16.mxu0 0
    %108 = vmatpush1.bf16.msra.mxu0 %v99
    %109 = vmatprep.subr.bf16.mxu0 0
    %110 = vmatpush1.bf16.msra.mxu0 %v100
    %111 = vmatprep.subr.bf16.mxu0 0
    %112 = vmatpush1.bf16.msra.mxu0 0
    %113 = vmatprep.subr.bf16.mxu0 0
    %114 = vmatpush1.bf16.msra.mxu0 0
    %115 = vmatprep.subr.bf16.mxu0 0
    %116 = vmatpush1.bf16.msra.mxu0 0
    %117 = vmatprep.subr.bf16.mxu0 0
    %118 = vmatpush1.bf16.msra.mxu0 0
    %119 = vmatprep.subr.bf16.mxu0 0
    %120 = vmatpush1.bf16.msra.mxu0 0
    %121 = vmatprep.subr.bf16.mxu0 0
    %122 = vmatpush1.bf16.msra.mxu0 0
    %123 = vmatprep.subr.bf16.mxu0 0
    %124 = vmatpush1.bf16.msra.mxu0 0
    %125 = vmatprep.subr.bf16.mxu0 0
    %126 = vmatpush1.bf16.msra.mxu0 0
    %127 = vmatprep.subr.bf16.mxu0 0
    %128 = vmatpush1.bf16.msra.mxu0 0
    %129 = vmatprep.subr.bf16.mxu0 0
    %130 = vmatpush1.bf16.msra.mxu0 0
    %131 = vmatprep.subr.bf16.mxu0 0
    %132 = vmatpush1.bf16.msra.mxu0 0
    %133 = vmatprep.subr.bf16.mxu0 0
    %134 = vmatpush1.bf16.msra.mxu0 0
    %135 = vmatprep.subr.bf16.mxu0 0
    %136 = vmatpush1.bf16.msra.mxu0 0
    %137 = vmatprep.subr.bf16.mxu0 0
    %138 = vmatpush1.bf16.msra.mxu0 0
    %139 = vmatprep.mubr.bf16.mxu0 0
    %140 = vmatmul.mubr.bf16.gmra.mrb[0].mxu0 %v105
    %v141 = vpop.f32.mrb[0].mxu0
    %v142 = vadd.f32 0.0, %v141
    %v143 = vpop.f32.mrb[0].mxu0
    %v144 = vpop.f32.mrb[0].mxu0
    %v145 = vadd.f32 0.0, %v144
    %v146 = vpop.f32.mrb[0].mxu0
    %147 = vdwg.mxu0
    %v148 = vadd.f32 %v37, %v142
    %v149 = vadd.f32 %v38, %v145
    %v150 = vpack.c.bf16 %v145, %v142
    %151 = vmatprep.subr.bf16.mxu0 0
    %152 = vmatpush1.bf16.msra.mxu0 %v150
    %153 = vmatprep.subr.bf16.mxu0 0
    %154 = vmatpush1.bf16.msra.mxu0 0
    %155 = vmatprep.subr.bf16.mxu0 0
    %156 = vmatpush1.bf16.msra.mxu0 0
    %157 = vmatprep.subr.bf16.mxu0 0
    %158 = vmatpush1.bf16.msra.mxu0 0
    %159 = vmatprep.subr.bf16.mxu0 0
    %160 = vmatpush1.bf16.msra.mxu0 0
    %161 = vmatprep.subr.bf16.mxu0 0
    %162 = vmatpush1.bf16.msra.mxu0 0
    %163 = vmatprep.subr.bf16.mxu0 0
    %164 = vmatpush1.bf16.msra.mxu0 0
    %165 = vmatprep.subr.bf16.mxu0 0
    %166 = vmatpush1.bf16.msra.mxu0 0
    %167 = vmatprep.subr.bf16.mxu0 0
    %168 = vmatpush1.bf16.msra.mxu0 0
    %169 = vmatprep.subr.bf16.mxu0 0
    %170 = vmatpush1.bf16.msra.mxu0 0
    %171 = vmatprep.subr.bf16.mxu0 0
    %172 = vmatpush1.bf16.msra.mxu0 0
    %173 = vmatprep.subr.bf16.mxu0 0
    %174 = vmatpush1.bf16.msra.mxu0 0
    %175 = vmatprep.subr.bf16.mxu0 0
    %176 = vmatpush1.bf16.msra.mxu0 0
    %177 = vmatprep.subr.bf16.mxu0 0
    %178 = vmatpush1.bf16.msra.mxu0 0
    %179 = vmatprep.subr.bf16.mxu0 0
    %180 = vmatpush1.bf16.msra.mxu0 0
    %181 = vmatprep.subr.bf16.mxu0 0
    %182 = vmatpush1.bf16.msra.mxu0 0
    %183 = vmatprep.mubr.bf16.mxu0 0
    %184 = vmatmul.mubr.bf16.gmra.mrb[0].mxu0 %v47
    %v185 = vpop.f32.mrb[0].mxu0
    %v186 = vadd.f32 0.0, %v185
    %v187 = vpop.f32.mrb[0].mxu0
    %v188 = vpop.f32.mrb[0].mxu0
    %v189 = vadd.f32 0.0, %v188
    %v190 = vpop.f32.mrb[0].mxu0
    %191 = vdwg.mxu0
    %v192 = vpack.c.bf16 %v189, %v186
    %v194 = vsel %vm103, %v192, 0
    %196 = vmatprep.subr.bf16.mxu0 0
    %197 = vmatpush1.bf16.msra.mxu0 %v99
    %198 = vmatprep.subr.bf16.mxu0 0
    %199 = vmatpush1.bf16.msra.mxu0 %v100
    %200 = vmatprep.subr.bf16.mxu0 0
    %201 = vmatpush1.bf16.msra.mxu0 0
    %202 = vmatprep.subr.bf16.mxu0 0
    %203 = vmatpush1.bf16.msra.mxu0 0
    %204 = vmatprep.subr.bf16.mxu0 0
    %205 = vmatpush1.bf16.msra.mxu0 0
    %206 = vmatprep.subr.bf16.mxu0 0
    %207 = vmatpush1.bf16.msra.mxu0 0
    %208 = vmatprep.subr.bf16.mxu0 0
    %209 = vmatpush1.bf16.msra.mxu0 0
    %210 = vmatprep.subr.bf16.mxu0 0
    %211 = vmatpush1.bf16.msra.mxu0 0
    %212 = vmatprep.subr.bf16.mxu0 0
    %213 = vmatpush1.bf16.msra.mxu0 0
    %214 = vmatprep.subr.bf16.mxu0 0
    %215 = vmatpush1.bf16.msra.mxu0 0
    %216 = vmatprep.subr.bf16.mxu0 0
    %217 = vmatpush1.bf16.msra.mxu0 0
    %218 = vmatprep.subr.bf16.mxu0 0
    %219 = vmatpush1.bf16.msra.mxu0 0
    %220 = vmatprep.subr.bf16.mxu0 0
    %221 = vmatpush1.bf16.msra.mxu0 0
    %222 = vmatprep.subr.bf16.mxu0 0
    %223 = vmatpush1.bf16.msra.mxu0 0
    %224 = vmatprep.subr.bf16.mxu0 0
    %225 = vmatpush1.bf16.msra.mxu0 0
    %226 = vmatprep.subr.bf16.mxu0 0
    %227 = vmatpush1.bf16.msra.mxu0 0
    %228 = vmatprep.mubr.bf16.mxu0 0
    %229 = vmatmul.mubr.bf16.gmra.mrb[0].mxu0 %v194
    %v230 = vpop.f32.mrb[0].mxu0
    %v231 = vadd.f32 0.0, %v230
    %v232 = vpop.f32.mrb[0].mxu0
    %v233 = vpop.f32.mrb[0].mxu0
    %v234 = vadd.f32 0.0, %v233
    %v235 = vpop.f32.mrb[0].mxu0
    %236 = vdwg.mxu0
    %v237 = vadd.f32 %v148, %v231
    %v238 = vadd.f32 %v149, %v234
    %v239 = vpack.c.bf16 %v234, %v231
    %240 = vmatprep.subr.bf16.mxu0 0
    %241 = vmatpush1.bf16.msra.mxu0 %v239
    %242 = vmatprep.subr.bf16.mxu0 0
    %243 = vmatpush1.bf16.msra.mxu0 0
    %244 = vmatprep.subr.bf16.mxu0 0
    %245 = vmatpush1.bf16.msra.mxu0 0
    %246 = vmatprep.subr.bf16.mxu0 0
    %247 = vmatpush1.bf16.msra.mxu0 0
    %248 = vmatprep.subr.bf16.mxu0 0
    %249 = vmatpush1.bf16.msra.mxu0 0
    %250 = vmatprep.subr.bf16.mxu0 0
    %251 = vmatpush1.bf16.msra.mxu0 0
    %252 = vmatprep.subr.bf16.mxu0 0
    %253 = vmatpush1.bf16.msra.mxu0 0
    %254 = vmatprep.subr.bf16.mxu0 0
    %255 = vmatpush1.bf16.msra.mxu0 0
    %256 = vmatprep.subr.bf16.mxu0 0
    %257 = vmatpush1.bf16.msra.mxu0 0
    %258 = vmatprep.subr.bf16.mxu0 0
    %259 = vmatpush1.bf16.msra.mxu0 0
    %260 = vmatprep.subr.bf16.mxu0 0
    %261 = vmatpush1.bf16.msra.mxu0 0
    %262 = vmatprep.subr.bf16.mxu0 0
    %263 = vmatpush1.bf16.msra.mxu0 0
    %264 = vmatprep.subr.bf16.mxu0 0
    %265 = vmatpush1.bf16.msra.mxu0 0
    %266 = vmatprep.subr.bf16.mxu0 0
    %267 = vmatpush1.bf16.msra.mxu0 0
    %268 = vmatprep.subr.bf16.mxu0 0
    %269 = vmatpush1.bf16.msra.mxu0 0
    %270 = vmatprep.subr.bf16.mxu0 0
    %271 = vmatpush1.bf16.msra.mxu0 0
    %272 = vmatprep.mubr.bf16.mxu0 0
    %273 = vmatmul.mubr.bf16.gmra.mrb[0].mxu0 %v47
    %v274 = vpop.f32.mrb[0].mxu0
    %v275 = vadd.f32 0.0, %v274
    %v276 = vpop.f32.mrb[0].mxu0
    %v277 = vpop.f32.mrb[0].mxu0
    %v278 = vadd.f32 0.0, %v277
    %v279 = vpop.f32.mrb[0].mxu0
    %280 = vdwg.mxu0
    %v281 = vpack.c.bf16 %v278, %v275
    %v283 = vsel %vm103, %v281, 0
    %285 = vmatprep.subr.bf16.mxu0 0
    %286 = vmatpush1.bf16.msra.mxu0 %v99
    %287 = vmatprep.subr.bf16.mxu0 0
    %288 = vmatpush1.bf16.msra.mxu0 %v100
    %289 = vmatprep.subr.bf16.mxu0 0
    %290 = vmatpush1.bf16.msra.mxu0 0
    %291 = vmatprep.subr.bf16.mxu0 0
    %292 = vmatpush1.bf16.msra.mxu0 0
    %293 = vmatprep.subr.bf16.mxu0 0
    %294 = vmatpush1.bf16.msra.mxu0 0
    %295 = vmatprep.subr.bf16.mxu0 0
    %296 = vmatpush1.bf16.msra.mxu0 0
    %297 = vmatprep.subr.bf16.mxu0 0
    %298 = vmatpush1.bf16.msra.mxu0 0
    %299 = vmatprep.subr.bf16.mxu0 0
    %300 = vmatpush1.bf16.msra.mxu0 0
    %301 = vmatprep.subr.bf16.mxu0 0
    %302 = vmatpush1.bf16.msra.mxu0 0
    %303 = vmatprep.subr.bf16.mxu0 0
    %304 = vmatpush1.bf16.msra.mxu0 0
    %305 = vmatprep.subr.bf16.mxu0 0
    %306 = vmatpush1.bf16.msra.mxu0 0
    %307 = vmatprep.subr.bf16.mxu0 0
    %308 = vmatpush1.bf16.msra.mxu0 0
    %309 = vmatprep.subr.bf16.mxu0 0
    %310 = vmatpush1.bf16.msra.mxu0 0
    %311 = vmatprep.subr.bf16.mxu0 0
    %312 = vmatpush1.bf16.msra.mxu0 0
    %313 = vmatprep.subr.bf16.mxu0 0
    %314 = vmatpush1.bf16.msra.mxu0 0
    %315 = vmatprep.subr.bf16.mxu0 0
    %316 = vmatpush1.bf16.msra.mxu0 0
    %317 = vmatprep.mubr.bf16.mxu0 0
    %318 = vmatmul.mubr.bf16.gmra.mrb[0].mxu0 %v283
    %v319 = vpop.f32.mrb[0].mxu0
    %v320 = vadd.f32 0.0, %v319
    %v321 = vpop.f32.mrb[0].mxu0
    %v322 = vpop.f32.mrb[0].mxu0
    %v323 = vadd.f32 0.0, %v322
    %v324 = vpop.f32.mrb[0].mxu0
    %325 = vdwg.mxu0
    %v326 = vadd.f32 %v237, %v320
    %v327 = vadd.f32 %v238, %v323
    %v328 = vpack.c.bf16 %v323, %v320
    %329 = vmatprep.subr.bf16.mxu0 0
    %330 = vmatpush1.bf16.msra.mxu0 %v328
    %331 = vmatprep.subr.bf16.mxu0 0
    %332 = vmatpush1.bf16.msra.mxu0 0
    %333 = vmatprep.subr.bf16.mxu0 0
    %334 = vmatpush1.bf16.msra.mxu0 0
    %335 = vmatprep.subr.bf16.mxu0 0
    %336 = vmatpush1.bf16.msra.mxu0 0
    %337 = vmatprep.subr.bf16.mxu0 0
    %338 = vmatpush1.bf16.msra.mxu0 0
    %339 = vmatprep.subr.bf16.mxu0 0
    %340 = vmatpush1.bf16.msra.mxu0 0
    %341 = vmatprep.subr.bf16.mxu0 0
    %342 = vmatpush1.bf16.msra.mxu0 0
    %343 = vmatprep.subr.bf16.mxu0 0
    %344 = vmatpush1.bf16.msra.mxu0 0
    %345 = vmatprep.subr.bf16.mxu0 0
    %346 = vmatpush1.bf16.msra.mxu0 0
    %347 = vmatprep.subr.bf16.mxu0 0
    %348 = vmatpush1.bf16.msra.mxu0 0
    %349 = vmatprep.subr.bf16.mxu0 0
    %350 = vmatpush1.bf16.msra.mxu0 0
    %351 = vmatprep.subr.bf16.mxu0 0
    %352 = vmatpush1.bf16.msra.mxu0 0
    %353 = vmatprep.subr.bf16.mxu0 0
    %354 = vmatpush1.bf16.msra.mxu0 0
    %355 = vmatprep.subr.bf16.mxu0 0
    %356 = vmatpush1.bf16.msra.mxu0 0
    %357 = vmatprep.subr.bf16.mxu0 0
    %358 = vmatpush1.bf16.msra.mxu0 0
    %359 = vmatprep.subr.bf16.mxu0 0
    %360 = vmatpush1.bf16.msra.mxu0 0
    %361 = vmatprep.mubr.bf16.mxu0 0
    %362 = vmatmul.mubr.bf16.gmra.mrb[0].mxu0 %v47
    %v363 = vpop.f32.mrb[0].mxu0
    %v364 = vadd.f32 0.0, %v363
    %v365 = vpop.f32.mrb[0].mxu0
    %v366 = vpop.f32.mrb[0].mxu0
    %v367 = vadd.f32 0.0, %v366
    %v368 = vpop.f32.mrb[0].mxu0
    %369 = vdwg.mxu0
    %v370 = vpack.c.bf16 %v367, %v364
    %v372 = vsel %vm103, %v370, 0
    %374 = vmatprep.subr.bf16.mxu0 0
    %375 = vmatpush1.bf16.msra.mxu0 %v99
    %376 = vmatprep.subr.bf16.mxu0 0
    %377 = vmatpush1.bf16.msra.mxu0 %v100
    %378 = vmatprep.subr.bf16.mxu0 0
    %379 = vmatpush1.bf16.msra.mxu0 0
    %380 = vmatprep.subr.bf16.mxu0 0
    %381 = vmatpush1.bf16.msra.mxu0 0
    %382 = vmatprep.subr.bf16.mxu0 0
    %383 = vmatpush1.bf16.msra.mxu0 0
    %384 = vmatprep.subr.bf16.mxu0 0
    %385 = vmatpush1.bf16.msra.mxu0 0
    %386 = vmatprep.subr.bf16.mxu0 0
    %387 = vmatpush1.bf16.msra.mxu0 0
    %388 = vmatprep.subr.bf16.mxu0 0
    %389 = vmatpush1.bf16.msra.mxu0 0
    %390 = vmatprep.subr.bf16.mxu0 0
    %391 = vmatpush1.bf16.msra.mxu0 0
    %392 = vmatprep.subr.bf16.mxu0 0
    %393 = vmatpush1.bf16.msra.mxu0 0
    %394 = vmatprep.subr.bf16.mxu0 0
    %395 = vmatpush1.bf16.msra.mxu0 0
    %396 = vmatprep.subr.bf16.mxu0 0
    %397 = vmatpush1.bf16.msra.mxu0 0
    %398 = vmatprep.subr.bf16.mxu0 0
    %399 = vmatpush1.bf16.msra.mxu0 0
    %400 = vmatprep.subr.bf16.mxu0 0
    %401 = vmatpush1.bf16.msra.mxu0 0
    %402 = vmatprep.subr.bf16.mxu0 0
    %403 = vmatpush1.bf16.msra.mxu0 0
    %404 = vmatprep.subr.bf16.mxu0 0
    %405 = vmatpush1.bf16.msra.mxu0 0
    %406 = vmatprep.mubr.bf16.mxu0 0
    %407 = vmatmul.mubr.bf16.gmra.mrb[0].mxu0 %v372
    %v408 = vpop.f32.mrb[0].mxu0
    %v409 = vadd.f32 0.0, %v408
    %v410 = vpop.f32.mrb[0].mxu0
    %v411 = vpop.f32.mrb[0].mxu0
    %v412 = vadd.f32 0.0, %v411
    %v413 = vpop.f32.mrb[0].mxu0
    %414 = vdwg.mxu0
    %v415 = vadd.f32 %v326, %v409
    %v416 = vadd.f32 %v327, %v412
    %v417 = vpack.c.bf16 %v412, %v409
    %418 = vmatprep.subr.bf16.mxu0 0
    %419 = vmatpush1.bf16.msra.mxu0 %v417
    %420 = vmatprep.subr.bf16.mxu0 0
    %421 = vmatpush1.bf16.msra.mxu0 0
    %422 = vmatprep.subr.bf16.mxu0 0
    %423 = vmatpush1.bf16.msra.mxu0 0
    %424 = vmatprep.subr.bf16.mxu0 0
    %425 = vmatpush1.bf16.msra.mxu0 0
    %426 = vmatprep.subr.bf16.mxu0 0
    %427 = vmatpush1.bf16.msra.mxu0 0
    %428 = vmatprep.subr.bf16.mxu0 0
    %429 = vmatpush1.bf16.msra.mxu0 0
    %430 = vmatprep.subr.bf16.mxu0 0
    %431 = vmatpush1.bf16.msra.mxu0 0
    %432 = vmatprep.subr.bf16.mxu0 0
    %433 = vmatpush1.bf16.msra.mxu0 0
    %434 = vmatprep.subr.bf16.mxu0 0
    %435 = vmatpush1.bf16.msra.mxu0 0
    %436 = vmatprep.subr.bf16.mxu0 0
    %437 = vmatpush1.bf16.msra.mxu0 0
    %438 = vmatprep.subr.bf16.mxu0 0
    %439 = vmatpush1.bf16.msra.mxu0 0
    %440 = vmatprep.subr.bf16.mxu0 0
    %441 = vmatpush1.bf16.msra.mxu0 0
    %442 = vmatprep.subr.bf16.mxu0 0
    %443 = vmatpush1.bf16.msra.mxu0 0
    %444 = vmatprep.subr.bf16.mxu0 0
    %445 = vmatpush1.bf16.msra.mxu0 0
    %446 = vmatprep.subr.bf16.mxu0 0
    %447 = vmatpush1.bf16.msra.mxu0 0
    %448 = vmatprep.subr.bf16.mxu0 0
    %449 = vmatpush1.bf16.msra.mxu0 0
    %450 = vmatprep.mubr.bf16.mxu0 0
    %451 = vmatmul.mubr.bf16.gmra.mrb[0].mxu0 %v47
    %v452 = vpop.f32.mrb[0].mxu0
    %v453 = vadd.f32 0.0, %v452
    %v454 = vpop.f32.mrb[0].mxu0
    %v455 = vpop.f32.mrb[0].mxu0
    %v456 = vadd.f32 0.0, %v455
    %v457 = vpop.f32.mrb[0].mxu0
    %458 = vdwg.mxu0
    %v459 = vpack.c.bf16 %v456, %v453
    %v461 = vsel %vm103, %v459, 0
    %463 = vmatprep.subr.bf16.mxu0 0
    %464 = vmatpush1.bf16.msra.mxu0 %v99
    %465 = vmatprep.subr.bf16.mxu0 0
    %466 = vmatpush1.bf16.msra.mxu0 %v100
    %467 = vmatprep.subr.bf16.mxu0 0
    %468 = vmatpush1.bf16.msra.mxu0 0
    %469 = vmatprep.subr.bf16.mxu0 0
    %470 = vmatpush1.bf16.msra.mxu0 0
    %471 = vmatprep.subr.bf16.mxu0 0
    %472 = vmatpush1.bf16.msra.mxu0 0
    %473 = vmatprep.subr.bf16.mxu0 0
    %474 = vmatpush1.bf16.msra.mxu0 0
    %475 = vmatprep.subr.bf16.mxu0 0
    %476 = vmatpush1.bf16.msra.mxu0 0
    %477 = vmatprep.subr.bf16.mxu0 0
    %478 = vmatpush1.bf16.msra.mxu0 0
    %479 = vmatprep.subr.bf16.mxu0 0
    %480 = vmatpush1.bf16.msra.mxu0 0
    %481 = vmatprep.subr.bf16.mxu0 0
    %482 = vmatpush1.bf16.msra.mxu0 0
    %483 = vmatprep.subr.bf16.mxu0 0
    %484 = vmatpush1.bf16.msra.mxu0 0
    %485 = vmatprep.subr.bf16.mxu0 0
    %486 = vmatpush1.bf16.msra.mxu0 0
    %487 = vmatprep.subr.bf16.mxu0 0
    %488 = vmatpush1.bf16.msra.mxu0 0
    %489 = vmatprep.subr.bf16.mxu0 0
    %490 = vmatpush1.bf16.msra.mxu0 0
    %491 = vmatprep.subr.bf16.mxu0 0
    %492 = vmatpush1.bf16.msra.mxu0 0
    %493 = vmatprep.subr.bf16.mxu0 0
    %494 = vmatpush1.bf16.msra.mxu0 0
    %495 = vmatprep.mubr.bf16.mxu0 0
    %496 = vmatmul.mubr.bf16.gmra.mrb[0].mxu0 %v461
    %v497 = vpop.f32.mrb[0].mxu0
    %v498 = vadd.f32 0.0, %v497
    %v499 = vpop.f32.mrb[0].mxu0
    %v500 = vpop.f32.mrb[0].mxu0
    %v501 = vadd.f32 0.0, %v500
    %v502 = vpop.f32.mrb[0].mxu0
    %503 = vdwg.mxu0
    %v504 = vadd.f32 %v415, %v498
    %v505 = vadd.f32 %v416, %v501
    %v506 = vpack.c.bf16 %v501, %v498
    %507 = vmatprep.subr.bf16.mxu0 0
    %508 = vmatpush1.bf16.msra.mxu0 %v506
    %509 = vmatprep.subr.bf16.mxu0 0
    %510 = vmatpush1.bf16.msra.mxu0 0
    %511 = vmatprep.subr.bf16.mxu0 0
    %512 = vmatpush1.bf16.msra.mxu0 0
    %513 = vmatprep.subr.bf16.mxu0 0
    %514 = vmatpush1.bf16.msra.mxu0 0
    %515 = vmatprep.subr.bf16.mxu0 0
    %516 = vmatpush1.bf16.msra.mxu0 0
    %517 = vmatprep.subr.bf16.mxu0 0
    %518 = vmatpush1.bf16.msra.mxu0 0
    %519 = vmatprep.subr.bf16.mxu0 0
    %520 = vmatpush1.bf16.msra.mxu0 0
    %521 = vmatprep.subr.bf16.mxu0 0
    %522 = vmatpush1.bf16.msra.mxu0 0
    %523 = vmatprep.subr.bf16.mxu0 0
    %524 = vmatpush1.bf16.msra.mxu0 0
    %525 = vmatprep.subr.bf16.mxu0 0
    %526 = vmatpush1.bf16.msra.mxu0 0
    %527 = vmatprep.subr.bf16.mxu0 0
    %528 = vmatpush1.bf16.msra.mxu0 0
    %529 = vmatprep.subr.bf16.mxu0 0
    %530 = vmatpush1.bf16.msra.mxu0 0
    %531 = vmatprep.subr.bf16.mxu0 0
    %532 = vmatpush1.bf16.msra.mxu0 0
    %533 = vmatprep.subr.bf16.mxu0 0
    %534 = vmatpush1.bf16.msra.mxu0 0
    %535 = vmatprep.subr.bf16.mxu0 0
    %536 = vmatpush1.bf16.msra.mxu0 0
    %537 = vmatprep.subr.bf16.mxu0 0
    %538 = vmatpush1.bf16.msra.mxu0 0
    %539 = vmatprep.mubr.bf16.mxu0 0
    %540 = vmatmul.mubr.bf16.gmra.mrb[0].mxu0 %v47
    %v541 = vpop.f32.mrb[0].mxu0
    %v542 = vadd.f32 0.0, %v541
    %v543 = vpop.f32.mrb[0].mxu0
    %v544 = vpop.f32.mrb[0].mxu0
    %v545 = vadd.f32 0.0, %v544
    %v546 = vpop.f32.mrb[0].mxu0
    %547 = vdwg.mxu0
    %v548 = vpack.c.bf16 %v545, %v542
    %v550 = vsel %vm103, %v548, 0
    %552 = vmatprep.subr.bf16.mxu0 0
    %553 = vmatpush1.bf16.msra.mxu0 %v99
    %554 = vmatprep.subr.bf16.mxu0 0
    %555 = vmatpush1.bf16.msra.mxu0 %v100
    %556 = vmatprep.subr.bf16.mxu0 0
    %557 = vmatpush1.bf16.msra.mxu0 0
    %558 = vmatprep.subr.bf16.mxu0 0
    %559 = vmatpush1.bf16.msra.mxu0 0
    %560 = vmatprep.subr.bf16.mxu0 0
    %561 = vmatpush1.bf16.msra.mxu0 0
    %562 = vmatprep.subr.bf16.mxu0 0
    %563 = vmatpush1.bf16.msra.mxu0 0
    %564 = vmatprep.subr.bf16.mxu0 0
    %565 = vmatpush1.bf16.msra.mxu0 0
    %566 = vmatprep.subr.bf16.mxu0 0
    %567 = vmatpush1.bf16.msra.mxu0 0
    %568 = vmatprep.subr.bf16.mxu0 0
    %569 = vmatpush1.bf16.msra.mxu0 0
    %570 = vmatprep.subr.bf16.mxu0 0
    %571 = vmatpush1.bf16.msra.mxu0 0
    %572 = vmatprep.subr.bf16.mxu0 0
    %573 = vmatpush1.bf16.msra.mxu0 0
    %574 = vmatprep.subr.bf16.mxu0 0
    %575 = vmatpush1.bf16.msra.mxu0 0
    %576 = vmatprep.subr.bf16.mxu0 0
    %577 = vmatpush1.bf16.msra.mxu0 0
    %578 = vmatprep.subr.bf16.mxu0 0
    %579 = vmatpush1.bf16.msra.mxu0 0
    %580 = vmatprep.subr.bf16.mxu0 0
    %581 = vmatpush1.bf16.msra.mxu0 0
    %582 = vmatprep.subr.bf16.mxu0 0
    %583 = vmatpush1.bf16.msra.mxu0 0
    %584 = vmatprep.mubr.bf16.mxu0 0
    %585 = vmatmul.mubr.bf16.gmra.mrb[0].mxu0 %v550
    %v586 = vpop.f32.mrb[0].mxu0
    %v587 = vadd.f32 0.0, %v586
    %v588 = vpop.f32.mrb[0].mxu0
    %v589 = vpop.f32.mrb[0].mxu0
    %v590 = vadd.f32 0.0, %v589
    %v591 = vpop.f32.mrb[0].mxu0
    %592 = vdwg.mxu0
    %v593 = vadd.f32 %v504, %v587
    %v594 = vadd.f32 %v505, %v590
    %v595 = vpack.c.bf16 %v590, %v587
    %596 = vmatprep.subr.bf16.mxu0 0
    %597 = vmatpush1.bf16.msra.mxu0 %v595
    %598 = vmatprep.subr.bf16.mxu0 0
    %599 = vmatpush1.bf16.msra.mxu0 0
    %600 = vmatprep.subr.bf16.mxu0 0
    %601 = vmatpush1.bf16.msra.mxu0 0
    %602 = vmatprep.subr.bf16.mxu0 0
    %603 = vmatpush1.bf16.msra.mxu0 0
    %604 = vmatprep.subr.bf16.mxu0 0
    %605 = vmatpush1.bf16.msra.mxu0 0
    %606 = vmatprep.subr.bf16.mxu0 0
    %607 = vmatpush1.bf16.msra.mxu0 0
    %608 = vmatprep.subr.bf16.mxu0 0
    %609 = vmatpush1.bf16.msra.mxu0 0
    %610 = vmatprep.subr.bf16.mxu0 0
    %611 = vmatpush1.bf16.msra.mxu0 0
    %612 = vmatprep.subr.bf16.mxu0 0
    %613 = vmatpush1.bf16.msra.mxu0 0
    %614 = vmatprep.subr.bf16.mxu0 0
    %615 = vmatpush1.bf16.msra.mxu0 0
    %616 = vmatprep.subr.bf16.mxu0 0
    %617 = vmatpush1.bf16.msra.mxu0 0
    %618 = vmatprep.subr.bf16.mxu0 0
    %619 = vmatpush1.bf16.msra.mxu0 0
    %620 = vmatprep.subr.bf16.mxu0 0
    %621 = vmatpush1.bf16.msra.mxu0 0
    %622 = vmatprep.subr.bf16.mxu0 0
    %623 = vmatpush1.bf16.msra.mxu0 0
    %624 = vmatprep.subr.bf16.mxu0 0
    %625 = vmatpush1.bf16.msra.mxu0 0
    %626 = vmatprep.subr.bf16.mxu0 0
    %627 = vmatpush1.bf16.msra.mxu0 0
    %628 = vmatprep.mubr.bf16.mxu0 0
    %629 = vmatmul.mubr.bf16.gmra.mrb[0].mxu0 %v47
    %v630 = vpop.f32.mrb[0].mxu0
    %v631 = vadd.f32 0.0, %v630
    %v632 = vpop.f32.mrb[0].mxu0
    %v633 = vpop.f32.mrb[0].mxu0
    %v634 = vadd.f32 0.0, %v633
    %v635 = vpop.f32.mrb[0].mxu0
    %636 = vdwg.mxu0
    %v637 = vpack.c.bf16 %v634, %v631
    %v639 = vsel %vm103, %v637, 0
    %641 = vmatprep.subr.bf16.mxu0 0
    %642 = vmatpush1.bf16.msra.mxu0 %v99
    %643 = vmatprep.subr.bf16.mxu0 0
    %644 = vmatpush1.bf16.msra.mxu0 %v100
    %645 = vmatprep.subr.bf16.mxu0 0
    %646 = vmatpush1.bf16.msra.mxu0 0
    %647 = vmatprep.subr.bf16.mxu0 0
    %648 = vmatpush1.bf16.msra.mxu0 0
    %649 = vmatprep.subr.bf16.mxu0 0
    %650 = vmatpush1.bf16.msra.mxu0 0
    %651 = vmatprep.subr.bf16.mxu0 0
    %652 = vmatpush1.bf16.msra.mxu0 0
    %653 = vmatprep.subr.bf16.mxu0 0
    %654 = vmatpush1.bf16.msra.mxu0 0
    %655 = vmatprep.subr.bf16.mxu0 0
    %656 = vmatpush1.bf16.msra.mxu0 0
    %657 = vmatprep.subr.bf16.mxu0 0
    %658 = vmatpush1.bf16.msra.mxu0 0
    %659 = vmatprep.subr.bf16.mxu0 0
    %660 = vmatpush1.bf16.msra.mxu0 0
    %661 = vmatprep.subr.bf16.mxu0 0
    %662 = vmatpush1.bf16.msra.mxu0 0
    %663 = vmatprep.subr.bf16.mxu0 0
    %664 = vmatpush1.bf16.msra.mxu0 0
    %665 = vmatprep.subr.bf16.mxu0 0
    %666 = vmatpush1.bf16.msra.mxu0 0
    %667 = vmatprep.subr.bf16.mxu0 0
    %668 = vmatpush1.bf16.msra.mxu0 0
    %669 = vmatprep.subr.bf16.mxu0 0
    %670 = vmatpush1.bf16.msra.mxu0 0
    %671 = vmatprep.subr.bf16.mxu0 0
    %672 = vmatpush1.bf16.msra.mxu0 0
    %673 = vmatprep.mubr.bf16.mxu0 0
    %674 = vmatmul.mubr.bf16.gmra.mrb[0].mxu0 %v639
    %v675 = vpop.f32.mrb[0].mxu0
    %v676 = vadd.f32 0.0, %v675
    %v677 = vpop.f32.mrb[0].mxu0
    %v678 = vpop.f32.mrb[0].mxu0
    %v679 = vadd.f32 0.0, %v678
    %v680 = vpop.f32.mrb[0].mxu0
    %681 = vdwg.mxu0
    %v682 = vadd.f32 %v593, %v676
    %v683 = vadd.f32 %v594, %v679
    %v684 = vpack.c.bf16 %v679, %v676
    %685 = vmatprep.subr.bf16.mxu0 0
    %686 = vmatpush1.bf16.msra.mxu0 %v684
    %687 = vmatprep.subr.bf16.mxu0 0
    %688 = vmatpush1.bf16.msra.mxu0 0
    %689 = vmatprep.subr.bf16.mxu0 0
    %690 = vmatpush1.bf16.msra.mxu0 0
    %691 = vmatprep.subr.bf16.mxu0 0
    %692 = vmatpush1.bf16.msra.mxu0 0
    %693 = vmatprep.subr.bf16.mxu0 0
    %694 = vmatpush1.bf16.msra.mxu0 0
    %695 = vmatprep.subr.bf16.mxu0 0
    %696 = vmatpush1.bf16.msra.mxu0 0
    %697 = vmatprep.subr.bf16.mxu0 0
    %698 = vmatpush1.bf16.msra.mxu0 0
    %699 = vmatprep.subr.bf16.mxu0 0
    %700 = vmatpush1.bf16.msra.mxu0 0
    %701 = vmatprep.subr.bf16.mxu0 0
    %702 = vmatpush1.bf16.msra.mxu0 0
    %703 = vmatprep.subr.bf16.mxu0 0
    %704 = vmatpush1.bf16.msra.mxu0 0
    %705 = vmatprep.subr.bf16.mxu0 0
    %706 = vmatpush1.bf16.msra.mxu0 0
    %707 = vmatprep.subr.bf16.mxu0 0
    %708 = vmatpush1.bf16.msra.mxu0 0
    %709 = vmatprep.subr.bf16.mxu0 0
    %710 = vmatpush1.bf16.msra.mxu0 0
    %711 = vmatprep.subr.bf16.mxu0 0
    %712 = vmatpush1.bf16.msra.mxu0 0
    %713 = vmatprep.subr.bf16.mxu0 0
    %714 = vmatpush1.bf16.msra.mxu0 0
    %715 = vmatprep.subr.bf16.mxu0 0
    %716 = vmatpush1.bf16.msra.mxu0 0
    %717 = vmatprep.mubr.bf16.mxu0 0
    %718 = vmatmul.mubr.bf16.gmra.mrb[0].mxu0 %v47
    %v719 = vpop.f32.mrb[0].mxu0
    %v720 = vadd.f32 0.0, %v719
    %v721 = vpop.f32.mrb[0].mxu0
    %v722 = vpop.f32.mrb[0].mxu0
    %v723 = vadd.f32 0.0, %v722
    %v724 = vpop.f32.mrb[0].mxu0
    %725 = vdwg.mxu0
    %v726 = vpack.c.bf16 %v723, %v720
    %v728 = vsel %vm103, %v726, 0
    %730 = vmatprep.subr.bf16.mxu0 0
    %731 = vmatpush1.bf16.msra.mxu0 %v99
    %732 = vmatprep.subr.bf16.mxu0 0
    %733 = vmatpush1.bf16.msra.mxu0 %v100
    %734 = vmatprep.subr.bf16.mxu0 0
    %735 = vmatpush1.bf16.msra.mxu0 0
    %736 = vmatprep.subr.bf16.mxu0 0
    %737 = vmatpush1.bf16.msra.mxu0 0
    %738 = vmatprep.subr.bf16.mxu0 0
    %739 = vmatpush1.bf16.msra.mxu0 0
    %740 = vmatprep.subr.bf16.mxu0 0
    %741 = vmatpush1.bf16.msra.mxu0 0
    %742 = vmatprep.subr.bf16.mxu0 0
    %743 = vmatpush1.bf16.msra.mxu0 0
    %744 = vmatprep.subr.bf16.mxu0 0
    %745 = vmatpush1.bf16.msra.mxu0 0
    %746 = vmatprep.subr.bf16.mxu0 0
    %747 = vmatpush1.bf16.msra.mxu0 0
    %748 = vmatprep.subr.bf16.mxu0 0
    %749 = vmatpush1.bf16.msra.mxu0 0
    %750 = vmatprep.subr.bf16.mxu0 0
    %751 = vmatpush1.bf16.msra.mxu0 0
    %752 = vmatprep.subr.bf16.mxu0 0
    %753 = vmatpush1.bf16.msra.mxu0 0
    %754 = vmatprep.subr.bf16.mxu0 0
    %755 = vmatpush1.bf16.msra.mxu0 0
    %756 = vmatprep.subr.bf16.mxu0 0
    %757 = vmatpush1.bf16.msra.mxu0 0
    %758 = vmatprep.subr.bf16.mxu0 0
    %759 = vmatpush1.bf16.msra.mxu0 0
    %760 = vmatprep.subr.bf16.mxu0 0
    %761 = vmatpush1.bf16.msra.mxu0 0
    %762 = vmatprep.mubr.bf16.mxu0 0
    %763 = vmatmul.mubr.bf16.gmra.mrb[0].mxu0 %v728
    %v764 = vpop.f32.mrb[0].mxu0
    %v765 = vadd.f32 0.0, %v764
    %v766 = vpop.f32.mrb[0].mxu0
    %v767 = vpop.f32.mrb[0].mxu0
    %v768 = vadd.f32 0.0, %v767
    %v769 = vpop.f32.mrb[0].mxu0
    %770 = vdwg.mxu0
    %v771 = vadd.f32 %v682, %v765
    %v772 = vadd.f32 %v683, %v768
    %v773 = vpack.c.bf16 %v768, %v765
    %774 = vmatprep.subr.bf16.mxu0 0
    %775 = vmatpush1.bf16.msra.mxu0 %v773
    %776 = vmatprep.subr.bf16.mxu0 0
    %777 = vmatpush1.bf16.msra.mxu0 0
    %778 = vmatprep.subr.bf16.mxu0 0
    %779 = vmatpush1.bf16.msra.mxu0 0
    %780 = vmatprep.subr.bf16.mxu0 0
    %781 = vmatpush1.bf16.msra.mxu0 0
    %782 = vmatprep.subr.bf16.mxu0 0
    %783 = vmatpush1.bf16.msra.mxu0 0
    %784 = vmatprep.subr.bf16.mxu0 0
    %785 = vmatpush1.bf16.msra.mxu0 0
    %786 = vmatprep.subr.bf16.mxu0 0
    %787 = vmatpush1.bf16.msra.mxu0 0
    %788 = vmatprep.subr.bf16.mxu0 0
    %789 = vmatpush1.bf16.msra.mxu0 0
    %790 = vmatprep.subr.bf16.mxu0 0
    %791 = vmatpush1.bf16.msra.mxu0 0
    %792 = vmatprep.subr.bf16.mxu0 0
    %793 = vmatpush1.bf16.msra.mxu0 0
    %794 = vmatprep.subr.bf16.mxu0 0
    %795 = vmatpush1.bf16.msra.mxu0 0
    %796 = vmatprep.subr.bf16.mxu0 0
    %797 = vmatpush1.bf16.msra.mxu0 0
    %798 = vmatprep.subr.bf16.mxu0 0
    %799 = vmatpush1.bf16.msra.mxu0 0
    %800 = vmatprep.subr.bf16.mxu0 0
    %801 = vmatpush1.bf16.msra.mxu0 0
    %802 = vmatprep.subr.bf16.mxu0 0
    %803 = vmatpush1.bf16.msra.mxu0 0
    %804 = vmatprep.subr.bf16.mxu0 0
    %805 = vmatpush1.bf16.msra.mxu0 0
    %806 = vmatprep.mubr.bf16.mxu0 0
    %807 = vmatmul.mubr.bf16.gmra.mrb[0].mxu0 %v47
    %v808 = vpop.f32.mrb[0].mxu0
    %v809 = vadd.f32 0.0, %v808
    %v810 = vpop.f32.mrb[0].mxu0
    %v811 = vpop.f32.mrb[0].mxu0
    %v812 = vadd.f32 0.0, %v811
    %v813 = vpop.f32.mrb[0].mxu0
    %814 = vdwg.mxu0
    %v815 = vpack.c.bf16 %v812, %v809
    %v817 = vsel %vm103, %v815, 0
    %819 = vmatprep.subr.bf16.mxu0 0
    %820 = vmatpush1.bf16.msra.mxu0 %v99
    %821 = vmatprep.subr.bf16.mxu0 0
    %822 = vmatpush1.bf16.msra.mxu0 %v100
    %823 = vmatprep.subr.bf16.mxu0 0
    %824 = vmatpush1.bf16.msra.mxu0 0
    %825 = vmatprep.subr.bf16.mxu0 0
    %826 = vmatpush1.bf16.msra.mxu0 0
    %827 = vmatprep.subr.bf16.mxu0 0
    %828 = vmatpush1.bf16.msra.mxu0 0
    %829 = vmatprep.subr.bf16.mxu0 0
    %830 = vmatpush1.bf16.msra.mxu0 0
    %831 = vmatprep.subr.bf16.mxu0 0
    %832 = vmatpush1.bf16.msra.mxu0 0
    %833 = vmatprep.subr.bf16.mxu0 0
    %834 = vmatpush1.bf16.msra.mxu0 0
    %835 = vmatprep.subr.bf16.mxu0 0
    %836 = vmatpush1.bf16.msra.mxu0 0
    %837 = vmatprep.subr.bf16.mxu0 0
    %838 = vmatpush1.bf16.msra.mxu0 0
    %839 = vmatprep.subr.bf16.mxu0 0
    %840 = vmatpush1.bf16.msra.mxu0 0
    %841 = vmatprep.subr.bf16.mxu0 0
    %842 = vmatpush1.bf16.msra.mxu0 0
    %843 = vmatprep.subr.bf16.mxu0 0
    %844 = vmatpush1.bf16.msra.mxu0 0
    %845 = vmatprep.subr.bf16.mxu0 0
    %846 = vmatpush1.bf16.msra.mxu0 0
    %847 = vmatprep.subr.bf16.mxu0 0
    %848 = vmatpush1.bf16.msra.mxu0 0
    %849 = vmatprep.subr.bf16.mxu0 0
    %850 = vmatpush1.bf16.msra.mxu0 0
    %851 = vmatprep.mubr.bf16.mxu0 0
    %852 = vmatmul.mubr.bf16.gmra.mrb[0].mxu0 %v817
    %v853 = vpop.f32.mrb[0].mxu0
    %v854 = vadd.f32 0.0, %v853
    %v855 = vpop.f32.mrb[0].mxu0
    %v856 = vpop.f32.mrb[0].mxu0
    %v857 = vadd.f32 0.0, %v856
    %v858 = vpop.f32.mrb[0].mxu0
    %859 = vdwg.mxu0
    %v860 = vadd.f32 %v771, %v854
    %v861 = vadd.f32 %v772, %v857
    %v862 = vpack.c.bf16 %v857, %v854
    %863 = vmatprep.subr.bf16.mxu0 0
    %864 = vmatpush1.bf16.msra.mxu0 %v862
    %865 = vmatprep.subr.bf16.mxu0 0
    %866 = vmatpush1.bf16.msra.mxu0 0
    %867 = vmatprep.subr.bf16.mxu0 0
    %868 = vmatpush1.bf16.msra.mxu0 0
    %869 = vmatprep.subr.bf16.mxu0 0
    %870 = vmatpush1.bf16.msra.mxu0 0
    %871 = vmatprep.subr.bf16.mxu0 0
    %872 = vmatpush1.bf16.msra.mxu0 0
    %873 = vmatprep.subr.bf16.mxu0 0
    %874 = vmatpush1.bf16.msra.mxu0 0
    %875 = vmatprep.subr.bf16.mxu0 0
    %876 = vmatpush1.bf16.msra.mxu0 0
    %877 = vmatprep.subr.bf16.mxu0 0
    %878 = vmatpush1.bf16.msra.mxu0 0
    %879 = vmatprep.subr.bf16.mxu0 0
    %880 = vmatpush1.bf16.msra.mxu0 0
    %881 = vmatprep.subr.bf16.mxu0 0
    %882 = vmatpush1.bf16.msra.mxu0 0
    %883 = vmatprep.subr.bf16.mxu0 0
    %884 = vmatpush1.bf16.msra.mxu0 0
    %885 = vmatprep.subr.bf16.mxu0 0
    %886 = vmatpush1.bf16.msra.mxu0 0
    %887 = vmatprep.subr.bf16.mxu0 0
    %888 = vmatpush1.bf16.msra.mxu0 0
    %889 = vmatprep.subr.bf16.mxu0 0
    %890 = vmatpush1.bf16.msra.mxu0 0
    %891 = vmatprep.subr.bf16.mxu0 0
    %892 = vmatpush1.bf16.msra.mxu0 0
    %893 = vmatprep.subr.bf16.mxu0 0
    %894 = vmatpush1.bf16.msra.mxu0 0
    %895 = vmatprep.mubr.bf16.mxu0 0
    %896 = vmatmul.mubr.bf16.gmra.mrb[0].mxu0 %v47
    %v897 = vpop.f32.mrb[0].mxu0
    %v898 = vadd.f32 0.0, %v897
    %v899 = vpop.f32.mrb[0].mxu0
    %v900 = vpop.f32.mrb[0].mxu0
    %v901 = vadd.f32 0.0, %v900
    %v902 = vpop.f32.mrb[0].mxu0
    %903 = vdwg.mxu0
    %v904 = vpack.c.bf16 %v901, %v898
    %v906 = vsel %vm103, %v904, 0
    %908 = vmatprep.subr.bf16.mxu0 0
    %909 = vmatpush1.bf16.msra.mxu0 %v99
    %910 = vmatprep.subr.bf16.mxu0 0
    %911 = vmatpush1.bf16.msra.mxu0 %v100
    %912 = vmatprep.subr.bf16.mxu0 0
    %913 = vmatpush1.bf16.msra.mxu0 0
    %914 = vmatprep.subr.bf16.mxu0 0
    %915 = vmatpush1.bf16.msra.mxu0 0
    %916 = vmatprep.subr.bf16.mxu0 0
    %917 = vmatpush1.bf16.msra.mxu0 0
    %918 = vmatprep.subr.bf16.mxu0 0
    %919 = vmatpush1.bf16.msra.mxu0 0
    %920 = vmatprep.subr.bf16.mxu0 0
    %921 = vmatpush1.bf16.msra.mxu0 0
    %922 = vmatprep.subr.bf16.mxu0 0
    %923 = vmatpush1.bf16.msra.mxu0 0
    %924 = vmatprep.subr.bf16.mxu0 0
    %925 = vmatpush1.bf16.msra.mxu0 0
    %926 = vmatprep.subr.bf16.mxu0 0
    %927 = vmatpush1.bf16.msra.mxu0 0
    %928 = vmatprep.subr.bf16.mxu0 0
    %929 = vmatpush1.bf16.msra.mxu0 0
    %930 = vmatprep.subr.bf16.mxu0 0
    %931 = vmatpush1.bf16.msra.mxu0 0
    %932 = vmatprep.subr.bf16.mxu0 0
    %933 = vmatpush1.bf16.msra.mxu0 0
    %934 = vmatprep.subr.bf16.mxu0 0
    %935 = vmatpush1.bf16.msra.mxu0 0
    %936 = vmatprep.subr.bf16.mxu0 0
    %937 = vmatpush1.bf16.msra.mxu0 0
    %938 = vmatprep.subr.bf16.mxu0 0
    %939 = vmatpush1.bf16.msra.mxu0 0
    %940 = vmatprep.mubr.bf16.mxu0 0
    %941 = vmatmul.mubr.bf16.gmra.mrb[0].mxu0 %v906
    %v942 = vpop.f32.mrb[0].mxu0
    %v943 = vadd.f32 0.0, %v942
    %v944 = vpop.f32.mrb[0].mxu0
    %v945 = vpop.f32.mrb[0].mxu0
    %v946 = vadd.f32 0.0, %v945
    %v947 = vpop.f32.mrb[0].mxu0
    %948 = vdwg.mxu0
    %v949 = vadd.f32 %v860, %v943
    %v950 = vadd.f32 %v861, %v946
    %v951 = vmul.f32 %v949, 0.5
    %v952 = vmul.f32 %v950, 0.5
    %v953 = vmul.f32 %v951, 2.0
    %v954 = vmul.f32 %v952, 2.0
    %v955 = vsub.f32 %v953, %v35
    %v956 = vsub.f32 %v954, %v36
    %v957 = vmax.f32 %v955, 0.0
    %v958 = vmax.f32 %v956, 0.0
  $region18: #{porous_mignn_forward.20} parent=0 // loop_footer
    %s28 = sadd.s32 1, %s24
  $region19: #{porous_mignn_forward.20} parent=0 // loop_footer_branch
    %23 = sbr.rel target = $region15
  $region20: #{porous_mignn_forward.20} parent=0 // loop_exit
    _
  %vm959 = vcmask 261120
  %960 = vst.msk [vmem:[%s3] sm:$0xff] %vm959, %v29
  %961 = vst.msk [vmem:[%s3 + $0x8] sm:$0xff] %vm959, %v30
  // Predicated region
  $region21: #{porous_mignn_forward.20} parent=0 // pred_check
    _
  $region22: #{porous_mignn_forward.20} parent=0 // pred_check_branch
    %963 = sbr.rel (0) target = $region24
  $region23: #{porous_mignn_forward.20} parent=0 // pred_region
    _
  $region24: #{porous_mignn_forward.20} parent=0 // pred_fallthru
    _
  // Predicated region
  $region25: #{porous_mignn_forward.20} parent=0 // pred_check
    _
  $region26: #{porous_mignn_forward.20} parent=0 // pred_check_branch
    %965 = sbr.rel (0) target = $region28
  $region27: #{porous_mignn_forward.20} parent=0 // pred_region
    _
  $region28: #{porous_mignn_forward.20} parent=0 // pred_fallthru
    _

// kernel: porous_mignn_forward.21
$region0: #{porous_mignn_forward.21}
  #allocation0 [shape = 'u32[]', space=smem, size = 0x4, offset = 0x4, fixed_abs, tag = 'smem constant byte address 0x4 - core index']
  #allocation1 [shape = 'u32[144,128]{1,0:T(1,128)}', space=vmem, size = 0x12000, scoped, tag = 'internal scratch']
  #allocation2 [shape = 'f32[1,1]{1,0:T(1,128)S(1)}', space=vmem, size = 0x200, scoped, tag = 'scoped memory for porous_mignn_forward.21']
  %s0 = inlined_call_operand.vmem [shape: f32[16,32], index: 0, kind: input, shape index: {}]
  %s1 = inlined_call_operand.vmem [shape: f32[32,64], index: 1, kind: input, shape index: {}]
  %s2 = inlined_call_operand.vmem [shape: f32[1,64], index: 2, kind: input, shape index: {}]
  %s3 = inlined_call_operand.vmem [shape: f32[64,32], index: 3, kind: input, shape index: {}]
  %s4 = inlined_call_operand.vmem [shape: f32[1,32], index: 4, kind: input, shape index: {}]
  %s5 = inlined_call_operand.vmem [shape: f32[32,1], index: 5, kind: input, shape index: {}]
  %s6 = inlined_call_operand.<no memory space> [shape: f32[1,1], index: 6, kind: input, shape index: {}]
  %s7 = inlined_call_operand.vmem [shape: f32[16,1], index: 7, kind: output, shape index: {}]
  %s8 = sld [smem:[#allocation0]]
  $region38: #{porous_mignn_forward.21} parent=0
    _
  %s10 = ssub.s32 1, %s8
  %s11 = scalar_select 0, %s10, %s8
  %v12 = vstv %s6
  %13 = vst [vmem:[#allocation2] sm:$0x1] %v12
  // Predicated region
  $region2: #{porous_mignn_forward.21} parent=0 // pred_check
    _
  $region3: #{porous_mignn_forward.21} parent=0 // pred_check_branch
    %15 = sbr.rel (0) target = $region5
  $region4: #{porous_mignn_forward.21} parent=0 // pred_region
    _
  $region5: #{porous_mignn_forward.21} parent=0 // pred_fallthru
    _
  // Predicated region
  $region6: #{porous_mignn_forward.21} parent=0 // pred_check
    _
  $region7: #{porous_mignn_forward.21} parent=0 // pred_check_branch
    %17 = sbr.rel (0) target = $region9
  $region8: #{porous_mignn_forward.21} parent=0 // pred_region
    _
  $region9: #{porous_mignn_forward.21} parent=0 // pred_fallthru
    _
  // Predicated region
  $region10: #{porous_mignn_forward.21} parent=0 // pred_check
    _
  $region11: #{porous_mignn_forward.21} parent=0 // pred_check_branch
    %19 = sbr.rel (0) target = $region13
  $region12: #{porous_mignn_forward.21} parent=0 // pred_region
    _
  $region13: #{porous_mignn_forward.21} parent=0 // pred_fallthru
    _
  // Predicated region
  $region14: #{porous_mignn_forward.21} parent=0 // pred_check
    _
  $region15: #{porous_mignn_forward.21} parent=0 // pred_check_branch
    %21 = sbr.rel (0) target = $region17
  $region16: #{porous_mignn_forward.21} parent=0 // pred_region
    _
  $region17: #{porous_mignn_forward.21} parent=0 // pred_fallthru
    _
  // Predicated region
  $region18: #{porous_mignn_forward.21} parent=0 // pred_check
    _
  $region19: #{porous_mignn_forward.21} parent=0 // pred_check_branch
    %23 = sbr.rel (0) target = $region21
  $region20: #{porous_mignn_forward.21} parent=0 // pred_region
    _
  $region21: #{porous_mignn_forward.21} parent=0 // pred_fallthru
    _
  // Predicated region
  $region22: #{porous_mignn_forward.21} parent=0 // pred_check
    _
  $region23: #{porous_mignn_forward.21} parent=0 // pred_check_branch
    %25 = sbr.rel (0) target = $region25
  $region24: #{porous_mignn_forward.21} parent=0 // pred_region
    _
  $region25: #{porous_mignn_forward.21} parent=0 // pred_fallthru
    _
  // Predicated region
  $region26: #{porous_mignn_forward.21} parent=0 // pred_check
    _
  $region27: #{porous_mignn_forward.21} parent=0 // pred_check_branch
    %27 = sbr.rel (0) target = $region29
  $region28: #{porous_mignn_forward.21} parent=0 // pred_region
    _
  $region29: #{porous_mignn_forward.21} parent=0 // pred_fallthru
    _
  %v29 = vld [vmem:[%s0] sm:$0xff]
  %v30 = vld [vmem:[%s0 + $0x8] sm:$0xff]
  %v31 = vld [vmem:[%s1] sm:$0xff]
  %v32 = vld [vmem:[%s1 + $0x8] sm:$0xff]
  %v33 = vld [vmem:[%s1 + $0x10] sm:$0xff]
  %v34 = vld [vmem:[%s1 + $0x18] sm:$0xff]
  %v35 = vld [vmem:[%s2] sm:$0x1]
  %v36 = vpack.c.bf16 %v30, %v29
  %v37 = vpack.c.bf16 %v32, %v31
  %v38 = vpack.c.bf16 %v34, %v33
  %v40 = vlaneseq
  %v41 = vshrl.u32 %v40, 7
  %v42 = vsub.s32 0, %v41
  %v43 = vrot.slane %v35, %v42
  %vm45 = vcmask 261120
  %v47 = vsel %vm45, %v36, 0
  %49 = vmatprep.subr.bf16.mxu0 0
  %50 = vmatpush1.bf16.msra.mxu0 %v37
  %51 = vmatprep.subr.bf16.mxu0 0
  %52 = vmatpush1.bf16.msra.mxu0 %v38
  %53 = vmatprep.subr.bf16.mxu0 0
  %54 = vmatpush1.bf16.msra.mxu0 0
  %55 = vmatprep.subr.bf16.mxu0 0
  %56 = vmatpush1.bf16.msra.mxu0 0
  %57 = vmatprep.subr.bf16.mxu0 0
  %58 = vmatpush1.bf16.msra.mxu0 0
  %59 = vmatprep.subr.bf16.mxu0 0
  %60 = vmatpush1.bf16.msra.mxu0 0
  %61 = vmatprep.subr.bf16.mxu0 0
  %62 = vmatpush1.bf16.msra.mxu0 0
  %63 = vmatprep.subr.bf16.mxu0 0
  %64 = vmatpush1.bf16.msra.mxu0 0
  %65 = vmatprep.subr.bf16.mxu0 0
  %66 = vmatpush1.bf16.msra.mxu0 0
  %67 = vmatprep.subr.bf16.mxu0 0
  %68 = vmatpush1.bf16.msra.mxu0 0
  %69 = vmatprep.subr.bf16.mxu0 0
  %70 = vmatpush1.bf16.msra.mxu0 0
  %71 = vmatprep.subr.bf16.mxu0 0
  %72 = vmatpush1.bf16.msra.mxu0 0
  %73 = vmatprep.subr.bf16.mxu0 0
  %74 = vmatpush1.bf16.msra.mxu0 0
  %75 = vmatprep.subr.bf16.mxu0 0
  %76 = vmatpush1.bf16.msra.mxu0 0
  %77 = vmatprep.subr.bf16.mxu0 0
  %78 = vmatpush1.bf16.msra.mxu0 0
  %79 = vmatprep.subr.bf16.mxu0 0
  %80 = vmatpush1.bf16.msra.mxu0 0
  %81 = vmatprep.mubr.bf16.mxu0 0
  %82 = vmatmul.mubr.bf16.gmra.mrb[0].mxu0 %v47
  %v83 = vpop.f32.mrb[0].mxu0
  %v84 = vadd.f32 %v43, %v83
  %v85 = vpop.f32.mrb[0].mxu0
  %v86 = vpop.f32.mrb[0].mxu0
  %v87 = vadd.f32 %v43, %v86
  %v88 = vpop.f32.mrb[0].mxu0
  %89 = vdwg.mxu0
  %v90 = vmax.f32 %v84, 0.0
  %v91 = vmax.f32 %v87, 0.0
  %v92 = vld [vmem:[%s3] sm:$0xff]
  %v93 = vld [vmem:[%s3 + $0x8] sm:$0xff]
  %v94 = vld [vmem:[%s3 + $0x10] sm:$0xff]
  %v95 = vld [vmem:[%s3 + $0x18] sm:$0xff]
  %v96 = vld [vmem:[%s3 + $0x20] sm:$0xff]
  %v97 = vld [vmem:[%s3 + $0x28] sm:$0xff]
  %v98 = vld [vmem:[%s3 + $0x30] sm:$0xff]
  %v99 = vld [vmem:[%s3 + $0x38] sm:$0xff]
  %v100 = vld [vmem:[%s4] sm:$0x1]
  %v101 = vpack.c.bf16 %v91, %v90
  %v102 = vpack.c.bf16 %v93, %v92
  %v103 = vpack.c.bf16 %v95, %v94
  %v104 = vpack.c.bf16 %v97, %v96
  %v105 = vpack.c.bf16 %v99, %v98
  %v107 = vlaneseq
  %v108 = vshrl.u32 %v107, 7
  %v109 = vsub.s32 0, %v108
  %v110 = vrot.slane %v100, %v109
  %vm112 = vcmask 523264
  %v114 = vsel %vm112, %v101, 0
  %116 = vmatprep.subr.bf16.mxu0 0
  %117 = vmatpush1.bf16.msra.mxu0 %v102
  %118 = vmatprep.subr.bf16.mxu0 0
  %119 = vmatpush1.bf16.msra.mxu0 %v103
  %120 = vmatprep.subr.bf16.mxu0 0
  %121 = vmatpush1.bf16.msra.mxu0 %v104
  %122 = vmatprep.subr.bf16.mxu0 0
  %123 = vmatpush1.bf16.msra.mxu0 %v105
  %124 = vmatprep.subr.bf16.mxu0 0
  %125 = vmatpush1.bf16.msra.mxu0 0
  %126 = vmatprep.subr.bf16.mxu0 0
  %127 = vmatpush1.bf16.msra.mxu0 0
  %128 = vmatprep.subr.bf16.mxu0 0
  %129 = vmatpush1.bf16.msra.mxu0 0
  %130 = vmatprep.subr.bf16.mxu0 0
  %131 = vmatpush1.bf16.msra.mxu0 0
  %132 = vmatprep.subr.bf16.mxu0 0
  %133 = vmatpush1.bf16.msra.mxu0 0
  %134 = vmatprep.subr.bf16.mxu0 0
  %135 = vmatpush1.bf16.msra.mxu0 0
  %136 = vmatprep.subr.bf16.mxu0 0
  %137 = vmatpush1.bf16.msra.mxu0 0
  %138 = vmatprep.subr.bf16.mxu0 0
  %139 = vmatpush1.bf16.msra.mxu0 0
  %140 = vmatprep.subr.bf16.mxu0 0
  %141 = vmatpush1.bf16.msra.mxu0 0
  %142 = vmatprep.subr.bf16.mxu0 0
  %143 = vmatpush1.bf16.msra.mxu0 0
  %144 = vmatprep.subr.bf16.mxu0 0
  %145 = vmatpush1.bf16.msra.mxu0 0
  %146 = vmatprep.subr.bf16.mxu0 0
  %147 = vmatpush1.bf16.msra.mxu0 0
  %148 = vmatprep.mubr.bf16.mxu0 0
  %149 = vmatmul.mubr.bf16.gmra.mrb[0].mxu0 %v114
  %v150 = vpop.f32.mrb[0].mxu0
  %v151 = vadd.f32 %v110, %v150
  %v152 = vpop.f32.mrb[0].mxu0
  %v153 = vpop.f32.mrb[0].mxu0
  %v154 = vadd.f32 %v110, %v153
  %v155 = vpop.f32.mrb[0].mxu0
  %156 = vdwg.mxu0
  %v157 = vmax.f32 %v151, 0.0
  %v158 = vmax.f32 %v154, 0.0
  %v159 = vld [vmem:[%s5] sm:$0xff]
  %v160 = vld [vmem:[%s5 + $0x8] sm:$0xff]
  %v161 = vld [vmem:[%s5 + $0x10] sm:$0xff]
  %v162 = vld [vmem:[%s5 + $0x18] sm:$0xff]
  %v163 = vld [vmem:[#allocation2] sm:$0x1]
  %v164 = vpack.c.bf16 %v158, %v157
  %v165 = vpack.c.bf16 %v160, %v159
  %v166 = vpack.c.bf16 %v162, %v161
  %v168 = vlaneseq
  %v169 = vshrl.u32 %v168, 7
  %v170 = vsub.s32 0, %v169
  %v171 = vrot.slane %v163, %v170
  %v174 = vsel %vm45, %v164, 0
  %176 = vmatprep.subr.bf16.mxu0 0
  %177 = vmatpush1.bf16.msra.mxu0 %v165
  %178 = vmatprep.subr.bf16.mxu0 0
  %179 = vmatpush1.bf16.msra.mxu0 %v166
  %180 = vmatprep.subr.bf16.mxu0 0
  %181 = vmatpush1.bf16.msra.mxu0 0
  %182 = vmatprep.subr.bf16.mxu0 0
  %183 = vmatpush1.bf16.msra.mxu0 0
  %184 = vmatprep.subr.bf16.mxu0 0
  %185 = vmatpush1.bf16.msra.mxu0 0
  %186 = vmatprep.subr.bf16.mxu0 0
  %187 = vmatpush1.bf16.msra.mxu0 0
  %188 = vmatprep.subr.bf16.mxu0 0
  %189 = vmatpush1.bf16.msra.mxu0 0
  %190 = vmatprep.subr.bf16.mxu0 0
  %191 = vmatpush1.bf16.msra.mxu0 0
  %192 = vmatprep.subr.bf16.mxu0 0
  %193 = vmatpush1.bf16.msra.mxu0 0
  %194 = vmatprep.subr.bf16.mxu0 0
  %195 = vmatpush1.bf16.msra.mxu0 0
  %196 = vmatprep.subr.bf16.mxu0 0
  %197 = vmatpush1.bf16.msra.mxu0 0
  %198 = vmatprep.subr.bf16.mxu0 0
  %199 = vmatpush1.bf16.msra.mxu0 0
  %200 = vmatprep.subr.bf16.mxu0 0
  %201 = vmatpush1.bf16.msra.mxu0 0
  %202 = vmatprep.subr.bf16.mxu0 0
  %203 = vmatpush1.bf16.msra.mxu0 0
  %204 = vmatprep.subr.bf16.mxu0 0
  %205 = vmatpush1.bf16.msra.mxu0 0
  %206 = vmatprep.subr.bf16.mxu0 0
  %207 = vmatpush1.bf16.msra.mxu0 0
  %208 = vmatprep.mubr.bf16.mxu0 0
  %209 = vmatmul.mubr.bf16.gmra.mrb[0].mxu0 %v174
  %v210 = vpop.f32.mrb[0].mxu0
  %v211 = vadd.f32 %v171, %v210
  %v212 = vpop.f32.mrb[0].mxu0
  %v213 = vpop.f32.mrb[0].mxu0
  %v214 = vadd.f32 %v171, %v213
  %v215 = vpop.f32.mrb[0].mxu0
  %216 = vdwg.mxu0
  %vm217 = vcmask 7168
  %218 = vst.msk [vmem:[%s7] sm:$0xff] %vm217, %v211
  %219 = vst.msk [vmem:[%s7 + $0x8] sm:$0xff] %vm217, %v214
  // Predicated region
  $region30: #{porous_mignn_forward.21} parent=0 // pred_check
    _
  $region31: #{porous_mignn_forward.21} parent=0 // pred_check_branch
    %221 = sbr.rel (0) target = $region33
  $region32: #{porous_mignn_forward.21} parent=0 // pred_region
    _
  $region33: #{porous_mignn_forward.21} parent=0 // pred_fallthru
    _
  // Predicated region
  $region34: #{porous_mignn_forward.21} parent=0 // pred_check
    _
  $region35: #{porous_mignn_forward.21} parent=0 // pred_check_branch
    %223 = sbr.rel (0) target = $region37
  $region36: #{porous_mignn_forward.21} parent=0 // pred_region
    _
  $region37: #{porous_mignn_forward.21} parent=0 // pred_fallthru
    _

</llo_original>
